<compile_context>
chip_gen: v7x
topology: tpu7x:2x2x1
jax: 0.10.0
libtpu: 0.0.40
codegen_flags: <defaults>
</compile_context>

<pallas_src>
from functools import lru_cache

import numpy as np
import jax
import jax.numpy as jnp
from jax.experimental import pallas as pl
from jax.experimental.pallas import tpu as pltpu

K = 3             # kernel_size (the shifted-tap layout below assumes K == 3)
NEG_SLOPE = 0.01  # nn.LeakyReLU default negative_slope
BN_EPS = 1e-5     # nn.BatchNorm2d default eps
LANES = 128


def _leaky(v):
    return jnp.where(v > 0, v, NEG_SLOPE * v)


def _round_up(x, m):
    return ((x + m - 1) // m) * m


def _full_spec(shape):
    nd = len(shape)
    return pl.BlockSpec(shape, lambda i, _nd=nd: (0,) * _nd)


# ----------------------------- Pallas kernels -----------------------------

def _make_fused_block_kernel(Cin, Cout, WA, WB, OFFH, starts, inv_count):
    """Fused conv_in -> leaky -> BN1 -> {conv1 | shortcut} -> leaky -> add -> BN2.

    Layout: channels on sublanes, flattened padded canvas (n, h, w) on lanes.
    `starts` are the 9 per-tap lane offsets shared by all three 3x3 convolutions.
    """

    def kernel(x_ref, w_in_ref, b_in_ref, g1_ref, be1_ref,
               wf_ref, bf_ref, g2_ref, be2_ref, mask_ref,
               o_ref, xh_ref):
        mask = mask_ref[...]                                       # (1, WA)

        # ---- conv_in as 9 shifted sub-matmuls (in-kernel, no im2col) ----
        s0 = starts[0]
        acc0 = jnp.dot(w_in_ref[0], x_ref[:, s0:s0 + WA],
                       preferred_element_type=jnp.float32)
        for t in range(1, K * K):
            s = starts[t]
            acc0 = acc0 + jnp.dot(w_in_ref[t], x_ref[:, s:s + WA],
                                  preferred_element_type=jnp.float32)
        act0 = _leaky(acc0 + b_in_ref[...])                        # (Cin, WA)

        # ---- BatchNorm1: masked one-pass sum / sum-of-squares ----
        xm = act0 * mask
        s1 = jnp.sum(xm, axis=1, keepdims=True)
        s2 = jnp.sum(xm * xm, axis=1, keepdims=True)
        mean1 = s1 * inv_count
        var1 = jnp.maximum(s2 * inv_count - mean1 * mean1, 0.0)
        h1 = ((act0 - mean1) * jax.lax.rsqrt(var1 + BN_EPS)
              * g1_ref[...] + be1_ref[...]) * mask                 # zero outside valid region

        # ---- keep h1 in VMEM: stack [h1 ; x] canvases in a scratch buffer ----
        xh_ref[...] = jnp.zeros_like(xh_ref)
        xh_ref[Cin:2 * Cin, :] = x_ref[...]
        xh_ref[0:Cin, OFFH:OFFH + WA] = h1

        # ---- conv1 + conv_short_cut fused (block-diagonal weights per tap) ----
        acc2 = jnp.dot(wf_ref[0], xh_ref[:, s0:s0 + WA],
                       preferred_element_type=jnp.float32)
        for t in range(1, K * K):
            s = starts[t]
            acc2 = acc2 + jnp.dot(wf_ref[t], xh_ref[:, s:s + WA],
                                  preferred_element_type=jnp.float32)
        act2 = _leaky(acc2 + bf_ref[...])                          # (2*Cout, WA)
        summed = act2[0:Cout, :] + act2[Cout:2 * Cout, :]

        # ---- BatchNorm2 ----
        ym = summed * mask
        t1 = jnp.sum(ym, axis=1, keepdims=True)
        t2 = jnp.sum(ym * ym, axis=1, keepdims=True)
        mean2 = t1 * inv_count
        var2 = jnp.maximum(t2 * inv_count - mean2 * mean2, 0.0)
        o_ref[...] = ((summed - mean2) * jax.lax.rsqrt(var2 + BN_EPS)
                      * g2_ref[...] + be2_ref[...])

    return kernel


def _upsample_kernel(uh_ref, y_ref, m_ref, o_ref):
    # separable bilinear (align_corners=True) upsample, one batch element per grid step:
    #   out = Uh @ Y @ kron(Uw^T, I_C)
    t = jnp.dot(uh_ref[...], y_ref[...], preferred_element_type=jnp.float32)
    o_ref[...] = jnp.dot(t, m_ref[...], preferred_element_type=jnp.float32)


# ----------------------------- host-side helpers -----------------------------

def _bilinear_matrix(n_in, n_out):
    # nn.UpsamplingBilinear2d == bilinear upsample with align_corners=True
    U = np.zeros((n_out, n_in), dtype=np.float32)
    for i in range(n_out):
        src = i * (n_in - 1) / (n_out - 1) if n_out > 1 else 0.0
        i0 = min(max(int(np.floor(src)), 0), n_in - 1)
        i1 = min(i0 + 1, n_in - 1)
        frac = src - i0
        U[i, i0] += 1.0 - frac
        U[i, i1] += frac
    return U


@lru_cache(maxsize=None)
def _upsample_operators(h_in, w_in, channels, scale):
    # cached per shape: Uh (Ho, H2) and kron(Uw^T, I_C) (W2*C, Wo*C)  -- both tiny.
    Uh = _bilinear_matrix(h_in, scale * h_in)
    Uw = _bilinear_matrix(w_in, scale * w_in)
    M = np.kron(Uw.T, np.eye(channels, dtype=np.float32)).astype(np.float32)
    return jnp.asarray(Uh), jnp.asarray(M)


def _convT_to_taps(w_t):
    # PyTorch ConvTranspose2d weight (Cin, Cout, K, K) -> per-tap matmul weights
    # (K*K, Cout, Cin) of the equivalent regular conv (spatial flip + in/out transpose).
    w = w_t[:, :, ::-1, ::-1]
    return jnp.transpose(w, (2, 3, 1, 0)).reshape(K * K, w_t.shape[1], w_t.shape[0])


def residual_block_upsample(x_nchw, params, scale_factor=2):
    N, Cin, H, W = x_nchw.shape
    Cout = params["w_sc"].shape[1]
    PAD = K - 1
    H2, W2 = H + PAD, W + PAD                  # 'valid' ConvTranspose output size
    Hp, Wp = H + 2 * PAD, W + 2 * PAD          # zero-padded canvas size
    Sp = Hp * Wp
    NS = N * Sp

    # flat-canvas geometry (lane-dense: flattened spatial on the lane axis)
    WA = _round_up(NS, LANES)                  # accumulator / output width
    OFFH = _round_up(Wp + 1, LANES)            # front margin covering the most-negative tap shift
    WB = WA + 2 * OFFH                         # canvas buffer width
    OFFX = OFFH - (Wp + 1)                     # input canvas start inside the buffer
    starts = [OFFH + (a - 1) * Wp + (b - 1) for a in range(K) for b in range(K)]
    inv_count = 1.0 / float(N * H2 * W2)

    # ---- host glue: pack the input once into the flat padded canvas (no im2col) ----
    canvas = jnp.zeros((Cin, N, Hp, Wp), jnp.float32)
    canvas = canvas.at[:, :, PAD:PAD + H, PAD:PAD + W].set(
        jnp.transpose(x_nchw.astype(jnp.float32), (1, 0, 2, 3)))
    xb = jnp.zeros((Cin, WB), jnp.float32).at[:, OFFX:OFFX + NS].set(
        canvas.reshape(Cin, NS))

    mask_np = np.zeros((N, Hp, Wp), np.float32)
    mask_np[:, :H2, :W2] = 1.0
    mask_flat = np.zeros((1, WA), np.float32)
    mask_flat[0, :NS] = mask_np.reshape(-1)
    mask = jnp.asarray(mask_flat)

    # per-tap conv weights; conv1 + shortcut fused block-diagonally
    w_in_t = _convT_to_taps(params["w_in"])                        # (9, Cin, Cin)
    w1_t = _convT_to_taps(params["w_1"])                           # (9, Cout, Cin)
    wsc_t = _convT_to_taps(params["w_sc"])                         # (9, Cout, Cin)
    zblk = jnp.zeros_like(w1_t)
    wf = jnp.concatenate([jnp.concatenate([w1_t, zblk], axis=2),
                          jnp.concatenate([zblk, wsc_t], axis=2)], axis=1)  # (9, 2Cout, 2Cin)

    b_in = params["b_in"].reshape(Cin, 1)
    g1, be1 = params["g1"].reshape(Cin, 1), params["be1"].reshape(Cin, 1)
    bf = jnp.concatenate([params["b_1"], params["b_sc"]]).reshape(2 * Cout, 1)
    g2, be2 = params["g2"].reshape(Cout, 1), params["be2"].reshape(Cout, 1)

    # ---- fused conv / BN block: single pallas_call, h1 held in a VMEM scratch ----
    kernel = _make_fused_block_kernel(Cin, Cout, WA, WB, OFFH, starts, inv_count)
    args = (xb, w_in_t, b_in, g1, be1, wf, bf, g2, be2, mask)
    y_flat = pl.pallas_call(
        kernel,
        grid=(1,),
        in_specs=[_full_spec(a.shape) for a in args],
        out_specs=_full_spec((Cout, WA)),
        out_shape=jax.ShapeDtypeStruct((Cout, WA), jnp.float32),
        scratch_shapes=[pltpu.VMEM((2 * Cin, WB), jnp.float32)],
        compiler_params=pltpu.CompilerParams(dimension_semantics=("arbitrary",)),
    )(*args)

    # ---- separable bilinear upsample, grid over batch ("parallel" for v7x megacore) ----
    Ho, Wo = scale_factor * H2, scale_factor * W2
    Uh, M = _upsample_operators(H2, W2, Cout, scale_factor)
    y_valid = y_flat[:, :NS].reshape(Cout, N, Hp, Wp)[:, :, :H2, :W2]
    y_up = jnp.transpose(y_valid, (1, 2, 3, 0)).reshape(N, H2, W2 * Cout)

    out_up = pl.pallas_call(
        _upsample_kernel,
        grid=(N,),
        in_specs=[
            pl.BlockSpec((Ho, H2), lambda n: (0, 0)),
            pl.BlockSpec((None, H2, W2 * Cout), lambda n: (n, 0, 0)),
            pl.BlockSpec((W2 * Cout, Wo * Cout), lambda n: (0, 0)),
        ],
        out_specs=pl.BlockSpec((None, Ho, Wo * Cout), lambda n: (n, 0, 0)),
        out_shape=jax.ShapeDtypeStruct((N, Ho, Wo * Cout), jnp.float32),
        compiler_params=pltpu.CompilerParams(dimension_semantics=("parallel",)),
    )(Uh, y_up, M)

    out = out_up.reshape(N, Ho, Wo, Cout)
    return jnp.transpose(out, (0, 3, 1, 2))                        # back to NCHW


# ----------------------------- reference (plain JAX, for sanity check) ---------------

def reference_forward(x_nchw, params, scale_factor=2):
    N, Cin, H, W = x_nchw.shape
    x = jnp.transpose(x_nchw, (0, 2, 3, 1))

    def convT(inp, w_t, b, pad):
        w_conv = jnp.transpose(w_t[:, :, ::-1, ::-1], (2, 3, 0, 1))   # HWIO
        y = jax.lax.conv_general_dilated(
            inp, w_conv, window_strides=(1, 1),
            padding=((pad, pad), (pad, pad)),
            dimension_numbers=("NHWC", "HWIO", "NHWC"))
        return y + b.reshape(1, 1, 1, -1)

    def bn(h, g, b):
        m = jnp.mean(h, axis=(0, 1, 2), keepdims=True)
        v = jnp.mean((h - m) ** 2, axis=(0, 1, 2), keepdims=True)
        return (h - m) / jnp.sqrt(v + BN_EPS) * g.reshape(1, 1, 1, -1) + b.reshape(1, 1, 1, -1)

    lr = lambda v: jnp.where(v > 0, v, NEG_SLOPE * v)
    h = bn(lr(convT(x, params["w_in"], params["b_in"], K - 1)), params["g1"], params["be1"])
    a = lr(convT(h, params["w_1"], params["b_1"], 1))
    r = lr(convT(x, params["w_sc"], params["b_sc"], K - 1))
    y = bn(a + r, params["g2"], params["be2"])
    H2, W2 = H + K - 1, W + K - 1
    Uh = jnp.asarray(_bilinear_matrix(H2, scale_factor * H2))
    Uw = jnp.asarray(_bilinear_matrix(W2, scale_factor * W2))
    up = jnp.einsum("ih,nhwc->niwc", Uh, y)
    up = jnp.einsum("jw,niwc->nijc", Uw, up)
    return jnp.transpose(up, (0, 3, 1, 2))


# ----------------------------- main -----------------------------

if __name__ == "__main__":
    N, Cin, Cout, H, W = 2, 4, 8, 16, 16

    key = jax.random.PRNGKey(0)
    ks = jax.random.split(key, 8)
    params = {
        "w_in": 0.2 * jax.random.normal(ks[0], (Cin, Cin, K, K), jnp.float32),
        "b_in": 0.1 * jax.random.normal(ks[1], (Cin,), jnp.float32),
        "w_1": 0.2 * jax.random.normal(ks[2], (Cin, Cout, K, K), jnp.float32),
        "b_1": 0.1 * jax.random.normal(ks[3], (Cout,), jnp.float32),
        "w_sc": 0.2 * jax.random.normal(ks[4], (Cin, Cout, K, K), jnp.float32),
        "b_sc": 0.1 * jax.random.normal(ks[5], (Cout,), jnp.float32),
        "g1": jnp.ones((Cin,), jnp.float32), "be1": jnp.zeros((Cin,), jnp.float32),
        "g2": jnp.ones((Cout,), jnp.float32), "be2": jnp.zeros((Cout,), jnp.float32),
    }
    x = jax.random.normal(ks[6], (N, Cin, H, W), jnp.float32)

    out = residual_block_upsample(x, params)
    out = jax.block_until_ready(out)

    expected_shape = (N, Cout, 2 * (H + K - 1), 2 * (W + K - 1))
    assert out.shape == expected_shape, (out.shape, expected_shape)

    ref = jax.block_until_ready(reference_forward(x, params))
    err = float(jnp.max(jnp.abs(out - ref)))
    if not np.allclose(np.asarray(out), np.asarray(ref), atol=2e-3, rtol=2e-3):
        raise AssertionError(f"Pallas result mismatch, max abs err = {err}")

    print("KERNEL_OK")
</pallas_src>

<mosaic_0001>
module attributes {stable_mosaic.version = 11 : i64} {
  func.func @kernel(%arg0: i32, %arg1: memref<4x1152xf32, #tpu.memory_space<vmem>>, %arg2: memref<9x4x4xf32, #tpu.memory_space<vmem>>, %arg3: memref<4x1xf32, #tpu.memory_space<vmem>>, %arg4: memref<4x1xf32, #tpu.memory_space<vmem>>, %arg5: memref<4x1xf32, #tpu.memory_space<vmem>>, %arg6: memref<9x16x8xf32, #tpu.memory_space<vmem>>, %arg7: memref<16x1xf32, #tpu.memory_space<vmem>>, %arg8: memref<8x1xf32, #tpu.memory_space<vmem>>, %arg9: memref<8x1xf32, #tpu.memory_space<vmem>>, %arg10: memref<1x896xf32, #tpu.memory_space<vmem>>, %arg11: memref<8x896xf32, #tpu.memory_space<vmem>>, %arg12: memref<8x1152xf32, #tpu.memory_space<vmem>>) attributes {dimension_semantics = [#tpu.dimension_semantics<arbitrary>], iteration_bounds = array<i64: 1>, scalar_prefetch = 0 : i64, scratch_operands = 1 : i64, tpu.core_type = #tpu.core_type<tc>, window_params = [{pipeline_mode = #tpu.pipeline_mode<synchronous>, transform_indices = @transform_0, window_bounds = array<i64: 4, 1152>}, {pipeline_mode = #tpu.pipeline_mode<synchronous>, transform_indices = @transform_1, window_bounds = array<i64: 9, 4, 4>}, {pipeline_mode = #tpu.pipeline_mode<synchronous>, transform_indices = @transform_2, window_bounds = array<i64: 4, 1>}, {pipeline_mode = #tpu.pipeline_mode<synchronous>, transform_indices = @transform_3, window_bounds = array<i64: 4, 1>}, {pipeline_mode = #tpu.pipeline_mode<synchronous>, transform_indices = @transform_4, window_bounds = array<i64: 4, 1>}, {pipeline_mode = #tpu.pipeline_mode<synchronous>, transform_indices = @transform_5, window_bounds = array<i64: 9, 16, 8>}, {pipeline_mode = #tpu.pipeline_mode<synchronous>, transform_indices = @transform_6, window_bounds = array<i64: 16, 1>}, {pipeline_mode = #tpu.pipeline_mode<synchronous>, transform_indices = @transform_7, window_bounds = array<i64: 8, 1>}, {pipeline_mode = #tpu.pipeline_mode<synchronous>, transform_indices = @transform_8, window_bounds = array<i64: 8, 1>}, {pipeline_mode = #tpu.pipeline_mode<synchronous>, transform_indices = @transform_9, window_bounds = array<i64: 1, 896>}, {pipeline_mode = #tpu.pipeline_mode<synchronous>, transform_indices = @transform_10, window_bounds = array<i64: 8, 896>}]} {
    %c0 = arith.constant 0 : index
    %c0_0 = arith.constant 0 : index
    %0 = vector.load %arg10[%c0, %c0_0] : memref<1x896xf32, #tpu.memory_space<vmem>>, vector<1x896xf32>
    %c0_1 = arith.constant 0 : index
    %c0_2 = arith.constant 0 : index
    %c0_3 = arith.constant 0 : index
    %1 = vector.load %arg2[%c0_1, %c0_2, %c0_3] : memref<9x4x4xf32, #tpu.memory_space<vmem>>, vector<1x4x4xf32>
    %2 = vector.shape_cast %1 : vector<1x4x4xf32> to vector<4x4xf32>
    %c0_4 = arith.constant 0 : index
    %c107 = arith.constant 107 : index
    %3 = vector.load %arg1[%c0_4, %c107] : memref<4x1152xf32, #tpu.memory_space<vmem>>, vector<4x896xf32>
    %cst = arith.constant dense<0.000000e+00> : vector<4x896xf32>
    %4 = tpu.matmul %2, %3, %cst {dimension_numbers = #tpu.dot_dimension_numbers<[1], [0], [0], [1], [0, 0, 1, 1], [], []>} : vector<4x4xf32>, vector<4x896xf32>, vector<4x896xf32> -> vector<4x896xf32>
    %c1 = arith.constant 1 : index
    %c0_5 = arith.constant 0 : index
    %c0_6 = arith.constant 0 : index
    %5 = vector.load %arg2[%c1, %c0_5, %c0_6] : memref<9x4x4xf32, #tpu.memory_space<vmem>>, vector<1x4x4xf32>
    %6 = vector.shape_cast %5 : vector<1x4x4xf32> to vector<4x4xf32>
    %c0_7 = arith.constant 0 : index
    %c108 = arith.constant 108 : index
    %7 = vector.load %arg1[%c0_7, %c108] : memref<4x1152xf32, #tpu.memory_space<vmem>>, vector<4x896xf32>
    %cst_8 = arith.constant dense<0.000000e+00> : vector<4x896xf32>
    %8 = tpu.matmul %6, %7, %cst_8 {dimension_numbers = #tpu.dot_dimension_numbers<[1], [0], [0], [1], [0, 0, 1, 1], [], []>} : vector<4x4xf32>, vector<4x896xf32>, vector<4x896xf32> -> vector<4x896xf32>
    %9 = arith.addf %4, %8 : vector<4x896xf32>
    %c2 = arith.constant 2 : index
    %c0_9 = arith.constant 0 : index
    %c0_10 = arith.constant 0 : index
    %10 = vector.load %arg2[%c2, %c0_9, %c0_10] : memref<9x4x4xf32, #tpu.memory_space<vmem>>, vector<1x4x4xf32>
    %11 = vector.shape_cast %10 : vector<1x4x4xf32> to vector<4x4xf32>
    %c0_11 = arith.constant 0 : index
    %c109 = arith.constant 109 : index
    %12 = vector.load %arg1[%c0_11, %c109] : memref<4x1152xf32, #tpu.memory_space<vmem>>, vector<4x896xf32>
    %cst_12 = arith.constant dense<0.000000e+00> : vector<4x896xf32>
    %13 = tpu.matmul %11, %12, %cst_12 {dimension_numbers = #tpu.dot_dimension_numbers<[1], [0], [0], [1], [0, 0, 1, 1], [], []>} : vector<4x4xf32>, vector<4x896xf32>, vector<4x896xf32> -> vector<4x896xf32>
    %14 = arith.addf %9, %13 : vector<4x896xf32>
    %c3 = arith.constant 3 : index
    %c0_13 = arith.constant 0 : index
    %c0_14 = arith.constant 0 : index
    %15 = vector.load %arg2[%c3, %c0_13, %c0_14] : memref<9x4x4xf32, #tpu.memory_space<vmem>>, vector<1x4x4xf32>
    %16 = vector.shape_cast %15 : vector<1x4x4xf32> to vector<4x4xf32>
    %c0_15 = arith.constant 0 : index
    %c127 = arith.constant 127 : index
    %17 = vector.load %arg1[%c0_15, %c127] : memref<4x1152xf32, #tpu.memory_space<vmem>>, vector<4x896xf32>
    %cst_16 = arith.constant dense<0.000000e+00> : vector<4x896xf32>
    %18 = tpu.matmul %16, %17, %cst_16 {dimension_numbers = #tpu.dot_dimension_numbers<[1], [0], [0], [1], [0, 0, 1, 1], [], []>} : vector<4x4xf32>, vector<4x896xf32>, vector<4x896xf32> -> vector<4x896xf32>
    %19 = arith.addf %14, %18 : vector<4x896xf32>
    %c4 = arith.constant 4 : index
    %c0_17 = arith.constant 0 : index
    %c0_18 = arith.constant 0 : index
    %20 = vector.load %arg2[%c4, %c0_17, %c0_18] : memref<9x4x4xf32, #tpu.memory_space<vmem>>, vector<1x4x4xf32>
    %21 = vector.shape_cast %20 : vector<1x4x4xf32> to vector<4x4xf32>
    %c0_19 = arith.constant 0 : index
    %c128 = arith.constant 128 : index
    %22 = vector.load %arg1[%c0_19, %c128] : memref<4x1152xf32, #tpu.memory_space<vmem>>, vector<4x896xf32>
    %cst_20 = arith.constant dense<0.000000e+00> : vector<4x896xf32>
    %23 = tpu.matmul %21, %22, %cst_20 {dimension_numbers = #tpu.dot_dimension_numbers<[1], [0], [0], [1], [0, 0, 1, 1], [], []>} : vector<4x4xf32>, vector<4x896xf32>, vector<4x896xf32> -> vector<4x896xf32>
    %24 = arith.addf %19, %23 : vector<4x896xf32>
    %c5 = arith.constant 5 : index
    %c0_21 = arith.constant 0 : index
    %c0_22 = arith.constant 0 : index
    %25 = vector.load %arg2[%c5, %c0_21, %c0_22] : memref<9x4x4xf32, #tpu.memory_space<vmem>>, vector<1x4x4xf32>
    %26 = vector.shape_cast %25 : vector<1x4x4xf32> to vector<4x4xf32>
    %c0_23 = arith.constant 0 : index
    %c129 = arith.constant 129 : index
    %27 = vector.load %arg1[%c0_23, %c129] : memref<4x1152xf32, #tpu.memory_space<vmem>>, vector<4x896xf32>
    %cst_24 = arith.constant dense<0.000000e+00> : vector<4x896xf32>
    %28 = tpu.matmul %26, %27, %cst_24 {dimension_numbers = #tpu.dot_dimension_numbers<[1], [0], [0], [1], [0, 0, 1, 1], [], []>} : vector<4x4xf32>, vector<4x896xf32>, vector<4x896xf32> -> vector<4x896xf32>
    %29 = arith.addf %24, %28 : vector<4x896xf32>
    %c6 = arith.constant 6 : index
    %c0_25 = arith.constant 0 : index
    %c0_26 = arith.constant 0 : index
    %30 = vector.load %arg2[%c6, %c0_25, %c0_26] : memref<9x4x4xf32, #tpu.memory_space<vmem>>, vector<1x4x4xf32>
    %31 = vector.shape_cast %30 : vector<1x4x4xf32> to vector<4x4xf32>
    %c0_27 = arith.constant 0 : index
    %c147 = arith.constant 147 : index
    %32 = vector.load %arg1[%c0_27, %c147] : memref<4x1152xf32, #tpu.memory_space<vmem>>, vector<4x896xf32>
    %cst_28 = arith.constant dense<0.000000e+00> : vector<4x896xf32>
    %33 = tpu.matmul %31, %32, %cst_28 {dimension_numbers = #tpu.dot_dimension_numbers<[1], [0], [0], [1], [0, 0, 1, 1], [], []>} : vector<4x4xf32>, vector<4x896xf32>, vector<4x896xf32> -> vector<4x896xf32>
    %34 = arith.addf %29, %33 : vector<4x896xf32>
    %c7 = arith.constant 7 : index
    %c0_29 = arith.constant 0 : index
    %c0_30 = arith.constant 0 : index
    %35 = vector.load %arg2[%c7, %c0_29, %c0_30] : memref<9x4x4xf32, #tpu.memory_space<vmem>>, vector<1x4x4xf32>
    %36 = vector.shape_cast %35 : vector<1x4x4xf32> to vector<4x4xf32>
    %c0_31 = arith.constant 0 : index
    %c148 = arith.constant 148 : index
    %37 = vector.load %arg1[%c0_31, %c148] : memref<4x1152xf32, #tpu.memory_space<vmem>>, vector<4x896xf32>
    %cst_32 = arith.constant dense<0.000000e+00> : vector<4x896xf32>
    %38 = tpu.matmul %36, %37, %cst_32 {dimension_numbers = #tpu.dot_dimension_numbers<[1], [0], [0], [1], [0, 0, 1, 1], [], []>} : vector<4x4xf32>, vector<4x896xf32>, vector<4x896xf32> -> vector<4x896xf32>
    %39 = arith.addf %34, %38 : vector<4x896xf32>
    %c8 = arith.constant 8 : index
    %c0_33 = arith.constant 0 : index
    %c0_34 = arith.constant 0 : index
    %40 = vector.load %arg2[%c8, %c0_33, %c0_34] : memref<9x4x4xf32, #tpu.memory_space<vmem>>, vector<1x4x4xf32>
    %41 = vector.shape_cast %40 : vector<1x4x4xf32> to vector<4x4xf32>
    %c0_35 = arith.constant 0 : index
    %c149 = arith.constant 149 : index
    %42 = vector.load %arg1[%c0_35, %c149] : memref<4x1152xf32, #tpu.memory_space<vmem>>, vector<4x896xf32>
    %cst_36 = arith.constant dense<0.000000e+00> : vector<4x896xf32>
    %43 = tpu.matmul %41, %42, %cst_36 {dimension_numbers = #tpu.dot_dimension_numbers<[1], [0], [0], [1], [0, 0, 1, 1], [], []>} : vector<4x4xf32>, vector<4x896xf32>, vector<4x896xf32> -> vector<4x896xf32>
    %44 = arith.addf %39, %43 : vector<4x896xf32>
    %c0_37 = arith.constant 0 : index
    %c0_38 = arith.constant 0 : index
    %45 = vector.load %arg3[%c0_37, %c0_38] : memref<4x1xf32, #tpu.memory_space<vmem>>, vector<4x1xf32>
    %46 = vector.broadcast %45 : vector<4x1xf32> to vector<4x896xf32>
    %47 = arith.addf %44, %46 : vector<4x896xf32>
    %cst_39 = arith.constant 0.000000e+00 : f32
    %48 = vector.broadcast %cst_39 : f32 to vector<4x896xf32>
    %49 = arith.cmpf ogt, %47, %48 : vector<4x896xf32>
    %cst_40 = arith.constant 0.00999999977 : f32
    %50 = vector.broadcast %cst_40 : f32 to vector<4x896xf32>
    %51 = arith.mulf %50, %47 : vector<4x896xf32>
    %52 = arith.select %49, %47, %51 : vector<4x896xi1>, vector<4x896xf32>
    %53 = vector.broadcast %0 : vector<1x896xf32> to vector<4x896xf32>
    %54 = arith.mulf %52, %53 : vector<4x896xf32>
    %cst_41 = arith.constant dense<0.000000e+00> : vector<4xf32>
    %55 = vector.multi_reduction <add>, %54, %cst_41 [1] : vector<4x896xf32> to vector<4xf32>
    %56 = vector.shape_cast %55 : vector<4xf32> to vector<4x1xf32>
    %57 = arith.mulf %54, %54 : vector<4x896xf32>
    %cst_42 = arith.constant dense<0.000000e+00> : vector<4xf32>
    %58 = vector.multi_reduction <add>, %57, %cst_42 [1] : vector<4x896xf32> to vector<4xf32>
    %59 = vector.shape_cast %58 : vector<4xf32> to vector<4x1xf32>
    %cst_43 = arith.constant 0.00154320989 : f32
    %60 = vector.broadcast %cst_43 : f32 to vector<4x1xf32>
    %61 = arith.mulf %56, %60 : vector<4x1xf32>
    %cst_44 = arith.constant 0.00154320989 : f32
    %62 = vector.broadcast %cst_44 : f32 to vector<4x1xf32>
    %63 = arith.mulf %59, %62 : vector<4x1xf32>
    %64 = arith.mulf %61, %61 : vector<4x1xf32>
    %65 = arith.subf %63, %64 : vector<4x1xf32>
    %cst_45 = arith.constant 0.000000e+00 : f32
    %66 = vector.broadcast %cst_45 : f32 to vector<4x1xf32>
    %67 = arith.maximumf %65, %66 : vector<4x1xf32>
    %68 = vector.broadcast %61 : vector<4x1xf32> to vector<4x896xf32>
    %69 = arith.subf %52, %68 : vector<4x896xf32>
    %cst_46 = arith.constant 9.99999974E-6 : f32
    %70 = vector.broadcast %cst_46 : f32 to vector<4x1xf32>
    %71 = arith.addf %67, %70 : vector<4x1xf32>
    %72 = math.rsqrt %71 : vector<4x1xf32>
    %73 = vector.broadcast %72 : vector<4x1xf32> to vector<4x896xf32>
    %74 = arith.mulf %69, %73 : vector<4x896xf32>
    %c0_47 = arith.constant 0 : index
    %c0_48 = arith.constant 0 : index
    %75 = vector.load %arg4[%c0_47, %c0_48] : memref<4x1xf32, #tpu.memory_space<vmem>>, vector<4x1xf32>
    %76 = vector.broadcast %75 : vector<4x1xf32> to vector<4x896xf32>
    %77 = arith.mulf %74, %76 : vector<4x896xf32>
    %c0_49 = arith.constant 0 : index
    %c0_50 = arith.constant 0 : index
    %78 = vector.load %arg5[%c0_49, %c0_50] : memref<4x1xf32, #tpu.memory_space<vmem>>, vector<4x1xf32>
    %79 = vector.broadcast %78 : vector<4x1xf32> to vector<4x896xf32>
    %80 = arith.addf %77, %79 : vector<4x896xf32>
    %81 = vector.broadcast %0 : vector<1x896xf32> to vector<4x896xf32>
    %82 = arith.mulf %80, %81 : vector<4x896xf32>
    %cst_51 = arith.constant 0.000000e+00 : f32
    %83 = vector.broadcast %cst_51 : f32 to vector<8x1152xf32>
    %c0_52 = arith.constant 0 : index
    %c0_53 = arith.constant 0 : index
    %84 = vector.load %arg12[%c0_52, %c0_53] : memref<8x1152xf32, #tpu.memory_space<vmem>>, vector<8x1152xf32>
    tpu.vector_store %arg12[%c0_52, %c0_53], %83 {strides = array<i32>} : memref<8x1152xf32, #tpu.memory_space<vmem>>, vector<8x1152xf32>,
    %c0_54 = arith.constant 0 : index
    %c0_55 = arith.constant 0 : index
    %85 = vector.load %arg1[%c0_54, %c0_55] : memref<4x1152xf32, #tpu.memory_space<vmem>>, vector<4x1152xf32>
    %c4_56 = arith.constant 4 : index
    %c0_57 = arith.constant 0 : index
    %86 = vector.load %arg12[%c4_56, %c0_57] : memref<8x1152xf32, #tpu.memory_space<vmem>>, vector<4x1152xf32>
    tpu.vector_store %arg12[%c4_56, %c0_57], %85 {strides = array<i32>} : memref<8x1152xf32, #tpu.memory_space<vmem>>, vector<4x1152xf32>,
    %c0_58 = arith.constant 0 : index
    %c128_59 = arith.constant 128 : index
    %87 = vector.load %arg12[%c0_58, %c128_59] : memref<8x1152xf32, #tpu.memory_space<vmem>>, vector<4x896xf32>
    tpu.vector_store %arg12[%c0_58, %c128_59], %82 {strides = array<i32>} : memref<8x1152xf32, #tpu.memory_space<vmem>>, vector<4x896xf32>,
    %c0_60 = arith.constant 0 : index
    %c0_61 = arith.constant 0 : index
    %c0_62 = arith.constant 0 : index
    %88 = vector.load %arg6[%c0_60, %c0_61, %c0_62] : memref<9x16x8xf32, #tpu.memory_space<vmem>>, vector<1x16x8xf32>
    %89 = vector.shape_cast %88 : vector<1x16x8xf32> to vector<16x8xf32>
    %c0_63 = arith.constant 0 : index
    %c107_64 = arith.constant 107 : index
    %90 = vector.load %arg12[%c0_63, %c107_64] : memref<8x1152xf32, #tpu.memory_space<vmem>>, vector<8x896xf32>
    %cst_65 = arith.constant dense<0.000000e+00> : vector<16x896xf32>
    %91 = tpu.matmul %89, %90, %cst_65 {dimension_numbers = #tpu.dot_dimension_numbers<[1], [0], [0], [1], [0, 0, 1, 1], [], []>} : vector<16x8xf32>, vector<8x896xf32>, vector<16x896xf32> -> vector<16x896xf32>
    %c1_66 = arith.constant 1 : index
    %c0_67 = arith.constant 0 : index
    %c0_68 = arith.constant 0 : index
    %92 = vector.load %arg6[%c1_66, %c0_67, %c0_68] : memref<9x16x8xf32, #tpu.memory_space<vmem>>, vector<1x16x8xf32>
    %93 = vector.shape_cast %92 : vector<1x16x8xf32> to vector<16x8xf32>
    %c0_69 = arith.constant 0 : index
    %c108_70 = arith.constant 108 : index
    %94 = vector.load %arg12[%c0_69, %c108_70] : memref<8x1152xf32, #tpu.memory_space<vmem>>, vector<8x896xf32>
    %cst_71 = arith.constant dense<0.000000e+00> : vector<16x896xf32>
    %95 = tpu.matmul %93, %94, %cst_71 {dimension_numbers = #tpu.dot_dimension_numbers<[1], [0], [0], [1], [0, 0, 1, 1], [], []>} : vector<16x8xf32>, vector<8x896xf32>, vector<16x896xf32> -> vector<16x896xf32>
    %96 = arith.addf %91, %95 : vector<16x896xf32>
    %c2_72 = arith.constant 2 : index
    %c0_73 = arith.constant 0 : index
    %c0_74 = arith.constant 0 : index
    %97 = vector.load %arg6[%c2_72, %c0_73, %c0_74] : memref<9x16x8xf32, #tpu.memory_space<vmem>>, vector<1x16x8xf32>
    %98 = vector.shape_cast %97 : vector<1x16x8xf32> to vector<16x8xf32>
    %c0_75 = arith.constant 0 : index
    %c109_76 = arith.constant 109 : index
    %99 = vector.load %arg12[%c0_75, %c109_76] : memref<8x1152xf32, #tpu.memory_space<vmem>>, vector<8x896xf32>
    %cst_77 = arith.constant dense<0.000000e+00> : vector<16x896xf32>
    %100 = tpu.matmul %98, %99, %cst_77 {dimension_numbers = #tpu.dot_dimension_numbers<[1], [0], [0], [1], [0, 0, 1, 1], [], []>} : vector<16x8xf32>, vector<8x896xf32>, vector<16x896xf32> -> vector<16x896xf32>
    %101 = arith.addf %96, %100 : vector<16x896xf32>
    %c3_78 = arith.constant 3 : index
    %c0_79 = arith.constant 0 : index
    %c0_80 = arith.constant 0 : index
    %102 = vector.load %arg6[%c3_78, %c0_79, %c0_80] : memref<9x16x8xf32, #tpu.memory_space<vmem>>, vector<1x16x8xf32>
    %103 = vector.shape_cast %102 : vector<1x16x8xf32> to vector<16x8xf32>
    %c0_81 = arith.constant 0 : index
    %c127_82 = arith.constant 127 : index
    %104 = vector.load %arg12[%c0_81, %c127_82] : memref<8x1152xf32, #tpu.memory_space<vmem>>, vector<8x896xf32>
    %cst_83 = arith.constant dense<0.000000e+00> : vector<16x896xf32>
    %105 = tpu.matmul %103, %104, %cst_83 {dimension_numbers = #tpu.dot_dimension_numbers<[1], [0], [0], [1], [0, 0, 1, 1], [], []>} : vector<16x8xf32>, vector<8x896xf32>, vector<16x896xf32> -> vector<16x896xf32>
    %106 = arith.addf %101, %105 : vector<16x896xf32>
    %c4_84 = arith.constant 4 : index
    %c0_85 = arith.constant 0 : index
    %c0_86 = arith.constant 0 : index
    %107 = vector.load %arg6[%c4_84, %c0_85, %c0_86] : memref<9x16x8xf32, #tpu.memory_space<vmem>>, vector<1x16x8xf32>
    %108 = vector.shape_cast %107 : vector<1x16x8xf32> to vector<16x8xf32>
    %c0_87 = arith.constant 0 : index
    %c128_88 = arith.constant 128 : index
    %109 = vector.load %arg12[%c0_87, %c128_88] : memref<8x1152xf32, #tpu.memory_space<vmem>>, vector<8x896xf32>
    %cst_89 = arith.constant dense<0.000000e+00> : vector<16x896xf32>
    %110 = tpu.matmul %108, %109, %cst_89 {dimension_numbers = #tpu.dot_dimension_numbers<[1], [0], [0], [1], [0, 0, 1, 1], [], []>} : vector<16x8xf32>, vector<8x896xf32>, vector<16x896xf32> -> vector<16x896xf32>
    %111 = arith.addf %106, %110 : vector<16x896xf32>
    %c5_90 = arith.constant 5 : index
    %c0_91 = arith.constant 0 : index
    %c0_92 = arith.constant 0 : index
    %112 = vector.load %arg6[%c5_90, %c0_91, %c0_92] : memref<9x16x8xf32, #tpu.memory_space<vmem>>, vector<1x16x8xf32>
    %113 = vector.shape_cast %112 : vector<1x16x8xf32> to vector<16x8xf32>
    %c0_93 = arith.constant 0 : index
    %c129_94 = arith.constant 129 : index
    %114 = vector.load %arg12[%c0_93, %c129_94] : memref<8x1152xf32, #tpu.memory_space<vmem>>, vector<8x896xf32>
    %cst_95 = arith.constant dense<0.000000e+00> : vector<16x896xf32>
    %115 = tpu.matmul %113, %114, %cst_95 {dimension_numbers = #tpu.dot_dimension_numbers<[1], [0], [0], [1], [0, 0, 1, 1], [], []>} : vector<16x8xf32>, vector<8x896xf32>, vector<16x896xf32> -> vector<16x896xf32>
    %116 = arith.addf %111, %115 : vector<16x896xf32>
    %c6_96 = arith.constant 6 : index
    %c0_97 = arith.constant 0 : index
    %c0_98 = arith.constant 0 : index
    %117 = vector.load %arg6[%c6_96, %c0_97, %c0_98] : memref<9x16x8xf32, #tpu.memory_space<vmem>>, vector<1x16x8xf32>
    %118 = vector.shape_cast %117 : vector<1x16x8xf32> to vector<16x8xf32>
    %c0_99 = arith.constant 0 : index
    %c147_100 = arith.constant 147 : index
    %119 = vector.load %arg12[%c0_99, %c147_100] : memref<8x1152xf32, #tpu.memory_space<vmem>>, vector<8x896xf32>
    %cst_101 = arith.constant dense<0.000000e+00> : vector<16x896xf32>
    %120 = tpu.matmul %118, %119, %cst_101 {dimension_numbers = #tpu.dot_dimension_numbers<[1], [0], [0], [1], [0, 0, 1, 1], [], []>} : vector<16x8xf32>, vector<8x896xf32>, vector<16x896xf32> -> vector<16x896xf32>
    %121 = arith.addf %116, %120 : vector<16x896xf32>
    %c7_102 = arith.constant 7 : index
    %c0_103 = arith.constant 0 : index
    %c0_104 = arith.constant 0 : index
    %122 = vector.load %arg6[%c7_102, %c0_103, %c0_104] : memref<9x16x8xf32, #tpu.memory_space<vmem>>, vector<1x16x8xf32>
    %123 = vector.shape_cast %122 : vector<1x16x8xf32> to vector<16x8xf32>
    %c0_105 = arith.constant 0 : index
    %c148_106 = arith.constant 148 : index
    %124 = vector.load %arg12[%c0_105, %c148_106] : memref<8x1152xf32, #tpu.memory_space<vmem>>, vector<8x896xf32>
    %cst_107 = arith.constant dense<0.000000e+00> : vector<16x896xf32>
    %125 = tpu.matmul %123, %124, %cst_107 {dimension_numbers = #tpu.dot_dimension_numbers<[1], [0], [0], [1], [0, 0, 1, 1], [], []>} : vector<16x8xf32>, vector<8x896xf32>, vector<16x896xf32> -> vector<16x896xf32>
    %126 = arith.addf %121, %125 : vector<16x896xf32>
    %c8_108 = arith.constant 8 : index
    %c0_109 = arith.constant 0 : index
    %c0_110 = arith.constant 0 : index
    %127 = vector.load %arg6[%c8_108, %c0_109, %c0_110] : memref<9x16x8xf32, #tpu.memory_space<vmem>>, vector<1x16x8xf32>
    %128 = vector.shape_cast %127 : vector<1x16x8xf32> to vector<16x8xf32>
    %c0_111 = arith.constant 0 : index
    %c149_112 = arith.constant 149 : index
    %129 = vector.load %arg12[%c0_111, %c149_112] : memref<8x1152xf32, #tpu.memory_space<vmem>>, vector<8x896xf32>
    %cst_113 = arith.constant dense<0.000000e+00> : vector<16x896xf32>
    %130 = tpu.matmul %128, %129, %cst_113 {dimension_numbers = #tpu.dot_dimension_numbers<[1], [0], [0], [1], [0, 0, 1, 1], [], []>} : vector<16x8xf32>, vector<8x896xf32>, vector<16x896xf32> -> vector<16x896xf32>
    %131 = arith.addf %126, %130 : vector<16x896xf32>
    %c0_114 = arith.constant 0 : index
    %c0_115 = arith.constant 0 : index
    %132 = vector.load %arg7[%c0_114, %c0_115] : memref<16x1xf32, #tpu.memory_space<vmem>>, vector<16x1xf32>
    %133 = vector.broadcast %132 : vector<16x1xf32> to vector<16x896xf32>
    %134 = arith.addf %131, %133 : vector<16x896xf32>
    %cst_116 = arith.constant 0.000000e+00 : f32
    %135 = vector.broadcast %cst_116 : f32 to vector<16x896xf32>
    %136 = arith.cmpf ogt, %134, %135 : vector<16x896xf32>
    %cst_117 = arith.constant 0.00999999977 : f32
    %137 = vector.broadcast %cst_117 : f32 to vector<16x896xf32>
    %138 = arith.mulf %137, %134 : vector<16x896xf32>
    %139 = arith.select %136, %134, %138 : vector<16x896xi1>, vector<16x896xf32>
    %140 = vector.extract_strided_slice %139 {offsets = [0, 0], sizes = [8, 896], strides = [1, 1]} : vector<16x896xf32> to vector<8x896xf32>
    %141 = vector.extract_strided_slice %139 {offsets = [8, 0], sizes = [8, 896], strides = [1, 1]} : vector<16x896xf32> to vector<8x896xf32>
    %142 = arith.addf %140, %141 : vector<8x896xf32>
    %143 = vector.broadcast %0 : vector<1x896xf32> to vector<8x896xf32>
    %144 = arith.mulf %142, %143 : vector<8x896xf32>
    %cst_118 = arith.constant dense<0.000000e+00> : vector<8xf32>
    %145 = vector.multi_reduction <add>, %144, %cst_118 [1] : vector<8x896xf32> to vector<8xf32>
    %146 = vector.shape_cast %145 : vector<8xf32> to vector<8x1xf32>
    %147 = arith.mulf %144, %144 : vector<8x896xf32>
    %cst_119 = arith.constant dense<0.000000e+00> : vector<8xf32>
    %148 = vector.multi_reduction <add>, %147, %cst_119 [1] : vector<8x896xf32> to vector<8xf32>
    %149 = vector.shape_cast %148 : vector<8xf32> to vector<8x1xf32>
    %cst_120 = arith.constant 0.00154320989 : f32
    %150 = vector.broadcast %cst_120 : f32 to vector<8x1xf32>
    %151 = arith.mulf %146, %150 : vector<8x1xf32>
    %cst_121 = arith.constant 0.00154320989 : f32
    %152 = vector.broadcast %cst_121 : f32 to vector<8x1xf32>
    %153 = arith.mulf %149, %152 : vector<8x1xf32>
    %154 = arith.mulf %151, %151 : vector<8x1xf32>
    %155 = arith.subf %153, %154 : vector<8x1xf32>
    %cst_122 = arith.constant 0.000000e+00 : f32
    %156 = vector.broadcast %cst_122 : f32 to vector<8x1xf32>
    %157 = arith.maximumf %155, %156 : vector<8x1xf32>
    %158 = vector.broadcast %151 : vector<8x1xf32> to vector<8x896xf32>
    %159 = arith.subf %142, %158 : vector<8x896xf32>
    %cst_123 = arith.constant 9.99999974E-6 : f32
    %160 = vector.broadcast %cst_123 : f32 to vector<8x1xf32>
    %161 = arith.addf %157, %160 : vector<8x1xf32>
    %162 = math.rsqrt %161 : vector<8x1xf32>
    %163 = vector.broadcast %162 : vector<8x1xf32> to vector<8x896xf32>
    %164 = arith.mulf %159, %163 : vector<8x896xf32>
    %c0_124 = arith.constant 0 : index
    %c0_125 = arith.constant 0 : index
    %165 = vector.load %arg8[%c0_124, %c0_125] : memref<8x1xf32, #tpu.memory_space<vmem>>, vector<8x1xf32>
    %166 = vector.broadcast %165 : vector<8x1xf32> to vector<8x896xf32>
    %167 = arith.mulf %164, %166 : vector<8x896xf32>
    %c0_126 = arith.constant 0 : index
    %c0_127 = arith.constant 0 : index
    %168 = vector.load %arg9[%c0_126, %c0_127] : memref<8x1xf32, #tpu.memory_space<vmem>>, vector<8x1xf32>
    %169 = vector.broadcast %168 : vector<8x1xf32> to vector<8x896xf32>
    %170 = arith.addf %167, %169 : vector<8x896xf32>
    %c0_128 = arith.constant 0 : index
    %c0_129 = arith.constant 0 : index
    %171 = vector.load %arg11[%c0_128, %c0_129] : memref<8x896xf32, #tpu.memory_space<vmem>>, vector<8x896xf32>
    tpu.vector_store %arg11[%c0_128, %c0_129], %170 {strides = array<i32>} : memref<8x896xf32, #tpu.memory_space<vmem>>, vector<8x896xf32>,
    return
  }
  func.func @transform_0(%arg0: i32) -> (i32, i32) {
    %c0_i32 = arith.constant 0 : i32
    %c0_i32_0 = arith.constant 0 : i32
    %c0_i32_1 = arith.constant 0 : i32
    return %c0_i32, %c0_i32_0 : i32, i32
  }
  func.func @transform_1(%arg0: i32) -> (i32, i32, i32) {
    %c0_i32 = arith.constant 0 : i32
    %c0_i32_0 = arith.constant 0 : i32
    %c0_i32_1 = arith.constant 0 : i32
    %c0_i32_2 = arith.constant 0 : i32
    return %c0_i32, %c0_i32_0, %c0_i32_1 : i32, i32, i32
  }
  func.func @transform_2(%arg0: i32) -> (i32, i32) {
    %c0_i32 = arith.constant 0 : i32
    %c0_i32_0 = arith.constant 0 : i32
    %c0_i32_1 = arith.constant 0 : i32
    return %c0_i32, %c0_i32_0 : i32, i32
  }
  func.func @transform_3(%arg0: i32) -> (i32, i32) {
    %c0_i32 = arith.constant 0 : i32
    %c0_i32_0 = arith.constant 0 : i32
    %c0_i32_1 = arith.constant 0 : i32
    return %c0_i32, %c0_i32_0 : i32, i32
  }
  func.func @transform_4(%arg0: i32) -> (i32, i32) {
    %c0_i32 = arith.constant 0 : i32
    %c0_i32_0 = arith.constant 0 : i32
    %c0_i32_1 = arith.constant 0 : i32
    return %c0_i32, %c0_i32_0 : i32, i32
  }
  func.func @transform_5(%arg0: i32) -> (i32, i32, i32) {
    %c0_i32 = arith.constant 0 : i32
    %c0_i32_0 = arith.constant 0 : i32
    %c0_i32_1 = arith.constant 0 : i32
    %c0_i32_2 = arith.constant 0 : i32
    return %c0_i32, %c0_i32_0, %c0_i32_1 : i32, i32, i32
  }
  func.func @transform_6(%arg0: i32) -> (i32, i32) {
    %c0_i32 = arith.constant 0 : i32
    %c0_i32_0 = arith.constant 0 : i32
    %c0_i32_1 = arith.constant 0 : i32
    return %c0_i32, %c0_i32_0 : i32, i32
  }
  func.func @transform_7(%arg0: i32) -> (i32, i32) {
    %c0_i32 = arith.constant 0 : i32
    %c0_i32_0 = arith.constant 0 : i32
    %c0_i32_1 = arith.constant 0 : i32
    return %c0_i32, %c0_i32_0 : i32, i32
  }
  func.func @transform_8(%arg0: i32) -> (i32, i32) {
    %c0_i32 = arith.constant 0 : i32
    %c0_i32_0 = arith.constant 0 : i32
    %c0_i32_1 = arith.constant 0 : i32
    return %c0_i32, %c0_i32_0 : i32, i32
  }
  func.func @transform_9(%arg0: i32) -> (i32, i32) {
    %c0_i32 = arith.constant 0 : i32
    %c0_i32_0 = arith.constant 0 : i32
    %c0_i32_1 = arith.constant 0 : i32
    return %c0_i32, %c0_i32_0 : i32, i32
  }
  func.func @transform_10(%arg0: i32) -> (i32, i32) {
    %c0_i32 = arith.constant 0 : i32
    %c0_i32_0 = arith.constant 0 : i32
    %c0_i32_1 = arith.constant 0 : i32
    return %c0_i32, %c0_i32_0 : i32, i32
  }
}

</mosaic_0001>

<llo_original>
// kernel: tpu_custom_call.1
$region0: #{tpu_custom_call.1}
  #allocation0 [shape = 'u32[]', space=smem, size = 0x4, offset = 0x4, fixed_abs, tag = 'smem constant byte address 0x4 - core index']
  #allocation1 [shape = 'u32[144,128]{1,0:T(1,128)}', space=vmem, size = 0x12000, scoped, tag = 'internal scratch']
  #allocation2 [shape = 'f32[8,1152]{1,0:T(8,128)}', space=vmem, size = 0x9000, scoped, tag = 'scratch operand']
  %s0 = inlined_call_operand.vmem [shape: f32[4,1152], index: 0, kind: input, shape index: {}]
  %s1 = inlined_call_operand.vmem [shape: f32[9,4,4], index: 1, kind: input, shape index: {}]
  %s2 = inlined_call_operand.vmem [shape: f32[4,1], index: 2, kind: input, shape index: {}]
  %s3 = inlined_call_operand.vmem [shape: f32[4,1], index: 3, kind: input, shape index: {}]
  %s4 = inlined_call_operand.vmem [shape: f32[4,1], index: 4, kind: input, shape index: {}]
  %s5 = inlined_call_operand.vmem [shape: f32[9,16,8], index: 5, kind: input, shape index: {}]
  %s6 = inlined_call_operand.vmem [shape: f32[16,1], index: 6, kind: input, shape index: {}]
  %s7 = inlined_call_operand.vmem [shape: f32[8,1], index: 7, kind: input, shape index: {}]
  %s8 = inlined_call_operand.vmem [shape: f32[8,1], index: 8, kind: input, shape index: {}]
  %s9 = inlined_call_operand.vmem [shape: f32[1,896], index: 9, kind: input, shape index: {}]
  %s10 = inlined_call_operand.hbm [shape: f32[8,896], index: 10, kind: output, shape index: {}]
  %s11 = sld [smem:[#allocation0]]
  $region50: #{tpu_custom_call.1} parent=0
    _
  %s13 = ssub.s32 1, %s11
  %s14 = scalar_select 0, %s13, %s11
  $region1: #{tpu_custom_call.1} parent=0
    #allocation3 [shape = 'u8[28672]{0}', space=vmem, size = 0x7000, scoped, tag = 'output window, operand 0, single buffered']
    #allocation4 [shape = 's32[1]{0}', space=sflag, size = 0x4, scoped, tag = 'scoped memory for tpu_custom_call.1']
    %15 = vsyncpa [#allocation4], 0
    // Predicated region
    $region2: #{tpu_custom_call.1} parent=1 // pred_check
      _
    $region3: #{tpu_custom_call.1} parent=1 // pred_check_branch
      %17 = sbr.rel (0) target = $region5
    $region4: #{tpu_custom_call.1} parent=1 // pred_region
      _
    $region5: #{tpu_custom_call.1} parent=1 // pred_fallthru
      _
    // Predicated region
    $region6: #{tpu_custom_call.1} parent=1 // pred_check
      _
    $region7: #{tpu_custom_call.1} parent=1 // pred_check_branch
      %19 = sbr.rel (0) target = $region9
    $region8: #{tpu_custom_call.1} parent=1 // pred_region
      _
    $region9: #{tpu_custom_call.1} parent=1 // pred_fallthru
      _
    // Predicated region
    $region10: #{tpu_custom_call.1} parent=1 // pred_check
      _
    $region11: #{tpu_custom_call.1} parent=1 // pred_check_branch
      %21 = sbr.rel (0) target = $region13
    $region12: #{tpu_custom_call.1} parent=1 // pred_region
      _
    $region13: #{tpu_custom_call.1} parent=1 // pred_fallthru
      _
    // Predicated region
    $region14: #{tpu_custom_call.1} parent=1 // pred_check
      _
    $region15: #{tpu_custom_call.1} parent=1 // pred_check_branch
      %23 = sbr.rel (0) target = $region17
    $region16: #{tpu_custom_call.1} parent=1 // pred_region
      _
    $region17: #{tpu_custom_call.1} parent=1 // pred_fallthru
      _
    // Predicated region
    $region18: #{tpu_custom_call.1} parent=1 // pred_check
      _
    $region19: #{tpu_custom_call.1} parent=1 // pred_check_branch
      %25 = sbr.rel (0) target = $region21
    $region20: #{tpu_custom_call.1} parent=1 // pred_region
      _
    $region21: #{tpu_custom_call.1} parent=1 // pred_fallthru
      _
    // Predicated region
    $region22: #{tpu_custom_call.1} parent=1 // pred_check
      _
    $region23: #{tpu_custom_call.1} parent=1 // pred_check_branch
      %27 = sbr.rel (0) target = $region25
    $region24: #{tpu_custom_call.1} parent=1 // pred_region
      _
    $region25: #{tpu_custom_call.1} parent=1 // pred_fallthru
      _
    // Predicated region
    $region26: #{tpu_custom_call.1} parent=1 // pred_check
      _
    $region27: #{tpu_custom_call.1} parent=1 // pred_check_branch
      %29 = sbr.rel (0) target = $region29
    $region28: #{tpu_custom_call.1} parent=1 // pred_region
      _
    $region29: #{tpu_custom_call.1} parent=1 // pred_fallthru
      _
    // Predicated region
    $region30: #{tpu_custom_call.1} parent=1 // pred_check
      _
    $region31: #{tpu_custom_call.1} parent=1 // pred_check_branch
      %31 = sbr.rel (0) target = $region33
    $region32: #{tpu_custom_call.1} parent=1 // pred_region
      _
    $region33: #{tpu_custom_call.1} parent=1 // pred_fallthru
      _
    // Predicated region
    $region34: #{tpu_custom_call.1} parent=1 // pred_check
      _
    $region35: #{tpu_custom_call.1} parent=1 // pred_check_branch
      %33 = sbr.rel (0) target = $region37
    $region36: #{tpu_custom_call.1} parent=1 // pred_region
      _
    $region37: #{tpu_custom_call.1} parent=1 // pred_fallthru
      _
    // Predicated region
    $region38: #{tpu_custom_call.1} parent=1 // pred_check
      _
    $region39: #{tpu_custom_call.1} parent=1 // pred_check_branch
      %35 = sbr.rel (0) target = $region41
    $region40: #{tpu_custom_call.1} parent=1 // pred_region
      _
    $region41: #{tpu_custom_call.1} parent=1 // pred_fallthru
      _
    %v36 = vld [vmem:[%s9] sm:$0xff]
    %v37 = vld [vmem:[%s1] sm:$0xf]
    %v38 = vld [vmem:[%s0] sm:$0xff]
    %v39 = vld [vmem:[%s0 + $0x8] sm:$0xff]
    %v40 = vld [vmem:[%s0 + $0x10] sm:$0xff]
    %v41 = vld [vmem:[%s0 + $0x18] sm:$0xff]
    %s42 = scalar_lea.vmem %s1, 4
    %v43 = vld [vmem:[%s42] sm:$0xf]
    %v48 = vcombine.high %v38, %v38
    %v49 = vcombine.high %v39, %v39
    %v50 = vcombine.high %v40, %v40
    %v51 = vcombine.high %v41, %v41
    %52 = vrot.lane.b32.xlu0 %v38, 20
    %v53 = vpop.permute.xlu0 %52
    %54 = vrot.lane.b32.xlu0 %v48, 20
    %v55 = vpop.permute.xlu0 %54
    %56 = vrot.lane.b32.xlu0 %v39, 20
    %v57 = vpop.permute.xlu0 %56
    %58 = vrot.lane.b32.xlu0 %v49, 20
    %v59 = vpop.permute.xlu0 %58
    %60 = vrot.lane.b32.xlu0 %v40, 20
    %v61 = vpop.permute.xlu0 %60
    %62 = vrot.lane.b32.xlu0 %v50, 20
    %v63 = vpop.permute.xlu0 %62
    %64 = vrot.lane.b32.xlu0 %v41, 20
    %v65 = vpop.permute.xlu0 %64
    %66 = vrot.lane.b32.xlu0 %v51, 20
    %v67 = vpop.permute.xlu0 %66
    %vm68 = vcmask 162816
    %v69 = vsel %vm68, %v53, %v55
    %v70 = vsel %vm68, %v55, %v57
    %v71 = vsel %vm68, %v57, %v59
    %v72 = vsel %vm68, %v59, %v61
    %v73 = vsel %vm68, %v61, %v63
    %v74 = vsel %vm68, %v63, %v65
    %v75 = vsel %vm68, %v65, %v67
    %vm76 = vcmask 31744
    %v78 = vsel %vm76, %v43, 0
    %vm80 = vcmask 1043456
    %v81 = vsel %vm80, %v69, 0
    %v83 = vsel %vm80, %v70, 0
    %v85 = vsel %vm80, %v71, 0
    %v87 = vsel %vm80, %v72, 0
    %v89 = vsel %vm80, %v73, 0
    %v91 = vsel %vm80, %v74, 0
    %v93 = vsel %vm80, %v75, 0
    %95 = vmatprep.subr.mxu0 %v83
    %96 = vmatpush1.msra.mxu0 %v81
    %97 = vmatprep.subr.mxu0 0.0
    %98 = vmatpush1.msra.mxu0 0.0
    %99 = vmatprep.subr.mxu0 0.0
    %100 = vmatpush1.msra.mxu0 0.0
    %101 = vmatprep.subr.mxu0 0.0
    %102 = vmatpush1.msra.mxu0 0.0
    %103 = vmatprep.subr.mxu0 0.0
    %104 = vmatpush1.msra.mxu0 0.0
    %105 = vmatprep.subr.mxu0 0.0
    %106 = vmatpush1.msra.mxu0 0.0
    %107 = vmatprep.subr.mxu0 0.0
    %108 = vmatpush1.msra.mxu0 0.0
    %109 = vmatprep.subr.mxu0 0.0
    %110 = vmatpush1.msra.mxu0 0.0
    %111 = vmatprep.subr.mxu0 0.0
    %112 = vmatpush1.msra.mxu0 0.0
    %113 = vmatprep.subr.mxu0 0.0
    %114 = vmatpush1.msra.mxu0 0.0
    %115 = vmatprep.subr.mxu0 0.0
    %116 = vmatpush1.msra.mxu0 0.0
    %117 = vmatprep.subr.mxu0 0.0
    %118 = vmatpush1.msra.mxu0 0.0
    %119 = vmatprep.subr.mxu0 0.0
    %120 = vmatpush1.msra.mxu0 0.0
    %121 = vmatprep.subr.mxu0 0.0
    %122 = vmatpush1.msra.mxu0 0.0
    %123 = vmatprep.subr.mxu0 0.0
    %124 = vmatpush1.msra.mxu0 0.0
    %125 = vmatprep.subr.mxu0 0.0
    %126 = vmatpush1.msra.mxu0 0.0
    %127 = vmatprep.subr.mxu0 0.0
    %128 = vmatpush1.msra.mxu0 0.0
    %129 = vmatprep.subr.mxu0 0.0
    %130 = vmatpush1.msra.mxu0 0.0
    %131 = vmatprep.subr.mxu0 0.0
    %132 = vmatpush1.msra.mxu0 0.0
    %133 = vmatprep.subr.mxu0 0.0
    %134 = vmatpush1.msra.mxu0 0.0
    %135 = vmatprep.subr.mxu0 0.0
    %136 = vmatpush1.msra.mxu0 0.0
    %137 = vmatprep.subr.mxu0 0.0
    %138 = vmatpush1.msra.mxu0 0.0
    %139 = vmatprep.subr.mxu0 0.0
    %140 = vmatpush1.msra.mxu0 0.0
    %141 = vmatprep.subr.mxu0 0.0
    %142 = vmatpush1.msra.mxu0 0.0
    %143 = vmatprep.subr.mxu0 0.0
    %144 = vmatpush1.msra.mxu0 0.0
    %145 = vmatprep.subr.mxu0 0.0
    %146 = vmatpush1.msra.mxu0 0.0
    %147 = vmatprep.subr.mxu0 0.0
    %148 = vmatpush1.msra.mxu0 0.0
    %149 = vmatprep.subr.mxu0 0.0
    %150 = vmatpush1.msra.mxu0 0.0
    %151 = vmatprep.subr.mxu0 0.0
    %152 = vmatpush1.msra.mxu0 0.0
    %153 = vmatprep.subr.mxu0 0.0
    %154 = vmatpush1.msra.mxu0 0.0
    %155 = vmatprep.subr.mxu0 0.0
    %156 = vmatpush1.msra.mxu0 0.0
    %157 = vmatprep.subr.mxu0 0.0
    %158 = vmatpush1.msra.mxu0 0.0
    %159 = vmatprep.mubr.f32.mxu0 0.0
    %160 = vmatmul.mubr.f32.gmra.mrb[0].mxu0 %v78
    %v161 = vpop.f32.mrb[0].mxu0
    %v162 = vadd.f32 0.0, %v161
    %v163 = vpop.f32.mrb[0].mxu0
    %v164 = vadd.f32 0.0, %v163
    %165 = vdwg.mxu0
    %166 = vmatprep.subr.mxu0 %v87
    %167 = vmatpush1.msra.mxu0 %v85
    %168 = vmatprep.subr.mxu0 0.0
    %169 = vmatpush1.msra.mxu0 0.0
    %170 = vmatprep.subr.mxu0 0.0
    %171 = vmatpush1.msra.mxu0 0.0
    %172 = vmatprep.subr.mxu0 0.0
    %173 = vmatpush1.msra.mxu0 0.0
    %174 = vmatprep.subr.mxu0 0.0
    %175 = vmatpush1.msra.mxu0 0.0
    %176 = vmatprep.subr.mxu0 0.0
    %177 = vmatpush1.msra.mxu0 0.0
    %178 = vmatprep.subr.mxu0 0.0
    %179 = vmatpush1.msra.mxu0 0.0
    %180 = vmatprep.subr.mxu0 0.0
    %181 = vmatpush1.msra.mxu0 0.0
    %182 = vmatprep.subr.mxu0 0.0
    %183 = vmatpush1.msra.mxu0 0.0
    %184 = vmatprep.subr.mxu0 0.0
    %185 = vmatpush1.msra.mxu0 0.0
    %186 = vmatprep.subr.mxu0 0.0
    %187 = vmatpush1.msra.mxu0 0.0
    %188 = vmatprep.subr.mxu0 0.0
    %189 = vmatpush1.msra.mxu0 0.0
    %190 = vmatprep.subr.mxu0 0.0
    %191 = vmatpush1.msra.mxu0 0.0
    %192 = vmatprep.subr.mxu0 0.0
    %193 = vmatpush1.msra.mxu0 0.0
    %194 = vmatprep.subr.mxu0 0.0
    %195 = vmatpush1.msra.mxu0 0.0
    %196 = vmatprep.subr.mxu0 0.0
    %197 = vmatpush1.msra.mxu0 0.0
    %198 = vmatprep.subr.mxu0 0.0
    %199 = vmatpush1.msra.mxu0 0.0
    %200 = vmatprep.subr.mxu0 0.0
    %201 = vmatpush1.msra.mxu0 0.0
    %202 = vmatprep.subr.mxu0 0.0
    %203 = vmatpush1.msra.mxu0 0.0
    %204 = vmatprep.subr.mxu0 0.0
    %205 = vmatpush1.msra.mxu0 0.0
    %206 = vmatprep.subr.mxu0 0.0
    %207 = vmatpush1.msra.mxu0 0.0
    %208 = vmatprep.subr.mxu0 0.0
    %209 = vmatpush1.msra.mxu0 0.0
    %210 = vmatprep.subr.mxu0 0.0
    %211 = vmatpush1.msra.mxu0 0.0
    %212 = vmatprep.subr.mxu0 0.0
    %213 = vmatpush1.msra.mxu0 0.0
    %214 = vmatprep.subr.mxu0 0.0
    %215 = vmatpush1.msra.mxu0 0.0
    %216 = vmatprep.subr.mxu0 0.0
    %217 = vmatpush1.msra.mxu0 0.0
    %218 = vmatprep.subr.mxu0 0.0
    %219 = vmatpush1.msra.mxu0 0.0
    %220 = vmatprep.subr.mxu0 0.0
    %221 = vmatpush1.msra.mxu0 0.0
    %222 = vmatprep.subr.mxu0 0.0
    %223 = vmatpush1.msra.mxu0 0.0
    %224 = vmatprep.subr.mxu0 0.0
    %225 = vmatpush1.msra.mxu0 0.0
    %226 = vmatprep.subr.mxu0 0.0
    %227 = vmatpush1.msra.mxu0 0.0
    %228 = vmatprep.subr.mxu0 0.0
    %229 = vmatpush1.msra.mxu0 0.0
    %230 = vmatprep.mubr.f32.mxu0 0.0
    %231 = vmatmul.mubr.f32.gmra.mrb[0].mxu0 %v78
    %v232 = vpop.f32.mrb[0].mxu0
    %v233 = vadd.f32 0.0, %v232
    %v234 = vpop.f32.mrb[0].mxu0
    %v235 = vadd.f32 0.0, %v234
    %236 = vdwg.mxu0
    %237 = vmatprep.subr.mxu0 %v91
    %238 = vmatpush1.msra.mxu0 %v89
    %239 = vmatprep.subr.mxu0 0.0
    %240 = vmatpush1.msra.mxu0 0.0
    %241 = vmatprep.subr.mxu0 0.0
    %242 = vmatpush1.msra.mxu0 0.0
    %243 = vmatprep.subr.mxu0 0.0
    %244 = vmatpush1.msra.mxu0 0.0
    %245 = vmatprep.subr.mxu0 0.0
    %246 = vmatpush1.msra.mxu0 0.0
    %247 = vmatprep.subr.mxu0 0.0
    %248 = vmatpush1.msra.mxu0 0.0
    %249 = vmatprep.subr.mxu0 0.0
    %250 = vmatpush1.msra.mxu0 0.0
    %251 = vmatprep.subr.mxu0 0.0
    %252 = vmatpush1.msra.mxu0 0.0
    %253 = vmatprep.subr.mxu0 0.0
    %254 = vmatpush1.msra.mxu0 0.0
    %255 = vmatprep.subr.mxu0 0.0
    %256 = vmatpush1.msra.mxu0 0.0
    %257 = vmatprep.subr.mxu0 0.0
    %258 = vmatpush1.msra.mxu0 0.0
    %259 = vmatprep.subr.mxu0 0.0
    %260 = vmatpush1.msra.mxu0 0.0
    %261 = vmatprep.subr.mxu0 0.0
    %262 = vmatpush1.msra.mxu0 0.0
    %263 = vmatprep.subr.mxu0 0.0
    %264 = vmatpush1.msra.mxu0 0.0
    %265 = vmatprep.subr.mxu0 0.0
    %266 = vmatpush1.msra.mxu0 0.0
    %267 = vmatprep.subr.mxu0 0.0
    %268 = vmatpush1.msra.mxu0 0.0
    %269 = vmatprep.subr.mxu0 0.0
    %270 = vmatpush1.msra.mxu0 0.0
    %271 = vmatprep.subr.mxu0 0.0
    %272 = vmatpush1.msra.mxu0 0.0
    %273 = vmatprep.subr.mxu0 0.0
    %274 = vmatpush1.msra.mxu0 0.0
    %275 = vmatprep.subr.mxu0 0.0
    %276 = vmatpush1.msra.mxu0 0.0
    %277 = vmatprep.subr.mxu0 0.0
    %278 = vmatpush1.msra.mxu0 0.0
    %279 = vmatprep.subr.mxu0 0.0
    %280 = vmatpush1.msra.mxu0 0.0
    %281 = vmatprep.subr.mxu0 0.0
    %282 = vmatpush1.msra.mxu0 0.0
    %283 = vmatprep.subr.mxu0 0.0
    %284 = vmatpush1.msra.mxu0 0.0
    %285 = vmatprep.subr.mxu0 0.0
    %286 = vmatpush1.msra.mxu0 0.0
    %287 = vmatprep.subr.mxu0 0.0
    %288 = vmatpush1.msra.mxu0 0.0
    %289 = vmatprep.subr.mxu0 0.0
    %290 = vmatpush1.msra.mxu0 0.0
    %291 = vmatprep.subr.mxu0 0.0
    %292 = vmatpush1.msra.mxu0 0.0
    %293 = vmatprep.subr.mxu0 0.0
    %294 = vmatpush1.msra.mxu0 0.0
    %295 = vmatprep.subr.mxu0 0.0
    %296 = vmatpush1.msra.mxu0 0.0
    %297 = vmatprep.subr.mxu0 0.0
    %298 = vmatpush1.msra.mxu0 0.0
    %299 = vmatprep.subr.mxu0 0.0
    %300 = vmatpush1.msra.mxu0 0.0
    %301 = vmatprep.mubr.f32.mxu0 0.0
    %302 = vmatmul.mubr.f32.gmra.mrb[0].mxu0 %v78
    %v303 = vpop.f32.mrb[0].mxu0
    %v304 = vadd.f32 0.0, %v303
    %v305 = vpop.f32.mrb[0].mxu0
    %v306 = vadd.f32 0.0, %v305
    %307 = vdwg.mxu0
    %308 = vmatprep.subr.mxu0 0.0
    %309 = vmatpush1.msra.mxu0 %v93
    %310 = vmatprep.subr.mxu0 0.0
    %311 = vmatpush1.msra.mxu0 0.0
    %312 = vmatprep.subr.mxu0 0.0
    %313 = vmatpush1.msra.mxu0 0.0
    %314 = vmatprep.subr.mxu0 0.0
    %315 = vmatpush1.msra.mxu0 0.0
    %316 = vmatprep.subr.mxu0 0.0
    %317 = vmatpush1.msra.mxu0 0.0
    %318 = vmatprep.subr.mxu0 0.0
    %319 = vmatpush1.msra.mxu0 0.0
    %320 = vmatprep.subr.mxu0 0.0
    %321 = vmatpush1.msra.mxu0 0.0
    %322 = vmatprep.subr.mxu0 0.0
    %323 = vmatpush1.msra.mxu0 0.0
    %324 = vmatprep.subr.mxu0 0.0
    %325 = vmatpush1.msra.mxu0 0.0
    %326 = vmatprep.subr.mxu0 0.0
    %327 = vmatpush1.msra.mxu0 0.0
    %328 = vmatprep.subr.mxu0 0.0
    %329 = vmatpush1.msra.mxu0 0.0
    %330 = vmatprep.subr.mxu0 0.0
    %331 = vmatpush1.msra.mxu0 0.0
    %332 = vmatprep.subr.mxu0 0.0
    %333 = vmatpush1.msra.mxu0 0.0
    %334 = vmatprep.subr.mxu0 0.0
    %335 = vmatpush1.msra.mxu0 0.0
    %336 = vmatprep.subr.mxu0 0.0
    %337 = vmatpush1.msra.mxu0 0.0
    %338 = vmatprep.subr.mxu0 0.0
    %339 = vmatpush1.msra.mxu0 0.0
    %340 = vmatprep.subr.mxu0 0.0
    %341 = vmatpush1.msra.mxu0 0.0
    %342 = vmatprep.subr.mxu0 0.0
    %343 = vmatpush1.msra.mxu0 0.0
    %344 = vmatprep.subr.mxu0 0.0
    %345 = vmatpush1.msra.mxu0 0.0
    %346 = vmatprep.subr.mxu0 0.0
    %347 = vmatpush1.msra.mxu0 0.0
    %348 = vmatprep.subr.mxu0 0.0
    %349 = vmatpush1.msra.mxu0 0.0
    %350 = vmatprep.subr.mxu0 0.0
    %351 = vmatpush1.msra.mxu0 0.0
    %352 = vmatprep.subr.mxu0 0.0
    %353 = vmatpush1.msra.mxu0 0.0
    %354 = vmatprep.subr.mxu0 0.0
    %355 = vmatpush1.msra.mxu0 0.0
    %356 = vmatprep.subr.mxu0 0.0
    %357 = vmatpush1.msra.mxu0 0.0
    %358 = vmatprep.subr.mxu0 0.0
    %359 = vmatpush1.msra.mxu0 0.0
    %360 = vmatprep.subr.mxu0 0.0
    %361 = vmatpush1.msra.mxu0 0.0
    %362 = vmatprep.subr.mxu0 0.0
    %363 = vmatpush1.msra.mxu0 0.0
    %364 = vmatprep.subr.mxu0 0.0
    %365 = vmatpush1.msra.mxu0 0.0
    %366 = vmatprep.subr.mxu0 0.0
    %367 = vmatpush1.msra.mxu0 0.0
    %368 = vmatprep.subr.mxu0 0.0
    %369 = vmatpush1.msra.mxu0 0.0
    %370 = vmatprep.subr.mxu0 0.0
    %371 = vmatpush1.msra.mxu0 0.0
    %372 = vmatprep.mubr.f32.mxu0 0.0
    %373 = vmatmul.mubr.f32.gmra.mrb[0].mxu0 %v78
    %v374 = vpop.f32.mrb[0].mxu0
    %v375 = vadd.f32 0.0, %v374
    %v376 = vpop.f32.mrb[0].mxu0
    %377 = vdwg.mxu0
    %378 = vrot.lane.b32.xlu0 %v38, 21
    %v379 = vpop.permute.xlu0 %378
    %380 = vrot.lane.b32.xlu0 %v48, 21
    %v381 = vpop.permute.xlu0 %380
    %382 = vrot.lane.b32.xlu0 %v39, 21
    %v383 = vpop.permute.xlu0 %382
    %384 = vrot.lane.b32.xlu0 %v49, 21
    %v385 = vpop.permute.xlu0 %384
    %386 = vrot.lane.b32.xlu0 %v40, 21
    %v387 = vpop.permute.xlu0 %386
    %388 = vrot.lane.b32.xlu0 %v50, 21
    %v389 = vpop.permute.xlu0 %388
    %390 = vrot.lane.b32.xlu0 %v41, 21
    %v391 = vpop.permute.xlu0 %390
    %392 = vrot.lane.b32.xlu0 %v51, 21
    %v393 = vpop.permute.xlu0 %392
    %vm394 = vcmask 171008
    %v395 = vsel %vm394, %v379, %v381
    %v396 = vsel %vm394, %v381, %v383
    %v397 = vsel %vm394, %v383, %v385
    %v398 = vsel %vm394, %v385, %v387
    %v399 = vsel %vm394, %v387, %v389
    %v400 = vsel %vm394, %v389, %v391
    %v401 = vsel %vm394, %v391, %v393
    %v403 = vsel %vm76, %v37, 0
    %v405 = vsel %vm80, %v395, 0
    %v407 = vsel %vm80, %v396, 0
    %v409 = vsel %vm80, %v397, 0
    %v411 = vsel %vm80, %v398, 0
    %v413 = vsel %vm80, %v399, 0
    %v415 = vsel %vm80, %v400, 0
    %v417 = vsel %vm80, %v401, 0
    %419 = vmatprep.subr.mxu0 %v407
    %420 = vmatpush1.msra.mxu0 %v405
    %421 = vmatprep.subr.mxu0 0.0
    %422 = vmatpush1.msra.mxu0 0.0
    %423 = vmatprep.subr.mxu0 0.0
    %424 = vmatpush1.msra.mxu0 0.0
    %425 = vmatprep.subr.mxu0 0.0
    %426 = vmatpush1.msra.mxu0 0.0
    %427 = vmatprep.subr.mxu0 0.0
    %428 = vmatpush1.msra.mxu0 0.0
    %429 = vmatprep.subr.mxu0 0.0
    %430 = vmatpush1.msra.mxu0 0.0
    %431 = vmatprep.subr.mxu0 0.0
    %432 = vmatpush1.msra.mxu0 0.0
    %433 = vmatprep.subr.mxu0 0.0
    %434 = vmatpush1.msra.mxu0 0.0
    %435 = vmatprep.subr.mxu0 0.0
    %436 = vmatpush1.msra.mxu0 0.0
    %437 = vmatprep.subr.mxu0 0.0
    %438 = vmatpush1.msra.mxu0 0.0
    %439 = vmatprep.subr.mxu0 0.0
    %440 = vmatpush1.msra.mxu0 0.0
    %441 = vmatprep.subr.mxu0 0.0
    %442 = vmatpush1.msra.mxu0 0.0
    %443 = vmatprep.subr.mxu0 0.0
    %444 = vmatpush1.msra.mxu0 0.0
    %445 = vmatprep.subr.mxu0 0.0
    %446 = vmatpush1.msra.mxu0 0.0
    %447 = vmatprep.subr.mxu0 0.0
    %448 = vmatpush1.msra.mxu0 0.0
    %449 = vmatprep.subr.mxu0 0.0
    %450 = vmatpush1.msra.mxu0 0.0
    %451 = vmatprep.subr.mxu0 0.0
    %452 = vmatpush1.msra.mxu0 0.0
    %453 = vmatprep.subr.mxu0 0.0
    %454 = vmatpush1.msra.mxu0 0.0
    %455 = vmatprep.subr.mxu0 0.0
    %456 = vmatpush1.msra.mxu0 0.0
    %457 = vmatprep.subr.mxu0 0.0
    %458 = vmatpush1.msra.mxu0 0.0
    %459 = vmatprep.subr.mxu0 0.0
    %460 = vmatpush1.msra.mxu0 0.0
    %461 = vmatprep.subr.mxu0 0.0
    %462 = vmatpush1.msra.mxu0 0.0
    %463 = vmatprep.subr.mxu0 0.0
    %464 = vmatpush1.msra.mxu0 0.0
    %465 = vmatprep.subr.mxu0 0.0
    %466 = vmatpush1.msra.mxu0 0.0
    %467 = vmatprep.subr.mxu0 0.0
    %468 = vmatpush1.msra.mxu0 0.0
    %469 = vmatprep.subr.mxu0 0.0
    %470 = vmatpush1.msra.mxu0 0.0
    %471 = vmatprep.subr.mxu0 0.0
    %472 = vmatpush1.msra.mxu0 0.0
    %473 = vmatprep.subr.mxu0 0.0
    %474 = vmatpush1.msra.mxu0 0.0
    %475 = vmatprep.subr.mxu0 0.0
    %476 = vmatpush1.msra.mxu0 0.0
    %477 = vmatprep.subr.mxu0 0.0
    %478 = vmatpush1.msra.mxu0 0.0
    %479 = vmatprep.subr.mxu0 0.0
    %480 = vmatpush1.msra.mxu0 0.0
    %481 = vmatprep.subr.mxu0 0.0
    %482 = vmatpush1.msra.mxu0 0.0
    %483 = vmatprep.mubr.f32.mxu0 0.0
    %484 = vmatmul.mubr.f32.gmra.mrb[0].mxu0 %v403
    %v485 = vpop.f32.mrb[0].mxu0
    %v486 = vadd.f32 %v162, %v485
    %v487 = vpop.f32.mrb[0].mxu0
    %v488 = vadd.f32 %v164, %v487
    %489 = vdwg.mxu0
    %490 = vmatprep.subr.mxu0 %v411
    %491 = vmatpush1.msra.mxu0 %v409
    %492 = vmatprep.subr.mxu0 0.0
    %493 = vmatpush1.msra.mxu0 0.0
    %494 = vmatprep.subr.mxu0 0.0
    %495 = vmatpush1.msra.mxu0 0.0
    %496 = vmatprep.subr.mxu0 0.0
    %497 = vmatpush1.msra.mxu0 0.0
    %498 = vmatprep.subr.mxu0 0.0
    %499 = vmatpush1.msra.mxu0 0.0
    %500 = vmatprep.subr.mxu0 0.0
    %501 = vmatpush1.msra.mxu0 0.0
    %502 = vmatprep.subr.mxu0 0.0
    %503 = vmatpush1.msra.mxu0 0.0
    %504 = vmatprep.subr.mxu0 0.0
    %505 = vmatpush1.msra.mxu0 0.0
    %506 = vmatprep.subr.mxu0 0.0
    %507 = vmatpush1.msra.mxu0 0.0
    %508 = vmatprep.subr.mxu0 0.0
    %509 = vmatpush1.msra.mxu0 0.0
    %510 = vmatprep.subr.mxu0 0.0
    %511 = vmatpush1.msra.mxu0 0.0
    %512 = vmatprep.subr.mxu0 0.0
    %513 = vmatpush1.msra.mxu0 0.0
    %514 = vmatprep.subr.mxu0 0.0
    %515 = vmatpush1.msra.mxu0 0.0
    %516 = vmatprep.subr.mxu0 0.0
    %517 = vmatpush1.msra.mxu0 0.0
    %518 = vmatprep.subr.mxu0 0.0
    %519 = vmatpush1.msra.mxu0 0.0
    %520 = vmatprep.subr.mxu0 0.0
    %521 = vmatpush1.msra.mxu0 0.0
    %522 = vmatprep.subr.mxu0 0.0
    %523 = vmatpush1.msra.mxu0 0.0
    %524 = vmatprep.subr.mxu0 0.0
    %525 = vmatpush1.msra.mxu0 0.0
    %526 = vmatprep.subr.mxu0 0.0
    %527 = vmatpush1.msra.mxu0 0.0
    %528 = vmatprep.subr.mxu0 0.0
    %529 = vmatpush1.msra.mxu0 0.0
    %530 = vmatprep.subr.mxu0 0.0
    %531 = vmatpush1.msra.mxu0 0.0
    %532 = vmatprep.subr.mxu0 0.0
    %533 = vmatpush1.msra.mxu0 0.0
    %534 = vmatprep.subr.mxu0 0.0
    %535 = vmatpush1.msra.mxu0 0.0
    %536 = vmatprep.subr.mxu0 0.0
    %537 = vmatpush1.msra.mxu0 0.0
    %538 = vmatprep.subr.mxu0 0.0
    %539 = vmatpush1.msra.mxu0 0.0
    %540 = vmatprep.subr.mxu0 0.0
    %541 = vmatpush1.msra.mxu0 0.0
    %542 = vmatprep.subr.mxu0 0.0
    %543 = vmatpush1.msra.mxu0 0.0
    %544 = vmatprep.subr.mxu0 0.0
    %545 = vmatpush1.msra.mxu0 0.0
    %546 = vmatprep.subr.mxu0 0.0
    %547 = vmatpush1.msra.mxu0 0.0
    %548 = vmatprep.subr.mxu0 0.0
    %549 = vmatpush1.msra.mxu0 0.0
    %550 = vmatprep.subr.mxu0 0.0
    %551 = vmatpush1.msra.mxu0 0.0
    %552 = vmatprep.subr.mxu0 0.0
    %553 = vmatpush1.msra.mxu0 0.0
    %554 = vmatprep.mubr.f32.mxu0 0.0
    %555 = vmatmul.mubr.f32.gmra.mrb[0].mxu0 %v403
    %v556 = vpop.f32.mrb[0].mxu0
    %v557 = vadd.f32 %v233, %v556
    %v558 = vpop.f32.mrb[0].mxu0
    %v559 = vadd.f32 %v235, %v558
    %560 = vdwg.mxu0
    %561 = vmatprep.subr.mxu0 %v415
    %562 = vmatpush1.msra.mxu0 %v413
    %563 = vmatprep.subr.mxu0 0.0
    %564 = vmatpush1.msra.mxu0 0.0
    %565 = vmatprep.subr.mxu0 0.0
    %566 = vmatpush1.msra.mxu0 0.0
    %567 = vmatprep.subr.mxu0 0.0
    %568 = vmatpush1.msra.mxu0 0.0
    %569 = vmatprep.subr.mxu0 0.0
    %570 = vmatpush1.msra.mxu0 0.0
    %571 = vmatprep.subr.mxu0 0.0
    %572 = vmatpush1.msra.mxu0 0.0
    %573 = vmatprep.subr.mxu0 0.0
    %574 = vmatpush1.msra.mxu0 0.0
    %575 = vmatprep.subr.mxu0 0.0
    %576 = vmatpush1.msra.mxu0 0.0
    %577 = vmatprep.subr.mxu0 0.0
    %578 = vmatpush1.msra.mxu0 0.0
    %579 = vmatprep.subr.mxu0 0.0
    %580 = vmatpush1.msra.mxu0 0.0
    %581 = vmatprep.subr.mxu0 0.0
    %582 = vmatpush1.msra.mxu0 0.0
    %583 = vmatprep.subr.mxu0 0.0
    %584 = vmatpush1.msra.mxu0 0.0
    %585 = vmatprep.subr.mxu0 0.0
    %586 = vmatpush1.msra.mxu0 0.0
    %587 = vmatprep.subr.mxu0 0.0
    %588 = vmatpush1.msra.mxu0 0.0
    %589 = vmatprep.subr.mxu0 0.0
    %590 = vmatpush1.msra.mxu0 0.0
    %591 = vmatprep.subr.mxu0 0.0
    %592 = vmatpush1.msra.mxu0 0.0
    %593 = vmatprep.subr.mxu0 0.0
    %594 = vmatpush1.msra.mxu0 0.0
    %595 = vmatprep.subr.mxu0 0.0
    %596 = vmatpush1.msra.mxu0 0.0
    %597 = vmatprep.subr.mxu0 0.0
    %598 = vmatpush1.msra.mxu0 0.0
    %599 = vmatprep.subr.mxu0 0.0
    %600 = vmatpush1.msra.mxu0 0.0
    %601 = vmatprep.subr.mxu0 0.0
    %602 = vmatpush1.msra.mxu0 0.0
    %603 = vmatprep.subr.mxu0 0.0
    %604 = vmatpush1.msra.mxu0 0.0
    %605 = vmatprep.subr.mxu0 0.0
    %606 = vmatpush1.msra.mxu0 0.0
    %607 = vmatprep.subr.mxu0 0.0
    %608 = vmatpush1.msra.mxu0 0.0
    %609 = vmatprep.subr.mxu0 0.0
    %610 = vmatpush1.msra.mxu0 0.0
    %611 = vmatprep.subr.mxu0 0.0
    %612 = vmatpush1.msra.mxu0 0.0
    %613 = vmatprep.subr.mxu0 0.0
    %614 = vmatpush1.msra.mxu0 0.0
    %615 = vmatprep.subr.mxu0 0.0
    %616 = vmatpush1.msra.mxu0 0.0
    %617 = vmatprep.subr.mxu0 0.0
    %618 = vmatpush1.msra.mxu0 0.0
    %619 = vmatprep.subr.mxu0 0.0
    %620 = vmatpush1.msra.mxu0 0.0
    %621 = vmatprep.subr.mxu0 0.0
    %622 = vmatpush1.msra.mxu0 0.0
    %623 = vmatprep.subr.mxu0 0.0
    %624 = vmatpush1.msra.mxu0 0.0
    %625 = vmatprep.mubr.f32.mxu0 0.0
    %626 = vmatmul.mubr.f32.gmra.mrb[0].mxu0 %v403
    %v627 = vpop.f32.mrb[0].mxu0
    %v628 = vadd.f32 %v304, %v627
    %v629 = vpop.f32.mrb[0].mxu0
    %v630 = vadd.f32 %v306, %v629
    %631 = vdwg.mxu0
    %632 = vmatprep.subr.mxu0 0.0
    %633 = vmatpush1.msra.mxu0 %v417
    %634 = vmatprep.subr.mxu0 0.0
    %635 = vmatpush1.msra.mxu0 0.0
    %636 = vmatprep.subr.mxu0 0.0
    %637 = vmatpush1.msra.mxu0 0.0
    %638 = vmatprep.subr.mxu0 0.0
    %639 = vmatpush1.msra.mxu0 0.0
    %640 = vmatprep.subr.mxu0 0.0
    %641 = vmatpush1.msra.mxu0 0.0
    %642 = vmatprep.subr.mxu0 0.0
    %643 = vmatpush1.msra.mxu0 0.0
    %644 = vmatprep.subr.mxu0 0.0
    %645 = vmatpush1.msra.mxu0 0.0
    %646 = vmatprep.subr.mxu0 0.0
    %647 = vmatpush1.msra.mxu0 0.0
    %648 = vmatprep.subr.mxu0 0.0
    %649 = vmatpush1.msra.mxu0 0.0
    %650 = vmatprep.subr.mxu0 0.0
    %651 = vmatpush1.msra.mxu0 0.0
    %652 = vmatprep.subr.mxu0 0.0
    %653 = vmatpush1.msra.mxu0 0.0
    %654 = vmatprep.subr.mxu0 0.0
    %655 = vmatpush1.msra.mxu0 0.0
    %656 = vmatprep.subr.mxu0 0.0
    %657 = vmatpush1.msra.mxu0 0.0
    %658 = vmatprep.subr.mxu0 0.0
    %659 = vmatpush1.msra.mxu0 0.0
    %660 = vmatprep.subr.mxu0 0.0
    %661 = vmatpush1.msra.mxu0 0.0
    %662 = vmatprep.subr.mxu0 0.0
    %663 = vmatpush1.msra.mxu0 0.0
    %664 = vmatprep.subr.mxu0 0.0
    %665 = vmatpush1.msra.mxu0 0.0
    %666 = vmatprep.subr.mxu0 0.0
    %667 = vmatpush1.msra.mxu0 0.0
    %668 = vmatprep.subr.mxu0 0.0
    %669 = vmatpush1.msra.mxu0 0.0
    %670 = vmatprep.subr.mxu0 0.0
    %671 = vmatpush1.msra.mxu0 0.0
    %672 = vmatprep.subr.mxu0 0.0
    %673 = vmatpush1.msra.mxu0 0.0
    %674 = vmatprep.subr.mxu0 0.0
    %675 = vmatpush1.msra.mxu0 0.0
    %676 = vmatprep.subr.mxu0 0.0
    %677 = vmatpush1.msra.mxu0 0.0
    %678 = vmatprep.subr.mxu0 0.0
    %679 = vmatpush1.msra.mxu0 0.0
    %680 = vmatprep.subr.mxu0 0.0
    %681 = vmatpush1.msra.mxu0 0.0
    %682 = vmatprep.subr.mxu0 0.0
    %683 = vmatpush1.msra.mxu0 0.0
    %684 = vmatprep.subr.mxu0 0.0
    %685 = vmatpush1.msra.mxu0 0.0
    %686 = vmatprep.subr.mxu0 0.0
    %687 = vmatpush1.msra.mxu0 0.0
    %688 = vmatprep.subr.mxu0 0.0
    %689 = vmatpush1.msra.mxu0 0.0
    %690 = vmatprep.subr.mxu0 0.0
    %691 = vmatpush1.msra.mxu0 0.0
    %692 = vmatprep.subr.mxu0 0.0
    %693 = vmatpush1.msra.mxu0 0.0
    %694 = vmatprep.subr.mxu0 0.0
    %695 = vmatpush1.msra.mxu0 0.0
    %696 = vmatprep.mubr.f32.mxu0 0.0
    %697 = vmatmul.mubr.f32.gmra.mrb[0].mxu0 %v403
    %v698 = vpop.f32.mrb[0].mxu0
    %v699 = vadd.f32 %v375, %v698
    %v700 = vpop.f32.mrb[0].mxu0
    %701 = vdwg.mxu0
    %s702 = scalar_lea.vmem %s1, 8
    %v703 = vld [vmem:[%s702] sm:$0xf]
    %v704 = vld [vmem:[%s0] sm:$0xff]
    %v705 = vld [vmem:[%s0 + $0x8] sm:$0xff]
    %v706 = vld [vmem:[%s0 + $0x10] sm:$0xff]
    %v707 = vld [vmem:[%s0 + $0x18] sm:$0xff]
    %v712 = vcombine.high %v704, %v704
    %v713 = vcombine.high %v705, %v705
    %v714 = vcombine.high %v706, %v706
    %v715 = vcombine.high %v707, %v707
    %716 = vrot.lane.b32.xlu0 %v704, 19
    %v717 = vpop.permute.xlu0 %716
    %718 = vrot.lane.b32.xlu0 %v712, 19
    %v719 = vpop.permute.xlu0 %718
    %720 = vrot.lane.b32.xlu0 %v705, 19
    %v721 = vpop.permute.xlu0 %720
    %722 = vrot.lane.b32.xlu0 %v713, 19
    %v723 = vpop.permute.xlu0 %722
    %724 = vrot.lane.b32.xlu0 %v706, 19
    %v725 = vpop.permute.xlu0 %724
    %726 = vrot.lane.b32.xlu0 %v714, 19
    %v727 = vpop.permute.xlu0 %726
    %728 = vrot.lane.b32.xlu0 %v707, 19
    %v729 = vpop.permute.xlu0 %728
    %730 = vrot.lane.b32.xlu0 %v715, 19
    %v731 = vpop.permute.xlu0 %730
    %vm732 = vcmask 154624
    %v733 = vsel %vm732, %v717, %v719
    %v734 = vsel %vm732, %v719, %v721
    %v735 = vsel %vm732, %v721, %v723
    %v736 = vsel %vm732, %v723, %v725
    %v737 = vsel %vm732, %v725, %v727
    %v738 = vsel %vm732, %v727, %v729
    %v739 = vsel %vm732, %v729, %v731
    %v741 = vsel %vm76, %v703, 0
    %v743 = vsel %vm80, %v733, 0
    %v745 = vsel %vm80, %v734, 0
    %v747 = vsel %vm80, %v735, 0
    %v749 = vsel %vm80, %v736, 0
    %v751 = vsel %vm80, %v737, 0
    %v753 = vsel %vm80, %v738, 0
    %v755 = vsel %vm80, %v739, 0
    %757 = vmatprep.subr.mxu0 %v745
    %758 = vmatpush1.msra.mxu0 %v743
    %759 = vmatprep.subr.mxu0 0.0
    %760 = vmatpush1.msra.mxu0 0.0
    %761 = vmatprep.subr.mxu0 0.0
    %762 = vmatpush1.msra.mxu0 0.0
    %763 = vmatprep.subr.mxu0 0.0
    %764 = vmatpush1.msra.mxu0 0.0
    %765 = vmatprep.subr.mxu0 0.0
    %766 = vmatpush1.msra.mxu0 0.0
    %767 = vmatprep.subr.mxu0 0.0
    %768 = vmatpush1.msra.mxu0 0.0
    %769 = vmatprep.subr.mxu0 0.0
    %770 = vmatpush1.msra.mxu0 0.0
    %771 = vmatprep.subr.mxu0 0.0
    %772 = vmatpush1.msra.mxu0 0.0
    %773 = vmatprep.subr.mxu0 0.0
    %774 = vmatpush1.msra.mxu0 0.0
    %775 = vmatprep.subr.mxu0 0.0
    %776 = vmatpush1.msra.mxu0 0.0
    %777 = vmatprep.subr.mxu0 0.0
    %778 = vmatpush1.msra.mxu0 0.0
    %779 = vmatprep.subr.mxu0 0.0
    %780 = vmatpush1.msra.mxu0 0.0
    %781 = vmatprep.subr.mxu0 0.0
    %782 = vmatpush1.msra.mxu0 0.0
    %783 = vmatprep.subr.mxu0 0.0
    %784 = vmatpush1.msra.mxu0 0.0
    %785 = vmatprep.subr.mxu0 0.0
    %786 = vmatpush1.msra.mxu0 0.0
    %787 = vmatprep.subr.mxu0 0.0
    %788 = vmatpush1.msra.mxu0 0.0
    %789 = vmatprep.subr.mxu0 0.0
    %790 = vmatpush1.msra.mxu0 0.0
    %791 = vmatprep.subr.mxu0 0.0
    %792 = vmatpush1.msra.mxu0 0.0
    %793 = vmatprep.subr.mxu0 0.0
    %794 = vmatpush1.msra.mxu0 0.0
    %795 = vmatprep.subr.mxu0 0.0
    %796 = vmatpush1.msra.mxu0 0.0
    %797 = vmatprep.subr.mxu0 0.0
    %798 = vmatpush1.msra.mxu0 0.0
    %799 = vmatprep.subr.mxu0 0.0
    %800 = vmatpush1.msra.mxu0 0.0
    %801 = vmatprep.subr.mxu0 0.0
    %802 = vmatpush1.msra.mxu0 0.0
    %803 = vmatprep.subr.mxu0 0.0
    %804 = vmatpush1.msra.mxu0 0.0
    %805 = vmatprep.subr.mxu0 0.0
    %806 = vmatpush1.msra.mxu0 0.0
    %807 = vmatprep.subr.mxu0 0.0
    %808 = vmatpush1.msra.mxu0 0.0
    %809 = vmatprep.subr.mxu0 0.0
    %810 = vmatpush1.msra.mxu0 0.0
    %811 = vmatprep.subr.mxu0 0.0
    %812 = vmatpush1.msra.mxu0 0.0
    %813 = vmatprep.subr.mxu0 0.0
    %814 = vmatpush1.msra.mxu0 0.0
    %815 = vmatprep.subr.mxu0 0.0
    %816 = vmatpush1.msra.mxu0 0.0
    %817 = vmatprep.subr.mxu0 0.0
    %818 = vmatpush1.msra.mxu0 0.0
    %819 = vmatprep.subr.mxu0 0.0
    %820 = vmatpush1.msra.mxu0 0.0
    %821 = vmatprep.mubr.f32.mxu0 0.0
    %822 = vmatmul.mubr.f32.gmra.mrb[0].mxu0 %v741
    %v823 = vpop.f32.mrb[0].mxu0
    %v824 = vadd.f32 0.0, %v823
    %v825 = vpop.f32.mrb[0].mxu0
    %v826 = vadd.f32 0.0, %v825
    %827 = vdwg.mxu0
    %828 = vmatprep.subr.mxu0 %v749
    %829 = vmatpush1.msra.mxu0 %v747
    %830 = vmatprep.subr.mxu0 0.0
    %831 = vmatpush1.msra.mxu0 0.0
    %832 = vmatprep.subr.mxu0 0.0
    %833 = vmatpush1.msra.mxu0 0.0
    %834 = vmatprep.subr.mxu0 0.0
    %835 = vmatpush1.msra.mxu0 0.0
    %836 = vmatprep.subr.mxu0 0.0
    %837 = vmatpush1.msra.mxu0 0.0
    %838 = vmatprep.subr.mxu0 0.0
    %839 = vmatpush1.msra.mxu0 0.0
    %840 = vmatprep.subr.mxu0 0.0
    %841 = vmatpush1.msra.mxu0 0.0
    %842 = vmatprep.subr.mxu0 0.0
    %843 = vmatpush1.msra.mxu0 0.0
    %844 = vmatprep.subr.mxu0 0.0
    %845 = vmatpush1.msra.mxu0 0.0
    %846 = vmatprep.subr.mxu0 0.0
    %847 = vmatpush1.msra.mxu0 0.0
    %848 = vmatprep.subr.mxu0 0.0
    %849 = vmatpush1.msra.mxu0 0.0
    %850 = vmatprep.subr.mxu0 0.0
    %851 = vmatpush1.msra.mxu0 0.0
    %852 = vmatprep.subr.mxu0 0.0
    %853 = vmatpush1.msra.mxu0 0.0
    %854 = vmatprep.subr.mxu0 0.0
    %855 = vmatpush1.msra.mxu0 0.0
    %856 = vmatprep.subr.mxu0 0.0
    %857 = vmatpush1.msra.mxu0 0.0
    %858 = vmatprep.subr.mxu0 0.0
    %859 = vmatpush1.msra.mxu0 0.0
    %860 = vmatprep.subr.mxu0 0.0
    %861 = vmatpush1.msra.mxu0 0.0
    %862 = vmatprep.subr.mxu0 0.0
    %863 = vmatpush1.msra.mxu0 0.0
    %864 = vmatprep.subr.mxu0 0.0
    %865 = vmatpush1.msra.mxu0 0.0
    %866 = vmatprep.subr.mxu0 0.0
    %867 = vmatpush1.msra.mxu0 0.0
    %868 = vmatprep.subr.mxu0 0.0
    %869 = vmatpush1.msra.mxu0 0.0
    %870 = vmatprep.subr.mxu0 0.0
    %871 = vmatpush1.msra.mxu0 0.0
    %872 = vmatprep.subr.mxu0 0.0
    %873 = vmatpush1.msra.mxu0 0.0
    %874 = vmatprep.subr.mxu0 0.0
    %875 = vmatpush1.msra.mxu0 0.0
    %876 = vmatprep.subr.mxu0 0.0
    %877 = vmatpush1.msra.mxu0 0.0
    %878 = vmatprep.subr.mxu0 0.0
    %879 = vmatpush1.msra.mxu0 0.0
    %880 = vmatprep.subr.mxu0 0.0
    %881 = vmatpush1.msra.mxu0 0.0
    %882 = vmatprep.subr.mxu0 0.0
    %883 = vmatpush1.msra.mxu0 0.0
    %884 = vmatprep.subr.mxu0 0.0
    %885 = vmatpush1.msra.mxu0 0.0
    %886 = vmatprep.subr.mxu0 0.0
    %887 = vmatpush1.msra.mxu0 0.0
    %888 = vmatprep.subr.mxu0 0.0
    %889 = vmatpush1.msra.mxu0 0.0
    %890 = vmatprep.subr.mxu0 0.0
    %891 = vmatpush1.msra.mxu0 0.0
    %892 = vmatprep.mubr.f32.mxu0 0.0
    %893 = vmatmul.mubr.f32.gmra.mrb[0].mxu0 %v741
    %v894 = vpop.f32.mrb[0].mxu0
    %v895 = vadd.f32 0.0, %v894
    %v896 = vpop.f32.mrb[0].mxu0
    %v897 = vadd.f32 0.0, %v896
    %898 = vdwg.mxu0
    %899 = vmatprep.subr.mxu0 %v753
    %900 = vmatpush1.msra.mxu0 %v751
    %901 = vmatprep.subr.mxu0 0.0
    %902 = vmatpush1.msra.mxu0 0.0
    %903 = vmatprep.subr.mxu0 0.0
    %904 = vmatpush1.msra.mxu0 0.0
    %905 = vmatprep.subr.mxu0 0.0
    %906 = vmatpush1.msra.mxu0 0.0
    %907 = vmatprep.subr.mxu0 0.0
    %908 = vmatpush1.msra.mxu0 0.0
    %909 = vmatprep.subr.mxu0 0.0
    %910 = vmatpush1.msra.mxu0 0.0
    %911 = vmatprep.subr.mxu0 0.0
    %912 = vmatpush1.msra.mxu0 0.0
    %913 = vmatprep.subr.mxu0 0.0
    %914 = vmatpush1.msra.mxu0 0.0
    %915 = vmatprep.subr.mxu0 0.0
    %916 = vmatpush1.msra.mxu0 0.0
    %917 = vmatprep.subr.mxu0 0.0
    %918 = vmatpush1.msra.mxu0 0.0
    %919 = vmatprep.subr.mxu0 0.0
    %920 = vmatpush1.msra.mxu0 0.0
    %921 = vmatprep.subr.mxu0 0.0
    %922 = vmatpush1.msra.mxu0 0.0
    %923 = vmatprep.subr.mxu0 0.0
    %924 = vmatpush1.msra.mxu0 0.0
    %925 = vmatprep.subr.mxu0 0.0
    %926 = vmatpush1.msra.mxu0 0.0
    %927 = vmatprep.subr.mxu0 0.0
    %928 = vmatpush1.msra.mxu0 0.0
    %929 = vmatprep.subr.mxu0 0.0
    %930 = vmatpush1.msra.mxu0 0.0
    %931 = vmatprep.subr.mxu0 0.0
    %932 = vmatpush1.msra.mxu0 0.0
    %933 = vmatprep.subr.mxu0 0.0
    %934 = vmatpush1.msra.mxu0 0.0
    %935 = vmatprep.subr.mxu0 0.0
    %936 = vmatpush1.msra.mxu0 0.0
    %937 = vmatprep.subr.mxu0 0.0
    %938 = vmatpush1.msra.mxu0 0.0
    %939 = vmatprep.subr.mxu0 0.0
    %940 = vmatpush1.msra.mxu0 0.0
    %941 = vmatprep.subr.mxu0 0.0
    %942 = vmatpush1.msra.mxu0 0.0
    %943 = vmatprep.subr.mxu0 0.0
    %944 = vmatpush1.msra.mxu0 0.0
    %945 = vmatprep.subr.mxu0 0.0
    %946 = vmatpush1.msra.mxu0 0.0
    %947 = vmatprep.subr.mxu0 0.0
    %948 = vmatpush1.msra.mxu0 0.0
    %949 = vmatprep.subr.mxu0 0.0
    %950 = vmatpush1.msra.mxu0 0.0
    %951 = vmatprep.subr.mxu0 0.0
    %952 = vmatpush1.msra.mxu0 0.0
    %953 = vmatprep.subr.mxu0 0.0
    %954 = vmatpush1.msra.mxu0 0.0
    %955 = vmatprep.subr.mxu0 0.0
    %956 = vmatpush1.msra.mxu0 0.0
    %957 = vmatprep.subr.mxu0 0.0
    %958 = vmatpush1.msra.mxu0 0.0
    %959 = vmatprep.subr.mxu0 0.0
    %960 = vmatpush1.msra.mxu0 0.0
    %961 = vmatprep.subr.mxu0 0.0
    %962 = vmatpush1.msra.mxu0 0.0
    %963 = vmatprep.mubr.f32.mxu0 0.0
    %964 = vmatmul.mubr.f32.gmra.mrb[0].mxu0 %v741
    %v965 = vpop.f32.mrb[0].mxu0
    %v966 = vadd.f32 0.0, %v965
    %v967 = vpop.f32.mrb[0].mxu0
    %v968 = vadd.f32 0.0, %v967
    %969 = vdwg.mxu0
    %970 = vmatprep.subr.mxu0 0.0
    %971 = vmatpush1.msra.mxu0 %v755
    %972 = vmatprep.subr.mxu0 0.0
    %973 = vmatpush1.msra.mxu0 0.0
    %974 = vmatprep.subr.mxu0 0.0
    %975 = vmatpush1.msra.mxu0 0.0
    %976 = vmatprep.subr.mxu0 0.0
    %977 = vmatpush1.msra.mxu0 0.0
    %978 = vmatprep.subr.mxu0 0.0
    %979 = vmatpush1.msra.mxu0 0.0
    %980 = vmatprep.subr.mxu0 0.0
    %981 = vmatpush1.msra.mxu0 0.0
    %982 = vmatprep.subr.mxu0 0.0
    %983 = vmatpush1.msra.mxu0 0.0
    %984 = vmatprep.subr.mxu0 0.0
    %985 = vmatpush1.msra.mxu0 0.0
    %986 = vmatprep.subr.mxu0 0.0
    %987 = vmatpush1.msra.mxu0 0.0
    %988 = vmatprep.subr.mxu0 0.0
    %989 = vmatpush1.msra.mxu0 0.0
    %990 = vmatprep.subr.mxu0 0.0
    %991 = vmatpush1.msra.mxu0 0.0
    %992 = vmatprep.subr.mxu0 0.0
    %993 = vmatpush1.msra.mxu0 0.0
    %994 = vmatprep.subr.mxu0 0.0
    %995 = vmatpush1.msra.mxu0 0.0
    %996 = vmatprep.subr.mxu0 0.0
    %997 = vmatpush1.msra.mxu0 0.0
    %998 = vmatprep.subr.mxu0 0.0
    %999 = vmatpush1.msra.mxu0 0.0
    %1000 = vmatprep.subr.mxu0 0.0
    %1001 = vmatpush1.msra.mxu0 0.0
    %1002 = vmatprep.subr.mxu0 0.0
    %1003 = vmatpush1.msra.mxu0 0.0
    %1004 = vmatprep.subr.mxu0 0.0
    %1005 = vmatpush1.msra.mxu0 0.0
    %1006 = vmatprep.subr.mxu0 0.0
    %1007 = vmatpush1.msra.mxu0 0.0
    %1008 = vmatprep.subr.mxu0 0.0
    %1009 = vmatpush1.msra.mxu0 0.0
    %1010 = vmatprep.subr.mxu0 0.0
    %1011 = vmatpush1.msra.mxu0 0.0
    %1012 = vmatprep.subr.mxu0 0.0
    %1013 = vmatpush1.msra.mxu0 0.0
    %1014 = vmatprep.subr.mxu0 0.0
    %1015 = vmatpush1.msra.mxu0 0.0
    %1016 = vmatprep.subr.mxu0 0.0
    %1017 = vmatpush1.msra.mxu0 0.0
    %1018 = vmatprep.subr.mxu0 0.0
    %1019 = vmatpush1.msra.mxu0 0.0
    %1020 = vmatprep.subr.mxu0 0.0
    %1021 = vmatpush1.msra.mxu0 0.0
    %1022 = vmatprep.subr.mxu0 0.0
    %1023 = vmatpush1.msra.mxu0 0.0
    %1024 = vmatprep.subr.mxu0 0.0
    %1025 = vmatpush1.msra.mxu0 0.0
    %1026 = vmatprep.subr.mxu0 0.0
    %1027 = vmatpush1.msra.mxu0 0.0
    %1028 = vmatprep.subr.mxu0 0.0
    %1029 = vmatpush1.msra.mxu0 0.0
    %1030 = vmatprep.subr.mxu0 0.0
    %1031 = vmatpush1.msra.mxu0 0.0
    %1032 = vmatprep.subr.mxu0 0.0
    %1033 = vmatpush1.msra.mxu0 0.0
    %1034 = vmatprep.mubr.f32.mxu0 0.0
    %1035 = vmatmul.mubr.f32.gmra.mrb[0].mxu0 %v741
    %v1036 = vpop.f32.mrb[0].mxu0
    %v1037 = vadd.f32 0.0, %v1036
    %v1038 = vpop.f32.mrb[0].mxu0
    %1039 = vdwg.mxu0
    %v1040 = vadd.f32 %v486, %v824
    %v1041 = vadd.f32 %v488, %v826
    %v1042 = vadd.f32 %v557, %v895
    %v1043 = vadd.f32 %v559, %v897
    %v1044 = vadd.f32 %v628, %v966
    %v1045 = vadd.f32 %v630, %v968
    %v1046 = vadd.f32 %v699, %v1037
    %s1047 = scalar_lea.vmem %s1, 12
    %v1048 = vld [vmem:[%s1047] sm:$0xf]
    %v1049 = vld [vmem:[%s0] sm:$0xff]
    %v1050 = vld [vmem:[%s0 + $0x8] sm:$0xff]
    %v1051 = vld [vmem:[%s0 + $0x10] sm:$0xff]
    %v1052 = vld [vmem:[%s0 + $0x18] sm:$0xff]
    %v1057 = vcombine.high %v1049, %v1049
    %v1058 = vcombine.high %v1050, %v1050
    %v1059 = vcombine.high %v1051, %v1051
    %v1060 = vcombine.high %v1052, %v1052
    %1061 = vrot.lane.b32.xlu0 %v1049, 1
    %v1062 = vpop.permute.xlu0 %1061
    %1063 = vrot.lane.b32.xlu0 %v1057, 1
    %v1064 = vpop.permute.xlu0 %1063
    %1065 = vrot.lane.b32.xlu0 %v1050, 1
    %v1066 = vpop.permute.xlu0 %1065
    %1067 = vrot.lane.b32.xlu0 %v1058, 1
    %v1068 = vpop.permute.xlu0 %1067
    %1069 = vrot.lane.b32.xlu0 %v1051, 1
    %v1070 = vpop.permute.xlu0 %1069
    %1071 = vrot.lane.b32.xlu0 %v1059, 1
    %v1072 = vpop.permute.xlu0 %1071
    %1073 = vrot.lane.b32.xlu0 %v1052, 1
    %v1074 = vpop.permute.xlu0 %1073
    %1075 = vrot.lane.b32.xlu0 %v1060, 1
    %v1076 = vpop.permute.xlu0 %1075
    %vm1077 = vcmask 7168
    %v1078 = vsel %vm1077, %v1062, %v1064
    %v1079 = vsel %vm1077, %v1064, %v1066
    %v1080 = vsel %vm1077, %v1066, %v1068
    %v1081 = vsel %vm1077, %v1068, %v1070
    %v1082 = vsel %vm1077, %v1070, %v1072
    %v1083 = vsel %vm1077, %v1072, %v1074
    %v1084 = vsel %vm1077, %v1074, %v1076
    %v1086 = vsel %vm76, %v1048, 0
    %v1088 = vsel %vm80, %v1078, 0
    %v1090 = vsel %vm80, %v1079, 0
    %v1092 = vsel %vm80, %v1080, 0
    %v1094 = vsel %vm80, %v1081, 0
    %v1096 = vsel %vm80, %v1082, 0
    %v1098 = vsel %vm80, %v1083, 0
    %v1100 = vsel %vm80, %v1084, 0
    %1102 = vmatprep.subr.mxu0 %v1090
    %1103 = vmatpush1.msra.mxu0 %v1088
    %1104 = vmatprep.subr.mxu0 0.0
    %1105 = vmatpush1.msra.mxu0 0.0
    %1106 = vmatprep.subr.mxu0 0.0
    %1107 = vmatpush1.msra.mxu0 0.0
    %1108 = vmatprep.subr.mxu0 0.0
    %1109 = vmatpush1.msra.mxu0 0.0
    %1110 = vmatprep.subr.mxu0 0.0
    %1111 = vmatpush1.msra.mxu0 0.0
    %1112 = vmatprep.subr.mxu0 0.0
    %1113 = vmatpush1.msra.mxu0 0.0
    %1114 = vmatprep.subr.mxu0 0.0
    %1115 = vmatpush1.msra.mxu0 0.0
    %1116 = vmatprep.subr.mxu0 0.0
    %1117 = vmatpush1.msra.mxu0 0.0
    %1118 = vmatprep.subr.mxu0 0.0
    %1119 = vmatpush1.msra.mxu0 0.0
    %1120 = vmatprep.subr.mxu0 0.0
    %1121 = vmatpush1.msra.mxu0 0.0
    %1122 = vmatprep.subr.mxu0 0.0
    %1123 = vmatpush1.msra.mxu0 0.0
    %1124 = vmatprep.subr.mxu0 0.0
    %1125 = vmatpush1.msra.mxu0 0.0
    %1126 = vmatprep.subr.mxu0 0.0
    %1127 = vmatpush1.msra.mxu0 0.0
    %1128 = vmatprep.subr.mxu0 0.0
    %1129 = vmatpush1.msra.mxu0 0.0
    %1130 = vmatprep.subr.mxu0 0.0
    %1131 = vmatpush1.msra.mxu0 0.0
    %1132 = vmatprep.subr.mxu0 0.0
    %1133 = vmatpush1.msra.mxu0 0.0
    %1134 = vmatprep.subr.mxu0 0.0
    %1135 = vmatpush1.msra.mxu0 0.0
    %1136 = vmatprep.subr.mxu0 0.0
    %1137 = vmatpush1.msra.mxu0 0.0
    %1138 = vmatprep.subr.mxu0 0.0
    %1139 = vmatpush1.msra.mxu0 0.0
    %1140 = vmatprep.subr.mxu0 0.0
    %1141 = vmatpush1.msra.mxu0 0.0
    %1142 = vmatprep.subr.mxu0 0.0
    %1143 = vmatpush1.msra.mxu0 0.0
    %1144 = vmatprep.subr.mxu0 0.0
    %1145 = vmatpush1.msra.mxu0 0.0
    %1146 = vmatprep.subr.mxu0 0.0
    %1147 = vmatpush1.msra.mxu0 0.0
    %1148 = vmatprep.subr.mxu0 0.0
    %1149 = vmatpush1.msra.mxu0 0.0
    %1150 = vmatprep.subr.mxu0 0.0
    %1151 = vmatpush1.msra.mxu0 0.0
    %1152 = vmatprep.subr.mxu0 0.0
    %1153 = vmatpush1.msra.mxu0 0.0
    %1154 = vmatprep.subr.mxu0 0.0
    %1155 = vmatpush1.msra.mxu0 0.0
    %1156 = vmatprep.subr.mxu0 0.0
    %1157 = vmatpush1.msra.mxu0 0.0
    %1158 = vmatprep.subr.mxu0 0.0
    %1159 = vmatpush1.msra.mxu0 0.0
    %1160 = vmatprep.subr.mxu0 0.0
    %1161 = vmatpush1.msra.mxu0 0.0
    %1162 = vmatprep.subr.mxu0 0.0
    %1163 = vmatpush1.msra.mxu0 0.0
    %1164 = vmatprep.subr.mxu0 0.0
    %1165 = vmatpush1.msra.mxu0 0.0
    %1166 = vmatprep.mubr.f32.mxu0 0.0
    %1167 = vmatmul.mubr.f32.gmra.mrb[0].mxu0 %v1086
    %v1168 = vpop.f32.mrb[0].mxu0
    %v1169 = vadd.f32 0.0, %v1168
    %v1170 = vpop.f32.mrb[0].mxu0
    %v1171 = vadd.f32 0.0, %v1170
    %1172 = vdwg.mxu0
    %1173 = vmatprep.subr.mxu0 %v1094
    %1174 = vmatpush1.msra.mxu0 %v1092
    %1175 = vmatprep.subr.mxu0 0.0
    %1176 = vmatpush1.msra.mxu0 0.0
    %1177 = vmatprep.subr.mxu0 0.0
    %1178 = vmatpush1.msra.mxu0 0.0
    %1179 = vmatprep.subr.mxu0 0.0
    %1180 = vmatpush1.msra.mxu0 0.0
    %1181 = vmatprep.subr.mxu0 0.0
    %1182 = vmatpush1.msra.mxu0 0.0
    %1183 = vmatprep.subr.mxu0 0.0
    %1184 = vmatpush1.msra.mxu0 0.0
    %1185 = vmatprep.subr.mxu0 0.0
    %1186 = vmatpush1.msra.mxu0 0.0
    %1187 = vmatprep.subr.mxu0 0.0
    %1188 = vmatpush1.msra.mxu0 0.0
    %1189 = vmatprep.subr.mxu0 0.0
    %1190 = vmatpush1.msra.mxu0 0.0
    %1191 = vmatprep.subr.mxu0 0.0
    %1192 = vmatpush1.msra.mxu0 0.0
    %1193 = vmatprep.subr.mxu0 0.0
    %1194 = vmatpush1.msra.mxu0 0.0
    %1195 = vmatprep.subr.mxu0 0.0
    %1196 = vmatpush1.msra.mxu0 0.0
    %1197 = vmatprep.subr.mxu0 0.0
    %1198 = vmatpush1.msra.mxu0 0.0
    %1199 = vmatprep.subr.mxu0 0.0
    %1200 = vmatpush1.msra.mxu0 0.0
    %1201 = vmatprep.subr.mxu0 0.0
    %1202 = vmatpush1.msra.mxu0 0.0
    %1203 = vmatprep.subr.mxu0 0.0
    %1204 = vmatpush1.msra.mxu0 0.0
    %1205 = vmatprep.subr.mxu0 0.0
    %1206 = vmatpush1.msra.mxu0 0.0
    %1207 = vmatprep.subr.mxu0 0.0
    %1208 = vmatpush1.msra.mxu0 0.0
    %1209 = vmatprep.subr.mxu0 0.0
    %1210 = vmatpush1.msra.mxu0 0.0
    %1211 = vmatprep.subr.mxu0 0.0
    %1212 = vmatpush1.msra.mxu0 0.0
    %1213 = vmatprep.subr.mxu0 0.0
    %1214 = vmatpush1.msra.mxu0 0.0
    %1215 = vmatprep.subr.mxu0 0.0
    %1216 = vmatpush1.msra.mxu0 0.0
    %1217 = vmatprep.subr.mxu0 0.0
    %1218 = vmatpush1.msra.mxu0 0.0
    %1219 = vmatprep.subr.mxu0 0.0
    %1220 = vmatpush1.msra.mxu0 0.0
    %1221 = vmatprep.subr.mxu0 0.0
    %1222 = vmatpush1.msra.mxu0 0.0
    %1223 = vmatprep.subr.mxu0 0.0
    %1224 = vmatpush1.msra.mxu0 0.0
    %1225 = vmatprep.subr.mxu0 0.0
    %1226 = vmatpush1.msra.mxu0 0.0
    %1227 = vmatprep.subr.mxu0 0.0
    %1228 = vmatpush1.msra.mxu0 0.0
    %1229 = vmatprep.subr.mxu0 0.0
    %1230 = vmatpush1.msra.mxu0 0.0
    %1231 = vmatprep.subr.mxu0 0.0
    %1232 = vmatpush1.msra.mxu0 0.0
    %1233 = vmatprep.subr.mxu0 0.0
    %1234 = vmatpush1.msra.mxu0 0.0
    %1235 = vmatprep.subr.mxu0 0.0
    %1236 = vmatpush1.msra.mxu0 0.0
    %1237 = vmatprep.mubr.f32.mxu0 0.0
    %1238 = vmatmul.mubr.f32.gmra.mrb[0].mxu0 %v1086
    %v1239 = vpop.f32.mrb[0].mxu0
    %v1240 = vadd.f32 0.0, %v1239
    %v1241 = vpop.f32.mrb[0].mxu0
    %v1242 = vadd.f32 0.0, %v1241
    %1243 = vdwg.mxu0
    %1244 = vmatprep.subr.mxu0 %v1098
    %1245 = vmatpush1.msra.mxu0 %v1096
    %1246 = vmatprep.subr.mxu0 0.0
    %1247 = vmatpush1.msra.mxu0 0.0
    %1248 = vmatprep.subr.mxu0 0.0
    %1249 = vmatpush1.msra.mxu0 0.0
    %1250 = vmatprep.subr.mxu0 0.0
    %1251 = vmatpush1.msra.mxu0 0.0
    %1252 = vmatprep.subr.mxu0 0.0
    %1253 = vmatpush1.msra.mxu0 0.0
    %1254 = vmatprep.subr.mxu0 0.0
    %1255 = vmatpush1.msra.mxu0 0.0
    %1256 = vmatprep.subr.mxu0 0.0
    %1257 = vmatpush1.msra.mxu0 0.0
    %1258 = vmatprep.subr.mxu0 0.0
    %1259 = vmatpush1.msra.mxu0 0.0
    %1260 = vmatprep.subr.mxu0 0.0
    %1261 = vmatpush1.msra.mxu0 0.0
    %1262 = vmatprep.subr.mxu0 0.0
    %1263 = vmatpush1.msra.mxu0 0.0
    %1264 = vmatprep.subr.mxu0 0.0
    %1265 = vmatpush1.msra.mxu0 0.0
    %1266 = vmatprep.subr.mxu0 0.0
    %1267 = vmatpush1.msra.mxu0 0.0
    %1268 = vmatprep.subr.mxu0 0.0
    %1269 = vmatpush1.msra.mxu0 0.0
    %1270 = vmatprep.subr.mxu0 0.0
    %1271 = vmatpush1.msra.mxu0 0.0
    %1272 = vmatprep.subr.mxu0 0.0
    %1273 = vmatpush1.msra.mxu0 0.0
    %1274 = vmatprep.subr.mxu0 0.0
    %1275 = vmatpush1.msra.mxu0 0.0
    %1276 = vmatprep.subr.mxu0 0.0
    %1277 = vmatpush1.msra.mxu0 0.0
    %1278 = vmatprep.subr.mxu0 0.0
    %1279 = vmatpush1.msra.mxu0 0.0
    %1280 = vmatprep.subr.mxu0 0.0
    %1281 = vmatpush1.msra.mxu0 0.0
    %1282 = vmatprep.subr.mxu0 0.0
    %1283 = vmatpush1.msra.mxu0 0.0
    %1284 = vmatprep.subr.mxu0 0.0
    %1285 = vmatpush1.msra.mxu0 0.0
    %1286 = vmatprep.subr.mxu0 0.0
    %1287 = vmatpush1.msra.mxu0 0.0
    %1288 = vmatprep.subr.mxu0 0.0
    %1289 = vmatpush1.msra.mxu0 0.0
    %1290 = vmatprep.subr.mxu0 0.0
    %1291 = vmatpush1.msra.mxu0 0.0
    %1292 = vmatprep.subr.mxu0 0.0
    %1293 = vmatpush1.msra.mxu0 0.0
    %1294 = vmatprep.subr.mxu0 0.0
    %1295 = vmatpush1.msra.mxu0 0.0
    %1296 = vmatprep.subr.mxu0 0.0
    %1297 = vmatpush1.msra.mxu0 0.0
    %1298 = vmatprep.subr.mxu0 0.0
    %1299 = vmatpush1.msra.mxu0 0.0
    %1300 = vmatprep.subr.mxu0 0.0
    %1301 = vmatpush1.msra.mxu0 0.0
    %1302 = vmatprep.subr.mxu0 0.0
    %1303 = vmatpush1.msra.mxu0 0.0
    %1304 = vmatprep.subr.mxu0 0.0
    %1305 = vmatpush1.msra.mxu0 0.0
    %1306 = vmatprep.subr.mxu0 0.0
    %1307 = vmatpush1.msra.mxu0 0.0
    %1308 = vmatprep.mubr.f32.mxu0 0.0
    %1309 = vmatmul.mubr.f32.gmra.mrb[0].mxu0 %v1086
    %v1310 = vpop.f32.mrb[0].mxu0
    %v1311 = vadd.f32 0.0, %v1310
    %v1312 = vpop.f32.mrb[0].mxu0
    %v1313 = vadd.f32 0.0, %v1312
    %1314 = vdwg.mxu0
    %1315 = vmatprep.subr.mxu0 0.0
    %1316 = vmatpush1.msra.mxu0 %v1100
    %1317 = vmatprep.subr.mxu0 0.0
    %1318 = vmatpush1.msra.mxu0 0.0
    %1319 = vmatprep.subr.mxu0 0.0
    %1320 = vmatpush1.msra.mxu0 0.0
    %1321 = vmatprep.subr.mxu0 0.0
    %1322 = vmatpush1.msra.mxu0 0.0
    %1323 = vmatprep.subr.mxu0 0.0
    %1324 = vmatpush1.msra.mxu0 0.0
    %1325 = vmatprep.subr.mxu0 0.0
    %1326 = vmatpush1.msra.mxu0 0.0
    %1327 = vmatprep.subr.mxu0 0.0
    %1328 = vmatpush1.msra.mxu0 0.0
    %1329 = vmatprep.subr.mxu0 0.0
    %1330 = vmatpush1.msra.mxu0 0.0
    %1331 = vmatprep.subr.mxu0 0.0
    %1332 = vmatpush1.msra.mxu0 0.0
    %1333 = vmatprep.subr.mxu0 0.0
    %1334 = vmatpush1.msra.mxu0 0.0
    %1335 = vmatprep.subr.mxu0 0.0
    %1336 = vmatpush1.msra.mxu0 0.0
    %1337 = vmatprep.subr.mxu0 0.0
    %1338 = vmatpush1.msra.mxu0 0.0
    %1339 = vmatprep.subr.mxu0 0.0
    %1340 = vmatpush1.msra.mxu0 0.0
    %1341 = vmatprep.subr.mxu0 0.0
    %1342 = vmatpush1.msra.mxu0 0.0
    %1343 = vmatprep.subr.mxu0 0.0
    %1344 = vmatpush1.msra.mxu0 0.0
    %1345 = vmatprep.subr.mxu0 0.0
    %1346 = vmatpush1.msra.mxu0 0.0
    %1347 = vmatprep.subr.mxu0 0.0
    %1348 = vmatpush1.msra.mxu0 0.0
    %1349 = vmatprep.subr.mxu0 0.0
    %1350 = vmatpush1.msra.mxu0 0.0
    %1351 = vmatprep.subr.mxu0 0.0
    %1352 = vmatpush1.msra.mxu0 0.0
    %1353 = vmatprep.subr.mxu0 0.0
    %1354 = vmatpush1.msra.mxu0 0.0
    %1355 = vmatprep.subr.mxu0 0.0
    %1356 = vmatpush1.msra.mxu0 0.0
    %1357 = vmatprep.subr.mxu0 0.0
    %1358 = vmatpush1.msra.mxu0 0.0
    %1359 = vmatprep.subr.mxu0 0.0
    %1360 = vmatpush1.msra.mxu0 0.0
    %1361 = vmatprep.subr.mxu0 0.0
    %1362 = vmatpush1.msra.mxu0 0.0
    %1363 = vmatprep.subr.mxu0 0.0
    %1364 = vmatpush1.msra.mxu0 0.0
    %1365 = vmatprep.subr.mxu0 0.0
    %1366 = vmatpush1.msra.mxu0 0.0
    %1367 = vmatprep.subr.mxu0 0.0
    %1368 = vmatpush1.msra.mxu0 0.0
    %1369 = vmatprep.subr.mxu0 0.0
    %1370 = vmatpush1.msra.mxu0 0.0
    %1371 = vmatprep.subr.mxu0 0.0
    %1372 = vmatpush1.msra.mxu0 0.0
    %1373 = vmatprep.subr.mxu0 0.0
    %1374 = vmatpush1.msra.mxu0 0.0
    %1375 = vmatprep.subr.mxu0 0.0
    %1376 = vmatpush1.msra.mxu0 0.0
    %1377 = vmatprep.subr.mxu0 0.0
    %1378 = vmatpush1.msra.mxu0 0.0
    %1379 = vmatprep.mubr.f32.mxu0 0.0
    %1380 = vmatmul.mubr.f32.gmra.mrb[0].mxu0 %v1086
    %v1381 = vpop.f32.mrb[0].mxu0
    %v1382 = vadd.f32 0.0, %v1381
    %v1383 = vpop.f32.mrb[0].mxu0
    %1384 = vdwg.mxu0
    %v1385 = vadd.f32 %v1040, %v1169
    %v1386 = vadd.f32 %v1041, %v1171
    %v1387 = vadd.f32 %v1042, %v1240
    %v1388 = vadd.f32 %v1043, %v1242
    %v1389 = vadd.f32 %v1044, %v1311
    %v1390 = vadd.f32 %v1045, %v1313
    %v1391 = vadd.f32 %v1046, %v1382
    %s1392 = scalar_lea.vmem %s1, 16
    %v1393 = vld [vmem:[%s1392] sm:$0xf]
    %v1394 = vld [vmem:[%s0 + $0x4] sm:$0xff]
    %v1395 = vld [vmem:[%s0 + $0xc] sm:$0xff]
    %v1396 = vld [vmem:[%s0 + $0x14] sm:$0xff]
    %v1397 = vld [vmem:[%s0 + $0x1c] sm:$0xf]
    %v1402 = vcombine.high %v1394, %v1394
    %v1403 = vcombine.high %v1395, %v1395
    %v1404 = vcombine.high %v1396, %v1396
    %v1406 = vsel %vm76, %v1393, 0
    %v1408 = vsel %vm80, %v1394, 0
    %v1410 = vsel %vm80, %v1402, 0
    %v1412 = vsel %vm80, %v1395, 0
    %v1414 = vsel %vm80, %v1403, 0
    %v1416 = vsel %vm80, %v1396, 0
    %v1418 = vsel %vm80, %v1404, 0
    %v1420 = vsel %vm80, %v1397, 0
    %1422 = vmatprep.subr.mxu0 %v1410
    %1423 = vmatpush1.msra.mxu0 %v1408
    %1424 = vmatprep.subr.mxu0 0.0
    %1425 = vmatpush1.msra.mxu0 0.0
    %1426 = vmatprep.subr.mxu0 0.0
    %1427 = vmatpush1.msra.mxu0 0.0
    %1428 = vmatprep.subr.mxu0 0.0
    %1429 = vmatpush1.msra.mxu0 0.0
    %1430 = vmatprep.subr.mxu0 0.0
    %1431 = vmatpush1.msra.mxu0 0.0
    %1432 = vmatprep.subr.mxu0 0.0
    %1433 = vmatpush1.msra.mxu0 0.0
    %1434 = vmatprep.subr.mxu0 0.0
    %1435 = vmatpush1.msra.mxu0 0.0
    %1436 = vmatprep.subr.mxu0 0.0
    %1437 = vmatpush1.msra.mxu0 0.0
    %1438 = vmatprep.subr.mxu0 0.0
    %1439 = vmatpush1.msra.mxu0 0.0
    %1440 = vmatprep.subr.mxu0 0.0
    %1441 = vmatpush1.msra.mxu0 0.0
    %1442 = vmatprep.subr.mxu0 0.0
    %1443 = vmatpush1.msra.mxu0 0.0
    %1444 = vmatprep.subr.mxu0 0.0
    %1445 = vmatpush1.msra.mxu0 0.0
    %1446 = vmatprep.subr.mxu0 0.0
    %1447 = vmatpush1.msra.mxu0 0.0
    %1448 = vmatprep.subr.mxu0 0.0
    %1449 = vmatpush1.msra.mxu0 0.0
    %1450 = vmatprep.subr.mxu0 0.0
    %1451 = vmatpush1.msra.mxu0 0.0
    %1452 = vmatprep.subr.mxu0 0.0
    %1453 = vmatpush1.msra.mxu0 0.0
    %1454 = vmatprep.subr.mxu0 0.0
    %1455 = vmatpush1.msra.mxu0 0.0
    %1456 = vmatprep.subr.mxu0 0.0
    %1457 = vmatpush1.msra.mxu0 0.0
    %1458 = vmatprep.subr.mxu0 0.0
    %1459 = vmatpush1.msra.mxu0 0.0
    %1460 = vmatprep.subr.mxu0 0.0
    %1461 = vmatpush1.msra.mxu0 0.0
    %1462 = vmatprep.subr.mxu0 0.0
    %1463 = vmatpush1.msra.mxu0 0.0
    %1464 = vmatprep.subr.mxu0 0.0
    %1465 = vmatpush1.msra.mxu0 0.0
    %1466 = vmatprep.subr.mxu0 0.0
    %1467 = vmatpush1.msra.mxu0 0.0
    %1468 = vmatprep.subr.mxu0 0.0
    %1469 = vmatpush1.msra.mxu0 0.0
    %1470 = vmatprep.subr.mxu0 0.0
    %1471 = vmatpush1.msra.mxu0 0.0
    %1472 = vmatprep.subr.mxu0 0.0
    %1473 = vmatpush1.msra.mxu0 0.0
    %1474 = vmatprep.subr.mxu0 0.0
    %1475 = vmatpush1.msra.mxu0 0.0
    %1476 = vmatprep.subr.mxu0 0.0
    %1477 = vmatpush1.msra.mxu0 0.0
    %1478 = vmatprep.subr.mxu0 0.0
    %1479 = vmatpush1.msra.mxu0 0.0
    %1480 = vmatprep.subr.mxu0 0.0
    %1481 = vmatpush1.msra.mxu0 0.0
    %1482 = vmatprep.subr.mxu0 0.0
    %1483 = vmatpush1.msra.mxu0 0.0
    %1484 = vmatprep.subr.mxu0 0.0
    %1485 = vmatpush1.msra.mxu0 0.0
    %1486 = vmatprep.mubr.f32.mxu0 0.0
    %1487 = vmatmul.mubr.f32.gmra.mrb[0].mxu0 %v1406
    %v1488 = vpop.f32.mrb[0].mxu0
    %v1489 = vadd.f32 0.0, %v1488
    %v1490 = vpop.f32.mrb[0].mxu0
    %v1491 = vadd.f32 0.0, %v1490
    %1492 = vdwg.mxu0
    %1493 = vmatprep.subr.mxu0 %v1414
    %1494 = vmatpush1.msra.mxu0 %v1412
    %1495 = vmatprep.subr.mxu0 0.0
    %1496 = vmatpush1.msra.mxu0 0.0
    %1497 = vmatprep.subr.mxu0 0.0
    %1498 = vmatpush1.msra.mxu0 0.0
    %1499 = vmatprep.subr.mxu0 0.0
    %1500 = vmatpush1.msra.mxu0 0.0
    %1501 = vmatprep.subr.mxu0 0.0
    %1502 = vmatpush1.msra.mxu0 0.0
    %1503 = vmatprep.subr.mxu0 0.0
    %1504 = vmatpush1.msra.mxu0 0.0
    %1505 = vmatprep.subr.mxu0 0.0
    %1506 = vmatpush1.msra.mxu0 0.0
    %1507 = vmatprep.subr.mxu0 0.0
    %1508 = vmatpush1.msra.mxu0 0.0
    %1509 = vmatprep.subr.mxu0 0.0
    %1510 = vmatpush1.msra.mxu0 0.0
    %1511 = vmatprep.subr.mxu0 0.0
    %1512 = vmatpush1.msra.mxu0 0.0
    %1513 = vmatprep.subr.mxu0 0.0
    %1514 = vmatpush1.msra.mxu0 0.0
    %1515 = vmatprep.subr.mxu0 0.0
    %1516 = vmatpush1.msra.mxu0 0.0
    %1517 = vmatprep.subr.mxu0 0.0
    %1518 = vmatpush1.msra.mxu0 0.0
    %1519 = vmatprep.subr.mxu0 0.0
    %1520 = vmatpush1.msra.mxu0 0.0
    %1521 = vmatprep.subr.mxu0 0.0
    %1522 = vmatpush1.msra.mxu0 0.0
    %1523 = vmatprep.subr.mxu0 0.0
    %1524 = vmatpush1.msra.mxu0 0.0
    %1525 = vmatprep.subr.mxu0 0.0
    %1526 = vmatpush1.msra.mxu0 0.0
    %1527 = vmatprep.subr.mxu0 0.0
    %1528 = vmatpush1.msra.mxu0 0.0
    %1529 = vmatprep.subr.mxu0 0.0
    %1530 = vmatpush1.msra.mxu0 0.0
    %1531 = vmatprep.subr.mxu0 0.0
    %1532 = vmatpush1.msra.mxu0 0.0
    %1533 = vmatprep.subr.mxu0 0.0
    %1534 = vmatpush1.msra.mxu0 0.0
    %1535 = vmatprep.subr.mxu0 0.0
    %1536 = vmatpush1.msra.mxu0 0.0
    %1537 = vmatprep.subr.mxu0 0.0
    %1538 = vmatpush1.msra.mxu0 0.0
    %1539 = vmatprep.subr.mxu0 0.0
    %1540 = vmatpush1.msra.mxu0 0.0
    %1541 = vmatprep.subr.mxu0 0.0
    %1542 = vmatpush1.msra.mxu0 0.0
    %1543 = vmatprep.subr.mxu0 0.0
    %1544 = vmatpush1.msra.mxu0 0.0
    %1545 = vmatprep.subr.mxu0 0.0
    %1546 = vmatpush1.msra.mxu0 0.0
    %1547 = vmatprep.subr.mxu0 0.0
    %1548 = vmatpush1.msra.mxu0 0.0
    %1549 = vmatprep.subr.mxu0 0.0
    %1550 = vmatpush1.msra.mxu0 0.0
    %1551 = vmatprep.subr.mxu0 0.0
    %1552 = vmatpush1.msra.mxu0 0.0
    %1553 = vmatprep.subr.mxu0 0.0
    %1554 = vmatpush1.msra.mxu0 0.0
    %1555 = vmatprep.subr.mxu0 0.0
    %1556 = vmatpush1.msra.mxu0 0.0
    %1557 = vmatprep.mubr.f32.mxu0 0.0
    %1558 = vmatmul.mubr.f32.gmra.mrb[0].mxu0 %v1406
    %v1559 = vpop.f32.mrb[0].mxu0
    %v1560 = vadd.f32 0.0, %v1559
    %v1561 = vpop.f32.mrb[0].mxu0
    %v1562 = vadd.f32 0.0, %v1561
    %1563 = vdwg.mxu0
    %1564 = vmatprep.subr.mxu0 %v1418
    %1565 = vmatpush1.msra.mxu0 %v1416
    %1566 = vmatprep.subr.mxu0 0.0
    %1567 = vmatpush1.msra.mxu0 0.0
    %1568 = vmatprep.subr.mxu0 0.0
    %1569 = vmatpush1.msra.mxu0 0.0
    %1570 = vmatprep.subr.mxu0 0.0
    %1571 = vmatpush1.msra.mxu0 0.0
    %1572 = vmatprep.subr.mxu0 0.0
    %1573 = vmatpush1.msra.mxu0 0.0
    %1574 = vmatprep.subr.mxu0 0.0
    %1575 = vmatpush1.msra.mxu0 0.0
    %1576 = vmatprep.subr.mxu0 0.0
    %1577 = vmatpush1.msra.mxu0 0.0
    %1578 = vmatprep.subr.mxu0 0.0
    %1579 = vmatpush1.msra.mxu0 0.0
    %1580 = vmatprep.subr.mxu0 0.0
    %1581 = vmatpush1.msra.mxu0 0.0
    %1582 = vmatprep.subr.mxu0 0.0
    %1583 = vmatpush1.msra.mxu0 0.0
    %1584 = vmatprep.subr.mxu0 0.0
    %1585 = vmatpush1.msra.mxu0 0.0
    %1586 = vmatprep.subr.mxu0 0.0
    %1587 = vmatpush1.msra.mxu0 0.0
    %1588 = vmatprep.subr.mxu0 0.0
    %1589 = vmatpush1.msra.mxu0 0.0
    %1590 = vmatprep.subr.mxu0 0.0
    %1591 = vmatpush1.msra.mxu0 0.0
    %1592 = vmatprep.subr.mxu0 0.0
    %1593 = vmatpush1.msra.mxu0 0.0
    %1594 = vmatprep.subr.mxu0 0.0
    %1595 = vmatpush1.msra.mxu0 0.0
    %1596 = vmatprep.subr.mxu0 0.0
    %1597 = vmatpush1.msra.mxu0 0.0
    %1598 = vmatprep.subr.mxu0 0.0
    %1599 = vmatpush1.msra.mxu0 0.0
    %1600 = vmatprep.subr.mxu0 0.0
    %1601 = vmatpush1.msra.mxu0 0.0
    %1602 = vmatprep.subr.mxu0 0.0
    %1603 = vmatpush1.msra.mxu0 0.0
    %1604 = vmatprep.subr.mxu0 0.0
    %1605 = vmatpush1.msra.mxu0 0.0
    %1606 = vmatprep.subr.mxu0 0.0
    %1607 = vmatpush1.msra.mxu0 0.0
    %1608 = vmatprep.subr.mxu0 0.0
    %1609 = vmatpush1.msra.mxu0 0.0
    %1610 = vmatprep.subr.mxu0 0.0
    %1611 = vmatpush1.msra.mxu0 0.0
    %1612 = vmatprep.subr.mxu0 0.0
    %1613 = vmatpush1.msra.mxu0 0.0
    %1614 = vmatprep.subr.mxu0 0.0
    %1615 = vmatpush1.msra.mxu0 0.0
    %1616 = vmatprep.subr.mxu0 0.0
    %1617 = vmatpush1.msra.mxu0 0.0
    %1618 = vmatprep.subr.mxu0 0.0
    %1619 = vmatpush1.msra.mxu0 0.0
    %1620 = vmatprep.subr.mxu0 0.0
    %1621 = vmatpush1.msra.mxu0 0.0
    %1622 = vmatprep.subr.mxu0 0.0
    %1623 = vmatpush1.msra.mxu0 0.0
    %1624 = vmatprep.subr.mxu0 0.0
    %1625 = vmatpush1.msra.mxu0 0.0
    %1626 = vmatprep.subr.mxu0 0.0
    %1627 = vmatpush1.msra.mxu0 0.0
    %1628 = vmatprep.mubr.f32.mxu0 0.0
    %1629 = vmatmul.mubr.f32.gmra.mrb[0].mxu0 %v1406
    %v1630 = vpop.f32.mrb[0].mxu0
    %v1631 = vadd.f32 0.0, %v1630
    %v1632 = vpop.f32.mrb[0].mxu0
    %v1633 = vadd.f32 0.0, %v1632
    %1634 = vdwg.mxu0
    %1635 = vmatprep.subr.mxu0 0.0
    %1636 = vmatpush1.msra.mxu0 %v1420
    %1637 = vmatprep.subr.mxu0 0.0
    %1638 = vmatpush1.msra.mxu0 0.0
    %1639 = vmatprep.subr.mxu0 0.0
    %1640 = vmatpush1.msra.mxu0 0.0
    %1641 = vmatprep.subr.mxu0 0.0
    %1642 = vmatpush1.msra.mxu0 0.0
    %1643 = vmatprep.subr.mxu0 0.0
    %1644 = vmatpush1.msra.mxu0 0.0
    %1645 = vmatprep.subr.mxu0 0.0
    %1646 = vmatpush1.msra.mxu0 0.0
    %1647 = vmatprep.subr.mxu0 0.0
    %1648 = vmatpush1.msra.mxu0 0.0
    %1649 = vmatprep.subr.mxu0 0.0
    %1650 = vmatpush1.msra.mxu0 0.0
    %1651 = vmatprep.subr.mxu0 0.0
    %1652 = vmatpush1.msra.mxu0 0.0
    %1653 = vmatprep.subr.mxu0 0.0
    %1654 = vmatpush1.msra.mxu0 0.0
    %1655 = vmatprep.subr.mxu0 0.0
    %1656 = vmatpush1.msra.mxu0 0.0
    %1657 = vmatprep.subr.mxu0 0.0
    %1658 = vmatpush1.msra.mxu0 0.0
    %1659 = vmatprep.subr.mxu0 0.0
    %1660 = vmatpush1.msra.mxu0 0.0
    %1661 = vmatprep.subr.mxu0 0.0
    %1662 = vmatpush1.msra.mxu0 0.0
    %1663 = vmatprep.subr.mxu0 0.0
    %1664 = vmatpush1.msra.mxu0 0.0
    %1665 = vmatprep.subr.mxu0 0.0
    %1666 = vmatpush1.msra.mxu0 0.0
    %1667 = vmatprep.subr.mxu0 0.0
    %1668 = vmatpush1.msra.mxu0 0.0
    %1669 = vmatprep.subr.mxu0 0.0
    %1670 = vmatpush1.msra.mxu0 0.0
    %1671 = vmatprep.subr.mxu0 0.0
    %1672 = vmatpush1.msra.mxu0 0.0
    %1673 = vmatprep.subr.mxu0 0.0
    %1674 = vmatpush1.msra.mxu0 0.0
    %1675 = vmatprep.subr.mxu0 0.0
    %1676 = vmatpush1.msra.mxu0 0.0
    %1677 = vmatprep.subr.mxu0 0.0
    %1678 = vmatpush1.msra.mxu0 0.0
    %1679 = vmatprep.subr.mxu0 0.0
    %1680 = vmatpush1.msra.mxu0 0.0
    %1681 = vmatprep.subr.mxu0 0.0
    %1682 = vmatpush1.msra.mxu0 0.0
    %1683 = vmatprep.subr.mxu0 0.0
    %1684 = vmatpush1.msra.mxu0 0.0
    %1685 = vmatprep.subr.mxu0 0.0
    %1686 = vmatpush1.msra.mxu0 0.0
    %1687 = vmatprep.subr.mxu0 0.0
    %1688 = vmatpush1.msra.mxu0 0.0
    %1689 = vmatprep.subr.mxu0 0.0
    %1690 = vmatpush1.msra.mxu0 0.0
    %1691 = vmatprep.subr.mxu0 0.0
    %1692 = vmatpush1.msra.mxu0 0.0
    %1693 = vmatprep.subr.mxu0 0.0
    %1694 = vmatpush1.msra.mxu0 0.0
    %1695 = vmatprep.subr.mxu0 0.0
    %1696 = vmatpush1.msra.mxu0 0.0
    %1697 = vmatprep.subr.mxu0 0.0
    %1698 = vmatpush1.msra.mxu0 0.0
    %1699 = vmatprep.mubr.f32.mxu0 0.0
    %1700 = vmatmul.mubr.f32.gmra.mrb[0].mxu0 %v1406
    %v1701 = vpop.f32.mrb[0].mxu0
    %v1702 = vadd.f32 0.0, %v1701
    %v1703 = vpop.f32.mrb[0].mxu0
    %1704 = vdwg.mxu0
    %v1705 = vadd.f32 %v1385, %v1489
    %v1706 = vadd.f32 %v1386, %v1491
    %v1707 = vadd.f32 %v1387, %v1560
    %v1708 = vadd.f32 %v1388, %v1562
    %v1709 = vadd.f32 %v1389, %v1631
    %v1710 = vadd.f32 %v1390, %v1633
    %v1711 = vadd.f32 %v1391, %v1702
    %s1712 = scalar_lea.vmem %s1, 20
    %v1713 = vld [vmem:[%s1712] sm:$0xf]
    %v1714 = vld [vmem:[%s0 + $0x4] sm:$0xff]
    %v1715 = vld [vmem:[%s0 + $0xc] sm:$0xff]
    %v1716 = vld [vmem:[%s0 + $0x14] sm:$0xff]
    %v1717 = vld [vmem:[%s0 + $0x1c] sm:$0xff]
    %v1722 = vcombine.high %v1714, %v1714
    %v1723 = vcombine.high %v1715, %v1715
    %v1724 = vcombine.high %v1716, %v1716
    %v1725 = vcombine.high %v1717, %v1717
    %1726 = vrot.lane.b32.xlu0 %v1714, 127
    %v1727 = vpop.permute.xlu0 %1726
    %1728 = vrot.lane.b32.xlu0 %v1722, 127
    %v1729 = vpop.permute.xlu0 %1728
    %1730 = vrot.lane.b32.xlu0 %v1715, 127
    %v1731 = vpop.permute.xlu0 %1730
    %1732 = vrot.lane.b32.xlu0 %v1723, 127
    %v1733 = vpop.permute.xlu0 %1732
    %1734 = vrot.lane.b32.xlu0 %v1716, 127
    %v1735 = vpop.permute.xlu0 %1734
    %1736 = vrot.lane.b32.xlu0 %v1724, 127
    %v1737 = vpop.permute.xlu0 %1736
    %1738 = vrot.lane.b32.xlu0 %v1717, 127
    %v1739 = vpop.permute.xlu0 %1738
    %1740 = vrot.lane.b32.xlu0 %v1725, 127
    %v1741 = vpop.permute.xlu0 %1740
    %vm1742 = vcmask 1039360
    %v1743 = vsel %vm1742, %v1727, %v1729
    %v1744 = vsel %vm1742, %v1729, %v1731
    %v1745 = vsel %vm1742, %v1731, %v1733
    %v1746 = vsel %vm1742, %v1733, %v1735
    %v1747 = vsel %vm1742, %v1735, %v1737
    %v1748 = vsel %vm1742, %v1737, %v1739
    %v1749 = vsel %vm1742, %v1739, %v1741
    %v1751 = vsel %vm76, %v1713, 0
    %v1753 = vsel %vm80, %v1743, 0
    %v1755 = vsel %vm80, %v1744, 0
    %v1757 = vsel %vm80, %v1745, 0
    %v1759 = vsel %vm80, %v1746, 0
    %v1761 = vsel %vm80, %v1747, 0
    %v1763 = vsel %vm80, %v1748, 0
    %v1765 = vsel %vm80, %v1749, 0
    %1767 = vmatprep.subr.mxu0 %v1755
    %1768 = vmatpush1.msra.mxu0 %v1753
    %1769 = vmatprep.subr.mxu0 0.0
    %1770 = vmatpush1.msra.mxu0 0.0
    %1771 = vmatprep.subr.mxu0 0.0
    %1772 = vmatpush1.msra.mxu0 0.0
    %1773 = vmatprep.subr.mxu0 0.0
    %1774 = vmatpush1.msra.mxu0 0.0
    %1775 = vmatprep.subr.mxu0 0.0
    %1776 = vmatpush1.msra.mxu0 0.0
    %1777 = vmatprep.subr.mxu0 0.0
    %1778 = vmatpush1.msra.mxu0 0.0
    %1779 = vmatprep.subr.mxu0 0.0
    %1780 = vmatpush1.msra.mxu0 0.0
    %1781 = vmatprep.subr.mxu0 0.0
    %1782 = vmatpush1.msra.mxu0 0.0
    %1783 = vmatprep.subr.mxu0 0.0
    %1784 = vmatpush1.msra.mxu0 0.0
    %1785 = vmatprep.subr.mxu0 0.0
    %1786 = vmatpush1.msra.mxu0 0.0
    %1787 = vmatprep.subr.mxu0 0.0
    %1788 = vmatpush1.msra.mxu0 0.0
    %1789 = vmatprep.subr.mxu0 0.0
    %1790 = vmatpush1.msra.mxu0 0.0
    %1791 = vmatprep.subr.mxu0 0.0
    %1792 = vmatpush1.msra.mxu0 0.0
    %1793 = vmatprep.subr.mxu0 0.0
    %1794 = vmatpush1.msra.mxu0 0.0
    %1795 = vmatprep.subr.mxu0 0.0
    %1796 = vmatpush1.msra.mxu0 0.0
    %1797 = vmatprep.subr.mxu0 0.0
    %1798 = vmatpush1.msra.mxu0 0.0
    %1799 = vmatprep.subr.mxu0 0.0
    %1800 = vmatpush1.msra.mxu0 0.0
    %1801 = vmatprep.subr.mxu0 0.0
    %1802 = vmatpush1.msra.mxu0 0.0
    %1803 = vmatprep.subr.mxu0 0.0
    %1804 = vmatpush1.msra.mxu0 0.0
    %1805 = vmatprep.subr.mxu0 0.0
    %1806 = vmatpush1.msra.mxu0 0.0
    %1807 = vmatprep.subr.mxu0 0.0
    %1808 = vmatpush1.msra.mxu0 0.0
    %1809 = vmatprep.subr.mxu0 0.0
    %1810 = vmatpush1.msra.mxu0 0.0
    %1811 = vmatprep.subr.mxu0 0.0
    %1812 = vmatpush1.msra.mxu0 0.0
    %1813 = vmatprep.subr.mxu0 0.0
    %1814 = vmatpush1.msra.mxu0 0.0
    %1815 = vmatprep.subr.mxu0 0.0
    %1816 = vmatpush1.msra.mxu0 0.0
    %1817 = vmatprep.subr.mxu0 0.0
    %1818 = vmatpush1.msra.mxu0 0.0
    %1819 = vmatprep.subr.mxu0 0.0
    %1820 = vmatpush1.msra.mxu0 0.0
    %1821 = vmatprep.subr.mxu0 0.0
    %1822 = vmatpush1.msra.mxu0 0.0
    %1823 = vmatprep.subr.mxu0 0.0
    %1824 = vmatpush1.msra.mxu0 0.0
    %1825 = vmatprep.subr.mxu0 0.0
    %1826 = vmatpush1.msra.mxu0 0.0
    %1827 = vmatprep.subr.mxu0 0.0
    %1828 = vmatpush1.msra.mxu0 0.0
    %1829 = vmatprep.subr.mxu0 0.0
    %1830 = vmatpush1.msra.mxu0 0.0
    %1831 = vmatprep.mubr.f32.mxu0 0.0
    %1832 = vmatmul.mubr.f32.gmra.mrb[0].mxu0 %v1751
    %v1833 = vpop.f32.mrb[0].mxu0
    %v1834 = vadd.f32 0.0, %v1833
    %v1835 = vpop.f32.mrb[0].mxu0
    %v1836 = vadd.f32 0.0, %v1835
    %1837 = vdwg.mxu0
    %1838 = vmatprep.subr.mxu0 %v1759
    %1839 = vmatpush1.msra.mxu0 %v1757
    %1840 = vmatprep.subr.mxu0 0.0
    %1841 = vmatpush1.msra.mxu0 0.0
    %1842 = vmatprep.subr.mxu0 0.0
    %1843 = vmatpush1.msra.mxu0 0.0
    %1844 = vmatprep.subr.mxu0 0.0
    %1845 = vmatpush1.msra.mxu0 0.0
    %1846 = vmatprep.subr.mxu0 0.0
    %1847 = vmatpush1.msra.mxu0 0.0
    %1848 = vmatprep.subr.mxu0 0.0
    %1849 = vmatpush1.msra.mxu0 0.0
    %1850 = vmatprep.subr.mxu0 0.0
    %1851 = vmatpush1.msra.mxu0 0.0
    %1852 = vmatprep.subr.mxu0 0.0
    %1853 = vmatpush1.msra.mxu0 0.0
    %1854 = vmatprep.subr.mxu0 0.0
    %1855 = vmatpush1.msra.mxu0 0.0
    %1856 = vmatprep.subr.mxu0 0.0
    %1857 = vmatpush1.msra.mxu0 0.0
    %1858 = vmatprep.subr.mxu0 0.0
    %1859 = vmatpush1.msra.mxu0 0.0
    %1860 = vmatprep.subr.mxu0 0.0
    %1861 = vmatpush1.msra.mxu0 0.0
    %1862 = vmatprep.subr.mxu0 0.0
    %1863 = vmatpush1.msra.mxu0 0.0
    %1864 = vmatprep.subr.mxu0 0.0
    %1865 = vmatpush1.msra.mxu0 0.0
    %1866 = vmatprep.subr.mxu0 0.0
    %1867 = vmatpush1.msra.mxu0 0.0
    %1868 = vmatprep.subr.mxu0 0.0
    %1869 = vmatpush1.msra.mxu0 0.0
    %1870 = vmatprep.subr.mxu0 0.0
    %1871 = vmatpush1.msra.mxu0 0.0
    %1872 = vmatprep.subr.mxu0 0.0
    %1873 = vmatpush1.msra.mxu0 0.0
    %1874 = vmatprep.subr.mxu0 0.0
    %1875 = vmatpush1.msra.mxu0 0.0
    %1876 = vmatprep.subr.mxu0 0.0
    %1877 = vmatpush1.msra.mxu0 0.0
    %1878 = vmatprep.subr.mxu0 0.0
    %1879 = vmatpush1.msra.mxu0 0.0
    %1880 = vmatprep.subr.mxu0 0.0
    %1881 = vmatpush1.msra.mxu0 0.0
    %1882 = vmatprep.subr.mxu0 0.0
    %1883 = vmatpush1.msra.mxu0 0.0
    %1884 = vmatprep.subr.mxu0 0.0
    %1885 = vmatpush1.msra.mxu0 0.0
    %1886 = vmatprep.subr.mxu0 0.0
    %1887 = vmatpush1.msra.mxu0 0.0
    %1888 = vmatprep.subr.mxu0 0.0
    %1889 = vmatpush1.msra.mxu0 0.0
    %1890 = vmatprep.subr.mxu0 0.0
    %1891 = vmatpush1.msra.mxu0 0.0
    %1892 = vmatprep.subr.mxu0 0.0
    %1893 = vmatpush1.msra.mxu0 0.0
    %1894 = vmatprep.subr.mxu0 0.0
    %1895 = vmatpush1.msra.mxu0 0.0
    %1896 = vmatprep.subr.mxu0 0.0
    %1897 = vmatpush1.msra.mxu0 0.0
    %1898 = vmatprep.subr.mxu0 0.0
    %1899 = vmatpush1.msra.mxu0 0.0
    %1900 = vmatprep.subr.mxu0 0.0
    %1901 = vmatpush1.msra.mxu0 0.0
    %1902 = vmatprep.mubr.f32.mxu0 0.0
    %1903 = vmatmul.mubr.f32.gmra.mrb[0].mxu0 %v1751
    %v1904 = vpop.f32.mrb[0].mxu0
    %v1905 = vadd.f32 0.0, %v1904
    %v1906 = vpop.f32.mrb[0].mxu0
    %v1907 = vadd.f32 0.0, %v1906
    %1908 = vdwg.mxu0
    %1909 = vmatprep.subr.mxu0 %v1763
    %1910 = vmatpush1.msra.mxu0 %v1761
    %1911 = vmatprep.subr.mxu0 0.0
    %1912 = vmatpush1.msra.mxu0 0.0
    %1913 = vmatprep.subr.mxu0 0.0
    %1914 = vmatpush1.msra.mxu0 0.0
    %1915 = vmatprep.subr.mxu0 0.0
    %1916 = vmatpush1.msra.mxu0 0.0
    %1917 = vmatprep.subr.mxu0 0.0
    %1918 = vmatpush1.msra.mxu0 0.0
    %1919 = vmatprep.subr.mxu0 0.0
    %1920 = vmatpush1.msra.mxu0 0.0
    %1921 = vmatprep.subr.mxu0 0.0
    %1922 = vmatpush1.msra.mxu0 0.0
    %1923 = vmatprep.subr.mxu0 0.0
    %1924 = vmatpush1.msra.mxu0 0.0
    %1925 = vmatprep.subr.mxu0 0.0
    %1926 = vmatpush1.msra.mxu0 0.0
    %1927 = vmatprep.subr.mxu0 0.0
    %1928 = vmatpush1.msra.mxu0 0.0
    %1929 = vmatprep.subr.mxu0 0.0
    %1930 = vmatpush1.msra.mxu0 0.0
    %1931 = vmatprep.subr.mxu0 0.0
    %1932 = vmatpush1.msra.mxu0 0.0
    %1933 = vmatprep.subr.mxu0 0.0
    %1934 = vmatpush1.msra.mxu0 0.0
    %1935 = vmatprep.subr.mxu0 0.0
    %1936 = vmatpush1.msra.mxu0 0.0
    %1937 = vmatprep.subr.mxu0 0.0
    %1938 = vmatpush1.msra.mxu0 0.0
    %1939 = vmatprep.subr.mxu0 0.0
    %1940 = vmatpush1.msra.mxu0 0.0
    %1941 = vmatprep.subr.mxu0 0.0
    %1942 = vmatpush1.msra.mxu0 0.0
    %1943 = vmatprep.subr.mxu0 0.0
    %1944 = vmatpush1.msra.mxu0 0.0
    %1945 = vmatprep.subr.mxu0 0.0
    %1946 = vmatpush1.msra.mxu0 0.0
    %1947 = vmatprep.subr.mxu0 0.0
    %1948 = vmatpush1.msra.mxu0 0.0
    %1949 = vmatprep.subr.mxu0 0.0
    %1950 = vmatpush1.msra.mxu0 0.0
    %1951 = vmatprep.subr.mxu0 0.0
    %1952 = vmatpush1.msra.mxu0 0.0
    %1953 = vmatprep.subr.mxu0 0.0
    %1954 = vmatpush1.msra.mxu0 0.0
    %1955 = vmatprep.subr.mxu0 0.0
    %1956 = vmatpush1.msra.mxu0 0.0
    %1957 = vmatprep.subr.mxu0 0.0
    %1958 = vmatpush1.msra.mxu0 0.0
    %1959 = vmatprep.subr.mxu0 0.0
    %1960 = vmatpush1.msra.mxu0 0.0
    %1961 = vmatprep.subr.mxu0 0.0
    %1962 = vmatpush1.msra.mxu0 0.0
    %1963 = vmatprep.subr.mxu0 0.0
    %1964 = vmatpush1.msra.mxu0 0.0
    %1965 = vmatprep.subr.mxu0 0.0
    %1966 = vmatpush1.msra.mxu0 0.0
    %1967 = vmatprep.subr.mxu0 0.0
    %1968 = vmatpush1.msra.mxu0 0.0
    %1969 = vmatprep.subr.mxu0 0.0
    %1970 = vmatpush1.msra.mxu0 0.0
    %1971 = vmatprep.subr.mxu0 0.0
    %1972 = vmatpush1.msra.mxu0 0.0
    %1973 = vmatprep.mubr.f32.mxu0 0.0
    %1974 = vmatmul.mubr.f32.gmra.mrb[0].mxu0 %v1751
    %v1975 = vpop.f32.mrb[0].mxu0
    %v1976 = vadd.f32 0.0, %v1975
    %v1977 = vpop.f32.mrb[0].mxu0
    %v1978 = vadd.f32 0.0, %v1977
    %1979 = vdwg.mxu0
    %1980 = vmatprep.subr.mxu0 0.0
    %1981 = vmatpush1.msra.mxu0 %v1765
    %1982 = vmatprep.subr.mxu0 0.0
    %1983 = vmatpush1.msra.mxu0 0.0
    %1984 = vmatprep.subr.mxu0 0.0
    %1985 = vmatpush1.msra.mxu0 0.0
    %1986 = vmatprep.subr.mxu0 0.0
    %1987 = vmatpush1.msra.mxu0 0.0
    %1988 = vmatprep.subr.mxu0 0.0
    %1989 = vmatpush1.msra.mxu0 0.0
    %1990 = vmatprep.subr.mxu0 0.0
    %1991 = vmatpush1.msra.mxu0 0.0
    %1992 = vmatprep.subr.mxu0 0.0
    %1993 = vmatpush1.msra.mxu0 0.0
    %1994 = vmatprep.subr.mxu0 0.0
    %1995 = vmatpush1.msra.mxu0 0.0
    %1996 = vmatprep.subr.mxu0 0.0
    %1997 = vmatpush1.msra.mxu0 0.0
    %1998 = vmatprep.subr.mxu0 0.0
    %1999 = vmatpush1.msra.mxu0 0.0
    %2000 = vmatprep.subr.mxu0 0.0
    %2001 = vmatpush1.msra.mxu0 0.0
    %2002 = vmatprep.subr.mxu0 0.0
    %2003 = vmatpush1.msra.mxu0 0.0
    %2004 = vmatprep.subr.mxu0 0.0
    %2005 = vmatpush1.msra.mxu0 0.0
    %2006 = vmatprep.subr.mxu0 0.0
    %2007 = vmatpush1.msra.mxu0 0.0
    %2008 = vmatprep.subr.mxu0 0.0
    %2009 = vmatpush1.msra.mxu0 0.0
    %2010 = vmatprep.subr.mxu0 0.0
    %2011 = vmatpush1.msra.mxu0 0.0
    %2012 = vmatprep.subr.mxu0 0.0
    %2013 = vmatpush1.msra.mxu0 0.0
    %2014 = vmatprep.subr.mxu0 0.0
    %2015 = vmatpush1.msra.mxu0 0.0
    %2016 = vmatprep.subr.mxu0 0.0
    %2017 = vmatpush1.msra.mxu0 0.0
    %2018 = vmatprep.subr.mxu0 0.0
    %2019 = vmatpush1.msra.mxu0 0.0
    %2020 = vmatprep.subr.mxu0 0.0
    %2021 = vmatpush1.msra.mxu0 0.0
    %2022 = vmatprep.subr.mxu0 0.0
    %2023 = vmatpush1.msra.mxu0 0.0
    %2024 = vmatprep.subr.mxu0 0.0
    %2025 = vmatpush1.msra.mxu0 0.0
    %2026 = vmatprep.subr.mxu0 0.0
    %2027 = vmatpush1.msra.mxu0 0.0
    %2028 = vmatprep.subr.mxu0 0.0
    %2029 = vmatpush1.msra.mxu0 0.0
    %2030 = vmatprep.subr.mxu0 0.0
    %2031 = vmatpush1.msra.mxu0 0.0
    %2032 = vmatprep.subr.mxu0 0.0
    %2033 = vmatpush1.msra.mxu0 0.0
    %2034 = vmatprep.subr.mxu0 0.0
    %2035 = vmatpush1.msra.mxu0 0.0
    %2036 = vmatprep.subr.mxu0 0.0
    %2037 = vmatpush1.msra.mxu0 0.0
    %2038 = vmatprep.subr.mxu0 0.0
    %2039 = vmatpush1.msra.mxu0 0.0
    %2040 = vmatprep.subr.mxu0 0.0
    %2041 = vmatpush1.msra.mxu0 0.0
    %2042 = vmatprep.subr.mxu0 0.0
    %2043 = vmatpush1.msra.mxu0 0.0
    %2044 = vmatprep.mubr.f32.mxu0 0.0
    %2045 = vmatmul.mubr.f32.gmra.mrb[0].mxu0 %v1751
    %v2046 = vpop.f32.mrb[0].mxu0
    %v2047 = vadd.f32 0.0, %v2046
    %v2048 = vpop.f32.mrb[0].mxu0
    %2049 = vdwg.mxu0
    %v2050 = vadd.f32 %v1705, %v1834
    %v2051 = vadd.f32 %v1706, %v1836
    %v2052 = vadd.f32 %v1707, %v1905
    %v2053 = vadd.f32 %v1708, %v1907
    %v2054 = vadd.f32 %v1709, %v1976
    %v2055 = vadd.f32 %v1710, %v1978
    %v2056 = vadd.f32 %v1711, %v2047
    %s2057 = scalar_lea.vmem %s1, 24
    %v2058 = vld [vmem:[%s2057] sm:$0xf]
    %v2059 = vld [vmem:[%s0 + $0x4] sm:$0xff]
    %v2060 = vld [vmem:[%s0 + $0xc] sm:$0xff]
    %v2061 = vld [vmem:[%s0 + $0x14] sm:$0xff]
    %v2062 = vld [vmem:[%s0 + $0x1c] sm:$0xff]
    %v2067 = vcombine.high %v2059, %v2059
    %v2068 = vcombine.high %v2060, %v2060
    %v2069 = vcombine.high %v2061, %v2061
    %v2070 = vcombine.high %v2062, %v2062
    %2071 = vrot.lane.b32.xlu0 %v2059, 109
    %v2072 = vpop.permute.xlu0 %2071
    %2073 = vrot.lane.b32.xlu0 %v2067, 109
    %v2074 = vpop.permute.xlu0 %2073
    %2075 = vrot.lane.b32.xlu0 %v2060, 109
    %v2076 = vpop.permute.xlu0 %2075
    %2077 = vrot.lane.b32.xlu0 %v2068, 109
    %v2078 = vpop.permute.xlu0 %2077
    %2079 = vrot.lane.b32.xlu0 %v2061, 109
    %v2080 = vpop.permute.xlu0 %2079
    %2081 = vrot.lane.b32.xlu0 %v2069, 109
    %v2082 = vpop.permute.xlu0 %2081
    %2083 = vrot.lane.b32.xlu0 %v2062, 109
    %v2084 = vpop.permute.xlu0 %2083
    %2085 = vrot.lane.b32.xlu0 %v2070, 109
    %v2086 = vpop.permute.xlu0 %2085
    %vm2087 = vcmask 891904
    %v2088 = vsel %vm2087, %v2072, %v2074
    %v2089 = vsel %vm2087, %v2074, %v2076
    %v2090 = vsel %vm2087, %v2076, %v2078
    %v2091 = vsel %vm2087, %v2078, %v2080
    %v2092 = vsel %vm2087, %v2080, %v2082
    %v2093 = vsel %vm2087, %v2082, %v2084
    %v2094 = vsel %vm2087, %v2084, %v2086
    %v2096 = vsel %vm76, %v2058, 0
    %v2098 = vsel %vm80, %v2088, 0
    %v2100 = vsel %vm80, %v2089, 0
    %v2102 = vsel %vm80, %v2090, 0
    %v2104 = vsel %vm80, %v2091, 0
    %v2106 = vsel %vm80, %v2092, 0
    %v2108 = vsel %vm80, %v2093, 0
    %v2110 = vsel %vm80, %v2094, 0
    %2112 = vmatprep.subr.mxu0 %v2100
    %2113 = vmatpush1.msra.mxu0 %v2098
    %2114 = vmatprep.subr.mxu0 0.0
    %2115 = vmatpush1.msra.mxu0 0.0
    %2116 = vmatprep.subr.mxu0 0.0
    %2117 = vmatpush1.msra.mxu0 0.0
    %2118 = vmatprep.subr.mxu0 0.0
    %2119 = vmatpush1.msra.mxu0 0.0
    %2120 = vmatprep.subr.mxu0 0.0
    %2121 = vmatpush1.msra.mxu0 0.0
    %2122 = vmatprep.subr.mxu0 0.0
    %2123 = vmatpush1.msra.mxu0 0.0
    %2124 = vmatprep.subr.mxu0 0.0
    %2125 = vmatpush1.msra.mxu0 0.0
    %2126 = vmatprep.subr.mxu0 0.0
    %2127 = vmatpush1.msra.mxu0 0.0
    %2128 = vmatprep.subr.mxu0 0.0
    %2129 = vmatpush1.msra.mxu0 0.0
    %2130 = vmatprep.subr.mxu0 0.0
    %2131 = vmatpush1.msra.mxu0 0.0
    %2132 = vmatprep.subr.mxu0 0.0
    %2133 = vmatpush1.msra.mxu0 0.0
    %2134 = vmatprep.subr.mxu0 0.0
    %2135 = vmatpush1.msra.mxu0 0.0
    %2136 = vmatprep.subr.mxu0 0.0
    %2137 = vmatpush1.msra.mxu0 0.0
    %2138 = vmatprep.subr.mxu0 0.0
    %2139 = vmatpush1.msra.mxu0 0.0
    %2140 = vmatprep.subr.mxu0 0.0
    %2141 = vmatpush1.msra.mxu0 0.0
    %2142 = vmatprep.subr.mxu0 0.0
    %2143 = vmatpush1.msra.mxu0 0.0
    %2144 = vmatprep.subr.mxu0 0.0
    %2145 = vmatpush1.msra.mxu0 0.0
    %2146 = vmatprep.subr.mxu0 0.0
    %2147 = vmatpush1.msra.mxu0 0.0
    %2148 = vmatprep.subr.mxu0 0.0
    %2149 = vmatpush1.msra.mxu0 0.0
    %2150 = vmatprep.subr.mxu0 0.0
    %2151 = vmatpush1.msra.mxu0 0.0
    %2152 = vmatprep.subr.mxu0 0.0
    %2153 = vmatpush1.msra.mxu0 0.0
    %2154 = vmatprep.subr.mxu0 0.0
    %2155 = vmatpush1.msra.mxu0 0.0
    %2156 = vmatprep.subr.mxu0 0.0
    %2157 = vmatpush1.msra.mxu0 0.0
    %2158 = vmatprep.subr.mxu0 0.0
    %2159 = vmatpush1.msra.mxu0 0.0
    %2160 = vmatprep.subr.mxu0 0.0
    %2161 = vmatpush1.msra.mxu0 0.0
    %2162 = vmatprep.subr.mxu0 0.0
    %2163 = vmatpush1.msra.mxu0 0.0
    %2164 = vmatprep.subr.mxu0 0.0
    %2165 = vmatpush1.msra.mxu0 0.0
    %2166 = vmatprep.subr.mxu0 0.0
    %2167 = vmatpush1.msra.mxu0 0.0
    %2168 = vmatprep.subr.mxu0 0.0
    %2169 = vmatpush1.msra.mxu0 0.0
    %2170 = vmatprep.subr.mxu0 0.0
    %2171 = vmatpush1.msra.mxu0 0.0
    %2172 = vmatprep.subr.mxu0 0.0
    %2173 = vmatpush1.msra.mxu0 0.0
    %2174 = vmatprep.subr.mxu0 0.0
    %2175 = vmatpush1.msra.mxu0 0.0
    %2176 = vmatprep.mubr.f32.mxu0 0.0
    %2177 = vmatmul.mubr.f32.gmra.mrb[0].mxu0 %v2096
    %v2178 = vpop.f32.mrb[0].mxu0
    %v2179 = vadd.f32 0.0, %v2178
    %v2180 = vpop.f32.mrb[0].mxu0
    %v2181 = vadd.f32 0.0, %v2180
    %2182 = vdwg.mxu0
    %2183 = vmatprep.subr.mxu0 %v2104
    %2184 = vmatpush1.msra.mxu0 %v2102
    %2185 = vmatprep.subr.mxu0 0.0
    %2186 = vmatpush1.msra.mxu0 0.0
    %2187 = vmatprep.subr.mxu0 0.0
    %2188 = vmatpush1.msra.mxu0 0.0
    %2189 = vmatprep.subr.mxu0 0.0
    %2190 = vmatpush1.msra.mxu0 0.0
    %2191 = vmatprep.subr.mxu0 0.0
    %2192 = vmatpush1.msra.mxu0 0.0
    %2193 = vmatprep.subr.mxu0 0.0
    %2194 = vmatpush1.msra.mxu0 0.0
    %2195 = vmatprep.subr.mxu0 0.0
    %2196 = vmatpush1.msra.mxu0 0.0
    %2197 = vmatprep.subr.mxu0 0.0
    %2198 = vmatpush1.msra.mxu0 0.0
    %2199 = vmatprep.subr.mxu0 0.0
    %2200 = vmatpush1.msra.mxu0 0.0
    %2201 = vmatprep.subr.mxu0 0.0
    %2202 = vmatpush1.msra.mxu0 0.0
    %2203 = vmatprep.subr.mxu0 0.0
    %2204 = vmatpush1.msra.mxu0 0.0
    %2205 = vmatprep.subr.mxu0 0.0
    %2206 = vmatpush1.msra.mxu0 0.0
    %2207 = vmatprep.subr.mxu0 0.0
    %2208 = vmatpush1.msra.mxu0 0.0
    %2209 = vmatprep.subr.mxu0 0.0
    %2210 = vmatpush1.msra.mxu0 0.0
    %2211 = vmatprep.subr.mxu0 0.0
    %2212 = vmatpush1.msra.mxu0 0.0
    %2213 = vmatprep.subr.mxu0 0.0
    %2214 = vmatpush1.msra.mxu0 0.0
    %2215 = vmatprep.subr.mxu0 0.0
    %2216 = vmatpush1.msra.mxu0 0.0
    %2217 = vmatprep.subr.mxu0 0.0
    %2218 = vmatpush1.msra.mxu0 0.0
    %2219 = vmatprep.subr.mxu0 0.0
    %2220 = vmatpush1.msra.mxu0 0.0
    %2221 = vmatprep.subr.mxu0 0.0
    %2222 = vmatpush1.msra.mxu0 0.0
    %2223 = vmatprep.subr.mxu0 0.0
    %2224 = vmatpush1.msra.mxu0 0.0
    %2225 = vmatprep.subr.mxu0 0.0
    %2226 = vmatpush1.msra.mxu0 0.0
    %2227 = vmatprep.subr.mxu0 0.0
    %2228 = vmatpush1.msra.mxu0 0.0
    %2229 = vmatprep.subr.mxu0 0.0
    %2230 = vmatpush1.msra.mxu0 0.0
    %2231 = vmatprep.subr.mxu0 0.0
    %2232 = vmatpush1.msra.mxu0 0.0
    %2233 = vmatprep.subr.mxu0 0.0
    %2234 = vmatpush1.msra.mxu0 0.0
    %2235 = vmatprep.subr.mxu0 0.0
    %2236 = vmatpush1.msra.mxu0 0.0
    %2237 = vmatprep.subr.mxu0 0.0
    %2238 = vmatpush1.msra.mxu0 0.0
    %2239 = vmatprep.subr.mxu0 0.0
    %2240 = vmatpush1.msra.mxu0 0.0
    %2241 = vmatprep.subr.mxu0 0.0
    %2242 = vmatpush1.msra.mxu0 0.0
    %2243 = vmatprep.subr.mxu0 0.0
    %2244 = vmatpush1.msra.mxu0 0.0
    %2245 = vmatprep.subr.mxu0 0.0
    %2246 = vmatpush1.msra.mxu0 0.0
    %2247 = vmatprep.mubr.f32.mxu0 0.0
    %2248 = vmatmul.mubr.f32.gmra.mrb[0].mxu0 %v2096
    %v2249 = vpop.f32.mrb[0].mxu0
    %v2250 = vadd.f32 0.0, %v2249
    %v2251 = vpop.f32.mrb[0].mxu0
    %v2252 = vadd.f32 0.0, %v2251
    %2253 = vdwg.mxu0
    %2254 = vmatprep.subr.mxu0 %v2108
    %2255 = vmatpush1.msra.mxu0 %v2106
    %2256 = vmatprep.subr.mxu0 0.0
    %2257 = vmatpush1.msra.mxu0 0.0
    %2258 = vmatprep.subr.mxu0 0.0
    %2259 = vmatpush1.msra.mxu0 0.0
    %2260 = vmatprep.subr.mxu0 0.0
    %2261 = vmatpush1.msra.mxu0 0.0
    %2262 = vmatprep.subr.mxu0 0.0
    %2263 = vmatpush1.msra.mxu0 0.0
    %2264 = vmatprep.subr.mxu0 0.0
    %2265 = vmatpush1.msra.mxu0 0.0
    %2266 = vmatprep.subr.mxu0 0.0
    %2267 = vmatpush1.msra.mxu0 0.0
    %2268 = vmatprep.subr.mxu0 0.0
    %2269 = vmatpush1.msra.mxu0 0.0
    %2270 = vmatprep.subr.mxu0 0.0
    %2271 = vmatpush1.msra.mxu0 0.0
    %2272 = vmatprep.subr.mxu0 0.0
    %2273 = vmatpush1.msra.mxu0 0.0
    %2274 = vmatprep.subr.mxu0 0.0
    %2275 = vmatpush1.msra.mxu0 0.0
    %2276 = vmatprep.subr.mxu0 0.0
    %2277 = vmatpush1.msra.mxu0 0.0
    %2278 = vmatprep.subr.mxu0 0.0
    %2279 = vmatpush1.msra.mxu0 0.0
    %2280 = vmatprep.subr.mxu0 0.0
    %2281 = vmatpush1.msra.mxu0 0.0
    %2282 = vmatprep.subr.mxu0 0.0
    %2283 = vmatpush1.msra.mxu0 0.0
    %2284 = vmatprep.subr.mxu0 0.0
    %2285 = vmatpush1.msra.mxu0 0.0
    %2286 = vmatprep.subr.mxu0 0.0
    %2287 = vmatpush1.msra.mxu0 0.0
    %2288 = vmatprep.subr.mxu0 0.0
    %2289 = vmatpush1.msra.mxu0 0.0
    %2290 = vmatprep.subr.mxu0 0.0
    %2291 = vmatpush1.msra.mxu0 0.0
    %2292 = vmatprep.subr.mxu0 0.0
    %2293 = vmatpush1.msra.mxu0 0.0
    %2294 = vmatprep.subr.mxu0 0.0
    %2295 = vmatpush1.msra.mxu0 0.0
    %2296 = vmatprep.subr.mxu0 0.0
    %2297 = vmatpush1.msra.mxu0 0.0
    %2298 = vmatprep.subr.mxu0 0.0
    %2299 = vmatpush1.msra.mxu0 0.0
    %2300 = vmatprep.subr.mxu0 0.0
    %2301 = vmatpush1.msra.mxu0 0.0
    %2302 = vmatprep.subr.mxu0 0.0
    %2303 = vmatpush1.msra.mxu0 0.0
    %2304 = vmatprep.subr.mxu0 0.0
    %2305 = vmatpush1.msra.mxu0 0.0
    %2306 = vmatprep.subr.mxu0 0.0
    %2307 = vmatpush1.msra.mxu0 0.0
    %2308 = vmatprep.subr.mxu0 0.0
    %2309 = vmatpush1.msra.mxu0 0.0
    %2310 = vmatprep.subr.mxu0 0.0
    %2311 = vmatpush1.msra.mxu0 0.0
    %2312 = vmatprep.subr.mxu0 0.0
    %2313 = vmatpush1.msra.mxu0 0.0
    %2314 = vmatprep.subr.mxu0 0.0
    %2315 = vmatpush1.msra.mxu0 0.0
    %2316 = vmatprep.subr.mxu0 0.0
    %2317 = vmatpush1.msra.mxu0 0.0
    %2318 = vmatprep.mubr.f32.mxu0 0.0
    %2319 = vmatmul.mubr.f32.gmra.mrb[0].mxu0 %v2096
    %v2320 = vpop.f32.mrb[0].mxu0
    %v2321 = vadd.f32 0.0, %v2320
    %v2322 = vpop.f32.mrb[0].mxu0
    %v2323 = vadd.f32 0.0, %v2322
    %2324 = vdwg.mxu0
    %2325 = vmatprep.subr.mxu0 0.0
    %2326 = vmatpush1.msra.mxu0 %v2110
    %2327 = vmatprep.subr.mxu0 0.0
    %2328 = vmatpush1.msra.mxu0 0.0
    %2329 = vmatprep.subr.mxu0 0.0
    %2330 = vmatpush1.msra.mxu0 0.0
    %2331 = vmatprep.subr.mxu0 0.0
    %2332 = vmatpush1.msra.mxu0 0.0
    %2333 = vmatprep.subr.mxu0 0.0
    %2334 = vmatpush1.msra.mxu0 0.0
    %2335 = vmatprep.subr.mxu0 0.0
    %2336 = vmatpush1.msra.mxu0 0.0
    %2337 = vmatprep.subr.mxu0 0.0
    %2338 = vmatpush1.msra.mxu0 0.0
    %2339 = vmatprep.subr.mxu0 0.0
    %2340 = vmatpush1.msra.mxu0 0.0
    %2341 = vmatprep.subr.mxu0 0.0
    %2342 = vmatpush1.msra.mxu0 0.0
    %2343 = vmatprep.subr.mxu0 0.0
    %2344 = vmatpush1.msra.mxu0 0.0
    %2345 = vmatprep.subr.mxu0 0.0
    %2346 = vmatpush1.msra.mxu0 0.0
    %2347 = vmatprep.subr.mxu0 0.0
    %2348 = vmatpush1.msra.mxu0 0.0
    %2349 = vmatprep.subr.mxu0 0.0
    %2350 = vmatpush1.msra.mxu0 0.0
    %2351 = vmatprep.subr.mxu0 0.0
    %2352 = vmatpush1.msra.mxu0 0.0
    %2353 = vmatprep.subr.mxu0 0.0
    %2354 = vmatpush1.msra.mxu0 0.0
    %2355 = vmatprep.subr.mxu0 0.0
    %2356 = vmatpush1.msra.mxu0 0.0
    %2357 = vmatprep.subr.mxu0 0.0
    %2358 = vmatpush1.msra.mxu0 0.0
    %2359 = vmatprep.subr.mxu0 0.0
    %2360 = vmatpush1.msra.mxu0 0.0
    %2361 = vmatprep.subr.mxu0 0.0
    %2362 = vmatpush1.msra.mxu0 0.0
    %2363 = vmatprep.subr.mxu0 0.0
    %2364 = vmatpush1.msra.mxu0 0.0
    %2365 = vmatprep.subr.mxu0 0.0
    %2366 = vmatpush1.msra.mxu0 0.0
    %2367 = vmatprep.subr.mxu0 0.0
    %2368 = vmatpush1.msra.mxu0 0.0
    %2369 = vmatprep.subr.mxu0 0.0
    %2370 = vmatpush1.msra.mxu0 0.0
    %2371 = vmatprep.subr.mxu0 0.0
    %2372 = vmatpush1.msra.mxu0 0.0
    %2373 = vmatprep.subr.mxu0 0.0
    %2374 = vmatpush1.msra.mxu0 0.0
    %2375 = vmatprep.subr.mxu0 0.0
    %2376 = vmatpush1.msra.mxu0 0.0
    %2377 = vmatprep.subr.mxu0 0.0
    %2378 = vmatpush1.msra.mxu0 0.0
    %2379 = vmatprep.subr.mxu0 0.0
    %2380 = vmatpush1.msra.mxu0 0.0
    %2381 = vmatprep.subr.mxu0 0.0
    %2382 = vmatpush1.msra.mxu0 0.0
    %2383 = vmatprep.subr.mxu0 0.0
    %2384 = vmatpush1.msra.mxu0 0.0
    %2385 = vmatprep.subr.mxu0 0.0
    %2386 = vmatpush1.msra.mxu0 0.0
    %2387 = vmatprep.subr.mxu0 0.0
    %2388 = vmatpush1.msra.mxu0 0.0
    %2389 = vmatprep.mubr.f32.mxu0 0.0
    %2390 = vmatmul.mubr.f32.gmra.mrb[0].mxu0 %v2096
    %v2391 = vpop.f32.mrb[0].mxu0
    %v2392 = vadd.f32 0.0, %v2391
    %v2393 = vpop.f32.mrb[0].mxu0
    %2394 = vdwg.mxu0
    %v2395 = vadd.f32 %v2050, %v2179
    %v2396 = vadd.f32 %v2051, %v2181
    %v2397 = vadd.f32 %v2052, %v2250
    %v2398 = vadd.f32 %v2053, %v2252
    %v2399 = vadd.f32 %v2054, %v2321
    %v2400 = vadd.f32 %v2055, %v2323
    %v2401 = vadd.f32 %v2056, %v2392
    %s2402 = scalar_lea.vmem %s1, 28
    %v2403 = vld [vmem:[%s2402] sm:$0xf]
    %v2404 = vld [vmem:[%s0 + $0x4] sm:$0xff]
    %v2405 = vld [vmem:[%s0 + $0xc] sm:$0xff]
    %v2406 = vld [vmem:[%s0 + $0x14] sm:$0xff]
    %v2407 = vld [vmem:[%s0 + $0x1c] sm:$0xff]
    %v2412 = vcombine.high %v2404, %v2404
    %v2413 = vcombine.high %v2405, %v2405
    %v2414 = vcombine.high %v2406, %v2406
    %v2415 = vcombine.high %v2407, %v2407
    %2416 = vrot.lane.b32.xlu0 %v2404, 108
    %v2417 = vpop.permute.xlu0 %2416
    %2418 = vrot.lane.b32.xlu0 %v2412, 108
    %v2419 = vpop.permute.xlu0 %2418
    %2420 = vrot.lane.b32.xlu0 %v2405, 108
    %v2421 = vpop.permute.xlu0 %2420
    %2422 = vrot.lane.b32.xlu0 %v2413, 108
    %v2423 = vpop.permute.xlu0 %2422
    %2424 = vrot.lane.b32.xlu0 %v2406, 108
    %v2425 = vpop.permute.xlu0 %2424
    %2426 = vrot.lane.b32.xlu0 %v2414, 108
    %v2427 = vpop.permute.xlu0 %2426
    %2428 = vrot.lane.b32.xlu0 %v2407, 108
    %v2429 = vpop.permute.xlu0 %2428
    %2430 = vrot.lane.b32.xlu0 %v2415, 108
    %v2431 = vpop.permute.xlu0 %2430
    %vm2432 = vcmask 883712
    %v2433 = vsel %vm2432, %v2417, %v2419
    %v2434 = vsel %vm2432, %v2419, %v2421
    %v2435 = vsel %vm2432, %v2421, %v2423
    %v2436 = vsel %vm2432, %v2423, %v2425
    %v2437 = vsel %vm2432, %v2425, %v2427
    %v2438 = vsel %vm2432, %v2427, %v2429
    %v2439 = vsel %vm2432, %v2429, %v2431
    %v2441 = vsel %vm76, %v2403, 0
    %v2443 = vsel %vm80, %v2433, 0
    %v2445 = vsel %vm80, %v2434, 0
    %v2447 = vsel %vm80, %v2435, 0
    %v2449 = vsel %vm80, %v2436, 0
    %v2451 = vsel %vm80, %v2437, 0
    %v2453 = vsel %vm80, %v2438, 0
    %v2455 = vsel %vm80, %v2439, 0
    %2457 = vmatprep.subr.mxu0 %v2445
    %2458 = vmatpush1.msra.mxu0 %v2443
    %2459 = vmatprep.subr.mxu0 0.0
    %2460 = vmatpush1.msra.mxu0 0.0
    %2461 = vmatprep.subr.mxu0 0.0
    %2462 = vmatpush1.msra.mxu0 0.0
    %2463 = vmatprep.subr.mxu0 0.0
    %2464 = vmatpush1.msra.mxu0 0.0
    %2465 = vmatprep.subr.mxu0 0.0
    %2466 = vmatpush1.msra.mxu0 0.0
    %2467 = vmatprep.subr.mxu0 0.0
    %2468 = vmatpush1.msra.mxu0 0.0
    %2469 = vmatprep.subr.mxu0 0.0
    %2470 = vmatpush1.msra.mxu0 0.0
    %2471 = vmatprep.subr.mxu0 0.0
    %2472 = vmatpush1.msra.mxu0 0.0
    %2473 = vmatprep.subr.mxu0 0.0
    %2474 = vmatpush1.msra.mxu0 0.0
    %2475 = vmatprep.subr.mxu0 0.0
    %2476 = vmatpush1.msra.mxu0 0.0
    %2477 = vmatprep.subr.mxu0 0.0
    %2478 = vmatpush1.msra.mxu0 0.0
    %2479 = vmatprep.subr.mxu0 0.0
    %2480 = vmatpush1.msra.mxu0 0.0
    %2481 = vmatprep.subr.mxu0 0.0
    %2482 = vmatpush1.msra.mxu0 0.0
    %2483 = vmatprep.subr.mxu0 0.0
    %2484 = vmatpush1.msra.mxu0 0.0
    %2485 = vmatprep.subr.mxu0 0.0
    %2486 = vmatpush1.msra.mxu0 0.0
    %2487 = vmatprep.subr.mxu0 0.0
    %2488 = vmatpush1.msra.mxu0 0.0
    %2489 = vmatprep.subr.mxu0 0.0
    %2490 = vmatpush1.msra.mxu0 0.0
    %2491 = vmatprep.subr.mxu0 0.0
    %2492 = vmatpush1.msra.mxu0 0.0
    %2493 = vmatprep.subr.mxu0 0.0
    %2494 = vmatpush1.msra.mxu0 0.0
    %2495 = vmatprep.subr.mxu0 0.0
    %2496 = vmatpush1.msra.mxu0 0.0
    %2497 = vmatprep.subr.mxu0 0.0
    %2498 = vmatpush1.msra.mxu0 0.0
    %2499 = vmatprep.subr.mxu0 0.0
    %2500 = vmatpush1.msra.mxu0 0.0
    %2501 = vmatprep.subr.mxu0 0.0
    %2502 = vmatpush1.msra.mxu0 0.0
    %2503 = vmatprep.subr.mxu0 0.0
    %2504 = vmatpush1.msra.mxu0 0.0
    %2505 = vmatprep.subr.mxu0 0.0
    %2506 = vmatpush1.msra.mxu0 0.0
    %2507 = vmatprep.subr.mxu0 0.0
    %2508 = vmatpush1.msra.mxu0 0.0
    %2509 = vmatprep.subr.mxu0 0.0
    %2510 = vmatpush1.msra.mxu0 0.0
    %2511 = vmatprep.subr.mxu0 0.0
    %2512 = vmatpush1.msra.mxu0 0.0
    %2513 = vmatprep.subr.mxu0 0.0
    %2514 = vmatpush1.msra.mxu0 0.0
    %2515 = vmatprep.subr.mxu0 0.0
    %2516 = vmatpush1.msra.mxu0 0.0
    %2517 = vmatprep.subr.mxu0 0.0
    %2518 = vmatpush1.msra.mxu0 0.0
    %2519 = vmatprep.subr.mxu0 0.0
    %2520 = vmatpush1.msra.mxu0 0.0
    %2521 = vmatprep.mubr.f32.mxu0 0.0
    %2522 = vmatmul.mubr.f32.gmra.mrb[0].mxu0 %v2441
    %v2523 = vpop.f32.mrb[0].mxu0
    %v2524 = vadd.f32 0.0, %v2523
    %v2525 = vpop.f32.mrb[0].mxu0
    %v2526 = vadd.f32 0.0, %v2525
    %2527 = vdwg.mxu0
    %2528 = vmatprep.subr.mxu0 %v2449
    %2529 = vmatpush1.msra.mxu0 %v2447
    %2530 = vmatprep.subr.mxu0 0.0
    %2531 = vmatpush1.msra.mxu0 0.0
    %2532 = vmatprep.subr.mxu0 0.0
    %2533 = vmatpush1.msra.mxu0 0.0
    %2534 = vmatprep.subr.mxu0 0.0
    %2535 = vmatpush1.msra.mxu0 0.0
    %2536 = vmatprep.subr.mxu0 0.0
    %2537 = vmatpush1.msra.mxu0 0.0
    %2538 = vmatprep.subr.mxu0 0.0
    %2539 = vmatpush1.msra.mxu0 0.0
    %2540 = vmatprep.subr.mxu0 0.0
    %2541 = vmatpush1.msra.mxu0 0.0
    %2542 = vmatprep.subr.mxu0 0.0
    %2543 = vmatpush1.msra.mxu0 0.0
    %2544 = vmatprep.subr.mxu0 0.0
    %2545 = vmatpush1.msra.mxu0 0.0
    %2546 = vmatprep.subr.mxu0 0.0
    %2547 = vmatpush1.msra.mxu0 0.0
    %2548 = vmatprep.subr.mxu0 0.0
    %2549 = vmatpush1.msra.mxu0 0.0
    %2550 = vmatprep.subr.mxu0 0.0
    %2551 = vmatpush1.msra.mxu0 0.0
    %2552 = vmatprep.subr.mxu0 0.0
    %2553 = vmatpush1.msra.mxu0 0.0
    %2554 = vmatprep.subr.mxu0 0.0
    %2555 = vmatpush1.msra.mxu0 0.0
    %2556 = vmatprep.subr.mxu0 0.0
    %2557 = vmatpush1.msra.mxu0 0.0
    %2558 = vmatprep.subr.mxu0 0.0
    %2559 = vmatpush1.msra.mxu0 0.0
    %2560 = vmatprep.subr.mxu0 0.0
    %2561 = vmatpush1.msra.mxu0 0.0
    %2562 = vmatprep.subr.mxu0 0.0
    %2563 = vmatpush1.msra.mxu0 0.0
    %2564 = vmatprep.subr.mxu0 0.0
    %2565 = vmatpush1.msra.mxu0 0.0
    %2566 = vmatprep.subr.mxu0 0.0
    %2567 = vmatpush1.msra.mxu0 0.0
    %2568 = vmatprep.subr.mxu0 0.0
    %2569 = vmatpush1.msra.mxu0 0.0
    %2570 = vmatprep.subr.mxu0 0.0
    %2571 = vmatpush1.msra.mxu0 0.0
    %2572 = vmatprep.subr.mxu0 0.0
    %2573 = vmatpush1.msra.mxu0 0.0
    %2574 = vmatprep.subr.mxu0 0.0
    %2575 = vmatpush1.msra.mxu0 0.0
    %2576 = vmatprep.subr.mxu0 0.0
    %2577 = vmatpush1.msra.mxu0 0.0
    %2578 = vmatprep.subr.mxu0 0.0
    %2579 = vmatpush1.msra.mxu0 0.0
    %2580 = vmatprep.subr.mxu0 0.0
    %2581 = vmatpush1.msra.mxu0 0.0
    %2582 = vmatprep.subr.mxu0 0.0
    %2583 = vmatpush1.msra.mxu0 0.0
    %2584 = vmatprep.subr.mxu0 0.0
    %2585 = vmatpush1.msra.mxu0 0.0
    %2586 = vmatprep.subr.mxu0 0.0
    %2587 = vmatpush1.msra.mxu0 0.0
    %2588 = vmatprep.subr.mxu0 0.0
    %2589 = vmatpush1.msra.mxu0 0.0
    %2590 = vmatprep.subr.mxu0 0.0
    %2591 = vmatpush1.msra.mxu0 0.0
    %2592 = vmatprep.mubr.f32.mxu0 0.0
    %2593 = vmatmul.mubr.f32.gmra.mrb[0].mxu0 %v2441
    %v2594 = vpop.f32.mrb[0].mxu0
    %v2595 = vadd.f32 0.0, %v2594
    %v2596 = vpop.f32.mrb[0].mxu0
    %v2597 = vadd.f32 0.0, %v2596
    %2598 = vdwg.mxu0
    %2599 = vmatprep.subr.mxu0 %v2453
    %2600 = vmatpush1.msra.mxu0 %v2451
    %2601 = vmatprep.subr.mxu0 0.0
    %2602 = vmatpush1.msra.mxu0 0.0
    %2603 = vmatprep.subr.mxu0 0.0
    %2604 = vmatpush1.msra.mxu0 0.0
    %2605 = vmatprep.subr.mxu0 0.0
    %2606 = vmatpush1.msra.mxu0 0.0
    %2607 = vmatprep.subr.mxu0 0.0
    %2608 = vmatpush1.msra.mxu0 0.0
    %2609 = vmatprep.subr.mxu0 0.0
    %2610 = vmatpush1.msra.mxu0 0.0
    %2611 = vmatprep.subr.mxu0 0.0
    %2612 = vmatpush1.msra.mxu0 0.0
    %2613 = vmatprep.subr.mxu0 0.0
    %2614 = vmatpush1.msra.mxu0 0.0
    %2615 = vmatprep.subr.mxu0 0.0
    %2616 = vmatpush1.msra.mxu0 0.0
    %2617 = vmatprep.subr.mxu0 0.0
    %2618 = vmatpush1.msra.mxu0 0.0
    %2619 = vmatprep.subr.mxu0 0.0
    %2620 = vmatpush1.msra.mxu0 0.0
    %2621 = vmatprep.subr.mxu0 0.0
    %2622 = vmatpush1.msra.mxu0 0.0
    %2623 = vmatprep.subr.mxu0 0.0
    %2624 = vmatpush1.msra.mxu0 0.0
    %2625 = vmatprep.subr.mxu0 0.0
    %2626 = vmatpush1.msra.mxu0 0.0
    %2627 = vmatprep.subr.mxu0 0.0
    %2628 = vmatpush1.msra.mxu0 0.0
    %2629 = vmatprep.subr.mxu0 0.0
    %2630 = vmatpush1.msra.mxu0 0.0
    %2631 = vmatprep.subr.mxu0 0.0
    %2632 = vmatpush1.msra.mxu0 0.0
    %2633 = vmatprep.subr.mxu0 0.0
    %2634 = vmatpush1.msra.mxu0 0.0
    %2635 = vmatprep.subr.mxu0 0.0
    %2636 = vmatpush1.msra.mxu0 0.0
    %2637 = vmatprep.subr.mxu0 0.0
    %2638 = vmatpush1.msra.mxu0 0.0
    %2639 = vmatprep.subr.mxu0 0.0
    %2640 = vmatpush1.msra.mxu0 0.0
    %2641 = vmatprep.subr.mxu0 0.0
    %2642 = vmatpush1.msra.mxu0 0.0
    %2643 = vmatprep.subr.mxu0 0.0
    %2644 = vmatpush1.msra.mxu0 0.0
    %2645 = vmatprep.subr.mxu0 0.0
    %2646 = vmatpush1.msra.mxu0 0.0
    %2647 = vmatprep.subr.mxu0 0.0
    %2648 = vmatpush1.msra.mxu0 0.0
    %2649 = vmatprep.subr.mxu0 0.0
    %2650 = vmatpush1.msra.mxu0 0.0
    %2651 = vmatprep.subr.mxu0 0.0
    %2652 = vmatpush1.msra.mxu0 0.0
    %2653 = vmatprep.subr.mxu0 0.0
    %2654 = vmatpush1.msra.mxu0 0.0
    %2655 = vmatprep.subr.mxu0 0.0
    %2656 = vmatpush1.msra.mxu0 0.0
    %2657 = vmatprep.subr.mxu0 0.0
    %2658 = vmatpush1.msra.mxu0 0.0
    %2659 = vmatprep.subr.mxu0 0.0
    %2660 = vmatpush1.msra.mxu0 0.0
    %2661 = vmatprep.subr.mxu0 0.0
    %2662 = vmatpush1.msra.mxu0 0.0
    %2663 = vmatprep.mubr.f32.mxu0 0.0
    %2664 = vmatmul.mubr.f32.gmra.mrb[0].mxu0 %v2441
    %v2665 = vpop.f32.mrb[0].mxu0
    %v2666 = vadd.f32 0.0, %v2665
    %v2667 = vpop.f32.mrb[0].mxu0
    %v2668 = vadd.f32 0.0, %v2667
    %2669 = vdwg.mxu0
    %2670 = vmatprep.subr.mxu0 0.0
    %2671 = vmatpush1.msra.mxu0 %v2455
    %2672 = vmatprep.subr.mxu0 0.0
    %2673 = vmatpush1.msra.mxu0 0.0
    %2674 = vmatprep.subr.mxu0 0.0
    %2675 = vmatpush1.msra.mxu0 0.0
    %2676 = vmatprep.subr.mxu0 0.0
    %2677 = vmatpush1.msra.mxu0 0.0
    %2678 = vmatprep.subr.mxu0 0.0
    %2679 = vmatpush1.msra.mxu0 0.0
    %2680 = vmatprep.subr.mxu0 0.0
    %2681 = vmatpush1.msra.mxu0 0.0
    %2682 = vmatprep.subr.mxu0 0.0
    %2683 = vmatpush1.msra.mxu0 0.0
    %2684 = vmatprep.subr.mxu0 0.0
    %2685 = vmatpush1.msra.mxu0 0.0
    %2686 = vmatprep.subr.mxu0 0.0
    %2687 = vmatpush1.msra.mxu0 0.0
    %2688 = vmatprep.subr.mxu0 0.0
    %2689 = vmatpush1.msra.mxu0 0.0
    %2690 = vmatprep.subr.mxu0 0.0
    %2691 = vmatpush1.msra.mxu0 0.0
    %2692 = vmatprep.subr.mxu0 0.0
    %2693 = vmatpush1.msra.mxu0 0.0
    %2694 = vmatprep.subr.mxu0 0.0
    %2695 = vmatpush1.msra.mxu0 0.0
    %2696 = vmatprep.subr.mxu0 0.0
    %2697 = vmatpush1.msra.mxu0 0.0
    %2698 = vmatprep.subr.mxu0 0.0
    %2699 = vmatpush1.msra.mxu0 0.0
    %2700 = vmatprep.subr.mxu0 0.0
    %2701 = vmatpush1.msra.mxu0 0.0
    %2702 = vmatprep.subr.mxu0 0.0
    %2703 = vmatpush1.msra.mxu0 0.0
    %2704 = vmatprep.subr.mxu0 0.0
    %2705 = vmatpush1.msra.mxu0 0.0
    %2706 = vmatprep.subr.mxu0 0.0
    %2707 = vmatpush1.msra.mxu0 0.0
    %2708 = vmatprep.subr.mxu0 0.0
    %2709 = vmatpush1.msra.mxu0 0.0
    %2710 = vmatprep.subr.mxu0 0.0
    %2711 = vmatpush1.msra.mxu0 0.0
    %2712 = vmatprep.subr.mxu0 0.0
    %2713 = vmatpush1.msra.mxu0 0.0
    %2714 = vmatprep.subr.mxu0 0.0
    %2715 = vmatpush1.msra.mxu0 0.0
    %2716 = vmatprep.subr.mxu0 0.0
    %2717 = vmatpush1.msra.mxu0 0.0
    %2718 = vmatprep.subr.mxu0 0.0
    %2719 = vmatpush1.msra.mxu0 0.0
    %2720 = vmatprep.subr.mxu0 0.0
    %2721 = vmatpush1.msra.mxu0 0.0
    %2722 = vmatprep.subr.mxu0 0.0
    %2723 = vmatpush1.msra.mxu0 0.0
    %2724 = vmatprep.subr.mxu0 0.0
    %2725 = vmatpush1.msra.mxu0 0.0
    %2726 = vmatprep.subr.mxu0 0.0
    %2727 = vmatpush1.msra.mxu0 0.0
    %2728 = vmatprep.subr.mxu0 0.0
    %2729 = vmatpush1.msra.mxu0 0.0
    %2730 = vmatprep.subr.mxu0 0.0
    %2731 = vmatpush1.msra.mxu0 0.0
    %2732 = vmatprep.subr.mxu0 0.0
    %2733 = vmatpush1.msra.mxu0 0.0
    %2734 = vmatprep.mubr.f32.mxu0 0.0
    %2735 = vmatmul.mubr.f32.gmra.mrb[0].mxu0 %v2441
    %v2736 = vpop.f32.mrb[0].mxu0
    %v2737 = vadd.f32 0.0, %v2736
    %v2738 = vpop.f32.mrb[0].mxu0
    %2739 = vdwg.mxu0
    %v2740 = vadd.f32 %v2395, %v2524
    %v2741 = vadd.f32 %v2396, %v2526
    %v2742 = vadd.f32 %v2397, %v2595
    %v2743 = vadd.f32 %v2398, %v2597
    %v2744 = vadd.f32 %v2399, %v2666
    %v2745 = vadd.f32 %v2400, %v2668
    %v2746 = vadd.f32 %v2401, %v2737
    %s2747 = scalar_lea.vmem %s1, 32
    %v2748 = vld [vmem:[%s2747] sm:$0xf]
    %v2749 = vld [vmem:[%s0 + $0x4] sm:$0xff]
    %v2750 = vld [vmem:[%s0 + $0xc] sm:$0xff]
    %v2751 = vld [vmem:[%s0 + $0x14] sm:$0xff]
    %v2752 = vld [vmem:[%s0 + $0x1c] sm:$0xff]
    %v2757 = vcombine.high %v2749, %v2749
    %v2758 = vcombine.high %v2750, %v2750
    %v2759 = vcombine.high %v2751, %v2751
    %v2760 = vcombine.high %v2752, %v2752
    %2761 = vrot.lane.b32.xlu0 %v2749, 107
    %v2762 = vpop.permute.xlu0 %2761
    %2763 = vrot.lane.b32.xlu0 %v2757, 107
    %v2764 = vpop.permute.xlu0 %2763
    %2765 = vrot.lane.b32.xlu0 %v2750, 107
    %v2766 = vpop.permute.xlu0 %2765
    %2767 = vrot.lane.b32.xlu0 %v2758, 107
    %v2768 = vpop.permute.xlu0 %2767
    %2769 = vrot.lane.b32.xlu0 %v2751, 107
    %v2770 = vpop.permute.xlu0 %2769
    %2771 = vrot.lane.b32.xlu0 %v2759, 107
    %v2772 = vpop.permute.xlu0 %2771
    %2773 = vrot.lane.b32.xlu0 %v2752, 107
    %v2774 = vpop.permute.xlu0 %2773
    %2775 = vrot.lane.b32.xlu0 %v2760, 107
    %v2776 = vpop.permute.xlu0 %2775
    %vm2777 = vcmask 875520
    %v2778 = vsel %vm2777, %v2762, %v2764
    %v2779 = vsel %vm2777, %v2764, %v2766
    %v2780 = vsel %vm2777, %v2766, %v2768
    %v2781 = vsel %vm2777, %v2768, %v2770
    %v2782 = vsel %vm2777, %v2770, %v2772
    %v2783 = vsel %vm2777, %v2772, %v2774
    %v2784 = vsel %vm2777, %v2774, %v2776
    %v2786 = vsel %vm76, %v2748, 0
    %v2788 = vsel %vm80, %v2778, 0
    %v2790 = vsel %vm80, %v2779, 0
    %v2792 = vsel %vm80, %v2780, 0
    %v2794 = vsel %vm80, %v2781, 0
    %v2796 = vsel %vm80, %v2782, 0
    %v2798 = vsel %vm80, %v2783, 0
    %v2800 = vsel %vm80, %v2784, 0
    %2802 = vmatprep.subr.mxu0 %v2790
    %2803 = vmatpush1.msra.mxu0 %v2788
    %2804 = vmatprep.subr.mxu0 0.0
    %2805 = vmatpush1.msra.mxu0 0.0
    %2806 = vmatprep.subr.mxu0 0.0
    %2807 = vmatpush1.msra.mxu0 0.0
    %2808 = vmatprep.subr.mxu0 0.0
    %2809 = vmatpush1.msra.mxu0 0.0
    %2810 = vmatprep.subr.mxu0 0.0
    %2811 = vmatpush1.msra.mxu0 0.0
    %2812 = vmatprep.subr.mxu0 0.0
    %2813 = vmatpush1.msra.mxu0 0.0
    %2814 = vmatprep.subr.mxu0 0.0
    %2815 = vmatpush1.msra.mxu0 0.0
    %2816 = vmatprep.subr.mxu0 0.0
    %2817 = vmatpush1.msra.mxu0 0.0
    %2818 = vmatprep.subr.mxu0 0.0
    %2819 = vmatpush1.msra.mxu0 0.0
    %2820 = vmatprep.subr.mxu0 0.0
    %2821 = vmatpush1.msra.mxu0 0.0
    %2822 = vmatprep.subr.mxu0 0.0
    %2823 = vmatpush1.msra.mxu0 0.0
    %2824 = vmatprep.subr.mxu0 0.0
    %2825 = vmatpush1.msra.mxu0 0.0
    %2826 = vmatprep.subr.mxu0 0.0
    %2827 = vmatpush1.msra.mxu0 0.0
    %2828 = vmatprep.subr.mxu0 0.0
    %2829 = vmatpush1.msra.mxu0 0.0
    %2830 = vmatprep.subr.mxu0 0.0
    %2831 = vmatpush1.msra.mxu0 0.0
    %2832 = vmatprep.subr.mxu0 0.0
    %2833 = vmatpush1.msra.mxu0 0.0
    %2834 = vmatprep.subr.mxu0 0.0
    %2835 = vmatpush1.msra.mxu0 0.0
    %2836 = vmatprep.subr.mxu0 0.0
    %2837 = vmatpush1.msra.mxu0 0.0
    %2838 = vmatprep.subr.mxu0 0.0
    %2839 = vmatpush1.msra.mxu0 0.0
    %2840 = vmatprep.subr.mxu0 0.0
    %2841 = vmatpush1.msra.mxu0 0.0
    %2842 = vmatprep.subr.mxu0 0.0
    %2843 = vmatpush1.msra.mxu0 0.0
    %2844 = vmatprep.subr.mxu0 0.0
    %2845 = vmatpush1.msra.mxu0 0.0
    %2846 = vmatprep.subr.mxu0 0.0
    %2847 = vmatpush1.msra.mxu0 0.0
    %2848 = vmatprep.subr.mxu0 0.0
    %2849 = vmatpush1.msra.mxu0 0.0
    %2850 = vmatprep.subr.mxu0 0.0
    %2851 = vmatpush1.msra.mxu0 0.0
    %2852 = vmatprep.subr.mxu0 0.0
    %2853 = vmatpush1.msra.mxu0 0.0
    %2854 = vmatprep.subr.mxu0 0.0
    %2855 = vmatpush1.msra.mxu0 0.0
    %2856 = vmatprep.subr.mxu0 0.0
    %2857 = vmatpush1.msra.mxu0 0.0
    %2858 = vmatprep.subr.mxu0 0.0
    %2859 = vmatpush1.msra.mxu0 0.0
    %2860 = vmatprep.subr.mxu0 0.0
    %2861 = vmatpush1.msra.mxu0 0.0
    %2862 = vmatprep.subr.mxu0 0.0
    %2863 = vmatpush1.msra.mxu0 0.0
    %2864 = vmatprep.subr.mxu0 0.0
    %2865 = vmatpush1.msra.mxu0 0.0
    %2866 = vmatprep.mubr.f32.mxu0 0.0
    %2867 = vmatmul.mubr.f32.gmra.mrb[0].mxu0 %v2786
    %v2868 = vpop.f32.mrb[0].mxu0
    %v2869 = vadd.f32 0.0, %v2868
    %v2870 = vpop.f32.mrb[0].mxu0
    %v2871 = vadd.f32 0.0, %v2870
    %2872 = vdwg.mxu0
    %2873 = vmatprep.subr.mxu0 %v2794
    %2874 = vmatpush1.msra.mxu0 %v2792
    %2875 = vmatprep.subr.mxu0 0.0
    %2876 = vmatpush1.msra.mxu0 0.0
    %2877 = vmatprep.subr.mxu0 0.0
    %2878 = vmatpush1.msra.mxu0 0.0
    %2879 = vmatprep.subr.mxu0 0.0
    %2880 = vmatpush1.msra.mxu0 0.0
    %2881 = vmatprep.subr.mxu0 0.0
    %2882 = vmatpush1.msra.mxu0 0.0
    %2883 = vmatprep.subr.mxu0 0.0
    %2884 = vmatpush1.msra.mxu0 0.0
    %2885 = vmatprep.subr.mxu0 0.0
    %2886 = vmatpush1.msra.mxu0 0.0
    %2887 = vmatprep.subr.mxu0 0.0
    %2888 = vmatpush1.msra.mxu0 0.0
    %2889 = vmatprep.subr.mxu0 0.0
    %2890 = vmatpush1.msra.mxu0 0.0
    %2891 = vmatprep.subr.mxu0 0.0
    %2892 = vmatpush1.msra.mxu0 0.0
    %2893 = vmatprep.subr.mxu0 0.0
    %2894 = vmatpush1.msra.mxu0 0.0
    %2895 = vmatprep.subr.mxu0 0.0
    %2896 = vmatpush1.msra.mxu0 0.0
    %2897 = vmatprep.subr.mxu0 0.0
    %2898 = vmatpush1.msra.mxu0 0.0
    %2899 = vmatprep.subr.mxu0 0.0
    %2900 = vmatpush1.msra.mxu0 0.0
    %2901 = vmatprep.subr.mxu0 0.0
    %2902 = vmatpush1.msra.mxu0 0.0
    %2903 = vmatprep.subr.mxu0 0.0
    %2904 = vmatpush1.msra.mxu0 0.0
    %2905 = vmatprep.subr.mxu0 0.0
    %2906 = vmatpush1.msra.mxu0 0.0
    %2907 = vmatprep.subr.mxu0 0.0
    %2908 = vmatpush1.msra.mxu0 0.0
    %2909 = vmatprep.subr.mxu0 0.0
    %2910 = vmatpush1.msra.mxu0 0.0
    %2911 = vmatprep.subr.mxu0 0.0
    %2912 = vmatpush1.msra.mxu0 0.0
    %2913 = vmatprep.subr.mxu0 0.0
    %2914 = vmatpush1.msra.mxu0 0.0
    %2915 = vmatprep.subr.mxu0 0.0
    %2916 = vmatpush1.msra.mxu0 0.0
    %2917 = vmatprep.subr.mxu0 0.0
    %2918 = vmatpush1.msra.mxu0 0.0
    %2919 = vmatprep.subr.mxu0 0.0
    %2920 = vmatpush1.msra.mxu0 0.0
    %2921 = vmatprep.subr.mxu0 0.0
    %2922 = vmatpush1.msra.mxu0 0.0
    %2923 = vmatprep.subr.mxu0 0.0
    %2924 = vmatpush1.msra.mxu0 0.0
    %2925 = vmatprep.subr.mxu0 0.0
    %2926 = vmatpush1.msra.mxu0 0.0
    %2927 = vmatprep.subr.mxu0 0.0
    %2928 = vmatpush1.msra.mxu0 0.0
    %2929 = vmatprep.subr.mxu0 0.0
    %2930 = vmatpush1.msra.mxu0 0.0
    %2931 = vmatprep.subr.mxu0 0.0
    %2932 = vmatpush1.msra.mxu0 0.0
    %2933 = vmatprep.subr.mxu0 0.0
    %2934 = vmatpush1.msra.mxu0 0.0
    %2935 = vmatprep.subr.mxu0 0.0
    %2936 = vmatpush1.msra.mxu0 0.0
    %2937 = vmatprep.mubr.f32.mxu0 0.0
    %2938 = vmatmul.mubr.f32.gmra.mrb[0].mxu0 %v2786
    %v2939 = vpop.f32.mrb[0].mxu0
    %v2940 = vadd.f32 0.0, %v2939
    %v2941 = vpop.f32.mrb[0].mxu0
    %v2942 = vadd.f32 0.0, %v2941
    %2943 = vdwg.mxu0
    %2944 = vmatprep.subr.mxu0 %v2798
    %2945 = vmatpush1.msra.mxu0 %v2796
    %2946 = vmatprep.subr.mxu0 0.0
    %2947 = vmatpush1.msra.mxu0 0.0
    %2948 = vmatprep.subr.mxu0 0.0
    %2949 = vmatpush1.msra.mxu0 0.0
    %2950 = vmatprep.subr.mxu0 0.0
    %2951 = vmatpush1.msra.mxu0 0.0
    %2952 = vmatprep.subr.mxu0 0.0
    %2953 = vmatpush1.msra.mxu0 0.0
    %2954 = vmatprep.subr.mxu0 0.0
    %2955 = vmatpush1.msra.mxu0 0.0
    %2956 = vmatprep.subr.mxu0 0.0
    %2957 = vmatpush1.msra.mxu0 0.0
    %2958 = vmatprep.subr.mxu0 0.0
    %2959 = vmatpush1.msra.mxu0 0.0
    %2960 = vmatprep.subr.mxu0 0.0
    %2961 = vmatpush1.msra.mxu0 0.0
    %2962 = vmatprep.subr.mxu0 0.0
    %2963 = vmatpush1.msra.mxu0 0.0
    %2964 = vmatprep.subr.mxu0 0.0
    %2965 = vmatpush1.msra.mxu0 0.0
    %2966 = vmatprep.subr.mxu0 0.0
    %2967 = vmatpush1.msra.mxu0 0.0
    %2968 = vmatprep.subr.mxu0 0.0
    %2969 = vmatpush1.msra.mxu0 0.0
    %2970 = vmatprep.subr.mxu0 0.0
    %2971 = vmatpush1.msra.mxu0 0.0
    %2972 = vmatprep.subr.mxu0 0.0
    %2973 = vmatpush1.msra.mxu0 0.0
    %2974 = vmatprep.subr.mxu0 0.0
    %2975 = vmatpush1.msra.mxu0 0.0
    %2976 = vmatprep.subr.mxu0 0.0
    %2977 = vmatpush1.msra.mxu0 0.0
    %2978 = vmatprep.subr.mxu0 0.0
    %2979 = vmatpush1.msra.mxu0 0.0
    %2980 = vmatprep.subr.mxu0 0.0
    %2981 = vmatpush1.msra.mxu0 0.0
    %2982 = vmatprep.subr.mxu0 0.0
    %2983 = vmatpush1.msra.mxu0 0.0
    %2984 = vmatprep.subr.mxu0 0.0
    %2985 = vmatpush1.msra.mxu0 0.0
    %2986 = vmatprep.subr.mxu0 0.0
    %2987 = vmatpush1.msra.mxu0 0.0
    %2988 = vmatprep.subr.mxu0 0.0
    %2989 = vmatpush1.msra.mxu0 0.0
    %2990 = vmatprep.subr.mxu0 0.0
    %2991 = vmatpush1.msra.mxu0 0.0
    %2992 = vmatprep.subr.mxu0 0.0
    %2993 = vmatpush1.msra.mxu0 0.0
    %2994 = vmatprep.subr.mxu0 0.0
    %2995 = vmatpush1.msra.mxu0 0.0
    %2996 = vmatprep.subr.mxu0 0.0
    %2997 = vmatpush1.msra.mxu0 0.0
    %2998 = vmatprep.subr.mxu0 0.0
    %2999 = vmatpush1.msra.mxu0 0.0
    %3000 = vmatprep.subr.mxu0 0.0
    %3001 = vmatpush1.msra.mxu0 0.0
    %3002 = vmatprep.subr.mxu0 0.0
    %3003 = vmatpush1.msra.mxu0 0.0
    %3004 = vmatprep.subr.mxu0 0.0
    %3005 = vmatpush1.msra.mxu0 0.0
    %3006 = vmatprep.subr.mxu0 0.0
    %3007 = vmatpush1.msra.mxu0 0.0
    %3008 = vmatprep.mubr.f32.mxu0 0.0
    %3009 = vmatmul.mubr.f32.gmra.mrb[0].mxu0 %v2786
    %v3010 = vpop.f32.mrb[0].mxu0
    %v3011 = vadd.f32 0.0, %v3010
    %v3012 = vpop.f32.mrb[0].mxu0
    %v3013 = vadd.f32 0.0, %v3012
    %3014 = vdwg.mxu0
    %3015 = vmatprep.subr.mxu0 0.0
    %3016 = vmatpush1.msra.mxu0 %v2800
    %3017 = vmatprep.subr.mxu0 0.0
    %3018 = vmatpush1.msra.mxu0 0.0
    %3019 = vmatprep.subr.mxu0 0.0
    %3020 = vmatpush1.msra.mxu0 0.0
    %3021 = vmatprep.subr.mxu0 0.0
    %3022 = vmatpush1.msra.mxu0 0.0
    %3023 = vmatprep.subr.mxu0 0.0
    %3024 = vmatpush1.msra.mxu0 0.0
    %3025 = vmatprep.subr.mxu0 0.0
    %3026 = vmatpush1.msra.mxu0 0.0
    %3027 = vmatprep.subr.mxu0 0.0
    %3028 = vmatpush1.msra.mxu0 0.0
    %3029 = vmatprep.subr.mxu0 0.0
    %3030 = vmatpush1.msra.mxu0 0.0
    %3031 = vmatprep.subr.mxu0 0.0
    %3032 = vmatpush1.msra.mxu0 0.0
    %3033 = vmatprep.subr.mxu0 0.0
    %3034 = vmatpush1.msra.mxu0 0.0
    %3035 = vmatprep.subr.mxu0 0.0
    %3036 = vmatpush1.msra.mxu0 0.0
    %3037 = vmatprep.subr.mxu0 0.0
    %3038 = vmatpush1.msra.mxu0 0.0
    %3039 = vmatprep.subr.mxu0 0.0
    %3040 = vmatpush1.msra.mxu0 0.0
    %3041 = vmatprep.subr.mxu0 0.0
    %3042 = vmatpush1.msra.mxu0 0.0
    %3043 = vmatprep.subr.mxu0 0.0
    %3044 = vmatpush1.msra.mxu0 0.0
    %3045 = vmatprep.subr.mxu0 0.0
    %3046 = vmatpush1.msra.mxu0 0.0
    %3047 = vmatprep.subr.mxu0 0.0
    %3048 = vmatpush1.msra.mxu0 0.0
    %3049 = vmatprep.subr.mxu0 0.0
    %3050 = vmatpush1.msra.mxu0 0.0
    %3051 = vmatprep.subr.mxu0 0.0
    %3052 = vmatpush1.msra.mxu0 0.0
    %3053 = vmatprep.subr.mxu0 0.0
    %3054 = vmatpush1.msra.mxu0 0.0
    %3055 = vmatprep.subr.mxu0 0.0
    %3056 = vmatpush1.msra.mxu0 0.0
    %3057 = vmatprep.subr.mxu0 0.0
    %3058 = vmatpush1.msra.mxu0 0.0
    %3059 = vmatprep.subr.mxu0 0.0
    %3060 = vmatpush1.msra.mxu0 0.0
    %3061 = vmatprep.subr.mxu0 0.0
    %3062 = vmatpush1.msra.mxu0 0.0
    %3063 = vmatprep.subr.mxu0 0.0
    %3064 = vmatpush1.msra.mxu0 0.0
    %3065 = vmatprep.subr.mxu0 0.0
    %3066 = vmatpush1.msra.mxu0 0.0
    %3067 = vmatprep.subr.mxu0 0.0
    %3068 = vmatpush1.msra.mxu0 0.0
    %3069 = vmatprep.subr.mxu0 0.0
    %3070 = vmatpush1.msra.mxu0 0.0
    %3071 = vmatprep.subr.mxu0 0.0
    %3072 = vmatpush1.msra.mxu0 0.0
    %3073 = vmatprep.subr.mxu0 0.0
    %3074 = vmatpush1.msra.mxu0 0.0
    %3075 = vmatprep.subr.mxu0 0.0
    %3076 = vmatpush1.msra.mxu0 0.0
    %3077 = vmatprep.subr.mxu0 0.0
    %3078 = vmatpush1.msra.mxu0 0.0
    %3079 = vmatprep.mubr.f32.mxu0 0.0
    %3080 = vmatmul.mubr.f32.gmra.mrb[0].mxu0 %v2786
    %v3081 = vpop.f32.mrb[0].mxu0
    %v3082 = vadd.f32 0.0, %v3081
    %v3083 = vpop.f32.mrb[0].mxu0
    %3084 = vdwg.mxu0
    %v3085 = vadd.f32 %v2740, %v2869
    %v3086 = vadd.f32 %v2741, %v2871
    %v3087 = vadd.f32 %v2742, %v2940
    %v3088 = vadd.f32 %v2743, %v2942
    %v3089 = vadd.f32 %v2744, %v3011
    %v3090 = vadd.f32 %v2745, %v3013
    %v3091 = vadd.f32 %v2746, %v3082
    %v3092 = vld [vmem:[%s2] sm:$0xf]
    %3094 = vset.pattern.permute.xlu0 0
    %3095 = vperm.xlu0 %3094, %v3092
    %v3096 = vpop.permute.xlu0 %3095
    %v3098 = vadd.f32 %v3085, %v3096
    %v3099 = vadd.f32 %v3086, %v3096
    %v3100 = vadd.f32 %v3087, %v3096
    %v3101 = vadd.f32 %v3088, %v3096
    %v3102 = vadd.f32 %v3089, %v3096
    %v3103 = vadd.f32 %v3090, %v3096
    %v3104 = vadd.f32 %v3091, %v3096
    %vm3105 = vcmp.gt.f32.partialorder %v3098, 0.0
    %vm3106 = vcmp.gt.f32.partialorder %v3099, 0.0
    %vm3107 = vcmp.gt.f32.partialorder %v3100, 0.0
    %vm3108 = vcmp.gt.f32.partialorder %v3101, 0.0
    %vm3109 = vcmp.gt.f32.partialorder %v3102, 0.0
    %vm3110 = vcmp.gt.f32.partialorder %v3103, 0.0
    %vm3111 = vcmp.gt.f32.partialorder %v3104, 0.0
    %v3112 = vmul.f32 %v3098, 0.01
    %v3113 = vmul.f32 %v3099, 0.01
    %v3114 = vmul.f32 %v3100, 0.01
    %v3115 = vmul.f32 %v3101, 0.01
    %v3116 = vmul.f32 %v3102, 0.01
    %v3117 = vmul.f32 %v3103, 0.01
    %v3118 = vmul.f32 %v3104, 0.01
    %v3119 = vsel %vm3105, %v3098, %v3112
    %v3120 = vsel %vm3106, %v3099, %v3113
    %v3121 = vsel %vm3107, %v3100, %v3114
    %v3122 = vsel %vm3108, %v3101, %v3115
    %v3123 = vsel %vm3109, %v3102, %v3116
    %v3124 = vsel %vm3110, %v3103, %v3117
    %v3125 = vsel %vm3111, %v3104, %v3118
    %v3127 = vlaneseq
    %v3128 = vshrl.u32 %v3127, 7
    %v3129 = vsub.s32 0, %v3128
    %v3130 = vrot.slane %v36, %v3129
    %v3131 = vlaneseq
    %v3132 = vshrl.u32 %v3131, 7
    %v3133 = vsub.s32 1, %v3132
    %v3134 = vrot.slane %v36, %v3133
    %v3135 = vlaneseq
    %v3136 = vshrl.u32 %v3135, 7
    %v3137 = vsub.s32 2, %v3136
    %v3138 = vrot.slane %v36, %v3137
    %v3139 = vlaneseq
    %v3140 = vshrl.u32 %v3139, 7
    %v3141 = vsub.s32 3, %v3140
    %v3142 = vrot.slane %v36, %v3141
    %v3143 = vlaneseq
    %v3144 = vshrl.u32 %v3143, 7
    %v3145 = vsub.s32 4, %v3144
    %v3146 = vrot.slane %v36, %v3145
    %v3147 = vlaneseq
    %v3148 = vshrl.u32 %v3147, 7
    %v3149 = vsub.s32 5, %v3148
    %v3150 = vrot.slane %v36, %v3149
    %v3151 = vlaneseq
    %v3152 = vshrl.u32 %v3151, 7
    %v3153 = vsub.s32 6, %v3152
    %v3154 = vrot.slane %v36, %v3153
    %v3162 = vmul.f32 %v3119, %v3130
    %v3163 = vmul.f32 %v3120, %v3134
    %v3164 = vmul.f32 %v3121, %v3138
    %v3165 = vmul.f32 %v3122, %v3142
    %v3166 = vmul.f32 %v3123, %v3146
    %v3167 = vmul.f32 %v3124, %v3150
    %v3168 = vmul.f32 %v3125, %v3154
    %v3169 = vsel %vm80, %v3162, 0.0
    %v3170 = vsel %vm80, %v3163, 0.0
    %v3171 = vadd.f32 %v3169, %v3170
    %v3172 = vsel %vm80, %v3164, 0.0
    %v3173 = vadd.f32 %v3171, %v3172
    %v3174 = vsel %vm80, %v3165, 0.0
    %v3175 = vadd.f32 %v3173, %v3174
    %v3176 = vsel %vm80, %v3166, 0.0
    %v3177 = vadd.f32 %v3175, %v3176
    %v3178 = vsel %vm80, %v3167, 0.0
    %v3179 = vadd.f32 %v3177, %v3178
    %v3180 = vsel %vm80, %v3168, 0.0
    %v3181 = vadd.f32 %v3179, %v3180
    %3182 = vadd.xlane.f32.xlu0 %v3181
    %v3183 = vpop.xlane.xlu0 %3182
    %v3184 = vmul.f32 %v3162, %v3162
    %v3185 = vmul.f32 %v3163, %v3163
    %v3186 = vmul.f32 %v3164, %v3164
    %v3187 = vmul.f32 %v3165, %v3165
    %v3188 = vmul.f32 %v3166, %v3166
    %v3189 = vmul.f32 %v3167, %v3167
    %v3190 = vmul.f32 %v3168, %v3168
    %v3191 = vsel %vm80, %v3184, 0.0
    %v3192 = vsel %vm80, %v3185, 0.0
    %v3193 = vadd.f32 %v3191, %v3192
    %v3194 = vsel %vm80, %v3186, 0.0
    %v3195 = vadd.f32 %v3193, %v3194
    %v3196 = vsel %vm80, %v3187, 0.0
    %v3197 = vadd.f32 %v3195, %v3196
    %v3198 = vsel %vm80, %v3188, 0.0
    %v3199 = vadd.f32 %v3197, %v3198
    %v3200 = vsel %vm80, %v3189, 0.0
    %v3201 = vadd.f32 %v3199, %v3200
    %v3202 = vsel %vm80, %v3190, 0.0
    %v3203 = vadd.f32 %v3201, %v3202
    %3204 = vadd.xlane.f32.xlu0 %v3203
    %v3205 = vpop.xlane.xlu0 %3204
    %v3206 = vmul.f32 %v3183, 0.0015432099
    %v3207 = vmul.f32 %v3205, 0.0015432099
    %v3208 = vmul.f32 %v3206, %v3206
    %v3209 = vsub.f32 %v3207, %v3208
    %v3210 = vmax.f32 %v3209, 0.0
    %v3211 = vsub.f32 %v3119, %v3206
    %v3212 = vsub.f32 %v3120, %v3206
    %v3213 = vsub.f32 %v3121, %v3206
    %v3214 = vsub.f32 %v3122, %v3206
    %v3215 = vsub.f32 %v3123, %v3206
    %v3216 = vsub.f32 %v3124, %v3206
    %v3217 = vsub.f32 %v3125, %v3206
    %v3218 = vadd.f32 %v3210, 1e-05
    %v3219 = vrsqrt.pop %v3218
    %v3220 = vmul.f32 %v3211, %v3219
    %v3221 = vmul.f32 %v3212, %v3219
    %v3222 = vmul.f32 %v3213, %v3219
    %v3223 = vmul.f32 %v3214, %v3219
    %v3224 = vmul.f32 %v3215, %v3219
    %v3225 = vmul.f32 %v3216, %v3219
    %v3226 = vmul.f32 %v3217, %v3219
    %v3227 = vld [vmem:[%s3] sm:$0xf]
    %3229 = vset.pattern.permute.xlu0 0
    %3230 = vperm.xlu0 %3229, %v3227
    %v3231 = vpop.permute.xlu0 %3230
    %v3233 = vmul.f32 %v3220, %v3231
    %v3234 = vmul.f32 %v3221, %v3231
    %v3235 = vmul.f32 %v3222, %v3231
    %v3236 = vmul.f32 %v3223, %v3231
    %v3237 = vmul.f32 %v3224, %v3231
    %v3238 = vmul.f32 %v3225, %v3231
    %v3239 = vmul.f32 %v3226, %v3231
    %v3240 = vld [vmem:[%s4] sm:$0xf]
    %3242 = vset.pattern.permute.xlu0 0
    %3243 = vperm.xlu0 %3242, %v3240
    %v3244 = vpop.permute.xlu0 %3243
    %v3246 = vadd.f32 %v3233, %v3244
    %v3247 = vadd.f32 %v3234, %v3244
    %v3248 = vadd.f32 %v3235, %v3244
    %v3249 = vadd.f32 %v3236, %v3244
    %v3250 = vadd.f32 %v3237, %v3244
    %v3251 = vadd.f32 %v3238, %v3244
    %v3252 = vadd.f32 %v3239, %v3244
    %v3253 = vmul.f32 %v3246, %v3130
    %v3254 = vmul.f32 %v3247, %v3134
    %v3255 = vmul.f32 %v3248, %v3138
    %v3256 = vmul.f32 %v3249, %v3142
    %v3257 = vmul.f32 %v3250, %v3146
    %v3258 = vmul.f32 %v3251, %v3150
    %v3259 = vmul.f32 %v3252, %v3154
    %3260 = vst [vmem:[#allocation2] sm:$0xff] 0.0
    %3261 = vst [vmem:[#allocation2 + $0x8] sm:$0xff] 0.0
    %3262 = vst [vmem:[#allocation2 + $0x10] sm:$0xff] 0.0
    %3263 = vst [vmem:[#allocation2 + $0x18] sm:$0xff] 0.0
    %3264 = vst [vmem:[#allocation2 + $0x20] sm:$0xff] 0.0
    %3265 = vst [vmem:[#allocation2 + $0x28] sm:$0xff] 0.0
    %3266 = vst [vmem:[#allocation2 + $0x30] sm:$0xff] 0.0
    %3267 = vst [vmem:[#allocation2 + $0x38] sm:$0xff] 0.0
    %3268 = vst [vmem:[#allocation2 + $0x40] sm:$0xff] 0.0
    %v3269 = vld [vmem:[%s0] sm:$0xff]
    %v3270 = vld [vmem:[%s0 + $0x8] sm:$0xff]
    %v3271 = vld [vmem:[%s0 + $0x10] sm:$0xff]
    %v3272 = vld [vmem:[%s0 + $0x18] sm:$0xff]
    %v3273 = vld [vmem:[%s0 + $0x20] sm:$0xf]
    %v3279 = vcombine.low %v3269, %v3269
    %v3280 = vcombine.low %v3270, %v3270
    %v3281 = vcombine.low %v3271, %v3271
    %v3282 = vcombine.low %v3272, %v3272
    %v3283 = vcombine.low %v3273, %v3273
    %3289 = vst [vmem:[#allocation2] sm:$0xf0] %v3279
    %3290 = vst [vmem:[#allocation2 + $0x8] sm:$0xf0] %v3269
    %3291 = vst [vmem:[#allocation2 + $0x10] sm:$0xf0] %v3280
    %3292 = vst [vmem:[#allocation2 + $0x18] sm:$0xf0] %v3270
    %3293 = vst [vmem:[#allocation2 + $0x20] sm:$0xf0] %v3281
    %3294 = vst [vmem:[#allocation2 + $0x28] sm:$0xf0] %v3271
    %3295 = vst [vmem:[#allocation2 + $0x30] sm:$0xf0] %v3282
    %3296 = vst [vmem:[#allocation2 + $0x38] sm:$0xf0] %v3272
    %3297 = vst [vmem:[#allocation2 + $0x40] sm:$0xf0] %v3283
    %3298 = vst [vmem:[#allocation2 + $0x8] sm:$0xf] %v3253
    %3299 = vst [vmem:[#allocation2 + $0x10] sm:$0xf] %v3254
    %3300 = vst [vmem:[#allocation2 + $0x18] sm:$0xf] %v3255
    %3301 = vst [vmem:[#allocation2 + $0x20] sm:$0xf] %v3256
    %3302 = vst [vmem:[#allocation2 + $0x28] sm:$0xf] %v3257
    %3303 = vst [vmem:[#allocation2 + $0x30] sm:$0xf] %v3258
    %3304 = vst [vmem:[#allocation2 + $0x38] sm:$0xf] %v3259
    %v3305 = vld [vmem:[%s5] sm:$0xff]
    %v3306 = vld [vmem:[%s5 + $0x8] sm:$0xff]
    %v3307 = vld [vmem:[#allocation2] sm:$0xff]
    %v3308 = vld [vmem:[#allocation2 + $0x8] sm:$0xff]
    %v3309 = vld [vmem:[#allocation2 + $0x10] sm:$0xff]
    %v3310 = vld [vmem:[#allocation2 + $0x18] sm:$0xff]
    %v3311 = vld [vmem:[#allocation2 + $0x20] sm:$0xff]
    %v3312 = vld [vmem:[#allocation2 + $0x28] sm:$0xff]
    %v3313 = vld [vmem:[#allocation2 + $0x30] sm:$0xff]
    %v3314 = vld [vmem:[#allocation2 + $0x38] sm:$0xff]
    %s3315 = scalar_lea.vmem %s5, 16
    %v3316 = vld [vmem:[%s3315] sm:$0xff]
    %v3317 = vld [vmem:[%s3315 + $0x8] sm:$0xff]
    %3326 = vrot.lane.b32.xlu0 %v3307, 20
    %v3327 = vpop.permute.xlu0 %3326
    %3328 = vrot.lane.b32.xlu0 %v3308, 20
    %v3329 = vpop.permute.xlu0 %3328
    %3330 = vrot.lane.b32.xlu0 %v3309, 20
    %v3331 = vpop.permute.xlu0 %3330
    %3332 = vrot.lane.b32.xlu0 %v3310, 20
    %v3333 = vpop.permute.xlu0 %3332
    %3334 = vrot.lane.b32.xlu0 %v3311, 20
    %v3335 = vpop.permute.xlu0 %3334
    %3336 = vrot.lane.b32.xlu0 %v3312, 20
    %v3337 = vpop.permute.xlu0 %3336
    %3338 = vrot.lane.b32.xlu0 %v3313, 20
    %v3339 = vpop.permute.xlu0 %3338
    %3340 = vrot.lane.b32.xlu0 %v3314, 20
    %v3341 = vpop.permute.xlu0 %3340
    %v3342 = vsel %vm68, %v3327, %v3329
    %v3343 = vsel %vm68, %v3329, %v3331
    %v3344 = vsel %vm68, %v3331, %v3333
    %v3345 = vsel %vm68, %v3333, %v3335
    %v3346 = vsel %vm68, %v3335, %v3337
    %v3347 = vsel %vm68, %v3337, %v3339
    %v3348 = vsel %vm68, %v3339, %v3341
    %vm3356 = vcmask 64512
    %v3358 = vsel %vm3356, %v3316, 0
    %v3361 = vsel %vm3356, %v3317, 0
    %3363 = vmatprep.subr.mxu0 %v3343
    %3364 = vmatpush1.msra.mxu0 %v3342
    %3365 = vmatprep.subr.mxu0 0.0
    %3366 = vmatpush1.msra.mxu0 0.0
    %3367 = vmatprep.subr.mxu0 0.0
    %3368 = vmatpush1.msra.mxu0 0.0
    %3369 = vmatprep.subr.mxu0 0.0
    %3370 = vmatpush1.msra.mxu0 0.0
    %3371 = vmatprep.subr.mxu0 0.0
    %3372 = vmatpush1.msra.mxu0 0.0
    %3373 = vmatprep.subr.mxu0 0.0
    %3374 = vmatpush1.msra.mxu0 0.0
    %3375 = vmatprep.subr.mxu0 0.0
    %3376 = vmatpush1.msra.mxu0 0.0
    %3377 = vmatprep.subr.mxu0 0.0
    %3378 = vmatpush1.msra.mxu0 0.0
    %3379 = vmatprep.subr.mxu0 0.0
    %3380 = vmatpush1.msra.mxu0 0.0
    %3381 = vmatprep.subr.mxu0 0.0
    %3382 = vmatpush1.msra.mxu0 0.0
    %3383 = vmatprep.subr.mxu0 0.0
    %3384 = vmatpush1.msra.mxu0 0.0
    %3385 = vmatprep.subr.mxu0 0.0
    %3386 = vmatpush1.msra.mxu0 0.0
    %3387 = vmatprep.subr.mxu0 0.0
    %3388 = vmatpush1.msra.mxu0 0.0
    %3389 = vmatprep.subr.mxu0 0.0
    %3390 = vmatpush1.msra.mxu0 0.0
    %3391 = vmatprep.subr.mxu0 0.0
    %3392 = vmatpush1.msra.mxu0 0.0
    %3393 = vmatprep.subr.mxu0 0.0
    %3394 = vmatpush1.msra.mxu0 0.0
    %3395 = vmatprep.subr.mxu0 0.0
    %3396 = vmatpush1.msra.mxu0 0.0
    %3397 = vmatprep.subr.mxu0 0.0
    %3398 = vmatpush1.msra.mxu0 0.0
    %3399 = vmatprep.subr.mxu0 0.0
    %3400 = vmatpush1.msra.mxu0 0.0
    %3401 = vmatprep.subr.mxu0 0.0
    %3402 = vmatpush1.msra.mxu0 0.0
    %3403 = vmatprep.subr.mxu0 0.0
    %3404 = vmatpush1.msra.mxu0 0.0
    %3405 = vmatprep.subr.mxu0 0.0
    %3406 = vmatpush1.msra.mxu0 0.0
    %3407 = vmatprep.subr.mxu0 0.0
    %3408 = vmatpush1.msra.mxu0 0.0
    %3409 = vmatprep.subr.mxu0 0.0
    %3410 = vmatpush1.msra.mxu0 0.0
    %3411 = vmatprep.subr.mxu0 0.0
    %3412 = vmatpush1.msra.mxu0 0.0
    %3413 = vmatprep.subr.mxu0 0.0
    %3414 = vmatpush1.msra.mxu0 0.0
    %3415 = vmatprep.subr.mxu0 0.0
    %3416 = vmatpush1.msra.mxu0 0.0
    %3417 = vmatprep.subr.mxu0 0.0
    %3418 = vmatpush1.msra.mxu0 0.0
    %3419 = vmatprep.subr.mxu0 0.0
    %3420 = vmatpush1.msra.mxu0 0.0
    %3421 = vmatprep.subr.mxu0 0.0
    %3422 = vmatpush1.msra.mxu0 0.0
    %3423 = vmatprep.subr.mxu0 0.0
    %3424 = vmatpush1.msra.mxu0 0.0
    %3425 = vmatprep.subr.mxu0 0.0
    %3426 = vmatpush1.msra.mxu0 0.0
    %3427 = vmatprep.mubr.f32.mxu0 0.0
    %3428 = vmatmul.mubr.f32.gmra.mrb[0].mxu0 %v3358
    %v3429 = vpop.f32.mrb[0].mxu0
    %v3430 = vadd.f32 0.0, %v3429
    %v3431 = vpop.f32.mrb[0].mxu0
    %v3432 = vadd.f32 0.0, %v3431
    %3433 = vmatprep.mubr.f32.mxu0 0.0
    %3434 = vmatmul.mubr.f32.gmra.mrb[0].mxu0 %v3361
    %v3435 = vpop.f32.mrb[0].mxu0
    %v3436 = vadd.f32 0.0, %v3435
    %v3437 = vpop.f32.mrb[0].mxu0
    %v3438 = vadd.f32 0.0, %v3437
    %3439 = vdwg.mxu0
    %3440 = vmatprep.subr.mxu0 %v3345
    %3441 = vmatpush1.msra.mxu0 %v3344
    %3442 = vmatprep.subr.mxu0 0.0
    %3443 = vmatpush1.msra.mxu0 0.0
    %3444 = vmatprep.subr.mxu0 0.0
    %3445 = vmatpush1.msra.mxu0 0.0
    %3446 = vmatprep.subr.mxu0 0.0
    %3447 = vmatpush1.msra.mxu0 0.0
    %3448 = vmatprep.subr.mxu0 0.0
    %3449 = vmatpush1.msra.mxu0 0.0
    %3450 = vmatprep.subr.mxu0 0.0
    %3451 = vmatpush1.msra.mxu0 0.0
    %3452 = vmatprep.subr.mxu0 0.0
    %3453 = vmatpush1.msra.mxu0 0.0
    %3454 = vmatprep.subr.mxu0 0.0
    %3455 = vmatpush1.msra.mxu0 0.0
    %3456 = vmatprep.subr.mxu0 0.0
    %3457 = vmatpush1.msra.mxu0 0.0
    %3458 = vmatprep.subr.mxu0 0.0
    %3459 = vmatpush1.msra.mxu0 0.0
    %3460 = vmatprep.subr.mxu0 0.0
    %3461 = vmatpush1.msra.mxu0 0.0
    %3462 = vmatprep.subr.mxu0 0.0
    %3463 = vmatpush1.msra.mxu0 0.0
    %3464 = vmatprep.subr.mxu0 0.0
    %3465 = vmatpush1.msra.mxu0 0.0
    %3466 = vmatprep.subr.mxu0 0.0
    %3467 = vmatpush1.msra.mxu0 0.0
    %3468 = vmatprep.subr.mxu0 0.0
    %3469 = vmatpush1.msra.mxu0 0.0
    %3470 = vmatprep.subr.mxu0 0.0
    %3471 = vmatpush1.msra.mxu0 0.0
    %3472 = vmatprep.subr.mxu0 0.0
    %3473 = vmatpush1.msra.mxu0 0.0
    %3474 = vmatprep.subr.mxu0 0.0
    %3475 = vmatpush1.msra.mxu0 0.0
    %3476 = vmatprep.subr.mxu0 0.0
    %3477 = vmatpush1.msra.mxu0 0.0
    %3478 = vmatprep.subr.mxu0 0.0
    %3479 = vmatpush1.msra.mxu0 0.0
    %3480 = vmatprep.subr.mxu0 0.0
    %3481 = vmatpush1.msra.mxu0 0.0
    %3482 = vmatprep.subr.mxu0 0.0
    %3483 = vmatpush1.msra.mxu0 0.0
    %3484 = vmatprep.subr.mxu0 0.0
    %3485 = vmatpush1.msra.mxu0 0.0
    %3486 = vmatprep.subr.mxu0 0.0
    %3487 = vmatpush1.msra.mxu0 0.0
    %3488 = vmatprep.subr.mxu0 0.0
    %3489 = vmatpush1.msra.mxu0 0.0
    %3490 = vmatprep.subr.mxu0 0.0
    %3491 = vmatpush1.msra.mxu0 0.0
    %3492 = vmatprep.subr.mxu0 0.0
    %3493 = vmatpush1.msra.mxu0 0.0
    %3494 = vmatprep.subr.mxu0 0.0
    %3495 = vmatpush1.msra.mxu0 0.0
    %3496 = vmatprep.subr.mxu0 0.0
    %3497 = vmatpush1.msra.mxu0 0.0
    %3498 = vmatprep.subr.mxu0 0.0
    %3499 = vmatpush1.msra.mxu0 0.0
    %3500 = vmatprep.subr.mxu0 0.0
    %3501 = vmatpush1.msra.mxu0 0.0
    %3502 = vmatprep.subr.mxu0 0.0
    %3503 = vmatpush1.msra.mxu0 0.0
    %3504 = vmatprep.mubr.f32.mxu0 0.0
    %3505 = vmatmul.mubr.f32.gmra.mrb[0].mxu0 %v3358
    %v3506 = vpop.f32.mrb[0].mxu0
    %v3507 = vadd.f32 0.0, %v3506
    %v3508 = vpop.f32.mrb[0].mxu0
    %v3509 = vadd.f32 0.0, %v3508
    %3510 = vmatprep.mubr.f32.mxu0 0.0
    %3511 = vmatmul.mubr.f32.gmra.mrb[0].mxu0 %v3361
    %v3512 = vpop.f32.mrb[0].mxu0
    %v3513 = vadd.f32 0.0, %v3512
    %v3514 = vpop.f32.mrb[0].mxu0
    %v3515 = vadd.f32 0.0, %v3514
    %3516 = vdwg.mxu0
    %3517 = vmatprep.subr.mxu0 %v3347
    %3518 = vmatpush1.msra.mxu0 %v3346
    %3519 = vmatprep.subr.mxu0 0.0
    %3520 = vmatpush1.msra.mxu0 0.0
    %3521 = vmatprep.subr.mxu0 0.0
    %3522 = vmatpush1.msra.mxu0 0.0
    %3523 = vmatprep.subr.mxu0 0.0
    %3524 = vmatpush1.msra.mxu0 0.0
    %3525 = vmatprep.subr.mxu0 0.0
    %3526 = vmatpush1.msra.mxu0 0.0
    %3527 = vmatprep.subr.mxu0 0.0
    %3528 = vmatpush1.msra.mxu0 0.0
    %3529 = vmatprep.subr.mxu0 0.0
    %3530 = vmatpush1.msra.mxu0 0.0
    %3531 = vmatprep.subr.mxu0 0.0
    %3532 = vmatpush1.msra.mxu0 0.0
    %3533 = vmatprep.subr.mxu0 0.0
    %3534 = vmatpush1.msra.mxu0 0.0
    %3535 = vmatprep.subr.mxu0 0.0
    %3536 = vmatpush1.msra.mxu0 0.0
    %3537 = vmatprep.subr.mxu0 0.0
    %3538 = vmatpush1.msra.mxu0 0.0
    %3539 = vmatprep.subr.mxu0 0.0
    %3540 = vmatpush1.msra.mxu0 0.0
    %3541 = vmatprep.subr.mxu0 0.0
    %3542 = vmatpush1.msra.mxu0 0.0
    %3543 = vmatprep.subr.mxu0 0.0
    %3544 = vmatpush1.msra.mxu0 0.0
    %3545 = vmatprep.subr.mxu0 0.0
    %3546 = vmatpush1.msra.mxu0 0.0
    %3547 = vmatprep.subr.mxu0 0.0
    %3548 = vmatpush1.msra.mxu0 0.0
    %3549 = vmatprep.subr.mxu0 0.0
    %3550 = vmatpush1.msra.mxu0 0.0
    %3551 = vmatprep.subr.mxu0 0.0
    %3552 = vmatpush1.msra.mxu0 0.0
    %3553 = vmatprep.subr.mxu0 0.0
    %3554 = vmatpush1.msra.mxu0 0.0
    %3555 = vmatprep.subr.mxu0 0.0
    %3556 = vmatpush1.msra.mxu0 0.0
    %3557 = vmatprep.subr.mxu0 0.0
    %3558 = vmatpush1.msra.mxu0 0.0
    %3559 = vmatprep.subr.mxu0 0.0
    %3560 = vmatpush1.msra.mxu0 0.0
    %3561 = vmatprep.subr.mxu0 0.0
    %3562 = vmatpush1.msra.mxu0 0.0
    %3563 = vmatprep.subr.mxu0 0.0
    %3564 = vmatpush1.msra.mxu0 0.0
    %3565 = vmatprep.subr.mxu0 0.0
    %3566 = vmatpush1.msra.mxu0 0.0
    %3567 = vmatprep.subr.mxu0 0.0
    %3568 = vmatpush1.msra.mxu0 0.0
    %3569 = vmatprep.subr.mxu0 0.0
    %3570 = vmatpush1.msra.mxu0 0.0
    %3571 = vmatprep.subr.mxu0 0.0
    %3572 = vmatpush1.msra.mxu0 0.0
    %3573 = vmatprep.subr.mxu0 0.0
    %3574 = vmatpush1.msra.mxu0 0.0
    %3575 = vmatprep.subr.mxu0 0.0
    %3576 = vmatpush1.msra.mxu0 0.0
    %3577 = vmatprep.subr.mxu0 0.0
    %3578 = vmatpush1.msra.mxu0 0.0
    %3579 = vmatprep.subr.mxu0 0.0
    %3580 = vmatpush1.msra.mxu0 0.0
    %3581 = vmatprep.mubr.f32.mxu0 0.0
    %3582 = vmatmul.mubr.f32.gmra.mrb[0].mxu0 %v3358
    %v3583 = vpop.f32.mrb[0].mxu0
    %v3584 = vadd.f32 0.0, %v3583
    %v3585 = vpop.f32.mrb[0].mxu0
    %v3586 = vadd.f32 0.0, %v3585
    %3587 = vmatprep.mubr.f32.mxu0 0.0
    %3588 = vmatmul.mubr.f32.gmra.mrb[0].mxu0 %v3361
    %v3589 = vpop.f32.mrb[0].mxu0
    %v3590 = vadd.f32 0.0, %v3589
    %v3591 = vpop.f32.mrb[0].mxu0
    %v3592 = vadd.f32 0.0, %v3591
    %3593 = vdwg.mxu0
    %3594 = vmatprep.subr.mxu0 0.0
    %3595 = vmatpush1.msra.mxu0 %v3348
    %3596 = vmatprep.subr.mxu0 0.0
    %3597 = vmatpush1.msra.mxu0 0.0
    %3598 = vmatprep.subr.mxu0 0.0
    %3599 = vmatpush1.msra.mxu0 0.0
    %3600 = vmatprep.subr.mxu0 0.0
    %3601 = vmatpush1.msra.mxu0 0.0
    %3602 = vmatprep.subr.mxu0 0.0
    %3603 = vmatpush1.msra.mxu0 0.0
    %3604 = vmatprep.subr.mxu0 0.0
    %3605 = vmatpush1.msra.mxu0 0.0
    %3606 = vmatprep.subr.mxu0 0.0
    %3607 = vmatpush1.msra.mxu0 0.0
    %3608 = vmatprep.subr.mxu0 0.0
    %3609 = vmatpush1.msra.mxu0 0.0
    %3610 = vmatprep.subr.mxu0 0.0
    %3611 = vmatpush1.msra.mxu0 0.0
    %3612 = vmatprep.subr.mxu0 0.0
    %3613 = vmatpush1.msra.mxu0 0.0
    %3614 = vmatprep.subr.mxu0 0.0
    %3615 = vmatpush1.msra.mxu0 0.0
    %3616 = vmatprep.subr.mxu0 0.0
    %3617 = vmatpush1.msra.mxu0 0.0
    %3618 = vmatprep.subr.mxu0 0.0
    %3619 = vmatpush1.msra.mxu0 0.0
    %3620 = vmatprep.subr.mxu0 0.0
    %3621 = vmatpush1.msra.mxu0 0.0
    %3622 = vmatprep.subr.mxu0 0.0
    %3623 = vmatpush1.msra.mxu0 0.0
    %3624 = vmatprep.subr.mxu0 0.0
    %3625 = vmatpush1.msra.mxu0 0.0
    %3626 = vmatprep.subr.mxu0 0.0
    %3627 = vmatpush1.msra.mxu0 0.0
    %3628 = vmatprep.subr.mxu0 0.0
    %3629 = vmatpush1.msra.mxu0 0.0
    %3630 = vmatprep.subr.mxu0 0.0
    %3631 = vmatpush1.msra.mxu0 0.0
    %3632 = vmatprep.subr.mxu0 0.0
    %3633 = vmatpush1.msra.mxu0 0.0
    %3634 = vmatprep.subr.mxu0 0.0
    %3635 = vmatpush1.msra.mxu0 0.0
    %3636 = vmatprep.subr.mxu0 0.0
    %3637 = vmatpush1.msra.mxu0 0.0
    %3638 = vmatprep.subr.mxu0 0.0
    %3639 = vmatpush1.msra.mxu0 0.0
    %3640 = vmatprep.subr.mxu0 0.0
    %3641 = vmatpush1.msra.mxu0 0.0
    %3642 = vmatprep.subr.mxu0 0.0
    %3643 = vmatpush1.msra.mxu0 0.0
    %3644 = vmatprep.subr.mxu0 0.0
    %3645 = vmatpush1.msra.mxu0 0.0
    %3646 = vmatprep.subr.mxu0 0.0
    %3647 = vmatpush1.msra.mxu0 0.0
    %3648 = vmatprep.subr.mxu0 0.0
    %3649 = vmatpush1.msra.mxu0 0.0
    %3650 = vmatprep.subr.mxu0 0.0
    %3651 = vmatpush1.msra.mxu0 0.0
    %3652 = vmatprep.subr.mxu0 0.0
    %3653 = vmatpush1.msra.mxu0 0.0
    %3654 = vmatprep.subr.mxu0 0.0
    %3655 = vmatpush1.msra.mxu0 0.0
    %3656 = vmatprep.subr.mxu0 0.0
    %3657 = vmatpush1.msra.mxu0 0.0
    %3658 = vmatprep.mubr.f32.mxu0 0.0
    %3659 = vmatmul.mubr.f32.gmra.mrb[0].mxu0 %v3358
    %v3660 = vpop.f32.mrb[0].mxu0
    %v3661 = vadd.f32 0.0, %v3660
    %v3662 = vpop.f32.mrb[0].mxu0
    %3663 = vmatprep.mubr.f32.mxu0 0.0
    %3664 = vmatmul.mubr.f32.gmra.mrb[0].mxu0 %v3361
    %v3665 = vpop.f32.mrb[0].mxu0
    %v3666 = vadd.f32 0.0, %v3665
    %v3667 = vpop.f32.mrb[0].mxu0
    %3668 = vdwg.mxu0
    %3669 = vrot.lane.b32.xlu0 %v3307, 21
    %v3670 = vpop.permute.xlu0 %3669
    %3671 = vrot.lane.b32.xlu0 %v3308, 21
    %v3672 = vpop.permute.xlu0 %3671
    %3673 = vrot.lane.b32.xlu0 %v3309, 21
    %v3674 = vpop.permute.xlu0 %3673
    %3675 = vrot.lane.b32.xlu0 %v3310, 21
    %v3676 = vpop.permute.xlu0 %3675
    %3677 = vrot.lane.b32.xlu0 %v3311, 21
    %v3678 = vpop.permute.xlu0 %3677
    %3679 = vrot.lane.b32.xlu0 %v3312, 21
    %v3680 = vpop.permute.xlu0 %3679
    %3681 = vrot.lane.b32.xlu0 %v3313, 21
    %v3682 = vpop.permute.xlu0 %3681
    %3683 = vrot.lane.b32.xlu0 %v3314, 21
    %v3684 = vpop.permute.xlu0 %3683
    %v3685 = vsel %vm394, %v3670, %v3672
    %v3686 = vsel %vm394, %v3672, %v3674
    %v3687 = vsel %vm394, %v3674, %v3676
    %v3688 = vsel %vm394, %v3676, %v3678
    %v3689 = vsel %vm394, %v3678, %v3680
    %v3690 = vsel %vm394, %v3680, %v3682
    %v3691 = vsel %vm394, %v3682, %v3684
    %v3700 = vsel %vm3356, %v3305, 0
    %v3703 = vsel %vm3356, %v3306, 0
    %3705 = vmatprep.subr.mxu0 %v3686
    %3706 = vmatpush1.msra.mxu0 %v3685
    %3707 = vmatprep.subr.mxu0 0.0
    %3708 = vmatpush1.msra.mxu0 0.0
    %3709 = vmatprep.subr.mxu0 0.0
    %3710 = vmatpush1.msra.mxu0 0.0
    %3711 = vmatprep.subr.mxu0 0.0
    %3712 = vmatpush1.msra.mxu0 0.0
    %3713 = vmatprep.subr.mxu0 0.0
    %3714 = vmatpush1.msra.mxu0 0.0
    %3715 = vmatprep.subr.mxu0 0.0
    %3716 = vmatpush1.msra.mxu0 0.0
    %3717 = vmatprep.subr.mxu0 0.0
    %3718 = vmatpush1.msra.mxu0 0.0
    %3719 = vmatprep.subr.mxu0 0.0
    %3720 = vmatpush1.msra.mxu0 0.0
    %3721 = vmatprep.subr.mxu0 0.0
    %3722 = vmatpush1.msra.mxu0 0.0
    %3723 = vmatprep.subr.mxu0 0.0
    %3724 = vmatpush1.msra.mxu0 0.0
    %3725 = vmatprep.subr.mxu0 0.0
    %3726 = vmatpush1.msra.mxu0 0.0
    %3727 = vmatprep.subr.mxu0 0.0
    %3728 = vmatpush1.msra.mxu0 0.0
    %3729 = vmatprep.subr.mxu0 0.0
    %3730 = vmatpush1.msra.mxu0 0.0
    %3731 = vmatprep.subr.mxu0 0.0
    %3732 = vmatpush1.msra.mxu0 0.0
    %3733 = vmatprep.subr.mxu0 0.0
    %3734 = vmatpush1.msra.mxu0 0.0
    %3735 = vmatprep.subr.mxu0 0.0
    %3736 = vmatpush1.msra.mxu0 0.0
    %3737 = vmatprep.subr.mxu0 0.0
    %3738 = vmatpush1.msra.mxu0 0.0
    %3739 = vmatprep.subr.mxu0 0.0
    %3740 = vmatpush1.msra.mxu0 0.0
    %3741 = vmatprep.subr.mxu0 0.0
    %3742 = vmatpush1.msra.mxu0 0.0
    %3743 = vmatprep.subr.mxu0 0.0
    %3744 = vmatpush1.msra.mxu0 0.0
    %3745 = vmatprep.subr.mxu0 0.0
    %3746 = vmatpush1.msra.mxu0 0.0
    %3747 = vmatprep.subr.mxu0 0.0
    %3748 = vmatpush1.msra.mxu0 0.0
    %3749 = vmatprep.subr.mxu0 0.0
    %3750 = vmatpush1.msra.mxu0 0.0
    %3751 = vmatprep.subr.mxu0 0.0
    %3752 = vmatpush1.msra.mxu0 0.0
    %3753 = vmatprep.subr.mxu0 0.0
    %3754 = vmatpush1.msra.mxu0 0.0
    %3755 = vmatprep.subr.mxu0 0.0
    %3756 = vmatpush1.msra.mxu0 0.0
    %3757 = vmatprep.subr.mxu0 0.0
    %3758 = vmatpush1.msra.mxu0 0.0
    %3759 = vmatprep.subr.mxu0 0.0
    %3760 = vmatpush1.msra.mxu0 0.0
    %3761 = vmatprep.subr.mxu0 0.0
    %3762 = vmatpush1.msra.mxu0 0.0
    %3763 = vmatprep.subr.mxu0 0.0
    %3764 = vmatpush1.msra.mxu0 0.0
    %3765 = vmatprep.subr.mxu0 0.0
    %3766 = vmatpush1.msra.mxu0 0.0
    %3767 = vmatprep.subr.mxu0 0.0
    %3768 = vmatpush1.msra.mxu0 0.0
    %3769 = vmatprep.mubr.f32.mxu0 0.0
    %3770 = vmatmul.mubr.f32.gmra.mrb[0].mxu0 %v3700
    %v3771 = vpop.f32.mrb[0].mxu0
    %v3772 = vadd.f32 %v3430, %v3771
    %v3773 = vpop.f32.mrb[0].mxu0
    %v3774 = vadd.f32 %v3432, %v3773
    %3775 = vmatprep.mubr.f32.mxu0 0.0
    %3776 = vmatmul.mubr.f32.gmra.mrb[0].mxu0 %v3703
    %v3777 = vpop.f32.mrb[0].mxu0
    %v3778 = vadd.f32 %v3436, %v3777
    %v3779 = vpop.f32.mrb[0].mxu0
    %v3780 = vadd.f32 %v3438, %v3779
    %3781 = vdwg.mxu0
    %3782 = vmatprep.subr.mxu0 %v3688
    %3783 = vmatpush1.msra.mxu0 %v3687
    %3784 = vmatprep.subr.mxu0 0.0
    %3785 = vmatpush1.msra.mxu0 0.0
    %3786 = vmatprep.subr.mxu0 0.0
    %3787 = vmatpush1.msra.mxu0 0.0
    %3788 = vmatprep.subr.mxu0 0.0
    %3789 = vmatpush1.msra.mxu0 0.0
    %3790 = vmatprep.subr.mxu0 0.0
    %3791 = vmatpush1.msra.mxu0 0.0
    %3792 = vmatprep.subr.mxu0 0.0
    %3793 = vmatpush1.msra.mxu0 0.0
    %3794 = vmatprep.subr.mxu0 0.0
    %3795 = vmatpush1.msra.mxu0 0.0
    %3796 = vmatprep.subr.mxu0 0.0
    %3797 = vmatpush1.msra.mxu0 0.0
    %3798 = vmatprep.subr.mxu0 0.0
    %3799 = vmatpush1.msra.mxu0 0.0
    %3800 = vmatprep.subr.mxu0 0.0
    %3801 = vmatpush1.msra.mxu0 0.0
    %3802 = vmatprep.subr.mxu0 0.0
    %3803 = vmatpush1.msra.mxu0 0.0
    %3804 = vmatprep.subr.mxu0 0.0
    %3805 = vmatpush1.msra.mxu0 0.0
    %3806 = vmatprep.subr.mxu0 0.0
    %3807 = vmatpush1.msra.mxu0 0.0
    %3808 = vmatprep.subr.mxu0 0.0
    %3809 = vmatpush1.msra.mxu0 0.0
    %3810 = vmatprep.subr.mxu0 0.0
    %3811 = vmatpush1.msra.mxu0 0.0
    %3812 = vmatprep.subr.mxu0 0.0
    %3813 = vmatpush1.msra.mxu0 0.0
    %3814 = vmatprep.subr.mxu0 0.0
    %3815 = vmatpush1.msra.mxu0 0.0
    %3816 = vmatprep.subr.mxu0 0.0
    %3817 = vmatpush1.msra.mxu0 0.0
    %3818 = vmatprep.subr.mxu0 0.0
    %3819 = vmatpush1.msra.mxu0 0.0
    %3820 = vmatprep.subr.mxu0 0.0
    %3821 = vmatpush1.msra.mxu0 0.0
    %3822 = vmatprep.subr.mxu0 0.0
    %3823 = vmatpush1.msra.mxu0 0.0
    %3824 = vmatprep.subr.mxu0 0.0
    %3825 = vmatpush1.msra.mxu0 0.0
    %3826 = vmatprep.subr.mxu0 0.0
    %3827 = vmatpush1.msra.mxu0 0.0
    %3828 = vmatprep.subr.mxu0 0.0
    %3829 = vmatpush1.msra.mxu0 0.0
    %3830 = vmatprep.subr.mxu0 0.0
    %3831 = vmatpush1.msra.mxu0 0.0
    %3832 = vmatprep.subr.mxu0 0.0
    %3833 = vmatpush1.msra.mxu0 0.0
    %3834 = vmatprep.subr.mxu0 0.0
    %3835 = vmatpush1.msra.mxu0 0.0
    %3836 = vmatprep.subr.mxu0 0.0
    %3837 = vmatpush1.msra.mxu0 0.0
    %3838 = vmatprep.subr.mxu0 0.0
    %3839 = vmatpush1.msra.mxu0 0.0
    %3840 = vmatprep.subr.mxu0 0.0
    %3841 = vmatpush1.msra.mxu0 0.0
    %3842 = vmatprep.subr.mxu0 0.0
    %3843 = vmatpush1.msra.mxu0 0.0
    %3844 = vmatprep.subr.mxu0 0.0
    %3845 = vmatpush1.msra.mxu0 0.0
    %3846 = vmatprep.mubr.f32.mxu0 0.0
    %3847 = vmatmul.mubr.f32.gmra.mrb[0].mxu0 %v3700
    %v3848 = vpop.f32.mrb[0].mxu0
    %v3849 = vadd.f32 %v3507, %v3848
    %v3850 = vpop.f32.mrb[0].mxu0
    %v3851 = vadd.f32 %v3509, %v3850
    %3852 = vmatprep.mubr.f32.mxu0 0.0
    %3853 = vmatmul.mubr.f32.gmra.mrb[0].mxu0 %v3703
    %v3854 = vpop.f32.mrb[0].mxu0
    %v3855 = vadd.f32 %v3513, %v3854
    %v3856 = vpop.f32.mrb[0].mxu0
    %v3857 = vadd.f32 %v3515, %v3856
    %3858 = vdwg.mxu0
    %3859 = vmatprep.subr.mxu0 %v3690
    %3860 = vmatpush1.msra.mxu0 %v3689
    %3861 = vmatprep.subr.mxu0 0.0
    %3862 = vmatpush1.msra.mxu0 0.0
    %3863 = vmatprep.subr.mxu0 0.0
    %3864 = vmatpush1.msra.mxu0 0.0
    %3865 = vmatprep.subr.mxu0 0.0
    %3866 = vmatpush1.msra.mxu0 0.0
    %3867 = vmatprep.subr.mxu0 0.0
    %3868 = vmatpush1.msra.mxu0 0.0
    %3869 = vmatprep.subr.mxu0 0.0
    %3870 = vmatpush1.msra.mxu0 0.0
    %3871 = vmatprep.subr.mxu0 0.0
    %3872 = vmatpush1.msra.mxu0 0.0
    %3873 = vmatprep.subr.mxu0 0.0
    %3874 = vmatpush1.msra.mxu0 0.0
    %3875 = vmatprep.subr.mxu0 0.0
    %3876 = vmatpush1.msra.mxu0 0.0
    %3877 = vmatprep.subr.mxu0 0.0
    %3878 = vmatpush1.msra.mxu0 0.0
    %3879 = vmatprep.subr.mxu0 0.0
    %3880 = vmatpush1.msra.mxu0 0.0
    %3881 = vmatprep.subr.mxu0 0.0
    %3882 = vmatpush1.msra.mxu0 0.0
    %3883 = vmatprep.subr.mxu0 0.0
    %3884 = vmatpush1.msra.mxu0 0.0
    %3885 = vmatprep.subr.mxu0 0.0
    %3886 = vmatpush1.msra.mxu0 0.0
    %3887 = vmatprep.subr.mxu0 0.0
    %3888 = vmatpush1.msra.mxu0 0.0
    %3889 = vmatprep.subr.mxu0 0.0
    %3890 = vmatpush1.msra.mxu0 0.0
    %3891 = vmatprep.subr.mxu0 0.0
    %3892 = vmatpush1.msra.mxu0 0.0
    %3893 = vmatprep.subr.mxu0 0.0
    %3894 = vmatpush1.msra.mxu0 0.0
    %3895 = vmatprep.subr.mxu0 0.0
    %3896 = vmatpush1.msra.mxu0 0.0
    %3897 = vmatprep.subr.mxu0 0.0
    %3898 = vmatpush1.msra.mxu0 0.0
    %3899 = vmatprep.subr.mxu0 0.0
    %3900 = vmatpush1.msra.mxu0 0.0
    %3901 = vmatprep.subr.mxu0 0.0
    %3902 = vmatpush1.msra.mxu0 0.0
    %3903 = vmatprep.subr.mxu0 0.0
    %3904 = vmatpush1.msra.mxu0 0.0
    %3905 = vmatprep.subr.mxu0 0.0
    %3906 = vmatpush1.msra.mxu0 0.0
    %3907 = vmatprep.subr.mxu0 0.0
    %3908 = vmatpush1.msra.mxu0 0.0
    %3909 = vmatprep.subr.mxu0 0.0
    %3910 = vmatpush1.msra.mxu0 0.0
    %3911 = vmatprep.subr.mxu0 0.0
    %3912 = vmatpush1.msra.mxu0 0.0
    %3913 = vmatprep.subr.mxu0 0.0
    %3914 = vmatpush1.msra.mxu0 0.0
    %3915 = vmatprep.subr.mxu0 0.0
    %3916 = vmatpush1.msra.mxu0 0.0
    %3917 = vmatprep.subr.mxu0 0.0
    %3918 = vmatpush1.msra.mxu0 0.0
    %3919 = vmatprep.subr.mxu0 0.0
    %3920 = vmatpush1.msra.mxu0 0.0
    %3921 = vmatprep.subr.mxu0 0.0
    %3922 = vmatpush1.msra.mxu0 0.0
    %3923 = vmatprep.mubr.f32.mxu0 0.0
    %3924 = vmatmul.mubr.f32.gmra.mrb[0].mxu0 %v3700
    %v3925 = vpop.f32.mrb[0].mxu0
    %v3926 = vadd.f32 %v3584, %v3925
    %v3927 = vpop.f32.mrb[0].mxu0
    %v3928 = vadd.f32 %v3586, %v3927
    %3929 = vmatprep.mubr.f32.mxu0 0.0
    %3930 = vmatmul.mubr.f32.gmra.mrb[0].mxu0 %v3703
    %v3931 = vpop.f32.mrb[0].mxu0
    %v3932 = vadd.f32 %v3590, %v3931
    %v3933 = vpop.f32.mrb[0].mxu0
    %v3934 = vadd.f32 %v3592, %v3933
    %3935 = vdwg.mxu0
    %3936 = vmatprep.subr.mxu0 0.0
    %3937 = vmatpush1.msra.mxu0 %v3691
    %3938 = vmatprep.subr.mxu0 0.0
    %3939 = vmatpush1.msra.mxu0 0.0
    %3940 = vmatprep.subr.mxu0 0.0
    %3941 = vmatpush1.msra.mxu0 0.0
    %3942 = vmatprep.subr.mxu0 0.0
    %3943 = vmatpush1.msra.mxu0 0.0
    %3944 = vmatprep.subr.mxu0 0.0
    %3945 = vmatpush1.msra.mxu0 0.0
    %3946 = vmatprep.subr.mxu0 0.0
    %3947 = vmatpush1.msra.mxu0 0.0
    %3948 = vmatprep.subr.mxu0 0.0
    %3949 = vmatpush1.msra.mxu0 0.0
    %3950 = vmatprep.subr.mxu0 0.0
    %3951 = vmatpush1.msra.mxu0 0.0
    %3952 = vmatprep.subr.mxu0 0.0
    %3953 = vmatpush1.msra.mxu0 0.0
    %3954 = vmatprep.subr.mxu0 0.0
    %3955 = vmatpush1.msra.mxu0 0.0
    %3956 = vmatprep.subr.mxu0 0.0
    %3957 = vmatpush1.msra.mxu0 0.0
    %3958 = vmatprep.subr.mxu0 0.0
    %3959 = vmatpush1.msra.mxu0 0.0
    %3960 = vmatprep.subr.mxu0 0.0
    %3961 = vmatpush1.msra.mxu0 0.0
    %3962 = vmatprep.subr.mxu0 0.0
    %3963 = vmatpush1.msra.mxu0 0.0
    %3964 = vmatprep.subr.mxu0 0.0
    %3965 = vmatpush1.msra.mxu0 0.0
    %3966 = vmatprep.subr.mxu0 0.0
    %3967 = vmatpush1.msra.mxu0 0.0
    %3968 = vmatprep.subr.mxu0 0.0
    %3969 = vmatpush1.msra.mxu0 0.0
    %3970 = vmatprep.subr.mxu0 0.0
    %3971 = vmatpush1.msra.mxu0 0.0
    %3972 = vmatprep.subr.mxu0 0.0
    %3973 = vmatpush1.msra.mxu0 0.0
    %3974 = vmatprep.subr.mxu0 0.0
    %3975 = vmatpush1.msra.mxu0 0.0
    %3976 = vmatprep.subr.mxu0 0.0
    %3977 = vmatpush1.msra.mxu0 0.0
    %3978 = vmatprep.subr.mxu0 0.0
    %3979 = vmatpush1.msra.mxu0 0.0
    %3980 = vmatprep.subr.mxu0 0.0
    %3981 = vmatpush1.msra.mxu0 0.0
    %3982 = vmatprep.subr.mxu0 0.0
    %3983 = vmatpush1.msra.mxu0 0.0
    %3984 = vmatprep.subr.mxu0 0.0
    %3985 = vmatpush1.msra.mxu0 0.0
    %3986 = vmatprep.subr.mxu0 0.0
    %3987 = vmatpush1.msra.mxu0 0.0
    %3988 = vmatprep.subr.mxu0 0.0
    %3989 = vmatpush1.msra.mxu0 0.0
    %3990 = vmatprep.subr.mxu0 0.0
    %3991 = vmatpush1.msra.mxu0 0.0
    %3992 = vmatprep.subr.mxu0 0.0
    %3993 = vmatpush1.msra.mxu0 0.0
    %3994 = vmatprep.subr.mxu0 0.0
    %3995 = vmatpush1.msra.mxu0 0.0
    %3996 = vmatprep.subr.mxu0 0.0
    %3997 = vmatpush1.msra.mxu0 0.0
    %3998 = vmatprep.subr.mxu0 0.0
    %3999 = vmatpush1.msra.mxu0 0.0
    %4000 = vmatprep.mubr.f32.mxu0 0.0
    %4001 = vmatmul.mubr.f32.gmra.mrb[0].mxu0 %v3700
    %v4002 = vpop.f32.mrb[0].mxu0
    %v4003 = vadd.f32 %v3661, %v4002
    %v4004 = vpop.f32.mrb[0].mxu0
    %4005 = vmatprep.mubr.f32.mxu0 0.0
    %4006 = vmatmul.mubr.f32.gmra.mrb[0].mxu0 %v3703
    %v4007 = vpop.f32.mrb[0].mxu0
    %v4008 = vadd.f32 %v3666, %v4007
    %v4009 = vpop.f32.mrb[0].mxu0
    %4010 = vdwg.mxu0
    %s4011 = scalar_lea.vmem %s5, 32
    %v4012 = vld [vmem:[%s4011] sm:$0xff]
    %v4013 = vld [vmem:[%s4011 + $0x8] sm:$0xff]
    %4014 = vrot.lane.b32.xlu0 %v3307, 19
    %v4015 = vpop.permute.xlu0 %4014
    %4016 = vrot.lane.b32.xlu0 %v3308, 19
    %v4017 = vpop.permute.xlu0 %4016
    %4018 = vrot.lane.b32.xlu0 %v3309, 19
    %v4019 = vpop.permute.xlu0 %4018
    %4020 = vrot.lane.b32.xlu0 %v3310, 19
    %v4021 = vpop.permute.xlu0 %4020
    %4022 = vrot.lane.b32.xlu0 %v3311, 19
    %v4023 = vpop.permute.xlu0 %4022
    %4024 = vrot.lane.b32.xlu0 %v3312, 19
    %v4025 = vpop.permute.xlu0 %4024
    %4026 = vrot.lane.b32.xlu0 %v3313, 19
    %v4027 = vpop.permute.xlu0 %4026
    %4028 = vrot.lane.b32.xlu0 %v3314, 19
    %v4029 = vpop.permute.xlu0 %4028
    %v4030 = vsel %vm732, %v4015, %v4017
    %v4031 = vsel %vm732, %v4017, %v4019
    %v4032 = vsel %vm732, %v4019, %v4021
    %v4033 = vsel %vm732, %v4021, %v4023
    %v4034 = vsel %vm732, %v4023, %v4025
    %v4035 = vsel %vm732, %v4025, %v4027
    %v4036 = vsel %vm732, %v4027, %v4029
    %v4045 = vsel %vm3356, %v4012, 0
    %v4048 = vsel %vm3356, %v4013, 0
    %4050 = vmatprep.subr.mxu0 %v4031
    %4051 = vmatpush1.msra.mxu0 %v4030
    %4052 = vmatprep.subr.mxu0 0.0
    %4053 = vmatpush1.msra.mxu0 0.0
    %4054 = vmatprep.subr.mxu0 0.0
    %4055 = vmatpush1.msra.mxu0 0.0
    %4056 = vmatprep.subr.mxu0 0.0
    %4057 = vmatpush1.msra.mxu0 0.0
    %4058 = vmatprep.subr.mxu0 0.0
    %4059 = vmatpush1.msra.mxu0 0.0
    %4060 = vmatprep.subr.mxu0 0.0
    %4061 = vmatpush1.msra.mxu0 0.0
    %4062 = vmatprep.subr.mxu0 0.0
    %4063 = vmatpush1.msra.mxu0 0.0
    %4064 = vmatprep.subr.mxu0 0.0
    %4065 = vmatpush1.msra.mxu0 0.0
    %4066 = vmatprep.subr.mxu0 0.0
    %4067 = vmatpush1.msra.mxu0 0.0
    %4068 = vmatprep.subr.mxu0 0.0
    %4069 = vmatpush1.msra.mxu0 0.0
    %4070 = vmatprep.subr.mxu0 0.0
    %4071 = vmatpush1.msra.mxu0 0.0
    %4072 = vmatprep.subr.mxu0 0.0
    %4073 = vmatpush1.msra.mxu0 0.0
    %4074 = vmatprep.subr.mxu0 0.0
    %4075 = vmatpush1.msra.mxu0 0.0
    %4076 = vmatprep.subr.mxu0 0.0
    %4077 = vmatpush1.msra.mxu0 0.0
    %4078 = vmatprep.subr.mxu0 0.0
    %4079 = vmatpush1.msra.mxu0 0.0
    %4080 = vmatprep.subr.mxu0 0.0
    %4081 = vmatpush1.msra.mxu0 0.0
    %4082 = vmatprep.subr.mxu0 0.0
    %4083 = vmatpush1.msra.mxu0 0.0
    %4084 = vmatprep.subr.mxu0 0.0
    %4085 = vmatpush1.msra.mxu0 0.0
    %4086 = vmatprep.subr.mxu0 0.0
    %4087 = vmatpush1.msra.mxu0 0.0
    %4088 = vmatprep.subr.mxu0 0.0
    %4089 = vmatpush1.msra.mxu0 0.0
    %4090 = vmatprep.subr.mxu0 0.0
    %4091 = vmatpush1.msra.mxu0 0.0
    %4092 = vmatprep.subr.mxu0 0.0
    %4093 = vmatpush1.msra.mxu0 0.0
    %4094 = vmatprep.subr.mxu0 0.0
    %4095 = vmatpush1.msra.mxu0 0.0
    %4096 = vmatprep.subr.mxu0 0.0
    %4097 = vmatpush1.msra.mxu0 0.0
    %4098 = vmatprep.subr.mxu0 0.0
    %4099 = vmatpush1.msra.mxu0 0.0
    %4100 = vmatprep.subr.mxu0 0.0
    %4101 = vmatpush1.msra.mxu0 0.0
    %4102 = vmatprep.subr.mxu0 0.0
    %4103 = vmatpush1.msra.mxu0 0.0
    %4104 = vmatprep.subr.mxu0 0.0
    %4105 = vmatpush1.msra.mxu0 0.0
    %4106 = vmatprep.subr.mxu0 0.0
    %4107 = vmatpush1.msra.mxu0 0.0
    %4108 = vmatprep.subr.mxu0 0.0
    %4109 = vmatpush1.msra.mxu0 0.0
    %4110 = vmatprep.subr.mxu0 0.0
    %4111 = vmatpush1.msra.mxu0 0.0
    %4112 = vmatprep.subr.mxu0 0.0
    %4113 = vmatpush1.msra.mxu0 0.0
    %4114 = vmatprep.mubr.f32.mxu0 0.0
    %4115 = vmatmul.mubr.f32.gmra.mrb[0].mxu0 %v4045
    %v4116 = vpop.f32.mrb[0].mxu0
    %v4117 = vadd.f32 0.0, %v4116
    %v4118 = vpop.f32.mrb[0].mxu0
    %v4119 = vadd.f32 0.0, %v4118
    %4120 = vmatprep.mubr.f32.mxu0 0.0
    %4121 = vmatmul.mubr.f32.gmra.mrb[0].mxu0 %v4048
    %v4122 = vpop.f32.mrb[0].mxu0
    %v4123 = vadd.f32 0.0, %v4122
    %v4124 = vpop.f32.mrb[0].mxu0
    %v4125 = vadd.f32 0.0, %v4124
    %4126 = vdwg.mxu0
    %4127 = vmatprep.subr.mxu0 %v4033
    %4128 = vmatpush1.msra.mxu0 %v4032
    %4129 = vmatprep.subr.mxu0 0.0
    %4130 = vmatpush1.msra.mxu0 0.0
    %4131 = vmatprep.subr.mxu0 0.0
    %4132 = vmatpush1.msra.mxu0 0.0
    %4133 = vmatprep.subr.mxu0 0.0
    %4134 = vmatpush1.msra.mxu0 0.0
    %4135 = vmatprep.subr.mxu0 0.0
    %4136 = vmatpush1.msra.mxu0 0.0
    %4137 = vmatprep.subr.mxu0 0.0
    %4138 = vmatpush1.msra.mxu0 0.0
    %4139 = vmatprep.subr.mxu0 0.0
    %4140 = vmatpush1.msra.mxu0 0.0
    %4141 = vmatprep.subr.mxu0 0.0
    %4142 = vmatpush1.msra.mxu0 0.0
    %4143 = vmatprep.subr.mxu0 0.0
    %4144 = vmatpush1.msra.mxu0 0.0
    %4145 = vmatprep.subr.mxu0 0.0
    %4146 = vmatpush1.msra.mxu0 0.0
    %4147 = vmatprep.subr.mxu0 0.0
    %4148 = vmatpush1.msra.mxu0 0.0
    %4149 = vmatprep.subr.mxu0 0.0
    %4150 = vmatpush1.msra.mxu0 0.0
    %4151 = vmatprep.subr.mxu0 0.0
    %4152 = vmatpush1.msra.mxu0 0.0
    %4153 = vmatprep.subr.mxu0 0.0
    %4154 = vmatpush1.msra.mxu0 0.0
    %4155 = vmatprep.subr.mxu0 0.0
    %4156 = vmatpush1.msra.mxu0 0.0
    %4157 = vmatprep.subr.mxu0 0.0
    %4158 = vmatpush1.msra.mxu0 0.0
    %4159 = vmatprep.subr.mxu0 0.0
    %4160 = vmatpush1.msra.mxu0 0.0
    %4161 = vmatprep.subr.mxu0 0.0
    %4162 = vmatpush1.msra.mxu0 0.0
    %4163 = vmatprep.subr.mxu0 0.0
    %4164 = vmatpush1.msra.mxu0 0.0
    %4165 = vmatprep.subr.mxu0 0.0
    %4166 = vmatpush1.msra.mxu0 0.0
    %4167 = vmatprep.subr.mxu0 0.0
    %4168 = vmatpush1.msra.mxu0 0.0
    %4169 = vmatprep.subr.mxu0 0.0
    %4170 = vmatpush1.msra.mxu0 0.0
    %4171 = vmatprep.subr.mxu0 0.0
    %4172 = vmatpush1.msra.mxu0 0.0
    %4173 = vmatprep.subr.mxu0 0.0
    %4174 = vmatpush1.msra.mxu0 0.0
    %4175 = vmatprep.subr.mxu0 0.0
    %4176 = vmatpush1.msra.mxu0 0.0
    %4177 = vmatprep.subr.mxu0 0.0
    %4178 = vmatpush1.msra.mxu0 0.0
    %4179 = vmatprep.subr.mxu0 0.0
    %4180 = vmatpush1.msra.mxu0 0.0
    %4181 = vmatprep.subr.mxu0 0.0
    %4182 = vmatpush1.msra.mxu0 0.0
    %4183 = vmatprep.subr.mxu0 0.0
    %4184 = vmatpush1.msra.mxu0 0.0
    %4185 = vmatprep.subr.mxu0 0.0
    %4186 = vmatpush1.msra.mxu0 0.0
    %4187 = vmatprep.subr.mxu0 0.0
    %4188 = vmatpush1.msra.mxu0 0.0
    %4189 = vmatprep.subr.mxu0 0.0
    %4190 = vmatpush1.msra.mxu0 0.0
    %4191 = vmatprep.mubr.f32.mxu0 0.0
    %4192 = vmatmul.mubr.f32.gmra.mrb[0].mxu0 %v4045
    %v4193 = vpop.f32.mrb[0].mxu0
    %v4194 = vadd.f32 0.0, %v4193
    %v4195 = vpop.f32.mrb[0].mxu0
    %v4196 = vadd.f32 0.0, %v4195
    %4197 = vmatprep.mubr.f32.mxu0 0.0
    %4198 = vmatmul.mubr.f32.gmra.mrb[0].mxu0 %v4048
    %v4199 = vpop.f32.mrb[0].mxu0
    %v4200 = vadd.f32 0.0, %v4199
    %v4201 = vpop.f32.mrb[0].mxu0
    %v4202 = vadd.f32 0.0, %v4201
    %4203 = vdwg.mxu0
    %4204 = vmatprep.subr.mxu0 %v4035
    %4205 = vmatpush1.msra.mxu0 %v4034
    %4206 = vmatprep.subr.mxu0 0.0
    %4207 = vmatpush1.msra.mxu0 0.0
    %4208 = vmatprep.subr.mxu0 0.0
    %4209 = vmatpush1.msra.mxu0 0.0
    %4210 = vmatprep.subr.mxu0 0.0
    %4211 = vmatpush1.msra.mxu0 0.0
    %4212 = vmatprep.subr.mxu0 0.0
    %4213 = vmatpush1.msra.mxu0 0.0
    %4214 = vmatprep.subr.mxu0 0.0
    %4215 = vmatpush1.msra.mxu0 0.0
    %4216 = vmatprep.subr.mxu0 0.0
    %4217 = vmatpush1.msra.mxu0 0.0
    %4218 = vmatprep.subr.mxu0 0.0
    %4219 = vmatpush1.msra.mxu0 0.0
    %4220 = vmatprep.subr.mxu0 0.0
    %4221 = vmatpush1.msra.mxu0 0.0
    %4222 = vmatprep.subr.mxu0 0.0
    %4223 = vmatpush1.msra.mxu0 0.0
    %4224 = vmatprep.subr.mxu0 0.0
    %4225 = vmatpush1.msra.mxu0 0.0
    %4226 = vmatprep.subr.mxu0 0.0
    %4227 = vmatpush1.msra.mxu0 0.0
    %4228 = vmatprep.subr.mxu0 0.0
    %4229 = vmatpush1.msra.mxu0 0.0
    %4230 = vmatprep.subr.mxu0 0.0
    %4231 = vmatpush1.msra.mxu0 0.0
    %4232 = vmatprep.subr.mxu0 0.0
    %4233 = vmatpush1.msra.mxu0 0.0
    %4234 = vmatprep.subr.mxu0 0.0
    %4235 = vmatpush1.msra.mxu0 0.0
    %4236 = vmatprep.subr.mxu0 0.0
    %4237 = vmatpush1.msra.mxu0 0.0
    %4238 = vmatprep.subr.mxu0 0.0
    %4239 = vmatpush1.msra.mxu0 0.0
    %4240 = vmatprep.subr.mxu0 0.0
    %4241 = vmatpush1.msra.mxu0 0.0
    %4242 = vmatprep.subr.mxu0 0.0
    %4243 = vmatpush1.msra.mxu0 0.0
    %4244 = vmatprep.subr.mxu0 0.0
    %4245 = vmatpush1.msra.mxu0 0.0
    %4246 = vmatprep.subr.mxu0 0.0
    %4247 = vmatpush1.msra.mxu0 0.0
    %4248 = vmatprep.subr.mxu0 0.0
    %4249 = vmatpush1.msra.mxu0 0.0
    %4250 = vmatprep.subr.mxu0 0.0
    %4251 = vmatpush1.msra.mxu0 0.0
    %4252 = vmatprep.subr.mxu0 0.0
    %4253 = vmatpush1.msra.mxu0 0.0
    %4254 = vmatprep.subr.mxu0 0.0
    %4255 = vmatpush1.msra.mxu0 0.0
    %4256 = vmatprep.subr.mxu0 0.0
    %4257 = vmatpush1.msra.mxu0 0.0
    %4258 = vmatprep.subr.mxu0 0.0
    %4259 = vmatpush1.msra.mxu0 0.0
    %4260 = vmatprep.subr.mxu0 0.0
    %4261 = vmatpush1.msra.mxu0 0.0
    %4262 = vmatprep.subr.mxu0 0.0
    %4263 = vmatpush1.msra.mxu0 0.0
    %4264 = vmatprep.subr.mxu0 0.0
    %4265 = vmatpush1.msra.mxu0 0.0
    %4266 = vmatprep.subr.mxu0 0.0
    %4267 = vmatpush1.msra.mxu0 0.0
    %4268 = vmatprep.mubr.f32.mxu0 0.0
    %4269 = vmatmul.mubr.f32.gmra.mrb[0].mxu0 %v4045
    %v4270 = vpop.f32.mrb[0].mxu0
    %v4271 = vadd.f32 0.0, %v4270
    %v4272 = vpop.f32.mrb[0].mxu0
    %v4273 = vadd.f32 0.0, %v4272
    %4274 = vmatprep.mubr.f32.mxu0 0.0
    %4275 = vmatmul.mubr.f32.gmra.mrb[0].mxu0 %v4048
    %v4276 = vpop.f32.mrb[0].mxu0
    %v4277 = vadd.f32 0.0, %v4276
    %v4278 = vpop.f32.mrb[0].mxu0
    %v4279 = vadd.f32 0.0, %v4278
    %4280 = vdwg.mxu0
    %4281 = vmatprep.subr.mxu0 0.0
    %4282 = vmatpush1.msra.mxu0 %v4036
    %4283 = vmatprep.subr.mxu0 0.0
    %4284 = vmatpush1.msra.mxu0 0.0
    %4285 = vmatprep.subr.mxu0 0.0
    %4286 = vmatpush1.msra.mxu0 0.0
    %4287 = vmatprep.subr.mxu0 0.0
    %4288 = vmatpush1.msra.mxu0 0.0
    %4289 = vmatprep.subr.mxu0 0.0
    %4290 = vmatpush1.msra.mxu0 0.0
    %4291 = vmatprep.subr.mxu0 0.0
    %4292 = vmatpush1.msra.mxu0 0.0
    %4293 = vmatprep.subr.mxu0 0.0
    %4294 = vmatpush1.msra.mxu0 0.0
    %4295 = vmatprep.subr.mxu0 0.0
    %4296 = vmatpush1.msra.mxu0 0.0
    %4297 = vmatprep.subr.mxu0 0.0
    %4298 = vmatpush1.msra.mxu0 0.0
    %4299 = vmatprep.subr.mxu0 0.0
    %4300 = vmatpush1.msra.mxu0 0.0
    %4301 = vmatprep.subr.mxu0 0.0
    %4302 = vmatpush1.msra.mxu0 0.0
    %4303 = vmatprep.subr.mxu0 0.0
    %4304 = vmatpush1.msra.mxu0 0.0
    %4305 = vmatprep.subr.mxu0 0.0
    %4306 = vmatpush1.msra.mxu0 0.0
    %4307 = vmatprep.subr.mxu0 0.0
    %4308 = vmatpush1.msra.mxu0 0.0
    %4309 = vmatprep.subr.mxu0 0.0
    %4310 = vmatpush1.msra.mxu0 0.0
    %4311 = vmatprep.subr.mxu0 0.0
    %4312 = vmatpush1.msra.mxu0 0.0
    %4313 = vmatprep.subr.mxu0 0.0
    %4314 = vmatpush1.msra.mxu0 0.0
    %4315 = vmatprep.subr.mxu0 0.0
    %4316 = vmatpush1.msra.mxu0 0.0
    %4317 = vmatprep.subr.mxu0 0.0
    %4318 = vmatpush1.msra.mxu0 0.0
    %4319 = vmatprep.subr.mxu0 0.0
    %4320 = vmatpush1.msra.mxu0 0.0
    %4321 = vmatprep.subr.mxu0 0.0
    %4322 = vmatpush1.msra.mxu0 0.0
    %4323 = vmatprep.subr.mxu0 0.0
    %4324 = vmatpush1.msra.mxu0 0.0
    %4325 = vmatprep.subr.mxu0 0.0
    %4326 = vmatpush1.msra.mxu0 0.0
    %4327 = vmatprep.subr.mxu0 0.0
    %4328 = vmatpush1.msra.mxu0 0.0
    %4329 = vmatprep.subr.mxu0 0.0
    %4330 = vmatpush1.msra.mxu0 0.0
    %4331 = vmatprep.subr.mxu0 0.0
    %4332 = vmatpush1.msra.mxu0 0.0
    %4333 = vmatprep.subr.mxu0 0.0
    %4334 = vmatpush1.msra.mxu0 0.0
    %4335 = vmatprep.subr.mxu0 0.0
    %4336 = vmatpush1.msra.mxu0 0.0
    %4337 = vmatprep.subr.mxu0 0.0
    %4338 = vmatpush1.msra.mxu0 0.0
    %4339 = vmatprep.subr.mxu0 0.0
    %4340 = vmatpush1.msra.mxu0 0.0
    %4341 = vmatprep.subr.mxu0 0.0
    %4342 = vmatpush1.msra.mxu0 0.0
    %4343 = vmatprep.subr.mxu0 0.0
    %4344 = vmatpush1.msra.mxu0 0.0
    %4345 = vmatprep.mubr.f32.mxu0 0.0
    %4346 = vmatmul.mubr.f32.gmra.mrb[0].mxu0 %v4045
    %v4347 = vpop.f32.mrb[0].mxu0
    %v4348 = vadd.f32 0.0, %v4347
    %v4349 = vpop.f32.mrb[0].mxu0
    %4350 = vmatprep.mubr.f32.mxu0 0.0
    %4351 = vmatmul.mubr.f32.gmra.mrb[0].mxu0 %v4048
    %v4352 = vpop.f32.mrb[0].mxu0
    %v4353 = vadd.f32 0.0, %v4352
    %v4354 = vpop.f32.mrb[0].mxu0
    %4355 = vdwg.mxu0
    %v4356 = vadd.f32 %v3772, %v4117
    %v4357 = vadd.f32 %v3774, %v4119
    %v4358 = vadd.f32 %v3849, %v4194
    %v4359 = vadd.f32 %v3851, %v4196
    %v4360 = vadd.f32 %v3926, %v4271
    %v4361 = vadd.f32 %v3928, %v4273
    %v4362 = vadd.f32 %v4003, %v4348
    %v4363 = vadd.f32 %v3778, %v4123
    %v4364 = vadd.f32 %v3780, %v4125
    %v4365 = vadd.f32 %v3855, %v4200
    %v4366 = vadd.f32 %v3857, %v4202
    %v4367 = vadd.f32 %v3932, %v4277
    %v4368 = vadd.f32 %v3934, %v4279
    %v4369 = vadd.f32 %v4008, %v4353
    %s4370 = scalar_lea.vmem %s5, 48
    %v4371 = vld [vmem:[%s4370] sm:$0xff]
    %v4372 = vld [vmem:[%s4370 + $0x8] sm:$0xff]
    %4373 = vrot.lane.b32.xlu0 %v3307, 1
    %v4374 = vpop.permute.xlu0 %4373
    %4375 = vrot.lane.b32.xlu0 %v3308, 1
    %v4376 = vpop.permute.xlu0 %4375
    %4377 = vrot.lane.b32.xlu0 %v3309, 1
    %v4378 = vpop.permute.xlu0 %4377
    %4379 = vrot.lane.b32.xlu0 %v3310, 1
    %v4380 = vpop.permute.xlu0 %4379
    %4381 = vrot.lane.b32.xlu0 %v3311, 1
    %v4382 = vpop.permute.xlu0 %4381
    %4383 = vrot.lane.b32.xlu0 %v3312, 1
    %v4384 = vpop.permute.xlu0 %4383
    %4385 = vrot.lane.b32.xlu0 %v3313, 1
    %v4386 = vpop.permute.xlu0 %4385
    %4387 = vrot.lane.b32.xlu0 %v3314, 1
    %v4388 = vpop.permute.xlu0 %4387
    %v4389 = vsel %vm1077, %v4374, %v4376
    %v4390 = vsel %vm1077, %v4376, %v4378
    %v4391 = vsel %vm1077, %v4378, %v4380
    %v4392 = vsel %vm1077, %v4380, %v4382
    %v4393 = vsel %vm1077, %v4382, %v4384
    %v4394 = vsel %vm1077, %v4384, %v4386
    %v4395 = vsel %vm1077, %v4386, %v4388
    %v4404 = vsel %vm3356, %v4371, 0
    %v4407 = vsel %vm3356, %v4372, 0
    %4409 = vmatprep.subr.mxu0 %v4390
    %4410 = vmatpush1.msra.mxu0 %v4389
    %4411 = vmatprep.subr.mxu0 0.0
    %4412 = vmatpush1.msra.mxu0 0.0
    %4413 = vmatprep.subr.mxu0 0.0
    %4414 = vmatpush1.msra.mxu0 0.0
    %4415 = vmatprep.subr.mxu0 0.0
    %4416 = vmatpush1.msra.mxu0 0.0
    %4417 = vmatprep.subr.mxu0 0.0
    %4418 = vmatpush1.msra.mxu0 0.0
    %4419 = vmatprep.subr.mxu0 0.0
    %4420 = vmatpush1.msra.mxu0 0.0
    %4421 = vmatprep.subr.mxu0 0.0
    %4422 = vmatpush1.msra.mxu0 0.0
    %4423 = vmatprep.subr.mxu0 0.0
    %4424 = vmatpush1.msra.mxu0 0.0
    %4425 = vmatprep.subr.mxu0 0.0
    %4426 = vmatpush1.msra.mxu0 0.0
    %4427 = vmatprep.subr.mxu0 0.0
    %4428 = vmatpush1.msra.mxu0 0.0
    %4429 = vmatprep.subr.mxu0 0.0
    %4430 = vmatpush1.msra.mxu0 0.0
    %4431 = vmatprep.subr.mxu0 0.0
    %4432 = vmatpush1.msra.mxu0 0.0
    %4433 = vmatprep.subr.mxu0 0.0
    %4434 = vmatpush1.msra.mxu0 0.0
    %4435 = vmatprep.subr.mxu0 0.0
    %4436 = vmatpush1.msra.mxu0 0.0
    %4437 = vmatprep.subr.mxu0 0.0
    %4438 = vmatpush1.msra.mxu0 0.0
    %4439 = vmatprep.subr.mxu0 0.0
    %4440 = vmatpush1.msra.mxu0 0.0
    %4441 = vmatprep.subr.mxu0 0.0
    %4442 = vmatpush1.msra.mxu0 0.0
    %4443 = vmatprep.subr.mxu0 0.0
    %4444 = vmatpush1.msra.mxu0 0.0
    %4445 = vmatprep.subr.mxu0 0.0
    %4446 = vmatpush1.msra.mxu0 0.0
    %4447 = vmatprep.subr.mxu0 0.0
    %4448 = vmatpush1.msra.mxu0 0.0
    %4449 = vmatprep.subr.mxu0 0.0
    %4450 = vmatpush1.msra.mxu0 0.0
    %4451 = vmatprep.subr.mxu0 0.0
    %4452 = vmatpush1.msra.mxu0 0.0
    %4453 = vmatprep.subr.mxu0 0.0
    %4454 = vmatpush1.msra.mxu0 0.0
    %4455 = vmatprep.subr.mxu0 0.0
    %4456 = vmatpush1.msra.mxu0 0.0
    %4457 = vmatprep.subr.mxu0 0.0
    %4458 = vmatpush1.msra.mxu0 0.0
    %4459 = vmatprep.subr.mxu0 0.0
    %4460 = vmatpush1.msra.mxu0 0.0
    %4461 = vmatprep.subr.mxu0 0.0
    %4462 = vmatpush1.msra.mxu0 0.0
    %4463 = vmatprep.subr.mxu0 0.0
    %4464 = vmatpush1.msra.mxu0 0.0
    %4465 = vmatprep.subr.mxu0 0.0
    %4466 = vmatpush1.msra.mxu0 0.0
    %4467 = vmatprep.subr.mxu0 0.0
    %4468 = vmatpush1.msra.mxu0 0.0
    %4469 = vmatprep.subr.mxu0 0.0
    %4470 = vmatpush1.msra.mxu0 0.0
    %4471 = vmatprep.subr.mxu0 0.0
    %4472 = vmatpush1.msra.mxu0 0.0
    %4473 = vmatprep.mubr.f32.mxu0 0.0
    %4474 = vmatmul.mubr.f32.gmra.mrb[0].mxu0 %v4404
    %v4475 = vpop.f32.mrb[0].mxu0
    %v4476 = vadd.f32 0.0, %v4475
    %v4477 = vpop.f32.mrb[0].mxu0
    %v4478 = vadd.f32 0.0, %v4477
    %4479 = vmatprep.mubr.f32.mxu0 0.0
    %4480 = vmatmul.mubr.f32.gmra.mrb[0].mxu0 %v4407
    %v4481 = vpop.f32.mrb[0].mxu0
    %v4482 = vadd.f32 0.0, %v4481
    %v4483 = vpop.f32.mrb[0].mxu0
    %v4484 = vadd.f32 0.0, %v4483
    %4485 = vdwg.mxu0
    %4486 = vmatprep.subr.mxu0 %v4392
    %4487 = vmatpush1.msra.mxu0 %v4391
    %4488 = vmatprep.subr.mxu0 0.0
    %4489 = vmatpush1.msra.mxu0 0.0
    %4490 = vmatprep.subr.mxu0 0.0
    %4491 = vmatpush1.msra.mxu0 0.0
    %4492 = vmatprep.subr.mxu0 0.0
    %4493 = vmatpush1.msra.mxu0 0.0
    %4494 = vmatprep.subr.mxu0 0.0
    %4495 = vmatpush1.msra.mxu0 0.0
    %4496 = vmatprep.subr.mxu0 0.0
    %4497 = vmatpush1.msra.mxu0 0.0
    %4498 = vmatprep.subr.mxu0 0.0
    %4499 = vmatpush1.msra.mxu0 0.0
    %4500 = vmatprep.subr.mxu0 0.0
    %4501 = vmatpush1.msra.mxu0 0.0
    %4502 = vmatprep.subr.mxu0 0.0
    %4503 = vmatpush1.msra.mxu0 0.0
    %4504 = vmatprep.subr.mxu0 0.0
    %4505 = vmatpush1.msra.mxu0 0.0
    %4506 = vmatprep.subr.mxu0 0.0
    %4507 = vmatpush1.msra.mxu0 0.0
    %4508 = vmatprep.subr.mxu0 0.0
    %4509 = vmatpush1.msra.mxu0 0.0
    %4510 = vmatprep.subr.mxu0 0.0
    %4511 = vmatpush1.msra.mxu0 0.0
    %4512 = vmatprep.subr.mxu0 0.0
    %4513 = vmatpush1.msra.mxu0 0.0
    %4514 = vmatprep.subr.mxu0 0.0
    %4515 = vmatpush1.msra.mxu0 0.0
    %4516 = vmatprep.subr.mxu0 0.0
    %4517 = vmatpush1.msra.mxu0 0.0
    %4518 = vmatprep.subr.mxu0 0.0
    %4519 = vmatpush1.msra.mxu0 0.0
    %4520 = vmatprep.subr.mxu0 0.0
    %4521 = vmatpush1.msra.mxu0 0.0
    %4522 = vmatprep.subr.mxu0 0.0
    %4523 = vmatpush1.msra.mxu0 0.0
    %4524 = vmatprep.subr.mxu0 0.0
    %4525 = vmatpush1.msra.mxu0 0.0
    %4526 = vmatprep.subr.mxu0 0.0
    %4527 = vmatpush1.msra.mxu0 0.0
    %4528 = vmatprep.subr.mxu0 0.0
    %4529 = vmatpush1.msra.mxu0 0.0
    %4530 = vmatprep.subr.mxu0 0.0
    %4531 = vmatpush1.msra.mxu0 0.0
    %4532 = vmatprep.subr.mxu0 0.0
    %4533 = vmatpush1.msra.mxu0 0.0
    %4534 = vmatprep.subr.mxu0 0.0
    %4535 = vmatpush1.msra.mxu0 0.0
    %4536 = vmatprep.subr.mxu0 0.0
    %4537 = vmatpush1.msra.mxu0 0.0
    %4538 = vmatprep.subr.mxu0 0.0
    %4539 = vmatpush1.msra.mxu0 0.0
    %4540 = vmatprep.subr.mxu0 0.0
    %4541 = vmatpush1.msra.mxu0 0.0
    %4542 = vmatprep.subr.mxu0 0.0
    %4543 = vmatpush1.msra.mxu0 0.0
    %4544 = vmatprep.subr.mxu0 0.0
    %4545 = vmatpush1.msra.mxu0 0.0
    %4546 = vmatprep.subr.mxu0 0.0
    %4547 = vmatpush1.msra.mxu0 0.0
    %4548 = vmatprep.subr.mxu0 0.0
    %4549 = vmatpush1.msra.mxu0 0.0
    %4550 = vmatprep.mubr.f32.mxu0 0.0
    %4551 = vmatmul.mubr.f32.gmra.mrb[0].mxu0 %v4404
    %v4552 = vpop.f32.mrb[0].mxu0
    %v4553 = vadd.f32 0.0, %v4552
    %v4554 = vpop.f32.mrb[0].mxu0
    %v4555 = vadd.f32 0.0, %v4554
    %4556 = vmatprep.mubr.f32.mxu0 0.0
    %4557 = vmatmul.mubr.f32.gmra.mrb[0].mxu0 %v4407
    %v4558 = vpop.f32.mrb[0].mxu0
    %v4559 = vadd.f32 0.0, %v4558
    %v4560 = vpop.f32.mrb[0].mxu0
    %v4561 = vadd.f32 0.0, %v4560
    %4562 = vdwg.mxu0
    %4563 = vmatprep.subr.mxu0 %v4394
    %4564 = vmatpush1.msra.mxu0 %v4393
    %4565 = vmatprep.subr.mxu0 0.0
    %4566 = vmatpush1.msra.mxu0 0.0
    %4567 = vmatprep.subr.mxu0 0.0
    %4568 = vmatpush1.msra.mxu0 0.0
    %4569 = vmatprep.subr.mxu0 0.0
    %4570 = vmatpush1.msra.mxu0 0.0
    %4571 = vmatprep.subr.mxu0 0.0
    %4572 = vmatpush1.msra.mxu0 0.0
    %4573 = vmatprep.subr.mxu0 0.0
    %4574 = vmatpush1.msra.mxu0 0.0
    %4575 = vmatprep.subr.mxu0 0.0
    %4576 = vmatpush1.msra.mxu0 0.0
    %4577 = vmatprep.subr.mxu0 0.0
    %4578 = vmatpush1.msra.mxu0 0.0
    %4579 = vmatprep.subr.mxu0 0.0
    %4580 = vmatpush1.msra.mxu0 0.0
    %4581 = vmatprep.subr.mxu0 0.0
    %4582 = vmatpush1.msra.mxu0 0.0
    %4583 = vmatprep.subr.mxu0 0.0
    %4584 = vmatpush1.msra.mxu0 0.0
    %4585 = vmatprep.subr.mxu0 0.0
    %4586 = vmatpush1.msra.mxu0 0.0
    %4587 = vmatprep.subr.mxu0 0.0
    %4588 = vmatpush1.msra.mxu0 0.0
    %4589 = vmatprep.subr.mxu0 0.0
    %4590 = vmatpush1.msra.mxu0 0.0
    %4591 = vmatprep.subr.mxu0 0.0
    %4592 = vmatpush1.msra.mxu0 0.0
    %4593 = vmatprep.subr.mxu0 0.0
    %4594 = vmatpush1.msra.mxu0 0.0
    %4595 = vmatprep.subr.mxu0 0.0
    %4596 = vmatpush1.msra.mxu0 0.0
    %4597 = vmatprep.subr.mxu0 0.0
    %4598 = vmatpush1.msra.mxu0 0.0
    %4599 = vmatprep.subr.mxu0 0.0
    %4600 = vmatpush1.msra.mxu0 0.0
    %4601 = vmatprep.subr.mxu0 0.0
    %4602 = vmatpush1.msra.mxu0 0.0
    %4603 = vmatprep.subr.mxu0 0.0
    %4604 = vmatpush1.msra.mxu0 0.0
    %4605 = vmatprep.subr.mxu0 0.0
    %4606 = vmatpush1.msra.mxu0 0.0
    %4607 = vmatprep.subr.mxu0 0.0
    %4608 = vmatpush1.msra.mxu0 0.0
    %4609 = vmatprep.subr.mxu0 0.0
    %4610 = vmatpush1.msra.mxu0 0.0
    %4611 = vmatprep.subr.mxu0 0.0
    %4612 = vmatpush1.msra.mxu0 0.0
    %4613 = vmatprep.subr.mxu0 0.0
    %4614 = vmatpush1.msra.mxu0 0.0
    %4615 = vmatprep.subr.mxu0 0.0
    %4616 = vmatpush1.msra.mxu0 0.0
    %4617 = vmatprep.subr.mxu0 0.0
    %4618 = vmatpush1.msra.mxu0 0.0
    %4619 = vmatprep.subr.mxu0 0.0
    %4620 = vmatpush1.msra.mxu0 0.0
    %4621 = vmatprep.subr.mxu0 0.0
    %4622 = vmatpush1.msra.mxu0 0.0
    %4623 = vmatprep.subr.mxu0 0.0
    %4624 = vmatpush1.msra.mxu0 0.0
    %4625 = vmatprep.subr.mxu0 0.0
    %4626 = vmatpush1.msra.mxu0 0.0
    %4627 = vmatprep.mubr.f32.mxu0 0.0
    %4628 = vmatmul.mubr.f32.gmra.mrb[0].mxu0 %v4404
    %v4629 = vpop.f32.mrb[0].mxu0
    %v4630 = vadd.f32 0.0, %v4629
    %v4631 = vpop.f32.mrb[0].mxu0
    %v4632 = vadd.f32 0.0, %v4631
    %4633 = vmatprep.mubr.f32.mxu0 0.0
    %4634 = vmatmul.mubr.f32.gmra.mrb[0].mxu0 %v4407
    %v4635 = vpop.f32.mrb[0].mxu0
    %v4636 = vadd.f32 0.0, %v4635
    %v4637 = vpop.f32.mrb[0].mxu0
    %v4638 = vadd.f32 0.0, %v4637
    %4639 = vdwg.mxu0
    %4640 = vmatprep.subr.mxu0 0.0
    %4641 = vmatpush1.msra.mxu0 %v4395
    %4642 = vmatprep.subr.mxu0 0.0
    %4643 = vmatpush1.msra.mxu0 0.0
    %4644 = vmatprep.subr.mxu0 0.0
    %4645 = vmatpush1.msra.mxu0 0.0
    %4646 = vmatprep.subr.mxu0 0.0
    %4647 = vmatpush1.msra.mxu0 0.0
    %4648 = vmatprep.subr.mxu0 0.0
    %4649 = vmatpush1.msra.mxu0 0.0
    %4650 = vmatprep.subr.mxu0 0.0
    %4651 = vmatpush1.msra.mxu0 0.0
    %4652 = vmatprep.subr.mxu0 0.0
    %4653 = vmatpush1.msra.mxu0 0.0
    %4654 = vmatprep.subr.mxu0 0.0
    %4655 = vmatpush1.msra.mxu0 0.0
    %4656 = vmatprep.subr.mxu0 0.0
    %4657 = vmatpush1.msra.mxu0 0.0
    %4658 = vmatprep.subr.mxu0 0.0
    %4659 = vmatpush1.msra.mxu0 0.0
    %4660 = vmatprep.subr.mxu0 0.0
    %4661 = vmatpush1.msra.mxu0 0.0
    %4662 = vmatprep.subr.mxu0 0.0
    %4663 = vmatpush1.msra.mxu0 0.0
    %4664 = vmatprep.subr.mxu0 0.0
    %4665 = vmatpush1.msra.mxu0 0.0
    %4666 = vmatprep.subr.mxu0 0.0
    %4667 = vmatpush1.msra.mxu0 0.0
    %4668 = vmatprep.subr.mxu0 0.0
    %4669 = vmatpush1.msra.mxu0 0.0
    %4670 = vmatprep.subr.mxu0 0.0
    %4671 = vmatpush1.msra.mxu0 0.0
    %4672 = vmatprep.subr.mxu0 0.0
    %4673 = vmatpush1.msra.mxu0 0.0
    %4674 = vmatprep.subr.mxu0 0.0
    %4675 = vmatpush1.msra.mxu0 0.0
    %4676 = vmatprep.subr.mxu0 0.0
    %4677 = vmatpush1.msra.mxu0 0.0
    %4678 = vmatprep.subr.mxu0 0.0
    %4679 = vmatpush1.msra.mxu0 0.0
    %4680 = vmatprep.subr.mxu0 0.0
    %4681 = vmatpush1.msra.mxu0 0.0
    %4682 = vmatprep.subr.mxu0 0.0
    %4683 = vmatpush1.msra.mxu0 0.0
    %4684 = vmatprep.subr.mxu0 0.0
    %4685 = vmatpush1.msra.mxu0 0.0
    %4686 = vmatprep.subr.mxu0 0.0
    %4687 = vmatpush1.msra.mxu0 0.0
    %4688 = vmatprep.subr.mxu0 0.0
    %4689 = vmatpush1.msra.mxu0 0.0
    %4690 = vmatprep.subr.mxu0 0.0
    %4691 = vmatpush1.msra.mxu0 0.0
    %4692 = vmatprep.subr.mxu0 0.0
    %4693 = vmatpush1.msra.mxu0 0.0
    %4694 = vmatprep.subr.mxu0 0.0
    %4695 = vmatpush1.msra.mxu0 0.0
    %4696 = vmatprep.subr.mxu0 0.0
    %4697 = vmatpush1.msra.mxu0 0.0
    %4698 = vmatprep.subr.mxu0 0.0
    %4699 = vmatpush1.msra.mxu0 0.0
    %4700 = vmatprep.subr.mxu0 0.0
    %4701 = vmatpush1.msra.mxu0 0.0
    %4702 = vmatprep.subr.mxu0 0.0
    %4703 = vmatpush1.msra.mxu0 0.0
    %4704 = vmatprep.mubr.f32.mxu0 0.0
    %4705 = vmatmul.mubr.f32.gmra.mrb[0].mxu0 %v4404
    %v4706 = vpop.f32.mrb[0].mxu0
    %v4707 = vadd.f32 0.0, %v4706
    %v4708 = vpop.f32.mrb[0].mxu0
    %4709 = vmatprep.mubr.f32.mxu0 0.0
    %4710 = vmatmul.mubr.f32.gmra.mrb[0].mxu0 %v4407
    %v4711 = vpop.f32.mrb[0].mxu0
    %v4712 = vadd.f32 0.0, %v4711
    %v4713 = vpop.f32.mrb[0].mxu0
    %4714 = vdwg.mxu0
    %v4715 = vadd.f32 %v4356, %v4476
    %v4716 = vadd.f32 %v4357, %v4478
    %v4717 = vadd.f32 %v4358, %v4553
    %v4718 = vadd.f32 %v4359, %v4555
    %v4719 = vadd.f32 %v4360, %v4630
    %v4720 = vadd.f32 %v4361, %v4632
    %v4721 = vadd.f32 %v4362, %v4707
    %v4722 = vadd.f32 %v4363, %v4482
    %v4723 = vadd.f32 %v4364, %v4484
    %v4724 = vadd.f32 %v4365, %v4559
    %v4725 = vadd.f32 %v4366, %v4561
    %v4726 = vadd.f32 %v4367, %v4636
    %v4727 = vadd.f32 %v4368, %v4638
    %v4728 = vadd.f32 %v4369, %v4712
    %s4729 = scalar_lea.vmem %s5, 64
    %v4730 = vld [vmem:[%s4729] sm:$0xff]
    %v4731 = vld [vmem:[%s4729 + $0x8] sm:$0xff]
    %v4733 = vsel %vm3356, %v4730, 0
    %v4736 = vsel %vm3356, %v4731, 0
    %4738 = vmatprep.subr.mxu0 %v3309
    %4739 = vmatpush1.msra.mxu0 %v3308
    %4740 = vmatprep.subr.mxu0 0.0
    %4741 = vmatpush1.msra.mxu0 0.0
    %4742 = vmatprep.subr.mxu0 0.0
    %4743 = vmatpush1.msra.mxu0 0.0
    %4744 = vmatprep.subr.mxu0 0.0
    %4745 = vmatpush1.msra.mxu0 0.0
    %4746 = vmatprep.subr.mxu0 0.0
    %4747 = vmatpush1.msra.mxu0 0.0
    %4748 = vmatprep.subr.mxu0 0.0
    %4749 = vmatpush1.msra.mxu0 0.0
    %4750 = vmatprep.subr.mxu0 0.0
    %4751 = vmatpush1.msra.mxu0 0.0
    %4752 = vmatprep.subr.mxu0 0.0
    %4753 = vmatpush1.msra.mxu0 0.0
    %4754 = vmatprep.subr.mxu0 0.0
    %4755 = vmatpush1.msra.mxu0 0.0
    %4756 = vmatprep.subr.mxu0 0.0
    %4757 = vmatpush1.msra.mxu0 0.0
    %4758 = vmatprep.subr.mxu0 0.0
    %4759 = vmatpush1.msra.mxu0 0.0
    %4760 = vmatprep.subr.mxu0 0.0
    %4761 = vmatpush1.msra.mxu0 0.0
    %4762 = vmatprep.subr.mxu0 0.0
    %4763 = vmatpush1.msra.mxu0 0.0
    %4764 = vmatprep.subr.mxu0 0.0
    %4765 = vmatpush1.msra.mxu0 0.0
    %4766 = vmatprep.subr.mxu0 0.0
    %4767 = vmatpush1.msra.mxu0 0.0
    %4768 = vmatprep.subr.mxu0 0.0
    %4769 = vmatpush1.msra.mxu0 0.0
    %4770 = vmatprep.subr.mxu0 0.0
    %4771 = vmatpush1.msra.mxu0 0.0
    %4772 = vmatprep.subr.mxu0 0.0
    %4773 = vmatpush1.msra.mxu0 0.0
    %4774 = vmatprep.subr.mxu0 0.0
    %4775 = vmatpush1.msra.mxu0 0.0
    %4776 = vmatprep.subr.mxu0 0.0
    %4777 = vmatpush1.msra.mxu0 0.0
    %4778 = vmatprep.subr.mxu0 0.0
    %4779 = vmatpush1.msra.mxu0 0.0
    %4780 = vmatprep.subr.mxu0 0.0
    %4781 = vmatpush1.msra.mxu0 0.0
    %4782 = vmatprep.subr.mxu0 0.0
    %4783 = vmatpush1.msra.mxu0 0.0
    %4784 = vmatprep.subr.mxu0 0.0
    %4785 = vmatpush1.msra.mxu0 0.0
    %4786 = vmatprep.subr.mxu0 0.0
    %4787 = vmatpush1.msra.mxu0 0.0
    %4788 = vmatprep.subr.mxu0 0.0
    %4789 = vmatpush1.msra.mxu0 0.0
    %4790 = vmatprep.subr.mxu0 0.0
    %4791 = vmatpush1.msra.mxu0 0.0
    %4792 = vmatprep.subr.mxu0 0.0
    %4793 = vmatpush1.msra.mxu0 0.0
    %4794 = vmatprep.subr.mxu0 0.0
    %4795 = vmatpush1.msra.mxu0 0.0
    %4796 = vmatprep.subr.mxu0 0.0
    %4797 = vmatpush1.msra.mxu0 0.0
    %4798 = vmatprep.subr.mxu0 0.0
    %4799 = vmatpush1.msra.mxu0 0.0
    %4800 = vmatprep.subr.mxu0 0.0
    %4801 = vmatpush1.msra.mxu0 0.0
    %4802 = vmatprep.mubr.f32.mxu0 0.0
    %4803 = vmatmul.mubr.f32.gmra.mrb[0].mxu0 %v4733
    %v4804 = vpop.f32.mrb[0].mxu0
    %v4805 = vadd.f32 0.0, %v4804
    %v4806 = vpop.f32.mrb[0].mxu0
    %v4807 = vadd.f32 0.0, %v4806
    %4808 = vmatprep.mubr.f32.mxu0 0.0
    %4809 = vmatmul.mubr.f32.gmra.mrb[0].mxu0 %v4736
    %v4810 = vpop.f32.mrb[0].mxu0
    %v4811 = vadd.f32 0.0, %v4810
    %v4812 = vpop.f32.mrb[0].mxu0
    %v4813 = vadd.f32 0.0, %v4812
    %4814 = vdwg.mxu0
    %4815 = vmatprep.subr.mxu0 %v3311
    %4816 = vmatpush1.msra.mxu0 %v3310
    %4817 = vmatprep.subr.mxu0 0.0
    %4818 = vmatpush1.msra.mxu0 0.0
    %4819 = vmatprep.subr.mxu0 0.0
    %4820 = vmatpush1.msra.mxu0 0.0
    %4821 = vmatprep.subr.mxu0 0.0
    %4822 = vmatpush1.msra.mxu0 0.0
    %4823 = vmatprep.subr.mxu0 0.0
    %4824 = vmatpush1.msra.mxu0 0.0
    %4825 = vmatprep.subr.mxu0 0.0
    %4826 = vmatpush1.msra.mxu0 0.0
    %4827 = vmatprep.subr.mxu0 0.0
    %4828 = vmatpush1.msra.mxu0 0.0
    %4829 = vmatprep.subr.mxu0 0.0
    %4830 = vmatpush1.msra.mxu0 0.0
    %4831 = vmatprep.subr.mxu0 0.0
    %4832 = vmatpush1.msra.mxu0 0.0
    %4833 = vmatprep.subr.mxu0 0.0
    %4834 = vmatpush1.msra.mxu0 0.0
    %4835 = vmatprep.subr.mxu0 0.0
    %4836 = vmatpush1.msra.mxu0 0.0
    %4837 = vmatprep.subr.mxu0 0.0
    %4838 = vmatpush1.msra.mxu0 0.0
    %4839 = vmatprep.subr.mxu0 0.0
    %4840 = vmatpush1.msra.mxu0 0.0
    %4841 = vmatprep.subr.mxu0 0.0
    %4842 = vmatpush1.msra.mxu0 0.0
    %4843 = vmatprep.subr.mxu0 0.0
    %4844 = vmatpush1.msra.mxu0 0.0
    %4845 = vmatprep.subr.mxu0 0.0
    %4846 = vmatpush1.msra.mxu0 0.0
    %4847 = vmatprep.subr.mxu0 0.0
    %4848 = vmatpush1.msra.mxu0 0.0
    %4849 = vmatprep.subr.mxu0 0.0
    %4850 = vmatpush1.msra.mxu0 0.0
    %4851 = vmatprep.subr.mxu0 0.0
    %4852 = vmatpush1.msra.mxu0 0.0
    %4853 = vmatprep.subr.mxu0 0.0
    %4854 = vmatpush1.msra.mxu0 0.0
    %4855 = vmatprep.subr.mxu0 0.0
    %4856 = vmatpush1.msra.mxu0 0.0
    %4857 = vmatprep.subr.mxu0 0.0
    %4858 = vmatpush1.msra.mxu0 0.0
    %4859 = vmatprep.subr.mxu0 0.0
    %4860 = vmatpush1.msra.mxu0 0.0
    %4861 = vmatprep.subr.mxu0 0.0
    %4862 = vmatpush1.msra.mxu0 0.0
    %4863 = vmatprep.subr.mxu0 0.0
    %4864 = vmatpush1.msra.mxu0 0.0
    %4865 = vmatprep.subr.mxu0 0.0
    %4866 = vmatpush1.msra.mxu0 0.0
    %4867 = vmatprep.subr.mxu0 0.0
    %4868 = vmatpush1.msra.mxu0 0.0
    %4869 = vmatprep.subr.mxu0 0.0
    %4870 = vmatpush1.msra.mxu0 0.0
    %4871 = vmatprep.subr.mxu0 0.0
    %4872 = vmatpush1.msra.mxu0 0.0
    %4873 = vmatprep.subr.mxu0 0.0
    %4874 = vmatpush1.msra.mxu0 0.0
    %4875 = vmatprep.subr.mxu0 0.0
    %4876 = vmatpush1.msra.mxu0 0.0
    %4877 = vmatprep.subr.mxu0 0.0
    %4878 = vmatpush1.msra.mxu0 0.0
    %4879 = vmatprep.mubr.f32.mxu0 0.0
    %4880 = vmatmul.mubr.f32.gmra.mrb[0].mxu0 %v4733
    %v4881 = vpop.f32.mrb[0].mxu0
    %v4882 = vadd.f32 0.0, %v4881
    %v4883 = vpop.f32.mrb[0].mxu0
    %v4884 = vadd.f32 0.0, %v4883
    %4885 = vmatprep.mubr.f32.mxu0 0.0
    %4886 = vmatmul.mubr.f32.gmra.mrb[0].mxu0 %v4736
    %v4887 = vpop.f32.mrb[0].mxu0
    %v4888 = vadd.f32 0.0, %v4887
    %v4889 = vpop.f32.mrb[0].mxu0
    %v4890 = vadd.f32 0.0, %v4889
    %4891 = vdwg.mxu0
    %4892 = vmatprep.subr.mxu0 %v3313
    %4893 = vmatpush1.msra.mxu0 %v3312
    %4894 = vmatprep.subr.mxu0 0.0
    %4895 = vmatpush1.msra.mxu0 0.0
    %4896 = vmatprep.subr.mxu0 0.0
    %4897 = vmatpush1.msra.mxu0 0.0
    %4898 = vmatprep.subr.mxu0 0.0
    %4899 = vmatpush1.msra.mxu0 0.0
    %4900 = vmatprep.subr.mxu0 0.0
    %4901 = vmatpush1.msra.mxu0 0.0
    %4902 = vmatprep.subr.mxu0 0.0
    %4903 = vmatpush1.msra.mxu0 0.0
    %4904 = vmatprep.subr.mxu0 0.0
    %4905 = vmatpush1.msra.mxu0 0.0
    %4906 = vmatprep.subr.mxu0 0.0
    %4907 = vmatpush1.msra.mxu0 0.0
    %4908 = vmatprep.subr.mxu0 0.0
    %4909 = vmatpush1.msra.mxu0 0.0
    %4910 = vmatprep.subr.mxu0 0.0
    %4911 = vmatpush1.msra.mxu0 0.0
    %4912 = vmatprep.subr.mxu0 0.0
    %4913 = vmatpush1.msra.mxu0 0.0
    %4914 = vmatprep.subr.mxu0 0.0
    %4915 = vmatpush1.msra.mxu0 0.0
    %4916 = vmatprep.subr.mxu0 0.0
    %4917 = vmatpush1.msra.mxu0 0.0
    %4918 = vmatprep.subr.mxu0 0.0
    %4919 = vmatpush1.msra.mxu0 0.0
    %4920 = vmatprep.subr.mxu0 0.0
    %4921 = vmatpush1.msra.mxu0 0.0
    %4922 = vmatprep.subr.mxu0 0.0
    %4923 = vmatpush1.msra.mxu0 0.0
    %4924 = vmatprep.subr.mxu0 0.0
    %4925 = vmatpush1.msra.mxu0 0.0
    %4926 = vmatprep.subr.mxu0 0.0
    %4927 = vmatpush1.msra.mxu0 0.0
    %4928 = vmatprep.subr.mxu0 0.0
    %4929 = vmatpush1.msra.mxu0 0.0
    %4930 = vmatprep.subr.mxu0 0.0
    %4931 = vmatpush1.msra.mxu0 0.0
    %4932 = vmatprep.subr.mxu0 0.0
    %4933 = vmatpush1.msra.mxu0 0.0
    %4934 = vmatprep.subr.mxu0 0.0
    %4935 = vmatpush1.msra.mxu0 0.0
    %4936 = vmatprep.subr.mxu0 0.0
    %4937 = vmatpush1.msra.mxu0 0.0
    %4938 = vmatprep.subr.mxu0 0.0
    %4939 = vmatpush1.msra.mxu0 0.0
    %4940 = vmatprep.subr.mxu0 0.0
    %4941 = vmatpush1.msra.mxu0 0.0
    %4942 = vmatprep.subr.mxu0 0.0
    %4943 = vmatpush1.msra.mxu0 0.0
    %4944 = vmatprep.subr.mxu0 0.0
    %4945 = vmatpush1.msra.mxu0 0.0
    %4946 = vmatprep.subr.mxu0 0.0
    %4947 = vmatpush1.msra.mxu0 0.0
    %4948 = vmatprep.subr.mxu0 0.0
    %4949 = vmatpush1.msra.mxu0 0.0
    %4950 = vmatprep.subr.mxu0 0.0
    %4951 = vmatpush1.msra.mxu0 0.0
    %4952 = vmatprep.subr.mxu0 0.0
    %4953 = vmatpush1.msra.mxu0 0.0
    %4954 = vmatprep.subr.mxu0 0.0
    %4955 = vmatpush1.msra.mxu0 0.0
    %4956 = vmatprep.mubr.f32.mxu0 0.0
    %4957 = vmatmul.mubr.f32.gmra.mrb[0].mxu0 %v4733
    %v4958 = vpop.f32.mrb[0].mxu0
    %v4959 = vadd.f32 0.0, %v4958
    %v4960 = vpop.f32.mrb[0].mxu0
    %v4961 = vadd.f32 0.0, %v4960
    %4962 = vmatprep.mubr.f32.mxu0 0.0
    %4963 = vmatmul.mubr.f32.gmra.mrb[0].mxu0 %v4736
    %v4964 = vpop.f32.mrb[0].mxu0
    %v4965 = vadd.f32 0.0, %v4964
    %v4966 = vpop.f32.mrb[0].mxu0
    %v4967 = vadd.f32 0.0, %v4966
    %4968 = vdwg.mxu0
    %4969 = vmatprep.subr.mxu0 0.0
    %4970 = vmatpush1.msra.mxu0 %v3314
    %4971 = vmatprep.subr.mxu0 0.0
    %4972 = vmatpush1.msra.mxu0 0.0
    %4973 = vmatprep.subr.mxu0 0.0
    %4974 = vmatpush1.msra.mxu0 0.0
    %4975 = vmatprep.subr.mxu0 0.0
    %4976 = vmatpush1.msra.mxu0 0.0
    %4977 = vmatprep.subr.mxu0 0.0
    %4978 = vmatpush1.msra.mxu0 0.0
    %4979 = vmatprep.subr.mxu0 0.0
    %4980 = vmatpush1.msra.mxu0 0.0
    %4981 = vmatprep.subr.mxu0 0.0
    %4982 = vmatpush1.msra.mxu0 0.0
    %4983 = vmatprep.subr.mxu0 0.0
    %4984 = vmatpush1.msra.mxu0 0.0
    %4985 = vmatprep.subr.mxu0 0.0
    %4986 = vmatpush1.msra.mxu0 0.0
    %4987 = vmatprep.subr.mxu0 0.0
    %4988 = vmatpush1.msra.mxu0 0.0
    %4989 = vmatprep.subr.mxu0 0.0
    %4990 = vmatpush1.msra.mxu0 0.0
    %4991 = vmatprep.subr.mxu0 0.0
    %4992 = vmatpush1.msra.mxu0 0.0
    %4993 = vmatprep.subr.mxu0 0.0
    %4994 = vmatpush1.msra.mxu0 0.0
    %4995 = vmatprep.subr.mxu0 0.0
    %4996 = vmatpush1.msra.mxu0 0.0
    %4997 = vmatprep.subr.mxu0 0.0
    %4998 = vmatpush1.msra.mxu0 0.0
    %4999 = vmatprep.subr.mxu0 0.0
    %5000 = vmatpush1.msra.mxu0 0.0
    %5001 = vmatprep.subr.mxu0 0.0
    %5002 = vmatpush1.msra.mxu0 0.0
    %5003 = vmatprep.subr.mxu0 0.0
    %5004 = vmatpush1.msra.mxu0 0.0
    %5005 = vmatprep.subr.mxu0 0.0
    %5006 = vmatpush1.msra.mxu0 0.0
    %5007 = vmatprep.subr.mxu0 0.0
    %5008 = vmatpush1.msra.mxu0 0.0
    %5009 = vmatprep.subr.mxu0 0.0
    %5010 = vmatpush1.msra.mxu0 0.0
    %5011 = vmatprep.subr.mxu0 0.0
    %5012 = vmatpush1.msra.mxu0 0.0
    %5013 = vmatprep.subr.mxu0 0.0
    %5014 = vmatpush1.msra.mxu0 0.0
    %5015 = vmatprep.subr.mxu0 0.0
    %5016 = vmatpush1.msra.mxu0 0.0
    %5017 = vmatprep.subr.mxu0 0.0
    %5018 = vmatpush1.msra.mxu0 0.0
    %5019 = vmatprep.subr.mxu0 0.0
    %5020 = vmatpush1.msra.mxu0 0.0
    %5021 = vmatprep.subr.mxu0 0.0
    %5022 = vmatpush1.msra.mxu0 0.0
    %5023 = vmatprep.subr.mxu0 0.0
    %5024 = vmatpush1.msra.mxu0 0.0
    %5025 = vmatprep.subr.mxu0 0.0
    %5026 = vmatpush1.msra.mxu0 0.0
    %5027 = vmatprep.subr.mxu0 0.0
    %5028 = vmatpush1.msra.mxu0 0.0
    %5029 = vmatprep.subr.mxu0 0.0
    %5030 = vmatpush1.msra.mxu0 0.0
    %5031 = vmatprep.subr.mxu0 0.0
    %5032 = vmatpush1.msra.mxu0 0.0
    %5033 = vmatprep.mubr.f32.mxu0 0.0
    %5034 = vmatmul.mubr.f32.gmra.mrb[0].mxu0 %v4733
    %v5035 = vpop.f32.mrb[0].mxu0
    %v5036 = vadd.f32 0.0, %v5035
    %v5037 = vpop.f32.mrb[0].mxu0
    %5038 = vmatprep.mubr.f32.mxu0 0.0
    %5039 = vmatmul.mubr.f32.gmra.mrb[0].mxu0 %v4736
    %v5040 = vpop.f32.mrb[0].mxu0
    %v5041 = vadd.f32 0.0, %v5040
    %v5042 = vpop.f32.mrb[0].mxu0
    %5043 = vdwg.mxu0
    %v5044 = vadd.f32 %v4715, %v4805
    %v5045 = vadd.f32 %v4716, %v4807
    %v5046 = vadd.f32 %v4717, %v4882
    %v5047 = vadd.f32 %v4718, %v4884
    %v5048 = vadd.f32 %v4719, %v4959
    %v5049 = vadd.f32 %v4720, %v4961
    %v5050 = vadd.f32 %v4721, %v5036
    %v5051 = vadd.f32 %v4722, %v4811
    %v5052 = vadd.f32 %v4723, %v4813
    %v5053 = vadd.f32 %v4724, %v4888
    %v5054 = vadd.f32 %v4725, %v4890
    %v5055 = vadd.f32 %v4726, %v4965
    %v5056 = vadd.f32 %v4727, %v4967
    %v5057 = vadd.f32 %v4728, %v5041
    %s5058 = scalar_lea.vmem %s5, 80
    %v5059 = vld [vmem:[%s5058] sm:$0xff]
    %v5060 = vld [vmem:[%s5058 + $0x8] sm:$0xff]
    %v5061 = vld [vmem:[#allocation2 + $0x8] sm:$0xff]
    %v5062 = vld [vmem:[#allocation2 + $0x10] sm:$0xff]
    %v5063 = vld [vmem:[#allocation2 + $0x18] sm:$0xff]
    %v5064 = vld [vmem:[#allocation2 + $0x20] sm:$0xff]
    %v5065 = vld [vmem:[#allocation2 + $0x28] sm:$0xff]
    %v5066 = vld [vmem:[#allocation2 + $0x30] sm:$0xff]
    %v5067 = vld [vmem:[#allocation2 + $0x38] sm:$0xff]
    %v5068 = vld [vmem:[#allocation2 + $0x40] sm:$0xff]
    %5077 = vrot.lane.b32.xlu0 %v5061, 127
    %v5078 = vpop.permute.xlu0 %5077
    %5079 = vrot.lane.b32.xlu0 %v5062, 127
    %v5080 = vpop.permute.xlu0 %5079
    %5081 = vrot.lane.b32.xlu0 %v5063, 127
    %v5082 = vpop.permute.xlu0 %5081
    %5083 = vrot.lane.b32.xlu0 %v5064, 127
    %v5084 = vpop.permute.xlu0 %5083
    %5085 = vrot.lane.b32.xlu0 %v5065, 127
    %v5086 = vpop.permute.xlu0 %5085
    %5087 = vrot.lane.b32.xlu0 %v5066, 127
    %v5088 = vpop.permute.xlu0 %5087
    %5089 = vrot.lane.b32.xlu0 %v5067, 127
    %v5090 = vpop.permute.xlu0 %5089
    %5091 = vrot.lane.b32.xlu0 %v5068, 127
    %v5092 = vpop.permute.xlu0 %5091
    %v5093 = vsel %vm1742, %v5078, %v5080
    %v5094 = vsel %vm1742, %v5080, %v5082
    %v5095 = vsel %vm1742, %v5082, %v5084
    %v5096 = vsel %vm1742, %v5084, %v5086
    %v5097 = vsel %vm1742, %v5086, %v5088
    %v5098 = vsel %vm1742, %v5088, %v5090
    %v5099 = vsel %vm1742, %v5090, %v5092
    %v5108 = vsel %vm3356, %v5059, 0
    %v5111 = vsel %vm3356, %v5060, 0
    %5113 = vmatprep.subr.mxu0 %v5094
    %5114 = vmatpush1.msra.mxu0 %v5093
    %5115 = vmatprep.subr.mxu0 0.0
    %5116 = vmatpush1.msra.mxu0 0.0
    %5117 = vmatprep.subr.mxu0 0.0
    %5118 = vmatpush1.msra.mxu0 0.0
    %5119 = vmatprep.subr.mxu0 0.0
    %5120 = vmatpush1.msra.mxu0 0.0
    %5121 = vmatprep.subr.mxu0 0.0
    %5122 = vmatpush1.msra.mxu0 0.0
    %5123 = vmatprep.subr.mxu0 0.0
    %5124 = vmatpush1.msra.mxu0 0.0
    %5125 = vmatprep.subr.mxu0 0.0
    %5126 = vmatpush1.msra.mxu0 0.0
    %5127 = vmatprep.subr.mxu0 0.0
    %5128 = vmatpush1.msra.mxu0 0.0
    %5129 = vmatprep.subr.mxu0 0.0
    %5130 = vmatpush1.msra.mxu0 0.0
    %5131 = vmatprep.subr.mxu0 0.0
    %5132 = vmatpush1.msra.mxu0 0.0
    %5133 = vmatprep.subr.mxu0 0.0
    %5134 = vmatpush1.msra.mxu0 0.0
    %5135 = vmatprep.subr.mxu0 0.0
    %5136 = vmatpush1.msra.mxu0 0.0
    %5137 = vmatprep.subr.mxu0 0.0
    %5138 = vmatpush1.msra.mxu0 0.0
    %5139 = vmatprep.subr.mxu0 0.0
    %5140 = vmatpush1.msra.mxu0 0.0
    %5141 = vmatprep.subr.mxu0 0.0
    %5142 = vmatpush1.msra.mxu0 0.0
    %5143 = vmatprep.subr.mxu0 0.0
    %5144 = vmatpush1.msra.mxu0 0.0
    %5145 = vmatprep.subr.mxu0 0.0
    %5146 = vmatpush1.msra.mxu0 0.0
    %5147 = vmatprep.subr.mxu0 0.0
    %5148 = vmatpush1.msra.mxu0 0.0
    %5149 = vmatprep.subr.mxu0 0.0
    %5150 = vmatpush1.msra.mxu0 0.0
    %5151 = vmatprep.subr.mxu0 0.0
    %5152 = vmatpush1.msra.mxu0 0.0
    %5153 = vmatprep.subr.mxu0 0.0
    %5154 = vmatpush1.msra.mxu0 0.0
    %5155 = vmatprep.subr.mxu0 0.0
    %5156 = vmatpush1.msra.mxu0 0.0
    %5157 = vmatprep.subr.mxu0 0.0
    %5158 = vmatpush1.msra.mxu0 0.0
    %5159 = vmatprep.subr.mxu0 0.0
    %5160 = vmatpush1.msra.mxu0 0.0
    %5161 = vmatprep.subr.mxu0 0.0
    %5162 = vmatpush1.msra.mxu0 0.0
    %5163 = vmatprep.subr.mxu0 0.0
    %5164 = vmatpush1.msra.mxu0 0.0
    %5165 = vmatprep.subr.mxu0 0.0
    %5166 = vmatpush1.msra.mxu0 0.0
    %5167 = vmatprep.subr.mxu0 0.0
    %5168 = vmatpush1.msra.mxu0 0.0
    %5169 = vmatprep.subr.mxu0 0.0
    %5170 = vmatpush1.msra.mxu0 0.0
    %5171 = vmatprep.subr.mxu0 0.0
    %5172 = vmatpush1.msra.mxu0 0.0
    %5173 = vmatprep.subr.mxu0 0.0
    %5174 = vmatpush1.msra.mxu0 0.0
    %5175 = vmatprep.subr.mxu0 0.0
    %5176 = vmatpush1.msra.mxu0 0.0
    %5177 = vmatprep.mubr.f32.mxu0 0.0
    %5178 = vmatmul.mubr.f32.gmra.mrb[0].mxu0 %v5108
    %v5179 = vpop.f32.mrb[0].mxu0
    %v5180 = vadd.f32 0.0, %v5179
    %v5181 = vpop.f32.mrb[0].mxu0
    %v5182 = vadd.f32 0.0, %v5181
    %5183 = vmatprep.mubr.f32.mxu0 0.0
    %5184 = vmatmul.mubr.f32.gmra.mrb[0].mxu0 %v5111
    %v5185 = vpop.f32.mrb[0].mxu0
    %v5186 = vadd.f32 0.0, %v5185
    %v5187 = vpop.f32.mrb[0].mxu0
    %v5188 = vadd.f32 0.0, %v5187
    %5189 = vdwg.mxu0
    %5190 = vmatprep.subr.mxu0 %v5096
    %5191 = vmatpush1.msra.mxu0 %v5095
    %5192 = vmatprep.subr.mxu0 0.0
    %5193 = vmatpush1.msra.mxu0 0.0
    %5194 = vmatprep.subr.mxu0 0.0
    %5195 = vmatpush1.msra.mxu0 0.0
    %5196 = vmatprep.subr.mxu0 0.0
    %5197 = vmatpush1.msra.mxu0 0.0
    %5198 = vmatprep.subr.mxu0 0.0
    %5199 = vmatpush1.msra.mxu0 0.0
    %5200 = vmatprep.subr.mxu0 0.0
    %5201 = vmatpush1.msra.mxu0 0.0
    %5202 = vmatprep.subr.mxu0 0.0
    %5203 = vmatpush1.msra.mxu0 0.0
    %5204 = vmatprep.subr.mxu0 0.0
    %5205 = vmatpush1.msra.mxu0 0.0
    %5206 = vmatprep.subr.mxu0 0.0
    %5207 = vmatpush1.msra.mxu0 0.0
    %5208 = vmatprep.subr.mxu0 0.0
    %5209 = vmatpush1.msra.mxu0 0.0
    %5210 = vmatprep.subr.mxu0 0.0
    %5211 = vmatpush1.msra.mxu0 0.0
    %5212 = vmatprep.subr.mxu0 0.0
    %5213 = vmatpush1.msra.mxu0 0.0
    %5214 = vmatprep.subr.mxu0 0.0
    %5215 = vmatpush1.msra.mxu0 0.0
    %5216 = vmatprep.subr.mxu0 0.0
    %5217 = vmatpush1.msra.mxu0 0.0
    %5218 = vmatprep.subr.mxu0 0.0
    %5219 = vmatpush1.msra.mxu0 0.0
    %5220 = vmatprep.subr.mxu0 0.0
    %5221 = vmatpush1.msra.mxu0 0.0
    %5222 = vmatprep.subr.mxu0 0.0
    %5223 = vmatpush1.msra.mxu0 0.0
    %5224 = vmatprep.subr.mxu0 0.0
    %5225 = vmatpush1.msra.mxu0 0.0
    %5226 = vmatprep.subr.mxu0 0.0
    %5227 = vmatpush1.msra.mxu0 0.0
    %5228 = vmatprep.subr.mxu0 0.0
    %5229 = vmatpush1.msra.mxu0 0.0
    %5230 = vmatprep.subr.mxu0 0.0
    %5231 = vmatpush1.msra.mxu0 0.0
    %5232 = vmatprep.subr.mxu0 0.0
    %5233 = vmatpush1.msra.mxu0 0.0
    %5234 = vmatprep.subr.mxu0 0.0
    %5235 = vmatpush1.msra.mxu0 0.0
    %5236 = vmatprep.subr.mxu0 0.0
    %5237 = vmatpush1.msra.mxu0 0.0
    %5238 = vmatprep.subr.mxu0 0.0
    %5239 = vmatpush1.msra.mxu0 0.0
    %5240 = vmatprep.subr.mxu0 0.0
    %5241 = vmatpush1.msra.mxu0 0.0
    %5242 = vmatprep.subr.mxu0 0.0
    %5243 = vmatpush1.msra.mxu0 0.0
    %5244 = vmatprep.subr.mxu0 0.0
    %5245 = vmatpush1.msra.mxu0 0.0
    %5246 = vmatprep.subr.mxu0 0.0
    %5247 = vmatpush1.msra.mxu0 0.0
    %5248 = vmatprep.subr.mxu0 0.0
    %5249 = vmatpush1.msra.mxu0 0.0
    %5250 = vmatprep.subr.mxu0 0.0
    %5251 = vmatpush1.msra.mxu0 0.0
    %5252 = vmatprep.subr.mxu0 0.0
    %5253 = vmatpush1.msra.mxu0 0.0
    %5254 = vmatprep.mubr.f32.mxu0 0.0
    %5255 = vmatmul.mubr.f32.gmra.mrb[0].mxu0 %v5108
    %v5256 = vpop.f32.mrb[0].mxu0
    %v5257 = vadd.f32 0.0, %v5256
    %v5258 = vpop.f32.mrb[0].mxu0
    %v5259 = vadd.f32 0.0, %v5258
    %5260 = vmatprep.mubr.f32.mxu0 0.0
    %5261 = vmatmul.mubr.f32.gmra.mrb[0].mxu0 %v5111
    %v5262 = vpop.f32.mrb[0].mxu0
    %v5263 = vadd.f32 0.0, %v5262
    %v5264 = vpop.f32.mrb[0].mxu0
    %v5265 = vadd.f32 0.0, %v5264
    %5266 = vdwg.mxu0
    %5267 = vmatprep.subr.mxu0 %v5098
    %5268 = vmatpush1.msra.mxu0 %v5097
    %5269 = vmatprep.subr.mxu0 0.0
    %5270 = vmatpush1.msra.mxu0 0.0
    %5271 = vmatprep.subr.mxu0 0.0
    %5272 = vmatpush1.msra.mxu0 0.0
    %5273 = vmatprep.subr.mxu0 0.0
    %5274 = vmatpush1.msra.mxu0 0.0
    %5275 = vmatprep.subr.mxu0 0.0
    %5276 = vmatpush1.msra.mxu0 0.0
    %5277 = vmatprep.subr.mxu0 0.0
    %5278 = vmatpush1.msra.mxu0 0.0
    %5279 = vmatprep.subr.mxu0 0.0
    %5280 = vmatpush1.msra.mxu0 0.0
    %5281 = vmatprep.subr.mxu0 0.0
    %5282 = vmatpush1.msra.mxu0 0.0
    %5283 = vmatprep.subr.mxu0 0.0
    %5284 = vmatpush1.msra.mxu0 0.0
    %5285 = vmatprep.subr.mxu0 0.0
    %5286 = vmatpush1.msra.mxu0 0.0
    %5287 = vmatprep.subr.mxu0 0.0
    %5288 = vmatpush1.msra.mxu0 0.0
    %5289 = vmatprep.subr.mxu0 0.0
    %5290 = vmatpush1.msra.mxu0 0.0
    %5291 = vmatprep.subr.mxu0 0.0
    %5292 = vmatpush1.msra.mxu0 0.0
    %5293 = vmatprep.subr.mxu0 0.0
    %5294 = vmatpush1.msra.mxu0 0.0
    %5295 = vmatprep.subr.mxu0 0.0
    %5296 = vmatpush1.msra.mxu0 0.0
    %5297 = vmatprep.subr.mxu0 0.0
    %5298 = vmatpush1.msra.mxu0 0.0
    %5299 = vmatprep.subr.mxu0 0.0
    %5300 = vmatpush1.msra.mxu0 0.0
    %5301 = vmatprep.subr.mxu0 0.0
    %5302 = vmatpush1.msra.mxu0 0.0
    %5303 = vmatprep.subr.mxu0 0.0
    %5304 = vmatpush1.msra.mxu0 0.0
    %5305 = vmatprep.subr.mxu0 0.0
    %5306 = vmatpush1.msra.mxu0 0.0
    %5307 = vmatprep.subr.mxu0 0.0
    %5308 = vmatpush1.msra.mxu0 0.0
    %5309 = vmatprep.subr.mxu0 0.0
    %5310 = vmatpush1.msra.mxu0 0.0
    %5311 = vmatprep.subr.mxu0 0.0
    %5312 = vmatpush1.msra.mxu0 0.0
    %5313 = vmatprep.subr.mxu0 0.0
    %5314 = vmatpush1.msra.mxu0 0.0
    %5315 = vmatprep.subr.mxu0 0.0
    %5316 = vmatpush1.msra.mxu0 0.0
    %5317 = vmatprep.subr.mxu0 0.0
    %5318 = vmatpush1.msra.mxu0 0.0
    %5319 = vmatprep.subr.mxu0 0.0
    %5320 = vmatpush1.msra.mxu0 0.0
    %5321 = vmatprep.subr.mxu0 0.0
    %5322 = vmatpush1.msra.mxu0 0.0
    %5323 = vmatprep.subr.mxu0 0.0
    %5324 = vmatpush1.msra.mxu0 0.0
    %5325 = vmatprep.subr.mxu0 0.0
    %5326 = vmatpush1.msra.mxu0 0.0
    %5327 = vmatprep.subr.mxu0 0.0
    %5328 = vmatpush1.msra.mxu0 0.0
    %5329 = vmatprep.subr.mxu0 0.0
    %5330 = vmatpush1.msra.mxu0 0.0
    %5331 = vmatprep.mubr.f32.mxu0 0.0
    %5332 = vmatmul.mubr.f32.gmra.mrb[0].mxu0 %v5108
    %v5333 = vpop.f32.mrb[0].mxu0
    %v5334 = vadd.f32 0.0, %v5333
    %v5335 = vpop.f32.mrb[0].mxu0
    %v5336 = vadd.f32 0.0, %v5335
    %5337 = vmatprep.mubr.f32.mxu0 0.0
    %5338 = vmatmul.mubr.f32.gmra.mrb[0].mxu0 %v5111
    %v5339 = vpop.f32.mrb[0].mxu0
    %v5340 = vadd.f32 0.0, %v5339
    %v5341 = vpop.f32.mrb[0].mxu0
    %v5342 = vadd.f32 0.0, %v5341
    %5343 = vdwg.mxu0
    %5344 = vmatprep.subr.mxu0 0.0
    %5345 = vmatpush1.msra.mxu0 %v5099
    %5346 = vmatprep.subr.mxu0 0.0
    %5347 = vmatpush1.msra.mxu0 0.0
    %5348 = vmatprep.subr.mxu0 0.0
    %5349 = vmatpush1.msra.mxu0 0.0
    %5350 = vmatprep.subr.mxu0 0.0
    %5351 = vmatpush1.msra.mxu0 0.0
    %5352 = vmatprep.subr.mxu0 0.0
    %5353 = vmatpush1.msra.mxu0 0.0
    %5354 = vmatprep.subr.mxu0 0.0
    %5355 = vmatpush1.msra.mxu0 0.0
    %5356 = vmatprep.subr.mxu0 0.0
    %5357 = vmatpush1.msra.mxu0 0.0
    %5358 = vmatprep.subr.mxu0 0.0
    %5359 = vmatpush1.msra.mxu0 0.0
    %5360 = vmatprep.subr.mxu0 0.0
    %5361 = vmatpush1.msra.mxu0 0.0
    %5362 = vmatprep.subr.mxu0 0.0
    %5363 = vmatpush1.msra.mxu0 0.0
    %5364 = vmatprep.subr.mxu0 0.0
    %5365 = vmatpush1.msra.mxu0 0.0
    %5366 = vmatprep.subr.mxu0 0.0
    %5367 = vmatpush1.msra.mxu0 0.0
    %5368 = vmatprep.subr.mxu0 0.0
    %5369 = vmatpush1.msra.mxu0 0.0
    %5370 = vmatprep.subr.mxu0 0.0
    %5371 = vmatpush1.msra.mxu0 0.0
    %5372 = vmatprep.subr.mxu0 0.0
    %5373 = vmatpush1.msra.mxu0 0.0
    %5374 = vmatprep.subr.mxu0 0.0
    %5375 = vmatpush1.msra.mxu0 0.0
    %5376 = vmatprep.subr.mxu0 0.0
    %5377 = vmatpush1.msra.mxu0 0.0
    %5378 = vmatprep.subr.mxu0 0.0
    %5379 = vmatpush1.msra.mxu0 0.0
    %5380 = vmatprep.subr.mxu0 0.0
    %5381 = vmatpush1.msra.mxu0 0.0
    %5382 = vmatprep.subr.mxu0 0.0
    %5383 = vmatpush1.msra.mxu0 0.0
    %5384 = vmatprep.subr.mxu0 0.0
    %5385 = vmatpush1.msra.mxu0 0.0
    %5386 = vmatprep.subr.mxu0 0.0
    %5387 = vmatpush1.msra.mxu0 0.0
    %5388 = vmatprep.subr.mxu0 0.0
    %5389 = vmatpush1.msra.mxu0 0.0
    %5390 = vmatprep.subr.mxu0 0.0
    %5391 = vmatpush1.msra.mxu0 0.0
    %5392 = vmatprep.subr.mxu0 0.0
    %5393 = vmatpush1.msra.mxu0 0.0
    %5394 = vmatprep.subr.mxu0 0.0
    %5395 = vmatpush1.msra.mxu0 0.0
    %5396 = vmatprep.subr.mxu0 0.0
    %5397 = vmatpush1.msra.mxu0 0.0
    %5398 = vmatprep.subr.mxu0 0.0
    %5399 = vmatpush1.msra.mxu0 0.0
    %5400 = vmatprep.subr.mxu0 0.0
    %5401 = vmatpush1.msra.mxu0 0.0
    %5402 = vmatprep.subr.mxu0 0.0
    %5403 = vmatpush1.msra.mxu0 0.0
    %5404 = vmatprep.subr.mxu0 0.0
    %5405 = vmatpush1.msra.mxu0 0.0
    %5406 = vmatprep.subr.mxu0 0.0
    %5407 = vmatpush1.msra.mxu0 0.0
    %5408 = vmatprep.mubr.f32.mxu0 0.0
    %5409 = vmatmul.mubr.f32.gmra.mrb[0].mxu0 %v5108
    %v5410 = vpop.f32.mrb[0].mxu0
    %v5411 = vadd.f32 0.0, %v5410
    %v5412 = vpop.f32.mrb[0].mxu0
    %5413 = vmatprep.mubr.f32.mxu0 0.0
    %5414 = vmatmul.mubr.f32.gmra.mrb[0].mxu0 %v5111
    %v5415 = vpop.f32.mrb[0].mxu0
    %v5416 = vadd.f32 0.0, %v5415
    %v5417 = vpop.f32.mrb[0].mxu0
    %5418 = vdwg.mxu0
    %v5419 = vadd.f32 %v5044, %v5180
    %v5420 = vadd.f32 %v5045, %v5182
    %v5421 = vadd.f32 %v5046, %v5257
    %v5422 = vadd.f32 %v5047, %v5259
    %v5423 = vadd.f32 %v5048, %v5334
    %v5424 = vadd.f32 %v5049, %v5336
    %v5425 = vadd.f32 %v5050, %v5411
    %v5426 = vadd.f32 %v5051, %v5186
    %v5427 = vadd.f32 %v5052, %v5188
    %v5428 = vadd.f32 %v5053, %v5263
    %v5429 = vadd.f32 %v5054, %v5265
    %v5430 = vadd.f32 %v5055, %v5340
    %v5431 = vadd.f32 %v5056, %v5342
    %v5432 = vadd.f32 %v5057, %v5416
    %s5433 = scalar_lea.vmem %s5, 96
    %v5434 = vld [vmem:[%s5433] sm:$0xff]
    %v5435 = vld [vmem:[%s5433 + $0x8] sm:$0xff]
    %5436 = vrot.lane.b32.xlu0 %v5061, 109
    %v5437 = vpop.permute.xlu0 %5436
    %5438 = vrot.lane.b32.xlu0 %v5062, 109
    %v5439 = vpop.permute.xlu0 %5438
    %5440 = vrot.lane.b32.xlu0 %v5063, 109
    %v5441 = vpop.permute.xlu0 %5440
    %5442 = vrot.lane.b32.xlu0 %v5064, 109
    %v5443 = vpop.permute.xlu0 %5442
    %5444 = vrot.lane.b32.xlu0 %v5065, 109
    %v5445 = vpop.permute.xlu0 %5444
    %5446 = vrot.lane.b32.xlu0 %v5066, 109
    %v5447 = vpop.permute.xlu0 %5446
    %5448 = vrot.lane.b32.xlu0 %v5067, 109
    %v5449 = vpop.permute.xlu0 %5448
    %5450 = vrot.lane.b32.xlu0 %v5068, 109
    %v5451 = vpop.permute.xlu0 %5450
    %v5452 = vsel %vm2087, %v5437, %v5439
    %v5453 = vsel %vm2087, %v5439, %v5441
    %v5454 = vsel %vm2087, %v5441, %v5443
    %v5455 = vsel %vm2087, %v5443, %v5445
    %v5456 = vsel %vm2087, %v5445, %v5447
    %v5457 = vsel %vm2087, %v5447, %v5449
    %v5458 = vsel %vm2087, %v5449, %v5451
    %v5467 = vsel %vm3356, %v5434, 0
    %v5470 = vsel %vm3356, %v5435, 0
    %5472 = vmatprep.subr.mxu0 %v5453
    %5473 = vmatpush1.msra.mxu0 %v5452
    %5474 = vmatprep.subr.mxu0 0.0
    %5475 = vmatpush1.msra.mxu0 0.0
    %5476 = vmatprep.subr.mxu0 0.0
    %5477 = vmatpush1.msra.mxu0 0.0
    %5478 = vmatprep.subr.mxu0 0.0
    %5479 = vmatpush1.msra.mxu0 0.0
    %5480 = vmatprep.subr.mxu0 0.0
    %5481 = vmatpush1.msra.mxu0 0.0
    %5482 = vmatprep.subr.mxu0 0.0
    %5483 = vmatpush1.msra.mxu0 0.0
    %5484 = vmatprep.subr.mxu0 0.0
    %5485 = vmatpush1.msra.mxu0 0.0
    %5486 = vmatprep.subr.mxu0 0.0
    %5487 = vmatpush1.msra.mxu0 0.0
    %5488 = vmatprep.subr.mxu0 0.0
    %5489 = vmatpush1.msra.mxu0 0.0
    %5490 = vmatprep.subr.mxu0 0.0
    %5491 = vmatpush1.msra.mxu0 0.0
    %5492 = vmatprep.subr.mxu0 0.0
    %5493 = vmatpush1.msra.mxu0 0.0
    %5494 = vmatprep.subr.mxu0 0.0
    %5495 = vmatpush1.msra.mxu0 0.0
    %5496 = vmatprep.subr.mxu0 0.0
    %5497 = vmatpush1.msra.mxu0 0.0
    %5498 = vmatprep.subr.mxu0 0.0
    %5499 = vmatpush1.msra.mxu0 0.0
    %5500 = vmatprep.subr.mxu0 0.0
    %5501 = vmatpush1.msra.mxu0 0.0
    %5502 = vmatprep.subr.mxu0 0.0
    %5503 = vmatpush1.msra.mxu0 0.0
    %5504 = vmatprep.subr.mxu0 0.0
    %5505 = vmatpush1.msra.mxu0 0.0
    %5506 = vmatprep.subr.mxu0 0.0
    %5507 = vmatpush1.msra.mxu0 0.0
    %5508 = vmatprep.subr.mxu0 0.0
    %5509 = vmatpush1.msra.mxu0 0.0
    %5510 = vmatprep.subr.mxu0 0.0
    %5511 = vmatpush1.msra.mxu0 0.0
    %5512 = vmatprep.subr.mxu0 0.0
    %5513 = vmatpush1.msra.mxu0 0.0
    %5514 = vmatprep.subr.mxu0 0.0
    %5515 = vmatpush1.msra.mxu0 0.0
    %5516 = vmatprep.subr.mxu0 0.0
    %5517 = vmatpush1.msra.mxu0 0.0
    %5518 = vmatprep.subr.mxu0 0.0
    %5519 = vmatpush1.msra.mxu0 0.0
    %5520 = vmatprep.subr.mxu0 0.0
    %5521 = vmatpush1.msra.mxu0 0.0
    %5522 = vmatprep.subr.mxu0 0.0
    %5523 = vmatpush1.msra.mxu0 0.0
    %5524 = vmatprep.subr.mxu0 0.0
    %5525 = vmatpush1.msra.mxu0 0.0
    %5526 = vmatprep.subr.mxu0 0.0
    %5527 = vmatpush1.msra.mxu0 0.0
    %5528 = vmatprep.subr.mxu0 0.0
    %5529 = vmatpush1.msra.mxu0 0.0
    %5530 = vmatprep.subr.mxu0 0.0
    %5531 = vmatpush1.msra.mxu0 0.0
    %5532 = vmatprep.subr.mxu0 0.0
    %5533 = vmatpush1.msra.mxu0 0.0
    %5534 = vmatprep.subr.mxu0 0.0
    %5535 = vmatpush1.msra.mxu0 0.0
    %5536 = vmatprep.mubr.f32.mxu0 0.0
    %5537 = vmatmul.mubr.f32.gmra.mrb[0].mxu0 %v5467
    %v5538 = vpop.f32.mrb[0].mxu0
    %v5539 = vadd.f32 0.0, %v5538
    %v5540 = vpop.f32.mrb[0].mxu0
    %v5541 = vadd.f32 0.0, %v5540
    %5542 = vmatprep.mubr.f32.mxu0 0.0
    %5543 = vmatmul.mubr.f32.gmra.mrb[0].mxu0 %v5470
    %v5544 = vpop.f32.mrb[0].mxu0
    %v5545 = vadd.f32 0.0, %v5544
    %v5546 = vpop.f32.mrb[0].mxu0
    %v5547 = vadd.f32 0.0, %v5546
    %5548 = vdwg.mxu0
    %5549 = vmatprep.subr.mxu0 %v5455
    %5550 = vmatpush1.msra.mxu0 %v5454
    %5551 = vmatprep.subr.mxu0 0.0
    %5552 = vmatpush1.msra.mxu0 0.0
    %5553 = vmatprep.subr.mxu0 0.0
    %5554 = vmatpush1.msra.mxu0 0.0
    %5555 = vmatprep.subr.mxu0 0.0
    %5556 = vmatpush1.msra.mxu0 0.0
    %5557 = vmatprep.subr.mxu0 0.0
    %5558 = vmatpush1.msra.mxu0 0.0
    %5559 = vmatprep.subr.mxu0 0.0
    %5560 = vmatpush1.msra.mxu0 0.0
    %5561 = vmatprep.subr.mxu0 0.0
    %5562 = vmatpush1.msra.mxu0 0.0
    %5563 = vmatprep.subr.mxu0 0.0
    %5564 = vmatpush1.msra.mxu0 0.0
    %5565 = vmatprep.subr.mxu0 0.0
    %5566 = vmatpush1.msra.mxu0 0.0
    %5567 = vmatprep.subr.mxu0 0.0
    %5568 = vmatpush1.msra.mxu0 0.0
    %5569 = vmatprep.subr.mxu0 0.0
    %5570 = vmatpush1.msra.mxu0 0.0
    %5571 = vmatprep.subr.mxu0 0.0
    %5572 = vmatpush1.msra.mxu0 0.0
    %5573 = vmatprep.subr.mxu0 0.0
    %5574 = vmatpush1.msra.mxu0 0.0
    %5575 = vmatprep.subr.mxu0 0.0
    %5576 = vmatpush1.msra.mxu0 0.0
    %5577 = vmatprep.subr.mxu0 0.0
    %5578 = vmatpush1.msra.mxu0 0.0
    %5579 = vmatprep.subr.mxu0 0.0
    %5580 = vmatpush1.msra.mxu0 0.0
    %5581 = vmatprep.subr.mxu0 0.0
    %5582 = vmatpush1.msra.mxu0 0.0
    %5583 = vmatprep.subr.mxu0 0.0
    %5584 = vmatpush1.msra.mxu0 0.0
    %5585 = vmatprep.subr.mxu0 0.0
    %5586 = vmatpush1.msra.mxu0 0.0
    %5587 = vmatprep.subr.mxu0 0.0
    %5588 = vmatpush1.msra.mxu0 0.0
    %5589 = vmatprep.subr.mxu0 0.0
    %5590 = vmatpush1.msra.mxu0 0.0
    %5591 = vmatprep.subr.mxu0 0.0
    %5592 = vmatpush1.msra.mxu0 0.0
    %5593 = vmatprep.subr.mxu0 0.0
    %5594 = vmatpush1.msra.mxu0 0.0
    %5595 = vmatprep.subr.mxu0 0.0
    %5596 = vmatpush1.msra.mxu0 0.0
    %5597 = vmatprep.subr.mxu0 0.0
    %5598 = vmatpush1.msra.mxu0 0.0
    %5599 = vmatprep.subr.mxu0 0.0
    %5600 = vmatpush1.msra.mxu0 0.0
    %5601 = vmatprep.subr.mxu0 0.0
    %5602 = vmatpush1.msra.mxu0 0.0
    %5603 = vmatprep.subr.mxu0 0.0
    %5604 = vmatpush1.msra.mxu0 0.0
    %5605 = vmatprep.subr.mxu0 0.0
    %5606 = vmatpush1.msra.mxu0 0.0
    %5607 = vmatprep.subr.mxu0 0.0
    %5608 = vmatpush1.msra.mxu0 0.0
    %5609 = vmatprep.subr.mxu0 0.0
    %5610 = vmatpush1.msra.mxu0 0.0
    %5611 = vmatprep.subr.mxu0 0.0
    %5612 = vmatpush1.msra.mxu0 0.0
    %5613 = vmatprep.mubr.f32.mxu0 0.0
    %5614 = vmatmul.mubr.f32.gmra.mrb[0].mxu0 %v5467
    %v5615 = vpop.f32.mrb[0].mxu0
    %v5616 = vadd.f32 0.0, %v5615
    %v5617 = vpop.f32.mrb[0].mxu0
    %v5618 = vadd.f32 0.0, %v5617
    %5619 = vmatprep.mubr.f32.mxu0 0.0
    %5620 = vmatmul.mubr.f32.gmra.mrb[0].mxu0 %v5470
    %v5621 = vpop.f32.mrb[0].mxu0
    %v5622 = vadd.f32 0.0, %v5621
    %v5623 = vpop.f32.mrb[0].mxu0
    %v5624 = vadd.f32 0.0, %v5623
    %5625 = vdwg.mxu0
    %5626 = vmatprep.subr.mxu0 %v5457
    %5627 = vmatpush1.msra.mxu0 %v5456
    %5628 = vmatprep.subr.mxu0 0.0
    %5629 = vmatpush1.msra.mxu0 0.0
    %5630 = vmatprep.subr.mxu0 0.0
    %5631 = vmatpush1.msra.mxu0 0.0
    %5632 = vmatprep.subr.mxu0 0.0
    %5633 = vmatpush1.msra.mxu0 0.0
    %5634 = vmatprep.subr.mxu0 0.0
    %5635 = vmatpush1.msra.mxu0 0.0
    %5636 = vmatprep.subr.mxu0 0.0
    %5637 = vmatpush1.msra.mxu0 0.0
    %5638 = vmatprep.subr.mxu0 0.0
    %5639 = vmatpush1.msra.mxu0 0.0
    %5640 = vmatprep.subr.mxu0 0.0
    %5641 = vmatpush1.msra.mxu0 0.0
    %5642 = vmatprep.subr.mxu0 0.0
    %5643 = vmatpush1.msra.mxu0 0.0
    %5644 = vmatprep.subr.mxu0 0.0
    %5645 = vmatpush1.msra.mxu0 0.0
    %5646 = vmatprep.subr.mxu0 0.0
    %5647 = vmatpush1.msra.mxu0 0.0
    %5648 = vmatprep.subr.mxu0 0.0
    %5649 = vmatpush1.msra.mxu0 0.0
    %5650 = vmatprep.subr.mxu0 0.0
    %5651 = vmatpush1.msra.mxu0 0.0
    %5652 = vmatprep.subr.mxu0 0.0
    %5653 = vmatpush1.msra.mxu0 0.0
    %5654 = vmatprep.subr.mxu0 0.0
    %5655 = vmatpush1.msra.mxu0 0.0
    %5656 = vmatprep.subr.mxu0 0.0
    %5657 = vmatpush1.msra.mxu0 0.0
    %5658 = vmatprep.subr.mxu0 0.0
    %5659 = vmatpush1.msra.mxu0 0.0
    %5660 = vmatprep.subr.mxu0 0.0
    %5661 = vmatpush1.msra.mxu0 0.0
    %5662 = vmatprep.subr.mxu0 0.0
    %5663 = vmatpush1.msra.mxu0 0.0
    %5664 = vmatprep.subr.mxu0 0.0
    %5665 = vmatpush1.msra.mxu0 0.0
    %5666 = vmatprep.subr.mxu0 0.0
    %5667 = vmatpush1.msra.mxu0 0.0
    %5668 = vmatprep.subr.mxu0 0.0
    %5669 = vmatpush1.msra.mxu0 0.0
    %5670 = vmatprep.subr.mxu0 0.0
    %5671 = vmatpush1.msra.mxu0 0.0
    %5672 = vmatprep.subr.mxu0 0.0
    %5673 = vmatpush1.msra.mxu0 0.0
    %5674 = vmatprep.subr.mxu0 0.0
    %5675 = vmatpush1.msra.mxu0 0.0
    %5676 = vmatprep.subr.mxu0 0.0
    %5677 = vmatpush1.msra.mxu0 0.0
    %5678 = vmatprep.subr.mxu0 0.0
    %5679 = vmatpush1.msra.mxu0 0.0
    %5680 = vmatprep.subr.mxu0 0.0
    %5681 = vmatpush1.msra.mxu0 0.0
    %5682 = vmatprep.subr.mxu0 0.0
    %5683 = vmatpush1.msra.mxu0 0.0
    %5684 = vmatprep.subr.mxu0 0.0
    %5685 = vmatpush1.msra.mxu0 0.0
    %5686 = vmatprep.subr.mxu0 0.0
    %5687 = vmatpush1.msra.mxu0 0.0
    %5688 = vmatprep.subr.mxu0 0.0
    %5689 = vmatpush1.msra.mxu0 0.0
    %5690 = vmatprep.mubr.f32.mxu0 0.0
    %5691 = vmatmul.mubr.f32.gmra.mrb[0].mxu0 %v5467
    %v5692 = vpop.f32.mrb[0].mxu0
    %v5693 = vadd.f32 0.0, %v5692
    %v5694 = vpop.f32.mrb[0].mxu0
    %v5695 = vadd.f32 0.0, %v5694
    %5696 = vmatprep.mubr.f32.mxu0 0.0
    %5697 = vmatmul.mubr.f32.gmra.mrb[0].mxu0 %v5470
    %v5698 = vpop.f32.mrb[0].mxu0
    %v5699 = vadd.f32 0.0, %v5698
    %v5700 = vpop.f32.mrb[0].mxu0
    %v5701 = vadd.f32 0.0, %v5700
    %5702 = vdwg.mxu0
    %5703 = vmatprep.subr.mxu0 0.0
    %5704 = vmatpush1.msra.mxu0 %v5458
    %5705 = vmatprep.subr.mxu0 0.0
    %5706 = vmatpush1.msra.mxu0 0.0
    %5707 = vmatprep.subr.mxu0 0.0
    %5708 = vmatpush1.msra.mxu0 0.0
    %5709 = vmatprep.subr.mxu0 0.0
    %5710 = vmatpush1.msra.mxu0 0.0
    %5711 = vmatprep.subr.mxu0 0.0
    %5712 = vmatpush1.msra.mxu0 0.0
    %5713 = vmatprep.subr.mxu0 0.0
    %5714 = vmatpush1.msra.mxu0 0.0
    %5715 = vmatprep.subr.mxu0 0.0
    %5716 = vmatpush1.msra.mxu0 0.0
    %5717 = vmatprep.subr.mxu0 0.0
    %5718 = vmatpush1.msra.mxu0 0.0
    %5719 = vmatprep.subr.mxu0 0.0
    %5720 = vmatpush1.msra.mxu0 0.0
    %5721 = vmatprep.subr.mxu0 0.0
    %5722 = vmatpush1.msra.mxu0 0.0
    %5723 = vmatprep.subr.mxu0 0.0
    %5724 = vmatpush1.msra.mxu0 0.0
    %5725 = vmatprep.subr.mxu0 0.0
    %5726 = vmatpush1.msra.mxu0 0.0
    %5727 = vmatprep.subr.mxu0 0.0
    %5728 = vmatpush1.msra.mxu0 0.0
    %5729 = vmatprep.subr.mxu0 0.0
    %5730 = vmatpush1.msra.mxu0 0.0
    %5731 = vmatprep.subr.mxu0 0.0
    %5732 = vmatpush1.msra.mxu0 0.0
    %5733 = vmatprep.subr.mxu0 0.0
    %5734 = vmatpush1.msra.mxu0 0.0
    %5735 = vmatprep.subr.mxu0 0.0
    %5736 = vmatpush1.msra.mxu0 0.0
    %5737 = vmatprep.subr.mxu0 0.0
    %5738 = vmatpush1.msra.mxu0 0.0
    %5739 = vmatprep.subr.mxu0 0.0
    %5740 = vmatpush1.msra.mxu0 0.0
    %5741 = vmatprep.subr.mxu0 0.0
    %5742 = vmatpush1.msra.mxu0 0.0
    %5743 = vmatprep.subr.mxu0 0.0
    %5744 = vmatpush1.msra.mxu0 0.0
    %5745 = vmatprep.subr.mxu0 0.0
    %5746 = vmatpush1.msra.mxu0 0.0
    %5747 = vmatprep.subr.mxu0 0.0
    %5748 = vmatpush1.msra.mxu0 0.0
    %5749 = vmatprep.subr.mxu0 0.0
    %5750 = vmatpush1.msra.mxu0 0.0
    %5751 = vmatprep.subr.mxu0 0.0
    %5752 = vmatpush1.msra.mxu0 0.0
    %5753 = vmatprep.subr.mxu0 0.0
    %5754 = vmatpush1.msra.mxu0 0.0
    %5755 = vmatprep.subr.mxu0 0.0
    %5756 = vmatpush1.msra.mxu0 0.0
    %5757 = vmatprep.subr.mxu0 0.0
    %5758 = vmatpush1.msra.mxu0 0.0
    %5759 = vmatprep.subr.mxu0 0.0
    %5760 = vmatpush1.msra.mxu0 0.0
    %5761 = vmatprep.subr.mxu0 0.0
    %5762 = vmatpush1.msra.mxu0 0.0
    %5763 = vmatprep.subr.mxu0 0.0
    %5764 = vmatpush1.msra.mxu0 0.0
    %5765 = vmatprep.subr.mxu0 0.0
    %5766 = vmatpush1.msra.mxu0 0.0
    %5767 = vmatprep.mubr.f32.mxu0 0.0
    %5768 = vmatmul.mubr.f32.gmra.mrb[0].mxu0 %v5467
    %v5769 = vpop.f32.mrb[0].mxu0
    %v5770 = vadd.f32 0.0, %v5769
    %v5771 = vpop.f32.mrb[0].mxu0
    %5772 = vmatprep.mubr.f32.mxu0 0.0
    %5773 = vmatmul.mubr.f32.gmra.mrb[0].mxu0 %v5470
    %v5774 = vpop.f32.mrb[0].mxu0
    %v5775 = vadd.f32 0.0, %v5774
    %v5776 = vpop.f32.mrb[0].mxu0
    %5777 = vdwg.mxu0
    %v5778 = vadd.f32 %v5419, %v5539
    %v5779 = vadd.f32 %v5420, %v5541
    %v5780 = vadd.f32 %v5421, %v5616
    %v5781 = vadd.f32 %v5422, %v5618
    %v5782 = vadd.f32 %v5423, %v5693
    %v5783 = vadd.f32 %v5424, %v5695
    %v5784 = vadd.f32 %v5425, %v5770
    %v5785 = vadd.f32 %v5426, %v5545
    %v5786 = vadd.f32 %v5427, %v5547
    %v5787 = vadd.f32 %v5428, %v5622
    %v5788 = vadd.f32 %v5429, %v5624
    %v5789 = vadd.f32 %v5430, %v5699
    %v5790 = vadd.f32 %v5431, %v5701
    %v5791 = vadd.f32 %v5432, %v5775
    %s5792 = scalar_lea.vmem %s5, 112
    %v5793 = vld [vmem:[%s5792] sm:$0xff]
    %v5794 = vld [vmem:[%s5792 + $0x8] sm:$0xff]
    %5795 = vrot.lane.b32.xlu0 %v5061, 108
    %v5796 = vpop.permute.xlu0 %5795
    %5797 = vrot.lane.b32.xlu0 %v5062, 108
    %v5798 = vpop.permute.xlu0 %5797
    %5799 = vrot.lane.b32.xlu0 %v5063, 108
    %v5800 = vpop.permute.xlu0 %5799
    %5801 = vrot.lane.b32.xlu0 %v5064, 108
    %v5802 = vpop.permute.xlu0 %5801
    %5803 = vrot.lane.b32.xlu0 %v5065, 108
    %v5804 = vpop.permute.xlu0 %5803
    %5805 = vrot.lane.b32.xlu0 %v5066, 108
    %v5806 = vpop.permute.xlu0 %5805
    %5807 = vrot.lane.b32.xlu0 %v5067, 108
    %v5808 = vpop.permute.xlu0 %5807
    %5809 = vrot.lane.b32.xlu0 %v5068, 108
    %v5810 = vpop.permute.xlu0 %5809
    %v5811 = vsel %vm2432, %v5796, %v5798
    %v5812 = vsel %vm2432, %v5798, %v5800
    %v5813 = vsel %vm2432, %v5800, %v5802
    %v5814 = vsel %vm2432, %v5802, %v5804
    %v5815 = vsel %vm2432, %v5804, %v5806
    %v5816 = vsel %vm2432, %v5806, %v5808
    %v5817 = vsel %vm2432, %v5808, %v5810
    %v5826 = vsel %vm3356, %v5793, 0
    %v5829 = vsel %vm3356, %v5794, 0
    %5831 = vmatprep.subr.mxu0 %v5812
    %5832 = vmatpush1.msra.mxu0 %v5811
    %5833 = vmatprep.subr.mxu0 0.0
    %5834 = vmatpush1.msra.mxu0 0.0
    %5835 = vmatprep.subr.mxu0 0.0
    %5836 = vmatpush1.msra.mxu0 0.0
    %5837 = vmatprep.subr.mxu0 0.0
    %5838 = vmatpush1.msra.mxu0 0.0
    %5839 = vmatprep.subr.mxu0 0.0
    %5840 = vmatpush1.msra.mxu0 0.0
    %5841 = vmatprep.subr.mxu0 0.0
    %5842 = vmatpush1.msra.mxu0 0.0
    %5843 = vmatprep.subr.mxu0 0.0
    %5844 = vmatpush1.msra.mxu0 0.0
    %5845 = vmatprep.subr.mxu0 0.0
    %5846 = vmatpush1.msra.mxu0 0.0
    %5847 = vmatprep.subr.mxu0 0.0
    %5848 = vmatpush1.msra.mxu0 0.0
    %5849 = vmatprep.subr.mxu0 0.0
    %5850 = vmatpush1.msra.mxu0 0.0
    %5851 = vmatprep.subr.mxu0 0.0
    %5852 = vmatpush1.msra.mxu0 0.0
    %5853 = vmatprep.subr.mxu0 0.0
    %5854 = vmatpush1.msra.mxu0 0.0
    %5855 = vmatprep.subr.mxu0 0.0
    %5856 = vmatpush1.msra.mxu0 0.0
    %5857 = vmatprep.subr.mxu0 0.0
    %5858 = vmatpush1.msra.mxu0 0.0
    %5859 = vmatprep.subr.mxu0 0.0
    %5860 = vmatpush1.msra.mxu0 0.0
    %5861 = vmatprep.subr.mxu0 0.0
    %5862 = vmatpush1.msra.mxu0 0.0
    %5863 = vmatprep.subr.mxu0 0.0
    %5864 = vmatpush1.msra.mxu0 0.0
    %5865 = vmatprep.subr.mxu0 0.0
    %5866 = vmatpush1.msra.mxu0 0.0
    %5867 = vmatprep.subr.mxu0 0.0
    %5868 = vmatpush1.msra.mxu0 0.0
    %5869 = vmatprep.subr.mxu0 0.0
    %5870 = vmatpush1.msra.mxu0 0.0
    %5871 = vmatprep.subr.mxu0 0.0
    %5872 = vmatpush1.msra.mxu0 0.0
    %5873 = vmatprep.subr.mxu0 0.0
    %5874 = vmatpush1.msra.mxu0 0.0
    %5875 = vmatprep.subr.mxu0 0.0
    %5876 = vmatpush1.msra.mxu0 0.0
    %5877 = vmatprep.subr.mxu0 0.0
    %5878 = vmatpush1.msra.mxu0 0.0
    %5879 = vmatprep.subr.mxu0 0.0
    %5880 = vmatpush1.msra.mxu0 0.0
    %5881 = vmatprep.subr.mxu0 0.0
    %5882 = vmatpush1.msra.mxu0 0.0
    %5883 = vmatprep.subr.mxu0 0.0
    %5884 = vmatpush1.msra.mxu0 0.0
    %5885 = vmatprep.subr.mxu0 0.0
    %5886 = vmatpush1.msra.mxu0 0.0
    %5887 = vmatprep.subr.mxu0 0.0
    %5888 = vmatpush1.msra.mxu0 0.0
    %5889 = vmatprep.subr.mxu0 0.0
    %5890 = vmatpush1.msra.mxu0 0.0
    %5891 = vmatprep.subr.mxu0 0.0
    %5892 = vmatpush1.msra.mxu0 0.0
    %5893 = vmatprep.subr.mxu0 0.0
    %5894 = vmatpush1.msra.mxu0 0.0
    %5895 = vmatprep.mubr.f32.mxu0 0.0
    %5896 = vmatmul.mubr.f32.gmra.mrb[0].mxu0 %v5826
    %v5897 = vpop.f32.mrb[0].mxu0
    %v5898 = vadd.f32 0.0, %v5897
    %v5899 = vpop.f32.mrb[0].mxu0
    %v5900 = vadd.f32 0.0, %v5899
    %5901 = vmatprep.mubr.f32.mxu0 0.0
    %5902 = vmatmul.mubr.f32.gmra.mrb[0].mxu0 %v5829
    %v5903 = vpop.f32.mrb[0].mxu0
    %v5904 = vadd.f32 0.0, %v5903
    %v5905 = vpop.f32.mrb[0].mxu0
    %v5906 = vadd.f32 0.0, %v5905
    %5907 = vdwg.mxu0
    %5908 = vmatprep.subr.mxu0 %v5814
    %5909 = vmatpush1.msra.mxu0 %v5813
    %5910 = vmatprep.subr.mxu0 0.0
    %5911 = vmatpush1.msra.mxu0 0.0
    %5912 = vmatprep.subr.mxu0 0.0
    %5913 = vmatpush1.msra.mxu0 0.0
    %5914 = vmatprep.subr.mxu0 0.0
    %5915 = vmatpush1.msra.mxu0 0.0
    %5916 = vmatprep.subr.mxu0 0.0
    %5917 = vmatpush1.msra.mxu0 0.0
    %5918 = vmatprep.subr.mxu0 0.0
    %5919 = vmatpush1.msra.mxu0 0.0
    %5920 = vmatprep.subr.mxu0 0.0
    %5921 = vmatpush1.msra.mxu0 0.0
    %5922 = vmatprep.subr.mxu0 0.0
    %5923 = vmatpush1.msra.mxu0 0.0
    %5924 = vmatprep.subr.mxu0 0.0
    %5925 = vmatpush1.msra.mxu0 0.0
    %5926 = vmatprep.subr.mxu0 0.0
    %5927 = vmatpush1.msra.mxu0 0.0
    %5928 = vmatprep.subr.mxu0 0.0
    %5929 = vmatpush1.msra.mxu0 0.0
    %5930 = vmatprep.subr.mxu0 0.0
    %5931 = vmatpush1.msra.mxu0 0.0
    %5932 = vmatprep.subr.mxu0 0.0
    %5933 = vmatpush1.msra.mxu0 0.0
    %5934 = vmatprep.subr.mxu0 0.0
    %5935 = vmatpush1.msra.mxu0 0.0
    %5936 = vmatprep.subr.mxu0 0.0
    %5937 = vmatpush1.msra.mxu0 0.0
    %5938 = vmatprep.subr.mxu0 0.0
    %5939 = vmatpush1.msra.mxu0 0.0
    %5940 = vmatprep.subr.mxu0 0.0
    %5941 = vmatpush1.msra.mxu0 0.0
    %5942 = vmatprep.subr.mxu0 0.0
    %5943 = vmatpush1.msra.mxu0 0.0
    %5944 = vmatprep.subr.mxu0 0.0
    %5945 = vmatpush1.msra.mxu0 0.0
    %5946 = vmatprep.subr.mxu0 0.0
    %5947 = vmatpush1.msra.mxu0 0.0
    %5948 = vmatprep.subr.mxu0 0.0
    %5949 = vmatpush1.msra.mxu0 0.0
    %5950 = vmatprep.subr.mxu0 0.0
    %5951 = vmatpush1.msra.mxu0 0.0
    %5952 = vmatprep.subr.mxu0 0.0
    %5953 = vmatpush1.msra.mxu0 0.0
    %5954 = vmatprep.subr.mxu0 0.0
    %5955 = vmatpush1.msra.mxu0 0.0
    %5956 = vmatprep.subr.mxu0 0.0
    %5957 = vmatpush1.msra.mxu0 0.0
    %5958 = vmatprep.subr.mxu0 0.0
    %5959 = vmatpush1.msra.mxu0 0.0
    %5960 = vmatprep.subr.mxu0 0.0
    %5961 = vmatpush1.msra.mxu0 0.0
    %5962 = vmatprep.subr.mxu0 0.0
    %5963 = vmatpush1.msra.mxu0 0.0
    %5964 = vmatprep.subr.mxu0 0.0
    %5965 = vmatpush1.msra.mxu0 0.0
    %5966 = vmatprep.subr.mxu0 0.0
    %5967 = vmatpush1.msra.mxu0 0.0
    %5968 = vmatprep.subr.mxu0 0.0
    %5969 = vmatpush1.msra.mxu0 0.0
    %5970 = vmatprep.subr.mxu0 0.0
    %5971 = vmatpush1.msra.mxu0 0.0
    %5972 = vmatprep.mubr.f32.mxu0 0.0
    %5973 = vmatmul.mubr.f32.gmra.mrb[0].mxu0 %v5826
    %v5974 = vpop.f32.mrb[0].mxu0
    %v5975 = vadd.f32 0.0, %v5974
    %v5976 = vpop.f32.mrb[0].mxu0
    %v5977 = vadd.f32 0.0, %v5976
    %5978 = vmatprep.mubr.f32.mxu0 0.0
    %5979 = vmatmul.mubr.f32.gmra.mrb[0].mxu0 %v5829
    %v5980 = vpop.f32.mrb[0].mxu0
    %v5981 = vadd.f32 0.0, %v5980
    %v5982 = vpop.f32.mrb[0].mxu0
    %v5983 = vadd.f32 0.0, %v5982
    %5984 = vdwg.mxu0
    %5985 = vmatprep.subr.mxu0 %v5816
    %5986 = vmatpush1.msra.mxu0 %v5815
    %5987 = vmatprep.subr.mxu0 0.0
    %5988 = vmatpush1.msra.mxu0 0.0
    %5989 = vmatprep.subr.mxu0 0.0
    %5990 = vmatpush1.msra.mxu0 0.0
    %5991 = vmatprep.subr.mxu0 0.0
    %5992 = vmatpush1.msra.mxu0 0.0
    %5993 = vmatprep.subr.mxu0 0.0
    %5994 = vmatpush1.msra.mxu0 0.0
    %5995 = vmatprep.subr.mxu0 0.0
    %5996 = vmatpush1.msra.mxu0 0.0
    %5997 = vmatprep.subr.mxu0 0.0
    %5998 = vmatpush1.msra.mxu0 0.0
    %5999 = vmatprep.subr.mxu0 0.0
    %6000 = vmatpush1.msra.mxu0 0.0
    %6001 = vmatprep.subr.mxu0 0.0
    %6002 = vmatpush1.msra.mxu0 0.0
    %6003 = vmatprep.subr.mxu0 0.0
    %6004 = vmatpush1.msra.mxu0 0.0
    %6005 = vmatprep.subr.mxu0 0.0
    %6006 = vmatpush1.msra.mxu0 0.0
    %6007 = vmatprep.subr.mxu0 0.0
    %6008 = vmatpush1.msra.mxu0 0.0
    %6009 = vmatprep.subr.mxu0 0.0
    %6010 = vmatpush1.msra.mxu0 0.0
    %6011 = vmatprep.subr.mxu0 0.0
    %6012 = vmatpush1.msra.mxu0 0.0
    %6013 = vmatprep.subr.mxu0 0.0
    %6014 = vmatpush1.msra.mxu0 0.0
    %6015 = vmatprep.subr.mxu0 0.0
    %6016 = vmatpush1.msra.mxu0 0.0
    %6017 = vmatprep.subr.mxu0 0.0
    %6018 = vmatpush1.msra.mxu0 0.0
    %6019 = vmatprep.subr.mxu0 0.0
    %6020 = vmatpush1.msra.mxu0 0.0
    %6021 = vmatprep.subr.mxu0 0.0
    %6022 = vmatpush1.msra.mxu0 0.0
    %6023 = vmatprep.subr.mxu0 0.0
    %6024 = vmatpush1.msra.mxu0 0.0
    %6025 = vmatprep.subr.mxu0 0.0
    %6026 = vmatpush1.msra.mxu0 0.0
    %6027 = vmatprep.subr.mxu0 0.0
    %6028 = vmatpush1.msra.mxu0 0.0
    %6029 = vmatprep.subr.mxu0 0.0
    %6030 = vmatpush1.msra.mxu0 0.0
    %6031 = vmatprep.subr.mxu0 0.0
    %6032 = vmatpush1.msra.mxu0 0.0
    %6033 = vmatprep.subr.mxu0 0.0
    %6034 = vmatpush1.msra.mxu0 0.0
    %6035 = vmatprep.subr.mxu0 0.0
    %6036 = vmatpush1.msra.mxu0 0.0
    %6037 = vmatprep.subr.mxu0 0.0
    %6038 = vmatpush1.msra.mxu0 0.0
    %6039 = vmatprep.subr.mxu0 0.0
    %6040 = vmatpush1.msra.mxu0 0.0
    %6041 = vmatprep.subr.mxu0 0.0
    %6042 = vmatpush1.msra.mxu0 0.0
    %6043 = vmatprep.subr.mxu0 0.0
    %6044 = vmatpush1.msra.mxu0 0.0
    %6045 = vmatprep.subr.mxu0 0.0
    %6046 = vmatpush1.msra.mxu0 0.0
    %6047 = vmatprep.subr.mxu0 0.0
    %6048 = vmatpush1.msra.mxu0 0.0
    %6049 = vmatprep.mubr.f32.mxu0 0.0
    %6050 = vmatmul.mubr.f32.gmra.mrb[0].mxu0 %v5826
    %v6051 = vpop.f32.mrb[0].mxu0
    %v6052 = vadd.f32 0.0, %v6051
    %v6053 = vpop.f32.mrb[0].mxu0
    %v6054 = vadd.f32 0.0, %v6053
    %6055 = vmatprep.mubr.f32.mxu0 0.0
    %6056 = vmatmul.mubr.f32.gmra.mrb[0].mxu0 %v5829
    %v6057 = vpop.f32.mrb[0].mxu0
    %v6058 = vadd.f32 0.0, %v6057
    %v6059 = vpop.f32.mrb[0].mxu0
    %v6060 = vadd.f32 0.0, %v6059
    %6061 = vdwg.mxu0
    %6062 = vmatprep.subr.mxu0 0.0
    %6063 = vmatpush1.msra.mxu0 %v5817
    %6064 = vmatprep.subr.mxu0 0.0
    %6065 = vmatpush1.msra.mxu0 0.0
    %6066 = vmatprep.subr.mxu0 0.0
    %6067 = vmatpush1.msra.mxu0 0.0
    %6068 = vmatprep.subr.mxu0 0.0
    %6069 = vmatpush1.msra.mxu0 0.0
    %6070 = vmatprep.subr.mxu0 0.0
    %6071 = vmatpush1.msra.mxu0 0.0
    %6072 = vmatprep.subr.mxu0 0.0
    %6073 = vmatpush1.msra.mxu0 0.0
    %6074 = vmatprep.subr.mxu0 0.0
    %6075 = vmatpush1.msra.mxu0 0.0
    %6076 = vmatprep.subr.mxu0 0.0
    %6077 = vmatpush1.msra.mxu0 0.0
    %6078 = vmatprep.subr.mxu0 0.0
    %6079 = vmatpush1.msra.mxu0 0.0
    %6080 = vmatprep.subr.mxu0 0.0
    %6081 = vmatpush1.msra.mxu0 0.0
    %6082 = vmatprep.subr.mxu0 0.0
    %6083 = vmatpush1.msra.mxu0 0.0
    %6084 = vmatprep.subr.mxu0 0.0
    %6085 = vmatpush1.msra.mxu0 0.0
    %6086 = vmatprep.subr.mxu0 0.0
    %6087 = vmatpush1.msra.mxu0 0.0
    %6088 = vmatprep.subr.mxu0 0.0
    %6089 = vmatpush1.msra.mxu0 0.0
    %6090 = vmatprep.subr.mxu0 0.0
    %6091 = vmatpush1.msra.mxu0 0.0
    %6092 = vmatprep.subr.mxu0 0.0
    %6093 = vmatpush1.msra.mxu0 0.0
    %6094 = vmatprep.subr.mxu0 0.0
    %6095 = vmatpush1.msra.mxu0 0.0
    %6096 = vmatprep.subr.mxu0 0.0
    %6097 = vmatpush1.msra.mxu0 0.0
    %6098 = vmatprep.subr.mxu0 0.0
    %6099 = vmatpush1.msra.mxu0 0.0
    %6100 = vmatprep.subr.mxu0 0.0
    %6101 = vmatpush1.msra.mxu0 0.0
    %6102 = vmatprep.subr.mxu0 0.0
    %6103 = vmatpush1.msra.mxu0 0.0
    %6104 = vmatprep.subr.mxu0 0.0
    %6105 = vmatpush1.msra.mxu0 0.0
    %6106 = vmatprep.subr.mxu0 0.0
    %6107 = vmatpush1.msra.mxu0 0.0
    %6108 = vmatprep.subr.mxu0 0.0
    %6109 = vmatpush1.msra.mxu0 0.0
    %6110 = vmatprep.subr.mxu0 0.0
    %6111 = vmatpush1.msra.mxu0 0.0
    %6112 = vmatprep.subr.mxu0 0.0
    %6113 = vmatpush1.msra.mxu0 0.0
    %6114 = vmatprep.subr.mxu0 0.0
    %6115 = vmatpush1.msra.mxu0 0.0
    %6116 = vmatprep.subr.mxu0 0.0
    %6117 = vmatpush1.msra.mxu0 0.0
    %6118 = vmatprep.subr.mxu0 0.0
    %6119 = vmatpush1.msra.mxu0 0.0
    %6120 = vmatprep.subr.mxu0 0.0
    %6121 = vmatpush1.msra.mxu0 0.0
    %6122 = vmatprep.subr.mxu0 0.0
    %6123 = vmatpush1.msra.mxu0 0.0
    %6124 = vmatprep.subr.mxu0 0.0
    %6125 = vmatpush1.msra.mxu0 0.0
    %6126 = vmatprep.mubr.f32.mxu0 0.0
    %6127 = vmatmul.mubr.f32.gmra.mrb[0].mxu0 %v5826
    %v6128 = vpop.f32.mrb[0].mxu0
    %v6129 = vadd.f32 0.0, %v6128
    %v6130 = vpop.f32.mrb[0].mxu0
    %6131 = vmatprep.mubr.f32.mxu0 0.0
    %6132 = vmatmul.mubr.f32.gmra.mrb[0].mxu0 %v5829
    %v6133 = vpop.f32.mrb[0].mxu0
    %v6134 = vadd.f32 0.0, %v6133
    %v6135 = vpop.f32.mrb[0].mxu0
    %6136 = vdwg.mxu0
    %v6137 = vadd.f32 %v5778, %v5898
    %v6138 = vadd.f32 %v5779, %v5900
    %v6139 = vadd.f32 %v5780, %v5975
    %v6140 = vadd.f32 %v5781, %v5977
    %v6141 = vadd.f32 %v5782, %v6052
    %v6142 = vadd.f32 %v5783, %v6054
    %v6143 = vadd.f32 %v5784, %v6129
    %v6144 = vadd.f32 %v5785, %v5904
    %v6145 = vadd.f32 %v5786, %v5906
    %v6146 = vadd.f32 %v5787, %v5981
    %v6147 = vadd.f32 %v5788, %v5983
    %v6148 = vadd.f32 %v5789, %v6058
    %v6149 = vadd.f32 %v5790, %v6060
    %v6150 = vadd.f32 %v5791, %v6134
    %s6151 = scalar_lea.vmem %s5, 128
    %v6152 = vld [vmem:[%s6151] sm:$0xff]
    %v6153 = vld [vmem:[%s6151 + $0x8] sm:$0xff]
    %6154 = vrot.lane.b32.xlu0 %v5061, 107
    %v6155 = vpop.permute.xlu0 %6154
    %6156 = vrot.lane.b32.xlu0 %v5062, 107
    %v6157 = vpop.permute.xlu0 %6156
    %6158 = vrot.lane.b32.xlu0 %v5063, 107
    %v6159 = vpop.permute.xlu0 %6158
    %6160 = vrot.lane.b32.xlu0 %v5064, 107
    %v6161 = vpop.permute.xlu0 %6160
    %6162 = vrot.lane.b32.xlu0 %v5065, 107
    %v6163 = vpop.permute.xlu0 %6162
    %6164 = vrot.lane.b32.xlu0 %v5066, 107
    %v6165 = vpop.permute.xlu0 %6164
    %6166 = vrot.lane.b32.xlu0 %v5067, 107
    %v6167 = vpop.permute.xlu0 %6166
    %6168 = vrot.lane.b32.xlu0 %v5068, 107
    %v6169 = vpop.permute.xlu0 %6168
    %v6170 = vsel %vm2777, %v6155, %v6157
    %v6171 = vsel %vm2777, %v6157, %v6159
    %v6172 = vsel %vm2777, %v6159, %v6161
    %v6173 = vsel %vm2777, %v6161, %v6163
    %v6174 = vsel %vm2777, %v6163, %v6165
    %v6175 = vsel %vm2777, %v6165, %v6167
    %v6176 = vsel %vm2777, %v6167, %v6169
    %v6185 = vsel %vm3356, %v6152, 0
    %v6188 = vsel %vm3356, %v6153, 0
    %6190 = vmatprep.subr.mxu0 %v6171
    %6191 = vmatpush1.msra.mxu0 %v6170
    %6192 = vmatprep.subr.mxu0 0.0
    %6193 = vmatpush1.msra.mxu0 0.0
    %6194 = vmatprep.subr.mxu0 0.0
    %6195 = vmatpush1.msra.mxu0 0.0
    %6196 = vmatprep.subr.mxu0 0.0
    %6197 = vmatpush1.msra.mxu0 0.0
    %6198 = vmatprep.subr.mxu0 0.0
    %6199 = vmatpush1.msra.mxu0 0.0
    %6200 = vmatprep.subr.mxu0 0.0
    %6201 = vmatpush1.msra.mxu0 0.0
    %6202 = vmatprep.subr.mxu0 0.0
    %6203 = vmatpush1.msra.mxu0 0.0
    %6204 = vmatprep.subr.mxu0 0.0
    %6205 = vmatpush1.msra.mxu0 0.0
    %6206 = vmatprep.subr.mxu0 0.0
    %6207 = vmatpush1.msra.mxu0 0.0
    %6208 = vmatprep.subr.mxu0 0.0
    %6209 = vmatpush1.msra.mxu0 0.0
    %6210 = vmatprep.subr.mxu0 0.0
    %6211 = vmatpush1.msra.mxu0 0.0
    %6212 = vmatprep.subr.mxu0 0.0
    %6213 = vmatpush1.msra.mxu0 0.0
    %6214 = vmatprep.subr.mxu0 0.0
    %6215 = vmatpush1.msra.mxu0 0.0
    %6216 = vmatprep.subr.mxu0 0.0
    %6217 = vmatpush1.msra.mxu0 0.0
    %6218 = vmatprep.subr.mxu0 0.0
    %6219 = vmatpush1.msra.mxu0 0.0
    %6220 = vmatprep.subr.mxu0 0.0
    %6221 = vmatpush1.msra.mxu0 0.0
    %6222 = vmatprep.subr.mxu0 0.0
    %6223 = vmatpush1.msra.mxu0 0.0
    %6224 = vmatprep.subr.mxu0 0.0
    %6225 = vmatpush1.msra.mxu0 0.0
    %6226 = vmatprep.subr.mxu0 0.0
    %6227 = vmatpush1.msra.mxu0 0.0
    %6228 = vmatprep.subr.mxu0 0.0
    %6229 = vmatpush1.msra.mxu0 0.0
    %6230 = vmatprep.subr.mxu0 0.0
    %6231 = vmatpush1.msra.mxu0 0.0
    %6232 = vmatprep.subr.mxu0 0.0
    %6233 = vmatpush1.msra.mxu0 0.0
    %6234 = vmatprep.subr.mxu0 0.0
    %6235 = vmatpush1.msra.mxu0 0.0
    %6236 = vmatprep.subr.mxu0 0.0
    %6237 = vmatpush1.msra.mxu0 0.0
    %6238 = vmatprep.subr.mxu0 0.0
    %6239 = vmatpush1.msra.mxu0 0.0
    %6240 = vmatprep.subr.mxu0 0.0
    %6241 = vmatpush1.msra.mxu0 0.0
    %6242 = vmatprep.subr.mxu0 0.0
    %6243 = vmatpush1.msra.mxu0 0.0
    %6244 = vmatprep.subr.mxu0 0.0
    %6245 = vmatpush1.msra.mxu0 0.0
    %6246 = vmatprep.subr.mxu0 0.0
    %6247 = vmatpush1.msra.mxu0 0.0
    %6248 = vmatprep.subr.mxu0 0.0
    %6249 = vmatpush1.msra.mxu0 0.0
    %6250 = vmatprep.subr.mxu0 0.0
    %6251 = vmatpush1.msra.mxu0 0.0
    %6252 = vmatprep.subr.mxu0 0.0
    %6253 = vmatpush1.msra.mxu0 0.0
    %6254 = vmatprep.mubr.f32.mxu0 0.0
    %6255 = vmatmul.mubr.f32.gmra.mrb[0].mxu0 %v6185
    %v6256 = vpop.f32.mrb[0].mxu0
    %v6257 = vadd.f32 0.0, %v6256
    %v6258 = vpop.f32.mrb[0].mxu0
    %v6259 = vadd.f32 0.0, %v6258
    %6260 = vmatprep.mubr.f32.mxu0 0.0
    %6261 = vmatmul.mubr.f32.gmra.mrb[0].mxu0 %v6188
    %v6262 = vpop.f32.mrb[0].mxu0
    %v6263 = vadd.f32 0.0, %v6262
    %v6264 = vpop.f32.mrb[0].mxu0
    %v6265 = vadd.f32 0.0, %v6264
    %6266 = vdwg.mxu0
    %6267 = vmatprep.subr.mxu0 %v6173
    %6268 = vmatpush1.msra.mxu0 %v6172
    %6269 = vmatprep.subr.mxu0 0.0
    %6270 = vmatpush1.msra.mxu0 0.0
    %6271 = vmatprep.subr.mxu0 0.0
    %6272 = vmatpush1.msra.mxu0 0.0
    %6273 = vmatprep.subr.mxu0 0.0
    %6274 = vmatpush1.msra.mxu0 0.0
    %6275 = vmatprep.subr.mxu0 0.0
    %6276 = vmatpush1.msra.mxu0 0.0
    %6277 = vmatprep.subr.mxu0 0.0
    %6278 = vmatpush1.msra.mxu0 0.0
    %6279 = vmatprep.subr.mxu0 0.0
    %6280 = vmatpush1.msra.mxu0 0.0
    %6281 = vmatprep.subr.mxu0 0.0
    %6282 = vmatpush1.msra.mxu0 0.0
    %6283 = vmatprep.subr.mxu0 0.0
    %6284 = vmatpush1.msra.mxu0 0.0
    %6285 = vmatprep.subr.mxu0 0.0
    %6286 = vmatpush1.msra.mxu0 0.0
    %6287 = vmatprep.subr.mxu0 0.0
    %6288 = vmatpush1.msra.mxu0 0.0
    %6289 = vmatprep.subr.mxu0 0.0
    %6290 = vmatpush1.msra.mxu0 0.0
    %6291 = vmatprep.subr.mxu0 0.0
    %6292 = vmatpush1.msra.mxu0 0.0
    %6293 = vmatprep.subr.mxu0 0.0
    %6294 = vmatpush1.msra.mxu0 0.0
    %6295 = vmatprep.subr.mxu0 0.0
    %6296 = vmatpush1.msra.mxu0 0.0
    %6297 = vmatprep.subr.mxu0 0.0
    %6298 = vmatpush1.msra.mxu0 0.0
    %6299 = vmatprep.subr.mxu0 0.0
    %6300 = vmatpush1.msra.mxu0 0.0
    %6301 = vmatprep.subr.mxu0 0.0
    %6302 = vmatpush1.msra.mxu0 0.0
    %6303 = vmatprep.subr.mxu0 0.0
    %6304 = vmatpush1.msra.mxu0 0.0
    %6305 = vmatprep.subr.mxu0 0.0
    %6306 = vmatpush1.msra.mxu0 0.0
    %6307 = vmatprep.subr.mxu0 0.0
    %6308 = vmatpush1.msra.mxu0 0.0
    %6309 = vmatprep.subr.mxu0 0.0
    %6310 = vmatpush1.msra.mxu0 0.0
    %6311 = vmatprep.subr.mxu0 0.0
    %6312 = vmatpush1.msra.mxu0 0.0
    %6313 = vmatprep.subr.mxu0 0.0
    %6314 = vmatpush1.msra.mxu0 0.0
    %6315 = vmatprep.subr.mxu0 0.0
    %6316 = vmatpush1.msra.mxu0 0.0
    %6317 = vmatprep.subr.mxu0 0.0
    %6318 = vmatpush1.msra.mxu0 0.0
    %6319 = vmatprep.subr.mxu0 0.0
    %6320 = vmatpush1.msra.mxu0 0.0
    %6321 = vmatprep.subr.mxu0 0.0
    %6322 = vmatpush1.msra.mxu0 0.0
    %6323 = vmatprep.subr.mxu0 0.0
    %6324 = vmatpush1.msra.mxu0 0.0
    %6325 = vmatprep.subr.mxu0 0.0
    %6326 = vmatpush1.msra.mxu0 0.0
    %6327 = vmatprep.subr.mxu0 0.0
    %6328 = vmatpush1.msra.mxu0 0.0
    %6329 = vmatprep.subr.mxu0 0.0
    %6330 = vmatpush1.msra.mxu0 0.0
    %6331 = vmatprep.mubr.f32.mxu0 0.0
    %6332 = vmatmul.mubr.f32.gmra.mrb[0].mxu0 %v6185
    %v6333 = vpop.f32.mrb[0].mxu0
    %v6334 = vadd.f32 0.0, %v6333
    %v6335 = vpop.f32.mrb[0].mxu0
    %v6336 = vadd.f32 0.0, %v6335
    %6337 = vmatprep.mubr.f32.mxu0 0.0
    %6338 = vmatmul.mubr.f32.gmra.mrb[0].mxu0 %v6188
    %v6339 = vpop.f32.mrb[0].mxu0
    %v6340 = vadd.f32 0.0, %v6339
    %v6341 = vpop.f32.mrb[0].mxu0
    %v6342 = vadd.f32 0.0, %v6341
    %6343 = vdwg.mxu0
    %6344 = vmatprep.subr.mxu0 %v6175
    %6345 = vmatpush1.msra.mxu0 %v6174
    %6346 = vmatprep.subr.mxu0 0.0
    %6347 = vmatpush1.msra.mxu0 0.0
    %6348 = vmatprep.subr.mxu0 0.0
    %6349 = vmatpush1.msra.mxu0 0.0
    %6350 = vmatprep.subr.mxu0 0.0
    %6351 = vmatpush1.msra.mxu0 0.0
    %6352 = vmatprep.subr.mxu0 0.0
    %6353 = vmatpush1.msra.mxu0 0.0
    %6354 = vmatprep.subr.mxu0 0.0
    %6355 = vmatpush1.msra.mxu0 0.0
    %6356 = vmatprep.subr.mxu0 0.0
    %6357 = vmatpush1.msra.mxu0 0.0
    %6358 = vmatprep.subr.mxu0 0.0
    %6359 = vmatpush1.msra.mxu0 0.0
    %6360 = vmatprep.subr.mxu0 0.0
    %6361 = vmatpush1.msra.mxu0 0.0
    %6362 = vmatprep.subr.mxu0 0.0
    %6363 = vmatpush1.msra.mxu0 0.0
    %6364 = vmatprep.subr.mxu0 0.0
    %6365 = vmatpush1.msra.mxu0 0.0
    %6366 = vmatprep.subr.mxu0 0.0
    %6367 = vmatpush1.msra.mxu0 0.0
    %6368 = vmatprep.subr.mxu0 0.0
    %6369 = vmatpush1.msra.mxu0 0.0
    %6370 = vmatprep.subr.mxu0 0.0
    %6371 = vmatpush1.msra.mxu0 0.0
    %6372 = vmatprep.subr.mxu0 0.0
    %6373 = vmatpush1.msra.mxu0 0.0
    %6374 = vmatprep.subr.mxu0 0.0
    %6375 = vmatpush1.msra.mxu0 0.0
    %6376 = vmatprep.subr.mxu0 0.0
    %6377 = vmatpush1.msra.mxu0 0.0
    %6378 = vmatprep.subr.mxu0 0.0
    %6379 = vmatpush1.msra.mxu0 0.0
    %6380 = vmatprep.subr.mxu0 0.0
    %6381 = vmatpush1.msra.mxu0 0.0
    %6382 = vmatprep.subr.mxu0 0.0
    %6383 = vmatpush1.msra.mxu0 0.0
    %6384 = vmatprep.subr.mxu0 0.0
    %6385 = vmatpush1.msra.mxu0 0.0
    %6386 = vmatprep.subr.mxu0 0.0
    %6387 = vmatpush1.msra.mxu0 0.0
    %6388 = vmatprep.subr.mxu0 0.0
    %6389 = vmatpush1.msra.mxu0 0.0
    %6390 = vmatprep.subr.mxu0 0.0
    %6391 = vmatpush1.msra.mxu0 0.0
    %6392 = vmatprep.subr.mxu0 0.0
    %6393 = vmatpush1.msra.mxu0 0.0
    %6394 = vmatprep.subr.mxu0 0.0
    %6395 = vmatpush1.msra.mxu0 0.0
    %6396 = vmatprep.subr.mxu0 0.0
    %6397 = vmatpush1.msra.mxu0 0.0
    %6398 = vmatprep.subr.mxu0 0.0
    %6399 = vmatpush1.msra.mxu0 0.0
    %6400 = vmatprep.subr.mxu0 0.0
    %6401 = vmatpush1.msra.mxu0 0.0
    %6402 = vmatprep.subr.mxu0 0.0
    %6403 = vmatpush1.msra.mxu0 0.0
    %6404 = vmatprep.subr.mxu0 0.0
    %6405 = vmatpush1.msra.mxu0 0.0
    %6406 = vmatprep.subr.mxu0 0.0
    %6407 = vmatpush1.msra.mxu0 0.0
    %6408 = vmatprep.mubr.f32.mxu0 0.0
    %6409 = vmatmul.mubr.f32.gmra.mrb[0].mxu0 %v6185
    %v6410 = vpop.f32.mrb[0].mxu0
    %v6411 = vadd.f32 0.0, %v6410
    %v6412 = vpop.f32.mrb[0].mxu0
    %v6413 = vadd.f32 0.0, %v6412
    %6414 = vmatprep.mubr.f32.mxu0 0.0
    %6415 = vmatmul.mubr.f32.gmra.mrb[0].mxu0 %v6188
    %v6416 = vpop.f32.mrb[0].mxu0
    %v6417 = vadd.f32 0.0, %v6416
    %v6418 = vpop.f32.mrb[0].mxu0
    %v6419 = vadd.f32 0.0, %v6418
    %6420 = vdwg.mxu0
    %6421 = vmatprep.subr.mxu0 0.0
    %6422 = vmatpush1.msra.mxu0 %v6176
    %6423 = vmatprep.subr.mxu0 0.0
    %6424 = vmatpush1.msra.mxu0 0.0
    %6425 = vmatprep.subr.mxu0 0.0
    %6426 = vmatpush1.msra.mxu0 0.0
    %6427 = vmatprep.subr.mxu0 0.0
    %6428 = vmatpush1.msra.mxu0 0.0
    %6429 = vmatprep.subr.mxu0 0.0
    %6430 = vmatpush1.msra.mxu0 0.0
    %6431 = vmatprep.subr.mxu0 0.0
    %6432 = vmatpush1.msra.mxu0 0.0
    %6433 = vmatprep.subr.mxu0 0.0
    %6434 = vmatpush1.msra.mxu0 0.0
    %6435 = vmatprep.subr.mxu0 0.0
    %6436 = vmatpush1.msra.mxu0 0.0
    %6437 = vmatprep.subr.mxu0 0.0
    %6438 = vmatpush1.msra.mxu0 0.0
    %6439 = vmatprep.subr.mxu0 0.0
    %6440 = vmatpush1.msra.mxu0 0.0
    %6441 = vmatprep.subr.mxu0 0.0
    %6442 = vmatpush1.msra.mxu0 0.0
    %6443 = vmatprep.subr.mxu0 0.0
    %6444 = vmatpush1.msra.mxu0 0.0
    %6445 = vmatprep.subr.mxu0 0.0
    %6446 = vmatpush1.msra.mxu0 0.0
    %6447 = vmatprep.subr.mxu0 0.0
    %6448 = vmatpush1.msra.mxu0 0.0
    %6449 = vmatprep.subr.mxu0 0.0
    %6450 = vmatpush1.msra.mxu0 0.0
    %6451 = vmatprep.subr.mxu0 0.0
    %6452 = vmatpush1.msra.mxu0 0.0
    %6453 = vmatprep.subr.mxu0 0.0
    %6454 = vmatpush1.msra.mxu0 0.0
    %6455 = vmatprep.subr.mxu0 0.0
    %6456 = vmatpush1.msra.mxu0 0.0
    %6457 = vmatprep.subr.mxu0 0.0
    %6458 = vmatpush1.msra.mxu0 0.0
    %6459 = vmatprep.subr.mxu0 0.0
    %6460 = vmatpush1.msra.mxu0 0.0
    %6461 = vmatprep.subr.mxu0 0.0
    %6462 = vmatpush1.msra.mxu0 0.0
    %6463 = vmatprep.subr.mxu0 0.0
    %6464 = vmatpush1.msra.mxu0 0.0
    %6465 = vmatprep.subr.mxu0 0.0
    %6466 = vmatpush1.msra.mxu0 0.0
    %6467 = vmatprep.subr.mxu0 0.0
    %6468 = vmatpush1.msra.mxu0 0.0
    %6469 = vmatprep.subr.mxu0 0.0
    %6470 = vmatpush1.msra.mxu0 0.0
    %6471 = vmatprep.subr.mxu0 0.0
    %6472 = vmatpush1.msra.mxu0 0.0
    %6473 = vmatprep.subr.mxu0 0.0
    %6474 = vmatpush1.msra.mxu0 0.0
    %6475 = vmatprep.subr.mxu0 0.0
    %6476 = vmatpush1.msra.mxu0 0.0
    %6477 = vmatprep.subr.mxu0 0.0
    %6478 = vmatpush1.msra.mxu0 0.0
    %6479 = vmatprep.subr.mxu0 0.0
    %6480 = vmatpush1.msra.mxu0 0.0
    %6481 = vmatprep.subr.mxu0 0.0
    %6482 = vmatpush1.msra.mxu0 0.0
    %6483 = vmatprep.subr.mxu0 0.0
    %6484 = vmatpush1.msra.mxu0 0.0
    %6485 = vmatprep.mubr.f32.mxu0 0.0
    %6486 = vmatmul.mubr.f32.gmra.mrb[0].mxu0 %v6185
    %v6487 = vpop.f32.mrb[0].mxu0
    %v6488 = vadd.f32 0.0, %v6487
    %v6489 = vpop.f32.mrb[0].mxu0
    %6490 = vmatprep.mubr.f32.mxu0 0.0
    %6491 = vmatmul.mubr.f32.gmra.mrb[0].mxu0 %v6188
    %v6492 = vpop.f32.mrb[0].mxu0
    %v6493 = vadd.f32 0.0, %v6492
    %v6494 = vpop.f32.mrb[0].mxu0
    %6495 = vdwg.mxu0
    %v6496 = vadd.f32 %v6137, %v6257
    %v6497 = vadd.f32 %v6138, %v6259
    %v6498 = vadd.f32 %v6139, %v6334
    %v6499 = vadd.f32 %v6140, %v6336
    %v6500 = vadd.f32 %v6141, %v6411
    %v6501 = vadd.f32 %v6142, %v6413
    %v6502 = vadd.f32 %v6143, %v6488
    %v6503 = vadd.f32 %v6144, %v6263
    %v6504 = vadd.f32 %v6145, %v6265
    %v6505 = vadd.f32 %v6146, %v6340
    %v6506 = vadd.f32 %v6147, %v6342
    %v6507 = vadd.f32 %v6148, %v6417
    %v6508 = vadd.f32 %v6149, %v6419
    %v6509 = vadd.f32 %v6150, %v6493
    %v6510 = vld [vmem:[%s6] sm:$0xff]
    %v6511 = vld [vmem:[%s6 + $0x8] sm:$0xff]
    %6513 = vset.pattern.permute.xlu0 0
    %6514 = vperm.xlu0 %6513, %v6510
    %v6515 = vpop.permute.xlu0 %6514
    %6518 = vset.pattern.permute.xlu0 0
    %6519 = vperm.xlu0 %6518, %v6511
    %v6520 = vpop.permute.xlu0 %6519
    %v6522 = vadd.f32 %v6496, %v6515
    %v6523 = vadd.f32 %v6497, %v6515
    %v6524 = vadd.f32 %v6498, %v6515
    %v6525 = vadd.f32 %v6499, %v6515
    %v6526 = vadd.f32 %v6500, %v6515
    %v6527 = vadd.f32 %v6501, %v6515
    %v6528 = vadd.f32 %v6502, %v6515
    %v6529 = vadd.f32 %v6503, %v6520
    %v6530 = vadd.f32 %v6504, %v6520
    %v6531 = vadd.f32 %v6505, %v6520
    %v6532 = vadd.f32 %v6506, %v6520
    %v6533 = vadd.f32 %v6507, %v6520
    %v6534 = vadd.f32 %v6508, %v6520
    %v6535 = vadd.f32 %v6509, %v6520
    %vm6536 = vcmp.gt.f32.partialorder %v6522, 0.0
    %vm6537 = vcmp.gt.f32.partialorder %v6523, 0.0
    %vm6538 = vcmp.gt.f32.partialorder %v6524, 0.0
    %vm6539 = vcmp.gt.f32.partialorder %v6525, 0.0
    %vm6540 = vcmp.gt.f32.partialorder %v6526, 0.0
    %vm6541 = vcmp.gt.f32.partialorder %v6527, 0.0
    %vm6542 = vcmp.gt.f32.partialorder %v6528, 0.0
    %vm6543 = vcmp.gt.f32.partialorder %v6529, 0.0
    %vm6544 = vcmp.gt.f32.partialorder %v6530, 0.0
    %vm6545 = vcmp.gt.f32.partialorder %v6531, 0.0
    %vm6546 = vcmp.gt.f32.partialorder %v6532, 0.0
    %vm6547 = vcmp.gt.f32.partialorder %v6533, 0.0
    %vm6548 = vcmp.gt.f32.partialorder %v6534, 0.0
    %vm6549 = vcmp.gt.f32.partialorder %v6535, 0.0
    %v6550 = vmul.f32 %v6522, 0.01
    %v6551 = vmul.f32 %v6523, 0.01
    %v6552 = vmul.f32 %v6524, 0.01
    %v6553 = vmul.f32 %v6525, 0.01
    %v6554 = vmul.f32 %v6526, 0.01
    %v6555 = vmul.f32 %v6527, 0.01
    %v6556 = vmul.f32 %v6528, 0.01
    %v6557 = vmul.f32 %v6529, 0.01
    %v6558 = vmul.f32 %v6530, 0.01
    %v6559 = vmul.f32 %v6531, 0.01
    %v6560 = vmul.f32 %v6532, 0.01
    %v6561 = vmul.f32 %v6533, 0.01
    %v6562 = vmul.f32 %v6534, 0.01
    %v6563 = vmul.f32 %v6535, 0.01
    %v6564 = vsel %vm6536, %v6522, %v6550
    %v6565 = vsel %vm6537, %v6523, %v6551
    %v6566 = vsel %vm6538, %v6524, %v6552
    %v6567 = vsel %vm6539, %v6525, %v6553
    %v6568 = vsel %vm6540, %v6526, %v6554
    %v6569 = vsel %vm6541, %v6527, %v6555
    %v6570 = vsel %vm6542, %v6528, %v6556
    %v6571 = vsel %vm6543, %v6529, %v6557
    %v6572 = vsel %vm6544, %v6530, %v6558
    %v6573 = vsel %vm6545, %v6531, %v6559
    %v6574 = vsel %vm6546, %v6532, %v6560
    %v6575 = vsel %vm6547, %v6533, %v6561
    %v6576 = vsel %vm6548, %v6534, %v6562
    %v6577 = vsel %vm6549, %v6535, %v6563
    %v6578 = vadd.f32 %v6564, %v6571
    %v6579 = vadd.f32 %v6565, %v6572
    %v6580 = vadd.f32 %v6566, %v6573
    %v6581 = vadd.f32 %v6567, %v6574
    %v6582 = vadd.f32 %v6568, %v6575
    %v6583 = vadd.f32 %v6569, %v6576
    %v6584 = vadd.f32 %v6570, %v6577
    %v6585 = vmul.f32 %v6578, %v3130
    %v6586 = vmul.f32 %v6579, %v3134
    %v6587 = vmul.f32 %v6580, %v3138
    %v6588 = vmul.f32 %v6581, %v3142
    %v6589 = vmul.f32 %v6582, %v3146
    %v6590 = vmul.f32 %v6583, %v3150
    %v6591 = vmul.f32 %v6584, %v3154
    %v6592 = vadd.f32 %v6585, %v6586
    %v6593 = vadd.f32 %v6592, %v6587
    %v6594 = vadd.f32 %v6593, %v6588
    %v6595 = vadd.f32 %v6594, %v6589
    %v6596 = vadd.f32 %v6595, %v6590
    %v6597 = vadd.f32 %v6596, %v6591
    %6598 = vadd.xlane.f32.xlu0 %v6597
    %v6599 = vpop.xlane.xlu0 %6598
    %v6600 = vmul.f32 %v6585, %v6585
    %v6601 = vmul.f32 %v6586, %v6586
    %v6602 = vmul.f32 %v6587, %v6587
    %v6603 = vmul.f32 %v6588, %v6588
    %v6604 = vmul.f32 %v6589, %v6589
    %v6605 = vmul.f32 %v6590, %v6590
    %v6606 = vmul.f32 %v6591, %v6591
    %v6607 = vadd.f32 %v6600, %v6601
    %v6608 = vadd.f32 %v6607, %v6602
    %v6609 = vadd.f32 %v6608, %v6603
    %v6610 = vadd.f32 %v6609, %v6604
    %v6611 = vadd.f32 %v6610, %v6605
    %v6612 = vadd.f32 %v6611, %v6606
    %6613 = vadd.xlane.f32.xlu0 %v6612
    %v6614 = vpop.xlane.xlu0 %6613
    %v6615 = vmul.f32 %v6599, 0.0015432099
    %v6616 = vmul.f32 %v6614, 0.0015432099
    %v6617 = vmul.f32 %v6615, %v6615
    %v6618 = vsub.f32 %v6616, %v6617
    %v6619 = vmax.f32 %v6618, 0.0
    %v6620 = vsub.f32 %v6578, %v6615
    %v6621 = vsub.f32 %v6579, %v6615
    %v6622 = vsub.f32 %v6580, %v6615
    %v6623 = vsub.f32 %v6581, %v6615
    %v6624 = vsub.f32 %v6582, %v6615
    %v6625 = vsub.f32 %v6583, %v6615
    %v6626 = vsub.f32 %v6584, %v6615
    %v6627 = vadd.f32 %v6619, 1e-05
    %v6628 = vrsqrt.pop %v6627
    %v6629 = vmul.f32 %v6620, %v6628
    %v6630 = vmul.f32 %v6621, %v6628
    %v6631 = vmul.f32 %v6622, %v6628
    %v6632 = vmul.f32 %v6623, %v6628
    %v6633 = vmul.f32 %v6624, %v6628
    %v6634 = vmul.f32 %v6625, %v6628
    %v6635 = vmul.f32 %v6626, %v6628
    %v6636 = vld [vmem:[%s7] sm:$0xff]
    %6638 = vset.pattern.permute.xlu0 0
    %6639 = vperm.xlu0 %6638, %v6636
    %v6640 = vpop.permute.xlu0 %6639
    %v6642 = vmul.f32 %v6629, %v6640
    %v6643 = vmul.f32 %v6630, %v6640
    %v6644 = vmul.f32 %v6631, %v6640
    %v6645 = vmul.f32 %v6632, %v6640
    %v6646 = vmul.f32 %v6633, %v6640
    %v6647 = vmul.f32 %v6634, %v6640
    %v6648 = vmul.f32 %v6635, %v6640
    %v6649 = vld [vmem:[%s8] sm:$0xff]
    %6651 = vset.pattern.permute.xlu0 0
    %6652 = vperm.xlu0 %6651, %v6649
    %v6653 = vpop.permute.xlu0 %6652
    %v6655 = vadd.f32 %v6642, %v6653
    %v6656 = vadd.f32 %v6643, %v6653
    %v6657 = vadd.f32 %v6644, %v6653
    %v6658 = vadd.f32 %v6645, %v6653
    %v6659 = vadd.f32 %v6646, %v6653
    %v6660 = vadd.f32 %v6647, %v6653
    %v6661 = vadd.f32 %v6648, %v6653
    %6662 = vst [vmem:[#allocation3] sm:$0xff] %v6655
    %6663 = vst [vmem:[#allocation3 + $0x8] sm:$0xff] %v6656
    %6664 = vst [vmem:[#allocation3 + $0x10] sm:$0xff] %v6657
    %6665 = vst [vmem:[#allocation3 + $0x18] sm:$0xff] %v6658
    %6666 = vst [vmem:[#allocation3 + $0x20] sm:$0xff] %v6659
    %6667 = vst [vmem:[#allocation3 + $0x28] sm:$0xff] %v6660
    %6668 = vst [vmem:[#allocation3 + $0x30] sm:$0xff] %v6661
    // Predicated region
    $region42: #{tpu_custom_call.1} parent=1 // pred_check
      _
    $region43: #{tpu_custom_call.1} parent=1 // pred_check_branch
      %6670 = sbr.rel (0) target = $region45
    $region44: #{tpu_custom_call.1} parent=1 // pred_region
      %s6672 = ssub.s32 896, 896
      %6673 = vsyncadd [#allocation4], %s6672
      %s6675 = sshll.u32 [#allocation3], 4
      %s6676 = int_to_ptr.vmem [resolvable:$true] %s6675
      %6678 = dma.vmem_to_hbm [thread:$0]  %s6676, 896, %s10, [#allocation4]
    $region45: #{tpu_custom_call.1} parent=1 // pred_fallthru
      _
    // Predicated region
    $region46: #{tpu_custom_call.1} parent=1 // pred_check
      _
    $region47: #{tpu_custom_call.1} parent=1 // pred_check_branch
      %6680 = sbr.rel (0) target = $region49
    $region48: #{tpu_custom_call.1} parent=1 // pred_region
      %6681 = dma.done [#allocation4], 896
    $region49: #{tpu_custom_call.1} parent=1 // pred_fallthru
      _
    %6682 = vsyncpa [#allocation4], 1

</llo_original>
